<compile_context>
chip_gen: v7x
topology: tpu7x:2x2x1
jax: 0.10.0
libtpu: 0.0.40
codegen_flags: <defaults>
</compile_context>

<pallas_src>
import numpy as np
import jax
import jax.numpy as jnp
from jax import lax
from jax.experimental import pallas as pl
from jax.experimental.pallas import tpu as pltpu

KH = KW = 5
PAD = 2
CPAD = 8          # channel rows in the flat buffer (sublane-aligned; Cin <= CPAD)


def _bilinear_matrix(n_in: int, n_out: int) -> np.ndarray:
    """1-D bilinear interpolation matrix, align_corners=True (nn.UpsamplingBilinear2d)."""
    M = np.zeros((n_out, n_in), dtype=np.float32)
    if n_out == 1 or n_in == 1:
        M[:, 0] = 1.0
        return M
    scale = (n_in - 1) / (n_out - 1)
    for i in range(n_out):
        src = i * scale
        i0 = min(int(np.floor(src)), n_in - 1)
        i1 = min(i0 + 1, n_in - 1)
        f = src - i0
        M[i, i0] += 1.0 - f
        M[i, i1] += f
    return M


def _round_up(v, m):
    return (v + m - 1) // m * m


def _make_kernel(H, W, Cin, Cout):
    H2, W2 = 2 * H, 2 * W
    WROW = W2 + 2 * PAD                  # row stride of the flat zero-padded image (36)
    H2P = H2 + 2 * PAD                   # padded image rows (36)
    PIMG = H2P * WROW                    # flat padded image length (1296)
    NQ = H2 * WROW                       # flat output length per channel (1152 = 9*128)
    MAXSH = (KH - 1) * WROW + (KW - 1)   # largest tap shift into the flat buffer
    FW = _round_up(MAXSH + NQ, 128)      # flat buffer width (zero tail beyond PIMG)

    def kernel(x_ref, kron_ref, wtap_ref, shift_ref, o_ref, fbuf_ref):
        # x_ref:     (1, Cin, H*W)      current batch element, spatial flattened (lane axis)
        # kron_ref:  (H*W, PIMG)        pad-folded bilinear-upsample kron matrix (constant)
        # wtap_ref:  (KH*KW, Cout, CPAD) per-tap conv weights, BN scale folded, zero-padded chans
        # shift_ref: (Cout, 1)          folded BN shift
        # o_ref:     (1, Cout, NQ)      flat output (h2*WROW + w2 on lanes)
        # fbuf_ref:  (CPAD, FW)         flat zero-padded upsampled image (scratch)

        # Re-zero the whole (small, 45 KB) buffer every step: the zero tail (lanes >= PIMG) and
        # the unused channel rows (Cin..CPAD-1) must be 0 on every core under megacore sharding.
        fbuf_ref[...] = jnp.zeros_like(fbuf_ref)

        # Upsample (align_corners bilinear x2) + conv zero-padding for ALL channels as one
        # matmul; the result is already in the flat layout -> single aligned store.
        up = jnp.dot(x_ref[0], kron_ref[...],
                     preferred_element_type=jnp.float32)              # (Cin, PIMG)
        fbuf_ref[pl.ds(0, Cin), pl.ds(0, PIMG)] = up

        # Fused 5x5 conv (+ folded BN scale): 25 per-tap dots accumulated in registers from
        # lane-shifted windows of the flat buffer (no materialized im2col).
        acc = jnp.broadcast_to(shift_ref[...], (Cout, NQ))            # start from BN shift
        for kh in range(KH):
            for kw in range(KW):
                t = kh * KW + kw
                acc = acc + jnp.dot(wtap_ref[t],
                                    fbuf_ref[:, pl.ds(kh * WROW + kw, NQ)],
                                    preferred_element_type=jnp.float32)
        o_ref[0] = jnp.maximum(acc, 0.0).astype(o_ref.dtype)

    return kernel, H2, W2, WROW, H2P, PIMG, NQ, FW


def upsampleconvolution_forward(x_nchw, w_oihw, bn_gamma, bn_beta, bn_mean, bn_var, eps=1e-5):
    """x_nchw: (N, Cin, H, W) float32.  Returns (N, Cout, 2H, 2W) float32 (NCHW)."""
    N, Cin, H, W = x_nchw.shape
    Cout = w_oihw.shape[0]
    assert Cin <= CPAD, "kernel assumes Cin <= 8 (padded channel rows)"
    kernel, H2, W2, WROW, H2P, PIMG, NQ, FW = _make_kernel(H, W, Cin, Cout)

    # Pad-folded 1-D bilinear matrices -> single kron upsample+pad operator (trace-time numpy).
    mh = _bilinear_matrix(H, H2)                                   # (H2, H)
    mw = _bilinear_matrix(W, W2)                                   # (W2, W)
    mh_pad = np.zeros((H2P, H), np.float32); mh_pad[PAD:PAD + H2] = mh
    mw_pad = np.zeros((WROW, W), np.float32); mw_pad[PAD:PAD + W2] = mw
    kron_t = jnp.asarray(np.kron(mh_pad, mw_pad).T)                # (H*W, PIMG)

    # Fold eval-mode BatchNorm into conv weights (scale) + per-channel shift.
    inv = (bn_gamma / jnp.sqrt(bn_var + eps)).astype(jnp.float32)  # (Cout,)
    shift = (bn_beta - bn_mean * inv).reshape(Cout, 1).astype(jnp.float32)

    # (Cout, Cin, KH, KW) -> per-tap (Cout, CPAD) blocks, zero-padded channels, BN scale folded.
    w_hwio = jnp.transpose(w_oihw, (2, 3, 1, 0)).astype(jnp.float32)        # (KH, KW, Cin, Cout)
    w_pad = jnp.zeros((KH, KW, CPAD, Cout), jnp.float32).at[:, :, :Cin, :].set(w_hwio)
    wtap = (jnp.transpose(w_pad, (0, 1, 3, 2)).reshape(KH * KW, Cout, CPAD)
            * inv[None, :, None])                                           # (25, Cout, CPAD)

    x_flat = x_nchw.astype(jnp.float32).reshape(N, Cin, H * W)      # free contiguous reshape

    out_flat = pl.pallas_call(
        kernel,
        out_shape=jax.ShapeDtypeStruct((N, Cout, NQ), jnp.float32),
        grid_spec=pltpu.PrefetchScalarGridSpec(
            num_scalar_prefetch=0,
            grid=(N,),
            in_specs=[
                pl.BlockSpec((1, Cin, H * W), lambda n: (n, 0, 0)),
                pl.BlockSpec((H * W, PIMG), lambda n: (0, 0)),
                pl.BlockSpec((KH * KW, Cout, CPAD), lambda n: (0, 0, 0)),
                pl.BlockSpec((Cout, 1), lambda n: (0, 0)),
            ],
            out_specs=pl.BlockSpec((1, Cout, NQ), lambda n: (n, 0, 0)),
            scratch_shapes=[
                pltpu.VMEM((CPAD, FW), jnp.float32),    # flat padded image buffer (~45 KB)
            ],
        ),
        compiler_params=pltpu.CompilerParams(dimension_semantics=("parallel",)),
    )(x_flat, kron_t, wtap, shift)

    # Wrapper-side layout plumbing only: drop the per-row pad columns -> NCHW.
    return out_flat.reshape(N, Cout, H2, WROW)[:, :, :, :W2]


def _reference_forward(x_nchw, w_oihw, bn_gamma, bn_beta, bn_mean, bn_var, eps=1e-5):
    """Pure-JAX reference (same semantics) for correctness checking."""
    N, Cin, H, W = x_nchw.shape
    H2, W2 = 2 * H, 2 * W
    Mh = jnp.asarray(_bilinear_matrix(H, H2))
    Mw = jnp.asarray(_bilinear_matrix(W, W2))
    up = jnp.einsum('Hh,Ww,nchw->ncHW', Mh, Mw, x_nchw)
    conv = lax.conv_general_dilated(
        up, w_oihw, window_strides=(1, 1), padding=[(PAD, PAD), (PAD, PAD)],
        dimension_numbers=('NCHW', 'OIHW', 'NCHW'))
    inv = bn_gamma / jnp.sqrt(bn_var + eps)
    y = conv * inv[None, :, None, None] + (bn_beta - bn_mean * inv)[None, :, None, None]
    return jnp.maximum(y, 0.0)


if __name__ == "__main__":
    key = jax.random.PRNGKey(0)
    k_x, k_w, k_g, k_b, k_m, k_v = jax.random.split(key, 6)

    N, Cin, Cout, H, W = 2, 4, 8, 16, 16
    x = jax.random.normal(k_x, (N, Cin, H, W), dtype=jnp.float32)

    # Conv2d(in=4, out=8, kernel=5, padding=2, bias=False) weight
    fan_in = Cin * KH * KW
    w = jax.random.normal(k_w, (Cout, Cin, KH, KW), dtype=jnp.float32) / np.sqrt(fan_in)

    # BatchNorm2d(out_dim) params / running stats (eval-mode semantics)
    gamma = 0.5 + jax.random.uniform(k_g, (Cout,), dtype=jnp.float32)
    beta = 0.1 * jax.random.normal(k_b, (Cout,), dtype=jnp.float32)
    r_mean = 0.1 * jax.random.normal(k_m, (Cout,), dtype=jnp.float32)
    r_var = 0.5 + jax.random.uniform(k_v, (Cout,), dtype=jnp.float32)

    out = upsampleconvolution_forward(x, w, gamma, beta, r_mean, r_var)
    out = jax.block_until_ready(out)

    ref = _reference_forward(x, w, gamma, beta, r_mean, r_var)
    assert out.shape == (N, Cout, 2 * H, 2 * W), out.shape
    assert jnp.allclose(out, ref, atol=1e-4, rtol=1e-4), float(jnp.max(jnp.abs(out - ref)))

    print("KERNEL_OK")
</pallas_src>

<mosaic_0001>
module attributes {stable_mosaic.version = 11 : i64} {
  func.func @kernel(%arg0: i32, %arg1: memref<1x4x256xf32, #tpu.memory_space<vmem>>, %arg2: memref<256x1296xf32, #tpu.memory_space<vmem>>, %arg3: memref<25x8x8xf32, #tpu.memory_space<vmem>>, %arg4: memref<8x1xf32, #tpu.memory_space<vmem>>, %arg5: memref<1x8x1152xf32, #tpu.memory_space<vmem>>, %arg6: memref<8x1408xf32, #tpu.memory_space<vmem>>) attributes {dimension_semantics = [#tpu.dimension_semantics<parallel>], iteration_bounds = array<i64: 2>, scalar_prefetch = 0 : i64, scratch_operands = 1 : i64, tpu.core_type = #tpu.core_type<tc>, window_params = [{transform_indices = @transform_0, window_bounds = array<i64: 1, 4, 256>}, {pipeline_mode = #tpu.pipeline_mode<synchronous>, transform_indices = @transform_1, window_bounds = array<i64: 256, 1296>}, {pipeline_mode = #tpu.pipeline_mode<synchronous>, transform_indices = @transform_2, window_bounds = array<i64: 25, 8, 8>}, {pipeline_mode = #tpu.pipeline_mode<synchronous>, transform_indices = @transform_3, window_bounds = array<i64: 8, 1>}, {transform_indices = @transform_4, window_bounds = array<i64: 1, 8, 1152>}]} {
    %cst = arith.constant 0.000000e+00 : f32
    %0 = vector.broadcast %cst : f32 to vector<8x1408xf32>
    %c0 = arith.constant 0 : index
    %c0_0 = arith.constant 0 : index
    %1 = vector.load %arg6[%c0, %c0_0] : memref<8x1408xf32, #tpu.memory_space<vmem>>, vector<8x1408xf32>
    tpu.vector_store %arg6[%c0, %c0_0], %0 {strides = array<i32>} : memref<8x1408xf32, #tpu.memory_space<vmem>>, vector<8x1408xf32>,
    %c0_1 = arith.constant 0 : index
    %c0_2 = arith.constant 0 : index
    %c0_3 = arith.constant 0 : index
    %2 = vector.load %arg1[%c0_1, %c0_2, %c0_3] : memref<1x4x256xf32, #tpu.memory_space<vmem>>, vector<1x4x256xf32>
    %3 = vector.shape_cast %2 : vector<1x4x256xf32> to vector<4x256xf32>
    %c0_4 = arith.constant 0 : index
    %c0_5 = arith.constant 0 : index
    %4 = vector.load %arg2[%c0_4, %c0_5] : memref<256x1296xf32, #tpu.memory_space<vmem>>, vector<256x1296xf32>
    %cst_6 = arith.constant dense<0.000000e+00> : vector<4x1296xf32>
    %5 = tpu.matmul %3, %4, %cst_6 {dimension_numbers = #tpu.dot_dimension_numbers<[1], [0], [0], [1], [0, 0, 1, 1], [], []>} : vector<4x256xf32>, vector<256x1296xf32>, vector<4x1296xf32> -> vector<4x1296xf32>
    %c0_7 = arith.constant 0 : index
    %c0_8 = arith.constant 0 : index
    %6 = vector.load %arg6[%c0_7, %c0_8] : memref<8x1408xf32, #tpu.memory_space<vmem>>, vector<4x1296xf32>
    tpu.vector_store %arg6[%c0_7, %c0_8], %5 {strides = array<i32>} : memref<8x1408xf32, #tpu.memory_space<vmem>>, vector<4x1296xf32>,
    %c0_9 = arith.constant 0 : index
    %c0_10 = arith.constant 0 : index
    %7 = vector.load %arg4[%c0_9, %c0_10] : memref<8x1xf32, #tpu.memory_space<vmem>>, vector<8x1xf32>
    %8 = vector.shape_cast %7 : vector<8x1xf32> to vector<8x1xf32>
    %9 = vector.broadcast %8 : vector<8x1xf32> to vector<8x1152xf32>
    %c0_11 = arith.constant 0 : index
    %c0_12 = arith.constant 0 : index
    %c0_13 = arith.constant 0 : index
    %10 = vector.load %arg3[%c0_11, %c0_12, %c0_13] : memref<25x8x8xf32, #tpu.memory_space<vmem>>, vector<1x8x8xf32>
    %11 = vector.shape_cast %10 : vector<1x8x8xf32> to vector<8x8xf32>
    %c0_14 = arith.constant 0 : index
    %c0_15 = arith.constant 0 : index
    %12 = vector.load %arg6[%c0_14, %c0_15] : memref<8x1408xf32, #tpu.memory_space<vmem>>, vector<8x1152xf32>
    %cst_16 = arith.constant dense<0.000000e+00> : vector<8x1152xf32>
    %13 = tpu.matmul %11, %12, %cst_16 {dimension_numbers = #tpu.dot_dimension_numbers<[1], [0], [0], [1], [0, 0, 1, 1], [], []>} : vector<8x8xf32>, vector<8x1152xf32>, vector<8x1152xf32> -> vector<8x1152xf32>
    %14 = arith.addf %9, %13 : vector<8x1152xf32>
    %c1 = arith.constant 1 : index
    %c0_17 = arith.constant 0 : index
    %c0_18 = arith.constant 0 : index
    %15 = vector.load %arg3[%c1, %c0_17, %c0_18] : memref<25x8x8xf32, #tpu.memory_space<vmem>>, vector<1x8x8xf32>
    %16 = vector.shape_cast %15 : vector<1x8x8xf32> to vector<8x8xf32>
    %c0_19 = arith.constant 0 : index
    %c1_20 = arith.constant 1 : index
    %17 = vector.load %arg6[%c0_19, %c1_20] : memref<8x1408xf32, #tpu.memory_space<vmem>>, vector<8x1152xf32>
    %cst_21 = arith.constant dense<0.000000e+00> : vector<8x1152xf32>
    %18 = tpu.matmul %16, %17, %cst_21 {dimension_numbers = #tpu.dot_dimension_numbers<[1], [0], [0], [1], [0, 0, 1, 1], [], []>} : vector<8x8xf32>, vector<8x1152xf32>, vector<8x1152xf32> -> vector<8x1152xf32>
    %19 = arith.addf %14, %18 : vector<8x1152xf32>
    %c2 = arith.constant 2 : index
    %c0_22 = arith.constant 0 : index
    %c0_23 = arith.constant 0 : index
    %20 = vector.load %arg3[%c2, %c0_22, %c0_23] : memref<25x8x8xf32, #tpu.memory_space<vmem>>, vector<1x8x8xf32>
    %21 = vector.shape_cast %20 : vector<1x8x8xf32> to vector<8x8xf32>
    %c0_24 = arith.constant 0 : index
    %c2_25 = arith.constant 2 : index
    %22 = vector.load %arg6[%c0_24, %c2_25] : memref<8x1408xf32, #tpu.memory_space<vmem>>, vector<8x1152xf32>
    %cst_26 = arith.constant dense<0.000000e+00> : vector<8x1152xf32>
    %23 = tpu.matmul %21, %22, %cst_26 {dimension_numbers = #tpu.dot_dimension_numbers<[1], [0], [0], [1], [0, 0, 1, 1], [], []>} : vector<8x8xf32>, vector<8x1152xf32>, vector<8x1152xf32> -> vector<8x1152xf32>
    %24 = arith.addf %19, %23 : vector<8x1152xf32>
    %c3 = arith.constant 3 : index
    %c0_27 = arith.constant 0 : index
    %c0_28 = arith.constant 0 : index
    %25 = vector.load %arg3[%c3, %c0_27, %c0_28] : memref<25x8x8xf32, #tpu.memory_space<vmem>>, vector<1x8x8xf32>
    %26 = vector.shape_cast %25 : vector<1x8x8xf32> to vector<8x8xf32>
    %c0_29 = arith.constant 0 : index
    %c3_30 = arith.constant 3 : index
    %27 = vector.load %arg6[%c0_29, %c3_30] : memref<8x1408xf32, #tpu.memory_space<vmem>>, vector<8x1152xf32>
    %cst_31 = arith.constant dense<0.000000e+00> : vector<8x1152xf32>
    %28 = tpu.matmul %26, %27, %cst_31 {dimension_numbers = #tpu.dot_dimension_numbers<[1], [0], [0], [1], [0, 0, 1, 1], [], []>} : vector<8x8xf32>, vector<8x1152xf32>, vector<8x1152xf32> -> vector<8x1152xf32>
    %29 = arith.addf %24, %28 : vector<8x1152xf32>
    %c4 = arith.constant 4 : index
    %c0_32 = arith.constant 0 : index
    %c0_33 = arith.constant 0 : index
    %30 = vector.load %arg3[%c4, %c0_32, %c0_33] : memref<25x8x8xf32, #tpu.memory_space<vmem>>, vector<1x8x8xf32>
    %31 = vector.shape_cast %30 : vector<1x8x8xf32> to vector<8x8xf32>
    %c0_34 = arith.constant 0 : index
    %c4_35 = arith.constant 4 : index
    %32 = vector.load %arg6[%c0_34, %c4_35] : memref<8x1408xf32, #tpu.memory_space<vmem>>, vector<8x1152xf32>
    %cst_36 = arith.constant dense<0.000000e+00> : vector<8x1152xf32>
    %33 = tpu.matmul %31, %32, %cst_36 {dimension_numbers = #tpu.dot_dimension_numbers<[1], [0], [0], [1], [0, 0, 1, 1], [], []>} : vector<8x8xf32>, vector<8x1152xf32>, vector<8x1152xf32> -> vector<8x1152xf32>
    %34 = arith.addf %29, %33 : vector<8x1152xf32>
    %c5 = arith.constant 5 : index
    %c0_37 = arith.constant 0 : index
    %c0_38 = arith.constant 0 : index
    %35 = vector.load %arg3[%c5, %c0_37, %c0_38] : memref<25x8x8xf32, #tpu.memory_space<vmem>>, vector<1x8x8xf32>
    %36 = vector.shape_cast %35 : vector<1x8x8xf32> to vector<8x8xf32>
    %c0_39 = arith.constant 0 : index
    %c36 = arith.constant 36 : index
    %37 = vector.load %arg6[%c0_39, %c36] : memref<8x1408xf32, #tpu.memory_space<vmem>>, vector<8x1152xf32>
    %cst_40 = arith.constant dense<0.000000e+00> : vector<8x1152xf32>
    %38 = tpu.matmul %36, %37, %cst_40 {dimension_numbers = #tpu.dot_dimension_numbers<[1], [0], [0], [1], [0, 0, 1, 1], [], []>} : vector<8x8xf32>, vector<8x1152xf32>, vector<8x1152xf32> -> vector<8x1152xf32>
    %39 = arith.addf %34, %38 : vector<8x1152xf32>
    %c6 = arith.constant 6 : index
    %c0_41 = arith.constant 0 : index
    %c0_42 = arith.constant 0 : index
    %40 = vector.load %arg3[%c6, %c0_41, %c0_42] : memref<25x8x8xf32, #tpu.memory_space<vmem>>, vector<1x8x8xf32>
    %41 = vector.shape_cast %40 : vector<1x8x8xf32> to vector<8x8xf32>
    %c0_43 = arith.constant 0 : index
    %c37 = arith.constant 37 : index
    %42 = vector.load %arg6[%c0_43, %c37] : memref<8x1408xf32, #tpu.memory_space<vmem>>, vector<8x1152xf32>
    %cst_44 = arith.constant dense<0.000000e+00> : vector<8x1152xf32>
    %43 = tpu.matmul %41, %42, %cst_44 {dimension_numbers = #tpu.dot_dimension_numbers<[1], [0], [0], [1], [0, 0, 1, 1], [], []>} : vector<8x8xf32>, vector<8x1152xf32>, vector<8x1152xf32> -> vector<8x1152xf32>
    %44 = arith.addf %39, %43 : vector<8x1152xf32>
    %c7 = arith.constant 7 : index
    %c0_45 = arith.constant 0 : index
    %c0_46 = arith.constant 0 : index
    %45 = vector.load %arg3[%c7, %c0_45, %c0_46] : memref<25x8x8xf32, #tpu.memory_space<vmem>>, vector<1x8x8xf32>
    %46 = vector.shape_cast %45 : vector<1x8x8xf32> to vector<8x8xf32>
    %c0_47 = arith.constant 0 : index
    %c38 = arith.constant 38 : index
    %47 = vector.load %arg6[%c0_47, %c38] : memref<8x1408xf32, #tpu.memory_space<vmem>>, vector<8x1152xf32>
    %cst_48 = arith.constant dense<0.000000e+00> : vector<8x1152xf32>
    %48 = tpu.matmul %46, %47, %cst_48 {dimension_numbers = #tpu.dot_dimension_numbers<[1], [0], [0], [1], [0, 0, 1, 1], [], []>} : vector<8x8xf32>, vector<8x1152xf32>, vector<8x1152xf32> -> vector<8x1152xf32>
    %49 = arith.addf %44, %48 : vector<8x1152xf32>
    %c8 = arith.constant 8 : index
    %c0_49 = arith.constant 0 : index
    %c0_50 = arith.constant 0 : index
    %50 = vector.load %arg3[%c8, %c0_49, %c0_50] : memref<25x8x8xf32, #tpu.memory_space<vmem>>, vector<1x8x8xf32>
    %51 = vector.shape_cast %50 : vector<1x8x8xf32> to vector<8x8xf32>
    %c0_51 = arith.constant 0 : index
    %c39 = arith.constant 39 : index
    %52 = vector.load %arg6[%c0_51, %c39] : memref<8x1408xf32, #tpu.memory_space<vmem>>, vector<8x1152xf32>
    %cst_52 = arith.constant dense<0.000000e+00> : vector<8x1152xf32>
    %53 = tpu.matmul %51, %52, %cst_52 {dimension_numbers = #tpu.dot_dimension_numbers<[1], [0], [0], [1], [0, 0, 1, 1], [], []>} : vector<8x8xf32>, vector<8x1152xf32>, vector<8x1152xf32> -> vector<8x1152xf32>
    %54 = arith.addf %49, %53 : vector<8x1152xf32>
    %c9 = arith.constant 9 : index
    %c0_53 = arith.constant 0 : index
    %c0_54 = arith.constant 0 : index
    %55 = vector.load %arg3[%c9, %c0_53, %c0_54] : memref<25x8x8xf32, #tpu.memory_space<vmem>>, vector<1x8x8xf32>
    %56 = vector.shape_cast %55 : vector<1x8x8xf32> to vector<8x8xf32>
    %c0_55 = arith.constant 0 : index
    %c40 = arith.constant 40 : index
    %57 = vector.load %arg6[%c0_55, %c40] : memref<8x1408xf32, #tpu.memory_space<vmem>>, vector<8x1152xf32>
    %cst_56 = arith.constant dense<0.000000e+00> : vector<8x1152xf32>
    %58 = tpu.matmul %56, %57, %cst_56 {dimension_numbers = #tpu.dot_dimension_numbers<[1], [0], [0], [1], [0, 0, 1, 1], [], []>} : vector<8x8xf32>, vector<8x1152xf32>, vector<8x1152xf32> -> vector<8x1152xf32>
    %59 = arith.addf %54, %58 : vector<8x1152xf32>
    %c10 = arith.constant 10 : index
    %c0_57 = arith.constant 0 : index
    %c0_58 = arith.constant 0 : index
    %60 = vector.load %arg3[%c10, %c0_57, %c0_58] : memref<25x8x8xf32, #tpu.memory_space<vmem>>, vector<1x8x8xf32>
    %61 = vector.shape_cast %60 : vector<1x8x8xf32> to vector<8x8xf32>
    %c0_59 = arith.constant 0 : index
    %c72 = arith.constant 72 : index
    %62 = vector.load %arg6[%c0_59, %c72] : memref<8x1408xf32, #tpu.memory_space<vmem>>, vector<8x1152xf32>
    %cst_60 = arith.constant dense<0.000000e+00> : vector<8x1152xf32>
    %63 = tpu.matmul %61, %62, %cst_60 {dimension_numbers = #tpu.dot_dimension_numbers<[1], [0], [0], [1], [0, 0, 1, 1], [], []>} : vector<8x8xf32>, vector<8x1152xf32>, vector<8x1152xf32> -> vector<8x1152xf32>
    %64 = arith.addf %59, %63 : vector<8x1152xf32>
    %c11 = arith.constant 11 : index
    %c0_61 = arith.constant 0 : index
    %c0_62 = arith.constant 0 : index
    %65 = vector.load %arg3[%c11, %c0_61, %c0_62] : memref<25x8x8xf32, #tpu.memory_space<vmem>>, vector<1x8x8xf32>
    %66 = vector.shape_cast %65 : vector<1x8x8xf32> to vector<8x8xf32>
    %c0_63 = arith.constant 0 : index
    %c73 = arith.constant 73 : index
    %67 = vector.load %arg6[%c0_63, %c73] : memref<8x1408xf32, #tpu.memory_space<vmem>>, vector<8x1152xf32>
    %cst_64 = arith.constant dense<0.000000e+00> : vector<8x1152xf32>
    %68 = tpu.matmul %66, %67, %cst_64 {dimension_numbers = #tpu.dot_dimension_numbers<[1], [0], [0], [1], [0, 0, 1, 1], [], []>} : vector<8x8xf32>, vector<8x1152xf32>, vector<8x1152xf32> -> vector<8x1152xf32>
    %69 = arith.addf %64, %68 : vector<8x1152xf32>
    %c12 = arith.constant 12 : index
    %c0_65 = arith.constant 0 : index
    %c0_66 = arith.constant 0 : index
    %70 = vector.load %arg3[%c12, %c0_65, %c0_66] : memref<25x8x8xf32, #tpu.memory_space<vmem>>, vector<1x8x8xf32>
    %71 = vector.shape_cast %70 : vector<1x8x8xf32> to vector<8x8xf32>
    %c0_67 = arith.constant 0 : index
    %c74 = arith.constant 74 : index
    %72 = vector.load %arg6[%c0_67, %c74] : memref<8x1408xf32, #tpu.memory_space<vmem>>, vector<8x1152xf32>
    %cst_68 = arith.constant dense<0.000000e+00> : vector<8x1152xf32>
    %73 = tpu.matmul %71, %72, %cst_68 {dimension_numbers = #tpu.dot_dimension_numbers<[1], [0], [0], [1], [0, 0, 1, 1], [], []>} : vector<8x8xf32>, vector<8x1152xf32>, vector<8x1152xf32> -> vector<8x1152xf32>
    %74 = arith.addf %69, %73 : vector<8x1152xf32>
    %c13 = arith.constant 13 : index
    %c0_69 = arith.constant 0 : index
    %c0_70 = arith.constant 0 : index
    %75 = vector.load %arg3[%c13, %c0_69, %c0_70] : memref<25x8x8xf32, #tpu.memory_space<vmem>>, vector<1x8x8xf32>
    %76 = vector.shape_cast %75 : vector<1x8x8xf32> to vector<8x8xf32>
    %c0_71 = arith.constant 0 : index
    %c75 = arith.constant 75 : index
    %77 = vector.load %arg6[%c0_71, %c75] : memref<8x1408xf32, #tpu.memory_space<vmem>>, vector<8x1152xf32>
    %cst_72 = arith.constant dense<0.000000e+00> : vector<8x1152xf32>
    %78 = tpu.matmul %76, %77, %cst_72 {dimension_numbers = #tpu.dot_dimension_numbers<[1], [0], [0], [1], [0, 0, 1, 1], [], []>} : vector<8x8xf32>, vector<8x1152xf32>, vector<8x1152xf32> -> vector<8x1152xf32>
    %79 = arith.addf %74, %78 : vector<8x1152xf32>
    %c14 = arith.constant 14 : index
    %c0_73 = arith.constant 0 : index
    %c0_74 = arith.constant 0 : index
    %80 = vector.load %arg3[%c14, %c0_73, %c0_74] : memref<25x8x8xf32, #tpu.memory_space<vmem>>, vector<1x8x8xf32>
    %81 = vector.shape_cast %80 : vector<1x8x8xf32> to vector<8x8xf32>
    %c0_75 = arith.constant 0 : index
    %c76 = arith.constant 76 : index
    %82 = vector.load %arg6[%c0_75, %c76] : memref<8x1408xf32, #tpu.memory_space<vmem>>, vector<8x1152xf32>
    %cst_76 = arith.constant dense<0.000000e+00> : vector<8x1152xf32>
    %83 = tpu.matmul %81, %82, %cst_76 {dimension_numbers = #tpu.dot_dimension_numbers<[1], [0], [0], [1], [0, 0, 1, 1], [], []>} : vector<8x8xf32>, vector<8x1152xf32>, vector<8x1152xf32> -> vector<8x1152xf32>
    %84 = arith.addf %79, %83 : vector<8x1152xf32>
    %c15 = arith.constant 15 : index
    %c0_77 = arith.constant 0 : index
    %c0_78 = arith.constant 0 : index
    %85 = vector.load %arg3[%c15, %c0_77, %c0_78] : memref<25x8x8xf32, #tpu.memory_space<vmem>>, vector<1x8x8xf32>
    %86 = vector.shape_cast %85 : vector<1x8x8xf32> to vector<8x8xf32>
    %c0_79 = arith.constant 0 : index
    %c108 = arith.constant 108 : index
    %87 = vector.load %arg6[%c0_79, %c108] : memref<8x1408xf32, #tpu.memory_space<vmem>>, vector<8x1152xf32>
    %cst_80 = arith.constant dense<0.000000e+00> : vector<8x1152xf32>
    %88 = tpu.matmul %86, %87, %cst_80 {dimension_numbers = #tpu.dot_dimension_numbers<[1], [0], [0], [1], [0, 0, 1, 1], [], []>} : vector<8x8xf32>, vector<8x1152xf32>, vector<8x1152xf32> -> vector<8x1152xf32>
    %89 = arith.addf %84, %88 : vector<8x1152xf32>
    %c16 = arith.constant 16 : index
    %c0_81 = arith.constant 0 : index
    %c0_82 = arith.constant 0 : index
    %90 = vector.load %arg3[%c16, %c0_81, %c0_82] : memref<25x8x8xf32, #tpu.memory_space<vmem>>, vector<1x8x8xf32>
    %91 = vector.shape_cast %90 : vector<1x8x8xf32> to vector<8x8xf32>
    %c0_83 = arith.constant 0 : index
    %c109 = arith.constant 109 : index
    %92 = vector.load %arg6[%c0_83, %c109] : memref<8x1408xf32, #tpu.memory_space<vmem>>, vector<8x1152xf32>
    %cst_84 = arith.constant dense<0.000000e+00> : vector<8x1152xf32>
    %93 = tpu.matmul %91, %92, %cst_84 {dimension_numbers = #tpu.dot_dimension_numbers<[1], [0], [0], [1], [0, 0, 1, 1], [], []>} : vector<8x8xf32>, vector<8x1152xf32>, vector<8x1152xf32> -> vector<8x1152xf32>
    %94 = arith.addf %89, %93 : vector<8x1152xf32>
    %c17 = arith.constant 17 : index
    %c0_85 = arith.constant 0 : index
    %c0_86 = arith.constant 0 : index
    %95 = vector.load %arg3[%c17, %c0_85, %c0_86] : memref<25x8x8xf32, #tpu.memory_space<vmem>>, vector<1x8x8xf32>
    %96 = vector.shape_cast %95 : vector<1x8x8xf32> to vector<8x8xf32>
    %c0_87 = arith.constant 0 : index
    %c110 = arith.constant 110 : index
    %97 = vector.load %arg6[%c0_87, %c110] : memref<8x1408xf32, #tpu.memory_space<vmem>>, vector<8x1152xf32>
    %cst_88 = arith.constant dense<0.000000e+00> : vector<8x1152xf32>
    %98 = tpu.matmul %96, %97, %cst_88 {dimension_numbers = #tpu.dot_dimension_numbers<[1], [0], [0], [1], [0, 0, 1, 1], [], []>} : vector<8x8xf32>, vector<8x1152xf32>, vector<8x1152xf32> -> vector<8x1152xf32>
    %99 = arith.addf %94, %98 : vector<8x1152xf32>
    %c18 = arith.constant 18 : index
    %c0_89 = arith.constant 0 : index
    %c0_90 = arith.constant 0 : index
    %100 = vector.load %arg3[%c18, %c0_89, %c0_90] : memref<25x8x8xf32, #tpu.memory_space<vmem>>, vector<1x8x8xf32>
    %101 = vector.shape_cast %100 : vector<1x8x8xf32> to vector<8x8xf32>
    %c0_91 = arith.constant 0 : index
    %c111 = arith.constant 111 : index
    %102 = vector.load %arg6[%c0_91, %c111] : memref<8x1408xf32, #tpu.memory_space<vmem>>, vector<8x1152xf32>
    %cst_92 = arith.constant dense<0.000000e+00> : vector<8x1152xf32>
    %103 = tpu.matmul %101, %102, %cst_92 {dimension_numbers = #tpu.dot_dimension_numbers<[1], [0], [0], [1], [0, 0, 1, 1], [], []>} : vector<8x8xf32>, vector<8x1152xf32>, vector<8x1152xf32> -> vector<8x1152xf32>
    %104 = arith.addf %99, %103 : vector<8x1152xf32>
    %c19 = arith.constant 19 : index
    %c0_93 = arith.constant 0 : index
    %c0_94 = arith.constant 0 : index
    %105 = vector.load %arg3[%c19, %c0_93, %c0_94] : memref<25x8x8xf32, #tpu.memory_space<vmem>>, vector<1x8x8xf32>
    %106 = vector.shape_cast %105 : vector<1x8x8xf32> to vector<8x8xf32>
    %c0_95 = arith.constant 0 : index
    %c112 = arith.constant 112 : index
    %107 = vector.load %arg6[%c0_95, %c112] : memref<8x1408xf32, #tpu.memory_space<vmem>>, vector<8x1152xf32>
    %cst_96 = arith.constant dense<0.000000e+00> : vector<8x1152xf32>
    %108 = tpu.matmul %106, %107, %cst_96 {dimension_numbers = #tpu.dot_dimension_numbers<[1], [0], [0], [1], [0, 0, 1, 1], [], []>} : vector<8x8xf32>, vector<8x1152xf32>, vector<8x1152xf32> -> vector<8x1152xf32>
    %109 = arith.addf %104, %108 : vector<8x1152xf32>
    %c20 = arith.constant 20 : index
    %c0_97 = arith.constant 0 : index
    %c0_98 = arith.constant 0 : index
    %110 = vector.load %arg3[%c20, %c0_97, %c0_98] : memref<25x8x8xf32, #tpu.memory_space<vmem>>, vector<1x8x8xf32>
    %111 = vector.shape_cast %110 : vector<1x8x8xf32> to vector<8x8xf32>
    %c0_99 = arith.constant 0 : index
    %c144 = arith.constant 144 : index
    %112 = vector.load %arg6[%c0_99, %c144] : memref<8x1408xf32, #tpu.memory_space<vmem>>, vector<8x1152xf32>
    %cst_100 = arith.constant dense<0.000000e+00> : vector<8x1152xf32>
    %113 = tpu.matmul %111, %112, %cst_100 {dimension_numbers = #tpu.dot_dimension_numbers<[1], [0], [0], [1], [0, 0, 1, 1], [], []>} : vector<8x8xf32>, vector<8x1152xf32>, vector<8x1152xf32> -> vector<8x1152xf32>
    %114 = arith.addf %109, %113 : vector<8x1152xf32>
    %c21 = arith.constant 21 : index
    %c0_101 = arith.constant 0 : index
    %c0_102 = arith.constant 0 : index
    %115 = vector.load %arg3[%c21, %c0_101, %c0_102] : memref<25x8x8xf32, #tpu.memory_space<vmem>>, vector<1x8x8xf32>
    %116 = vector.shape_cast %115 : vector<1x8x8xf32> to vector<8x8xf32>
    %c0_103 = arith.constant 0 : index
    %c145 = arith.constant 145 : index
    %117 = vector.load %arg6[%c0_103, %c145] : memref<8x1408xf32, #tpu.memory_space<vmem>>, vector<8x1152xf32>
    %cst_104 = arith.constant dense<0.000000e+00> : vector<8x1152xf32>
    %118 = tpu.matmul %116, %117, %cst_104 {dimension_numbers = #tpu.dot_dimension_numbers<[1], [0], [0], [1], [0, 0, 1, 1], [], []>} : vector<8x8xf32>, vector<8x1152xf32>, vector<8x1152xf32> -> vector<8x1152xf32>
    %119 = arith.addf %114, %118 : vector<8x1152xf32>
    %c22 = arith.constant 22 : index
    %c0_105 = arith.constant 0 : index
    %c0_106 = arith.constant 0 : index
    %120 = vector.load %arg3[%c22, %c0_105, %c0_106] : memref<25x8x8xf32, #tpu.memory_space<vmem>>, vector<1x8x8xf32>
    %121 = vector.shape_cast %120 : vector<1x8x8xf32> to vector<8x8xf32>
    %c0_107 = arith.constant 0 : index
    %c146 = arith.constant 146 : index
    %122 = vector.load %arg6[%c0_107, %c146] : memref<8x1408xf32, #tpu.memory_space<vmem>>, vector<8x1152xf32>
    %cst_108 = arith.constant dense<0.000000e+00> : vector<8x1152xf32>
    %123 = tpu.matmul %121, %122, %cst_108 {dimension_numbers = #tpu.dot_dimension_numbers<[1], [0], [0], [1], [0, 0, 1, 1], [], []>} : vector<8x8xf32>, vector<8x1152xf32>, vector<8x1152xf32> -> vector<8x1152xf32>
    %124 = arith.addf %119, %123 : vector<8x1152xf32>
    %c23 = arith.constant 23 : index
    %c0_109 = arith.constant 0 : index
    %c0_110 = arith.constant 0 : index
    %125 = vector.load %arg3[%c23, %c0_109, %c0_110] : memref<25x8x8xf32, #tpu.memory_space<vmem>>, vector<1x8x8xf32>
    %126 = vector.shape_cast %125 : vector<1x8x8xf32> to vector<8x8xf32>
    %c0_111 = arith.constant 0 : index
    %c147 = arith.constant 147 : index
    %127 = vector.load %arg6[%c0_111, %c147] : memref<8x1408xf32, #tpu.memory_space<vmem>>, vector<8x1152xf32>
    %cst_112 = arith.constant dense<0.000000e+00> : vector<8x1152xf32>
    %128 = tpu.matmul %126, %127, %cst_112 {dimension_numbers = #tpu.dot_dimension_numbers<[1], [0], [0], [1], [0, 0, 1, 1], [], []>} : vector<8x8xf32>, vector<8x1152xf32>, vector<8x1152xf32> -> vector<8x1152xf32>
    %129 = arith.addf %124, %128 : vector<8x1152xf32>
    %c24 = arith.constant 24 : index
    %c0_113 = arith.constant 0 : index
    %c0_114 = arith.constant 0 : index
    %130 = vector.load %arg3[%c24, %c0_113, %c0_114] : memref<25x8x8xf32, #tpu.memory_space<vmem>>, vector<1x8x8xf32>
    %131 = vector.shape_cast %130 : vector<1x8x8xf32> to vector<8x8xf32>
    %c0_115 = arith.constant 0 : index
    %c148 = arith.constant 148 : index
    %132 = vector.load %arg6[%c0_115, %c148] : memref<8x1408xf32, #tpu.memory_space<vmem>>, vector<8x1152xf32>
    %cst_116 = arith.constant dense<0.000000e+00> : vector<8x1152xf32>
    %133 = tpu.matmul %131, %132, %cst_116 {dimension_numbers = #tpu.dot_dimension_numbers<[1], [0], [0], [1], [0, 0, 1, 1], [], []>} : vector<8x8xf32>, vector<8x1152xf32>, vector<8x1152xf32> -> vector<8x1152xf32>
    %134 = arith.addf %129, %133 : vector<8x1152xf32>
    %cst_117 = arith.constant 0.000000e+00 : f32
    %135 = vector.broadcast %cst_117 : f32 to vector<8x1152xf32>
    %136 = arith.maximumf %134, %135 : vector<8x1152xf32>
    %c0_118 = arith.constant 0 : index
    %c0_119 = arith.constant 0 : index
    %c0_120 = arith.constant 0 : index
    %137 = vector.load %arg5[%c0_118, %c0_119, %c0_120] : memref<1x8x1152xf32, #tpu.memory_space<vmem>>, vector<1x8x1152xf32>
    %138 = vector.shape_cast %137 : vector<1x8x1152xf32> to vector<8x1152xf32>
    %139 = vector.shape_cast %136 : vector<8x1152xf32> to vector<1x8x1152xf32>
    tpu.vector_store %arg5[%c0_118, %c0_119, %c0_120], %139 {strides = array<i32>} : memref<1x8x1152xf32, #tpu.memory_space<vmem>>, vector<1x8x1152xf32>,
    return
  }
  func.func @transform_0(%arg0: i32) -> (i32, i32, i32) {
    %c0_i32 = arith.constant 0 : i32
    %c0_i32_0 = arith.constant 0 : i32
    %c0_i32_1 = arith.constant 0 : i32
    return %arg0, %c0_i32, %c0_i32_0 : i32, i32, i32
  }
  func.func @transform_1(%arg0: i32) -> (i32, i32) {
    %c0_i32 = arith.constant 0 : i32
    %c0_i32_0 = arith.constant 0 : i32
    %c0_i32_1 = arith.constant 0 : i32
    return %c0_i32, %c0_i32_0 : i32, i32
  }
  func.func @transform_2(%arg0: i32) -> (i32, i32, i32) {
    %c0_i32 = arith.constant 0 : i32
    %c0_i32_0 = arith.constant 0 : i32
    %c0_i32_1 = arith.constant 0 : i32
    %c0_i32_2 = arith.constant 0 : i32
    return %c0_i32, %c0_i32_0, %c0_i32_1 : i32, i32, i32
  }
  func.func @transform_3(%arg0: i32) -> (i32, i32) {
    %c0_i32 = arith.constant 0 : i32
    %c0_i32_0 = arith.constant 0 : i32
    %c0_i32_1 = arith.constant 0 : i32
    return %c0_i32, %c0_i32_0 : i32, i32
  }
  func.func @transform_4(%arg0: i32) -> (i32, i32, i32) {
    %c0_i32 = arith.constant 0 : i32
    %c0_i32_0 = arith.constant 0 : i32
    %c0_i32_1 = arith.constant 0 : i32
    return %arg0, %c0_i32, %c0_i32_0 : i32, i32, i32
  }
}

</mosaic_0001>

<llo_original>
// kernel: tpu_custom_call.1
$region0: #{tpu_custom_call.1}
  #allocation0 [shape = 'u32[]', space=smem, size = 0x4, offset = 0x4, fixed_abs, tag = 'smem constant byte address 0x4 - core index']
  #allocation1 [shape = 'u32[144,128]{1,0:T(1,128)}', space=vmem, size = 0x12000, scoped, tag = 'internal scratch']
  #allocation2 [shape = 'f32[8,1408]{1,0:T(8,128)}', space=vmem, size = 0xb000, scoped, tag = 'scratch operand']
  %s0 = inlined_call_operand.vmem [shape: f32[2,4,256], index: 0, kind: input, shape index: {}]
  %s1 = inlined_call_operand.vmem [shape: f32[256,1296], index: 1, kind: input, shape index: {}]
  %s2 = inlined_call_operand.vmem [shape: f32[25,8,8], index: 2, kind: input, shape index: {}]
  %s3 = inlined_call_operand.vmem [shape: f32[8,1], index: 3, kind: input, shape index: {}]
  %s4 = inlined_call_operand.hbm [shape: f32[2,8,1152], index: 4, kind: output, shape index: {}]
  %s5 = sld [smem:[#allocation0]]
  $region49: #{tpu_custom_call.1} parent=0
    _
  %s7 = ssub.s32 1, %s5
  %s8 = scalar_select 0, %s7, %s5
  $region1: #{tpu_custom_call.1} parent=0
    #allocation3 [shape = 'u8[73728]{0}', space=vmem, size = 0x12000, scoped, tag = 'output window, operand 0']
    #allocation4 [shape = 's32[2]{0}', space=sflag, size = 0x8, scoped, tag = 'scoped memory for tpu_custom_call.1']
    %9 = vsyncpa [#allocation4], 0
    %s10 = scalar_lea.sflag [#allocation4], 1
    %11 = vsyncpa %s10, 0
    loop: start=0, step=1, limit=4
    $region2: #{tpu_custom_call.1} parent=1 // loop_pre_header
      _
    $region3: #{tpu_custom_call.1} parent=1 // loop_header
      %s13 = sphi 0, %s17
      %p14 = scmp.ge.s32.totalorder %s13, 4
      %s23 = sphi 0, %s25
      %s26 = sphi 0, %s23
      %s27 = sphi 0, %s26
      %s43 = sphi 0, %s27
      %s47 = sphi 0, %s47
      %s49 = sphi 0, %s47
      %s50 = sphi 0, %s49
      %s64 = sphi 0, %s50
      %s68 = sphi 0, %s68
      %s70 = sphi 0, %s68
      %s71 = sphi 0, %s70
      %s85 = sphi 0, %s71
      %s89 = sphi 0, %s89
      %s91 = sphi 0, %s89
      %s92 = sphi 0, %s91
      %s106 = sphi 0, %s92
      %s112 = sphi 0, %s114
      %s115 = sphi 0, %s112
      %s116 = sphi 0, %s115
      %s132 = sphi 0, %s116
    $region4: #{tpu_custom_call.1} parent=1 // loop_header_branch
      %16 = sbr.rel (%p14) target = $region8
    $region5: #{tpu_custom_call.1} parent=1 // loop_body
      %s18 = ssub.s32 %s13, 1
      %s19 = ssub.s32 %s13, 2
      %s20 = sadd.s32 %s13, 1
      %s21 = ssub.s32 %s13, %s20
      %p22 = scmp.eq.s32.totalorder %s21, 0
      %s24 = sadd.s32 %s23, 1
      %s25 = scalar_select %p22, %s23, %s24
      %p28 = pneg %p22
      %p29 = scmp.eq.s32.totalorder %s13, 1
      %p30 = por %p28, %p29
      %p31 = scmp.ne.s32.totalorder %s23, %s26
      %p32 = scmp.eq.s32.totalorder %s13, 0
      %p33 = por %p31, %p32
      %p34 = scmp.ne.s32.totalorder %s23, %s26
      %p35 = scmp.eq.s32.totalorder %s18, 1
      %p36 = por %p34, %p35
      %p37 = scmp.ne.s32.totalorder %s26, %s27
      %p38 = scmp.eq.s32.totalorder %s18, 0
      %p39 = por %p37, %p38
      %p40 = scmp.ne.s32.totalorder %s26, %s27
      %p41 = scmp.eq.s32.totalorder %s19, 1
      %p42 = por %p40, %p41
      %p44 = scmp.ne.s32.totalorder %s27, %s43
      %p45 = scmp.eq.s32.totalorder %s19, 0
      %p46 = por %p44, %p45
      %s48 = sadd.s32 %s47, 1
      %p51 = scmp.eq.s32.totalorder %s13, 1
      %p52 = scmp.ne.s32.totalorder %s47, %s49
      %p53 = scmp.eq.s32.totalorder %s13, 0
      %p54 = por %p52, %p53
      %p55 = scmp.ne.s32.totalorder %s47, %s49
      %p56 = scmp.eq.s32.totalorder %s18, 1
      %p57 = por %p55, %p56
      %p58 = scmp.ne.s32.totalorder %s49, %s50
      %p59 = scmp.eq.s32.totalorder %s18, 0
      %p60 = por %p58, %p59
      %p61 = scmp.ne.s32.totalorder %s49, %s50
      %p62 = scmp.eq.s32.totalorder %s19, 1
      %p63 = por %p61, %p62
      %p65 = scmp.ne.s32.totalorder %s50, %s64
      %p66 = scmp.eq.s32.totalorder %s19, 0
      %p67 = por %p65, %p66
      %s69 = sadd.s32 %s68, 1
      %p72 = scmp.eq.s32.totalorder %s13, 1
      %p73 = scmp.ne.s32.totalorder %s68, %s70
      %p74 = scmp.eq.s32.totalorder %s13, 0
      %p75 = por %p73, %p74
      %p76 = scmp.ne.s32.totalorder %s68, %s70
      %p77 = scmp.eq.s32.totalorder %s18, 1
      %p78 = por %p76, %p77
      %p79 = scmp.ne.s32.totalorder %s70, %s71
      %p80 = scmp.eq.s32.totalorder %s18, 0
      %p81 = por %p79, %p80
      %p82 = scmp.ne.s32.totalorder %s70, %s71
      %p83 = scmp.eq.s32.totalorder %s19, 1
      %p84 = por %p82, %p83
      %p86 = scmp.ne.s32.totalorder %s71, %s85
      %p87 = scmp.eq.s32.totalorder %s19, 0
      %p88 = por %p86, %p87
      %s90 = sadd.s32 %s89, 1
      %p93 = scmp.eq.s32.totalorder %s13, 1
      %p94 = scmp.ne.s32.totalorder %s89, %s91
      %p95 = scmp.eq.s32.totalorder %s13, 0
      %p96 = por %p94, %p95
      %p97 = scmp.ne.s32.totalorder %s89, %s91
      %p98 = scmp.eq.s32.totalorder %s18, 1
      %p99 = por %p97, %p98
      %p100 = scmp.ne.s32.totalorder %s91, %s92
      %p101 = scmp.eq.s32.totalorder %s18, 0
      %p102 = por %p100, %p101
      %p103 = scmp.ne.s32.totalorder %s91, %s92
      %p104 = scmp.eq.s32.totalorder %s19, 1
      %p105 = por %p103, %p104
      %p107 = scmp.ne.s32.totalorder %s92, %s106
      %p108 = scmp.eq.s32.totalorder %s19, 0
      %p109 = por %p107, %p108
      %s110 = ssub.s32 %s13, %s20
      %p111 = scmp.eq.s32.totalorder %s110, 0
      %s113 = sadd.s32 %s112, 1
      %s114 = scalar_select %p111, %s112, %s113
      %p117 = pneg %p111
      %p118 = scmp.eq.s32.totalorder %s13, 1
      %p119 = por %p117, %p118
      %p120 = scmp.ne.s32.totalorder %s112, %s115
      %p121 = scmp.eq.s32.totalorder %s13, 0
      %p122 = por %p120, %p121
      %p123 = scmp.ne.s32.totalorder %s112, %s115
      %p124 = scmp.eq.s32.totalorder %s18, 1
      %p125 = por %p123, %p124
      %p126 = scmp.ne.s32.totalorder %s115, %s116
      %p127 = scmp.eq.s32.totalorder %s18, 0
      %p128 = por %p126, %p127
      %p129 = scmp.ne.s32.totalorder %s115, %s116
      %p130 = scmp.eq.s32.totalorder %s19, 1
      %p131 = por %p129, %p130
      %p133 = scmp.ne.s32.totalorder %s116, %s132
      %p134 = scmp.eq.s32.totalorder %s19, 0
      %p135 = por %p133, %p134
      %p136 = scmp.le.s32.totalorder 1, %s13
      %p137 = scmp.lt.s32.totalorder %s13, 3
      %p138 = pnand %p136, %p137
      %p139 = pneg %p138
      // Predicated region
      $region9: #{tpu_custom_call.1} parent=5 // pred_check
        _
      $region10: #{tpu_custom_call.1} parent=5 // pred_check_branch
        %141 = sbr.rel (%p138) target = $region12
      $region11: #{tpu_custom_call.1} parent=5 // pred_region
        %s142 = ssub.s32 %s13, 1
        // Predicated region
        $region13: #{tpu_custom_call.1} parent=11 // pred_check
          %p143 = pneg %p60
        $region14: #{tpu_custom_call.1} parent=11 // pred_check_branch
          %145 = sbr.rel (%p143) target = $region16
        $region15: #{tpu_custom_call.1} parent=11 // pred_region
          _
        $region16: #{tpu_custom_call.1} parent=11 // pred_fallthru
          _
        // Predicated region
        $region17: #{tpu_custom_call.1} parent=11 // pred_check
          %p146 = pneg %p81
        $region18: #{tpu_custom_call.1} parent=11 // pred_check_branch
          %148 = sbr.rel (%p146) target = $region20
        $region19: #{tpu_custom_call.1} parent=11 // pred_region
          _
        $region20: #{tpu_custom_call.1} parent=11 // pred_fallthru
          _
        // Predicated region
        $region21: #{tpu_custom_call.1} parent=11 // pred_check
          %p149 = pneg %p102
        $region22: #{tpu_custom_call.1} parent=11 // pred_check_branch
          %151 = sbr.rel (%p149) target = $region24
        $region23: #{tpu_custom_call.1} parent=11 // pred_region
          _
        $region24: #{tpu_custom_call.1} parent=11 // pred_fallthru
          _
      $region12: #{tpu_custom_call.1} parent=5 // pred_fallthru
        _
      %p152 = scmp.lt.s32.totalorder %s13, 2
      // Predicated region
      $region25: #{tpu_custom_call.1} parent=5 // pred_check
        %p153 = pneg %p152
      $region26: #{tpu_custom_call.1} parent=5 // pred_check_branch
        %155 = sbr.rel (%p153) target = $region28
      $region27: #{tpu_custom_call.1} parent=5 // pred_region
        // Predicated region
        $region29: #{tpu_custom_call.1} parent=27 // pred_check
          %p156 = pneg %p33
        $region30: #{tpu_custom_call.1} parent=27 // pred_check_branch
          %158 = sbr.rel (%p156) target = $region32
        $region31: #{tpu_custom_call.1} parent=27 // pred_region
          %p159 = scmp.lt.s32.totalorder %s13, 1
          %s160 = scalar_select %p159, %s13, 1
          %s161 = smul.addr %s160, 2
          %s162 = smul.addr %s161, 4
          %s163 = scalar_lea.vmem %s0, %s162
        $region32: #{tpu_custom_call.1} parent=27 // pred_fallthru
          _
      $region28: #{tpu_custom_call.1} parent=5 // pred_fallthru
        _
      %p164 = scmp.le.s32.totalorder 1, %s13
      %p165 = scmp.lt.s32.totalorder %s13, 3
      %p166 = pnand %p164, %p165
      %p167 = pneg %p166
      // Predicated region
      $region33: #{tpu_custom_call.1} parent=5 // pred_check
        _
      $region34: #{tpu_custom_call.1} parent=5 // pred_check_branch
        %169 = sbr.rel (%p166) target = $region36
      $region35: #{tpu_custom_call.1} parent=5 // pred_region
        %s170 = ssub.s32 %s13, 1
        %p171 = scmp.lt.s32.totalorder %s18, 1
        %s172 = scalar_select %p171, %s18, 1
        %s173 = smul.addr %s172, 2
        %s174 = smul.addr %s173, 4
        %s175 = scalar_lea.vmem %s0, %s174
        %p176 = pneg %p39
        %p177 = pneg %p36
        %p178 = pneg %p60
        %p179 = pneg %p57
        %p180 = pneg %p81
        %p181 = pneg %p78
        %p182 = pneg %p102
        %p183 = pneg %p99
        %p184 = pneg %p128
        %p185 = pneg %p125
        %s186 = sand.u32 %s115, 1
        %s187 = scalar_lea.sflag [#allocation4], %s186
        %s188 = sand.u32 %s115, 1
        %s189 = smul.addr %s188, 72
        %s190 = scalar_lea.vmem [#allocation3], %s189
        %p191 = scmp.lt.s32.totalorder %s18, 1
        %s192 = scalar_select %p191, %s18, 1
        %s193 = smul.addr %s192, 2
        %s194 = smul.addr %s193, 4
        %s195 = scalar_lea.vmem %s0, %s194
        %196 = vst [vmem:[#allocation2] sm:$0xff] 0.0
        %197 = vst [vmem:[#allocation2 + $0x8] sm:$0xff] 0.0
        %198 = vst [vmem:[#allocation2 + $0x10] sm:$0xff] 0.0
        %199 = vst [vmem:[#allocation2 + $0x18] sm:$0xff] 0.0
        %200 = vst [vmem:[#allocation2 + $0x20] sm:$0xff] 0.0
        %201 = vst [vmem:[#allocation2 + $0x28] sm:$0xff] 0.0
        %202 = vst [vmem:[#allocation2 + $0x30] sm:$0xff] 0.0
        %203 = vst [vmem:[#allocation2 + $0x38] sm:$0xff] 0.0
        %204 = vst [vmem:[#allocation2 + $0x40] sm:$0xff] 0.0
        %205 = vst [vmem:[#allocation2 + $0x48] sm:$0xff] 0.0
        %206 = vst [vmem:[#allocation2 + $0x50] sm:$0xff] 0.0
        %v207 = vld [vmem:[%s195] sm:$0xff]
        %v208 = vld [vmem:[%s1] sm:$0xff]
        %v209 = vld [vmem:[%s1 + $0x8] sm:$0xff]
        %v210 = vld [vmem:[%s1 + $0x10] sm:$0xff]
        %v211 = vld [vmem:[%s1 + $0x18] sm:$0xff]
        %v212 = vld [vmem:[%s1 + $0x20] sm:$0xff]
        %v213 = vld [vmem:[%s1 + $0x28] sm:$0xff]
        %v214 = vld [vmem:[%s1 + $0x30] sm:$0xff]
        %v215 = vld [vmem:[%s1 + $0x38] sm:$0xff]
        %v216 = vld [vmem:[%s1 + $0x40] sm:$0xff]
        %v217 = vld [vmem:[%s1 + $0x48] sm:$0xff]
        %v218 = vld [vmem:[%s1 + $0x50] sm:$0xff]
        %v219 = vld [vmem:[%s1 + $0x58] sm:$0xff]
        %v220 = vld [vmem:[%s1 + $0x60] sm:$0xff]
        %v221 = vld [vmem:[%s1 + $0x68] sm:$0xff]
        %v222 = vld [vmem:[%s1 + $0x70] sm:$0xff]
        %v223 = vld [vmem:[%s1 + $0x78] sm:$0xff]
        %v224 = vld [vmem:[%s1 + $0x80] sm:$0xff]
        %v225 = vld [vmem:[%s1 + $0x88] sm:$0xff]
        %v226 = vld [vmem:[%s1 + $0x90] sm:$0xff]
        %v227 = vld [vmem:[%s1 + $0x98] sm:$0xff]
        %v228 = vld [vmem:[%s1 + $0xa0] sm:$0xff]
        %v229 = vld [vmem:[%s1 + $0xa8] sm:$0xff]
        %v230 = vld [vmem:[%s1 + $0xb0] sm:$0xff]
        %v231 = vld [vmem:[%s1 + $0xb8] sm:$0xff]
        %v232 = vld [vmem:[%s1 + $0xc0] sm:$0xff]
        %v233 = vld [vmem:[%s1 + $0xc8] sm:$0xff]
        %v234 = vld [vmem:[%s1 + $0xd0] sm:$0xff]
        %v235 = vld [vmem:[%s1 + $0xd8] sm:$0xff]
        %v236 = vld [vmem:[%s1 + $0xe0] sm:$0xff]
        %v237 = vld [vmem:[%s1 + $0xe8] sm:$0xff]
        %v238 = vld [vmem:[%s1 + $0xf0] sm:$0xff]
        %v239 = vld [vmem:[%s1 + $0xf8] sm:$0xff]
        %v240 = vld [vmem:[%s1 + $0x100] sm:$0xff]
        %v241 = vld [vmem:[%s1 + $0x108] sm:$0xff]
        %v242 = vld [vmem:[%s1 + $0x110] sm:$0xff]
        %v243 = vld [vmem:[%s1 + $0x118] sm:$0xff]
        %v244 = vld [vmem:[%s1 + $0x120] sm:$0xff]
        %v245 = vld [vmem:[%s1 + $0x128] sm:$0xff]
        %v246 = vld [vmem:[%s1 + $0x130] sm:$0xff]
        %v247 = vld [vmem:[%s1 + $0x138] sm:$0xff]
        %v248 = vld [vmem:[%s1 + $0x140] sm:$0xff]
        %v249 = vld [vmem:[%s1 + $0x148] sm:$0xff]
        %v250 = vld [vmem:[%s1 + $0x150] sm:$0xff]
        %v251 = vld [vmem:[%s1 + $0x158] sm:$0xff]
        %v252 = vld [vmem:[%s1 + $0x160] sm:$0xff]
        %v253 = vld [vmem:[%s1 + $0x168] sm:$0xff]
        %v254 = vld [vmem:[%s1 + $0x170] sm:$0xff]
        %v255 = vld [vmem:[%s1 + $0x178] sm:$0xff]
        %v256 = vld [vmem:[%s1 + $0x180] sm:$0xff]
        %v257 = vld [vmem:[%s1 + $0x188] sm:$0xff]
        %v258 = vld [vmem:[%s1 + $0x190] sm:$0xff]
        %v259 = vld [vmem:[%s1 + $0x198] sm:$0xff]
        %v260 = vld [vmem:[%s1 + $0x1a0] sm:$0xff]
        %v261 = vld [vmem:[%s1 + $0x1a8] sm:$0xff]
        %v262 = vld [vmem:[%s1 + $0x1b0] sm:$0xff]
        %v263 = vld [vmem:[%s1 + $0x1b8] sm:$0xff]
        %v264 = vld [vmem:[%s1 + $0x1c0] sm:$0xff]
        %v265 = vld [vmem:[%s1 + $0x1c8] sm:$0xff]
        %v266 = vld [vmem:[%s1 + $0x1d0] sm:$0xff]
        %v267 = vld [vmem:[%s1 + $0x1d8] sm:$0xff]
        %v268 = vld [vmem:[%s1 + $0x1e0] sm:$0xff]
        %v269 = vld [vmem:[%s1 + $0x1e8] sm:$0xff]
        %v270 = vld [vmem:[%s1 + $0x1f0] sm:$0xff]
        %v271 = vld [vmem:[%s1 + $0x1f8] sm:$0xff]
        %v272 = vld [vmem:[%s1 + $0x200] sm:$0xff]
        %v273 = vld [vmem:[%s1 + $0x208] sm:$0xff]
        %v274 = vld [vmem:[%s1 + $0x210] sm:$0xff]
        %v275 = vld [vmem:[%s1 + $0x218] sm:$0xff]
        %v276 = vld [vmem:[%s1 + $0x220] sm:$0xff]
        %v277 = vld [vmem:[%s1 + $0x228] sm:$0xff]
        %v278 = vld [vmem:[%s1 + $0x230] sm:$0xff]
        %v279 = vld [vmem:[%s1 + $0x238] sm:$0xff]
        %v280 = vld [vmem:[%s1 + $0x240] sm:$0xff]
        %v281 = vld [vmem:[%s1 + $0x248] sm:$0xff]
        %v282 = vld [vmem:[%s1 + $0x250] sm:$0xff]
        %v283 = vld [vmem:[%s1 + $0x258] sm:$0xff]
        %v284 = vld [vmem:[%s1 + $0x260] sm:$0xff]
        %v285 = vld [vmem:[%s1 + $0x268] sm:$0xff]
        %v286 = vld [vmem:[%s1 + $0x270] sm:$0xff]
        %v287 = vld [vmem:[%s1 + $0x278] sm:$0xff]
        %v288 = vld [vmem:[%s1 + $0x280] sm:$0xff]
        %v289 = vld [vmem:[%s1 + $0x288] sm:$0xff]
        %v290 = vld [vmem:[%s1 + $0x290] sm:$0xff]
        %v291 = vld [vmem:[%s1 + $0x298] sm:$0xff]
        %v292 = vld [vmem:[%s1 + $0x2a0] sm:$0xff]
        %v293 = vld [vmem:[%s1 + $0x2a8] sm:$0xff]
        %v294 = vld [vmem:[%s1 + $0x2b0] sm:$0xff]
        %v295 = vld [vmem:[%s1 + $0x2b8] sm:$0xff]
        %v296 = vld [vmem:[%s1 + $0x2c0] sm:$0xff]
        %v297 = vld [vmem:[%s1 + $0x2c8] sm:$0xff]
        %v298 = vld [vmem:[%s1 + $0x2d0] sm:$0xff]
        %v299 = vld [vmem:[%s1 + $0x2d8] sm:$0xff]
        %v300 = vld [vmem:[%s1 + $0x2e0] sm:$0xff]
        %v301 = vld [vmem:[%s1 + $0x2e8] sm:$0xff]
        %v302 = vld [vmem:[%s1 + $0x2f0] sm:$0xff]
        %v303 = vld [vmem:[%s1 + $0x2f8] sm:$0xff]
        %v304 = vld [vmem:[%s1 + $0x300] sm:$0xff]
        %v305 = vld [vmem:[%s1 + $0x308] sm:$0xff]
        %v306 = vld [vmem:[%s1 + $0x310] sm:$0xff]
        %v307 = vld [vmem:[%s1 + $0x318] sm:$0xff]
        %v308 = vld [vmem:[%s1 + $0x320] sm:$0xff]
        %v309 = vld [vmem:[%s1 + $0x328] sm:$0xff]
        %v310 = vld [vmem:[%s1 + $0x330] sm:$0xff]
        %v311 = vld [vmem:[%s1 + $0x338] sm:$0xff]
        %v312 = vld [vmem:[%s1 + $0x340] sm:$0xff]
        %v313 = vld [vmem:[%s1 + $0x348] sm:$0xff]
        %v314 = vld [vmem:[%s1 + $0x350] sm:$0xff]
        %v315 = vld [vmem:[%s1 + $0x358] sm:$0xff]
        %v316 = vld [vmem:[%s1 + $0x360] sm:$0xff]
        %v317 = vld [vmem:[%s1 + $0x368] sm:$0xff]
        %v318 = vld [vmem:[%s1 + $0x370] sm:$0xff]
        %v319 = vld [vmem:[%s1 + $0x378] sm:$0xff]
        %v320 = vld [vmem:[%s1 + $0x380] sm:$0xff]
        %v321 = vld [vmem:[%s1 + $0x388] sm:$0xff]
        %v322 = vld [vmem:[%s1 + $0x390] sm:$0xff]
        %v323 = vld [vmem:[%s1 + $0x398] sm:$0xff]
        %v324 = vld [vmem:[%s1 + $0x3a0] sm:$0xff]
        %v325 = vld [vmem:[%s1 + $0x3a8] sm:$0xff]
        %v326 = vld [vmem:[%s1 + $0x3b0] sm:$0xff]
        %v327 = vld [vmem:[%s1 + $0x3b8] sm:$0xff]
        %v328 = vld [vmem:[%s1 + $0x3c0] sm:$0xff]
        %v329 = vld [vmem:[%s1 + $0x3c8] sm:$0xff]
        %v330 = vld [vmem:[%s1 + $0x3d0] sm:$0xff]
        %v331 = vld [vmem:[%s1 + $0x3d8] sm:$0xff]
        %v332 = vld [vmem:[%s1 + $0x3e0] sm:$0xff]
        %v333 = vld [vmem:[%s1 + $0x3e8] sm:$0xff]
        %v334 = vld [vmem:[%s1 + $0x3f0] sm:$0xff]
        %v335 = vld [vmem:[%s1 + $0x3f8] sm:$0xff]
        %v336 = vld [vmem:[%s1 + $0x400] sm:$0xff]
        %v337 = vld [vmem:[%s1 + $0x408] sm:$0xff]
        %v338 = vld [vmem:[%s1 + $0x410] sm:$0xff]
        %v339 = vld [vmem:[%s1 + $0x418] sm:$0xff]
        %v340 = vld [vmem:[%s1 + $0x420] sm:$0xff]
        %v341 = vld [vmem:[%s1 + $0x428] sm:$0xff]
        %v342 = vld [vmem:[%s1 + $0x430] sm:$0xff]
        %v343 = vld [vmem:[%s1 + $0x438] sm:$0xff]
        %v344 = vld [vmem:[%s1 + $0x440] sm:$0xff]
        %v345 = vld [vmem:[%s1 + $0x448] sm:$0xff]
        %v346 = vld [vmem:[%s1 + $0x450] sm:$0xff]
        %v347 = vld [vmem:[%s1 + $0x458] sm:$0xff]
        %v348 = vld [vmem:[%s1 + $0x460] sm:$0xff]
        %v349 = vld [vmem:[%s1 + $0x468] sm:$0xff]
        %v350 = vld [vmem:[%s1 + $0x470] sm:$0xff]
        %v351 = vld [vmem:[%s1 + $0x478] sm:$0xff]
        %v352 = vld [vmem:[%s1 + $0x480] sm:$0xff]
        %v353 = vld [vmem:[%s1 + $0x488] sm:$0xff]
        %v354 = vld [vmem:[%s1 + $0x490] sm:$0xff]
        %v355 = vld [vmem:[%s1 + $0x498] sm:$0xff]
        %v356 = vld [vmem:[%s1 + $0x4a0] sm:$0xff]
        %v357 = vld [vmem:[%s1 + $0x4a8] sm:$0xff]
        %v358 = vld [vmem:[%s1 + $0x4b0] sm:$0xff]
        %v359 = vld [vmem:[%s1 + $0x4b8] sm:$0xff]
        %v360 = vld [vmem:[%s1 + $0x4c0] sm:$0xff]
        %v361 = vld [vmem:[%s1 + $0x4c8] sm:$0xff]
        %v362 = vld [vmem:[%s1 + $0x4d0] sm:$0xff]
        %v363 = vld [vmem:[%s1 + $0x4d8] sm:$0xff]
        %v364 = vld [vmem:[%s1 + $0x4e0] sm:$0xff]
        %v365 = vld [vmem:[%s1 + $0x4e8] sm:$0xff]
        %v366 = vld [vmem:[%s1 + $0x4f0] sm:$0xff]
        %v367 = vld [vmem:[%s1 + $0x4f8] sm:$0xff]
        %v368 = vld [vmem:[%s1 + $0x500] sm:$0xff]
        %v369 = vld [vmem:[%s1 + $0x508] sm:$0xff]
        %v370 = vld [vmem:[%s1 + $0x510] sm:$0xff]
        %v371 = vld [vmem:[%s1 + $0x518] sm:$0xff]
        %v372 = vld [vmem:[%s1 + $0x520] sm:$0xff]
        %v373 = vld [vmem:[%s1 + $0x528] sm:$0xff]
        %v374 = vld [vmem:[%s1 + $0x530] sm:$0xff]
        %v375 = vld [vmem:[%s1 + $0x538] sm:$0xff]
        %v376 = vld [vmem:[%s1 + $0x540] sm:$0xff]
        %v377 = vld [vmem:[%s1 + $0x548] sm:$0xff]
        %v378 = vld [vmem:[%s1 + $0x550] sm:$0xff]
        %v379 = vld [vmem:[%s1 + $0x558] sm:$0xff]
        %v380 = vld [vmem:[%s1 + $0x560] sm:$0xff]
        %v381 = vld [vmem:[%s1 + $0x568] sm:$0xff]
        %v382 = vld [vmem:[%s1 + $0x570] sm:$0xff]
        %v383 = vld [vmem:[%s1 + $0x578] sm:$0xff]
        %v384 = vld [vmem:[%s1 + $0x580] sm:$0xff]
        %v385 = vld [vmem:[%s1 + $0x588] sm:$0xff]
        %v386 = vld [vmem:[%s1 + $0x590] sm:$0xff]
        %v387 = vld [vmem:[%s1 + $0x598] sm:$0xff]
        %v388 = vld [vmem:[%s1 + $0x5a0] sm:$0xff]
        %v389 = vld [vmem:[%s1 + $0x5a8] sm:$0xff]
        %v390 = vld [vmem:[%s1 + $0x5b0] sm:$0xff]
        %v391 = vld [vmem:[%s1 + $0x5b8] sm:$0xff]
        %v392 = vld [vmem:[%s1 + $0x5c0] sm:$0xff]
        %v393 = vld [vmem:[%s1 + $0x5c8] sm:$0xff]
        %v394 = vld [vmem:[%s1 + $0x5d0] sm:$0xff]
        %v395 = vld [vmem:[%s1 + $0x5d8] sm:$0xff]
        %v396 = vld [vmem:[%s1 + $0x5e0] sm:$0xff]
        %v397 = vld [vmem:[%s1 + $0x5e8] sm:$0xff]
        %v398 = vld [vmem:[%s1 + $0x5f0] sm:$0xff]
        %v399 = vld [vmem:[%s1 + $0x5f8] sm:$0xff]
        %v400 = vld [vmem:[%s1 + $0x600] sm:$0xff]
        %v401 = vld [vmem:[%s1 + $0x608] sm:$0xff]
        %v402 = vld [vmem:[%s1 + $0x610] sm:$0xff]
        %v403 = vld [vmem:[%s1 + $0x618] sm:$0xff]
        %v404 = vld [vmem:[%s1 + $0x620] sm:$0xff]
        %v405 = vld [vmem:[%s1 + $0x628] sm:$0xff]
        %v406 = vld [vmem:[%s1 + $0x630] sm:$0xff]
        %v407 = vld [vmem:[%s1 + $0x638] sm:$0xff]
        %v408 = vld [vmem:[%s1 + $0x640] sm:$0xff]
        %v409 = vld [vmem:[%s1 + $0x648] sm:$0xff]
        %v410 = vld [vmem:[%s1 + $0x650] sm:$0xff]
        %v411 = vld [vmem:[%s1 + $0x658] sm:$0xff]
        %v412 = vld [vmem:[%s1 + $0x660] sm:$0xff]
        %v413 = vld [vmem:[%s1 + $0x668] sm:$0xff]
        %v414 = vld [vmem:[%s1 + $0x670] sm:$0xff]
        %v415 = vld [vmem:[%s1 + $0x678] sm:$0xff]
        %v416 = vld [vmem:[%s1 + $0x680] sm:$0xff]
        %v417 = vld [vmem:[%s1 + $0x688] sm:$0xff]
        %v418 = vld [vmem:[%s1 + $0x690] sm:$0xff]
        %v419 = vld [vmem:[%s1 + $0x698] sm:$0xff]
        %v420 = vld [vmem:[%s1 + $0x6a0] sm:$0xff]
        %v421 = vld [vmem:[%s1 + $0x6a8] sm:$0xff]
        %v422 = vld [vmem:[%s1 + $0x6b0] sm:$0xff]
        %v423 = vld [vmem:[%s1 + $0x6b8] sm:$0xff]
        %v424 = vld [vmem:[%s1 + $0x6c0] sm:$0xff]
        %v425 = vld [vmem:[%s1 + $0x6c8] sm:$0xff]
        %v426 = vld [vmem:[%s1 + $0x6d0] sm:$0xff]
        %v427 = vld [vmem:[%s1 + $0x6d8] sm:$0xff]
        %v428 = vld [vmem:[%s1 + $0x6e0] sm:$0xff]
        %v429 = vld [vmem:[%s1 + $0x6e8] sm:$0xff]
        %v430 = vld [vmem:[%s1 + $0x6f0] sm:$0xff]
        %v431 = vld [vmem:[%s1 + $0x6f8] sm:$0xff]
        %v432 = vld [vmem:[%s1 + $0x700] sm:$0xff]
        %v433 = vld [vmem:[%s1 + $0x708] sm:$0xff]
        %v434 = vld [vmem:[%s1 + $0x710] sm:$0xff]
        %v435 = vld [vmem:[%s1 + $0x718] sm:$0xff]
        %v436 = vld [vmem:[%s1 + $0x720] sm:$0xff]
        %v437 = vld [vmem:[%s1 + $0x728] sm:$0xff]
        %v438 = vld [vmem:[%s1 + $0x730] sm:$0xff]
        %v439 = vld [vmem:[%s1 + $0x738] sm:$0xff]
        %v440 = vld [vmem:[%s1 + $0x740] sm:$0xff]
        %v441 = vld [vmem:[%s1 + $0x748] sm:$0xff]
        %v442 = vld [vmem:[%s1 + $0x750] sm:$0xff]
        %v443 = vld [vmem:[%s1 + $0x758] sm:$0xff]
        %v444 = vld [vmem:[%s1 + $0x760] sm:$0xff]
        %v445 = vld [vmem:[%s1 + $0x768] sm:$0xff]
        %v446 = vld [vmem:[%s1 + $0x770] sm:$0xff]
        %v447 = vld [vmem:[%s1 + $0x778] sm:$0xff]
        %v448 = vld [vmem:[%s1 + $0x780] sm:$0xff]
        %v449 = vld [vmem:[%s1 + $0x788] sm:$0xff]
        %v450 = vld [vmem:[%s1 + $0x790] sm:$0xff]
        %v451 = vld [vmem:[%s1 + $0x798] sm:$0xff]
        %v452 = vld [vmem:[%s1 + $0x7a0] sm:$0xff]
        %v453 = vld [vmem:[%s1 + $0x7a8] sm:$0xff]
        %v454 = vld [vmem:[%s1 + $0x7b0] sm:$0xff]
        %v455 = vld [vmem:[%s1 + $0x7b8] sm:$0xff]
        %v456 = vld [vmem:[%s1 + $0x7c0] sm:$0xff]
        %v457 = vld [vmem:[%s1 + $0x7c8] sm:$0xff]
        %v458 = vld [vmem:[%s1 + $0x7d0] sm:$0xff]
        %v459 = vld [vmem:[%s1 + $0x7d8] sm:$0xff]
        %v460 = vld [vmem:[%s1 + $0x7e0] sm:$0xff]
        %v461 = vld [vmem:[%s1 + $0x7e8] sm:$0xff]
        %v462 = vld [vmem:[%s1 + $0x7f0] sm:$0xff]
        %v463 = vld [vmem:[%s1 + $0x7f8] sm:$0xff]
        %v464 = vld [vmem:[%s1 + $0x800] sm:$0xff]
        %v465 = vld [vmem:[%s1 + $0x808] sm:$0xff]
        %v466 = vld [vmem:[%s1 + $0x810] sm:$0xff]
        %v467 = vld [vmem:[%s1 + $0x818] sm:$0xff]
        %v468 = vld [vmem:[%s1 + $0x820] sm:$0xff]
        %v469 = vld [vmem:[%s1 + $0x828] sm:$0xff]
        %v470 = vld [vmem:[%s1 + $0x830] sm:$0xff]
        %v471 = vld [vmem:[%s1 + $0x838] sm:$0xff]
        %v472 = vld [vmem:[%s1 + $0x840] sm:$0xff]
        %v473 = vld [vmem:[%s1 + $0x848] sm:$0xff]
        %v474 = vld [vmem:[%s1 + $0x850] sm:$0xff]
        %v475 = vld [vmem:[%s1 + $0x858] sm:$0xff]
        %v476 = vld [vmem:[%s1 + $0x860] sm:$0xff]
        %v477 = vld [vmem:[%s1 + $0x868] sm:$0xff]
        %v478 = vld [vmem:[%s1 + $0x870] sm:$0xff]
        %v479 = vld [vmem:[%s1 + $0x878] sm:$0xff]
        %v480 = vld [vmem:[%s1 + $0x880] sm:$0xff]
        %v481 = vld [vmem:[%s1 + $0x888] sm:$0xff]
        %v482 = vld [vmem:[%s1 + $0x890] sm:$0xff]
        %v483 = vld [vmem:[%s1 + $0x898] sm:$0xff]
        %v484 = vld [vmem:[%s1 + $0x8a0] sm:$0xff]
        %v485 = vld [vmem:[%s1 + $0x8a8] sm:$0xff]
        %v486 = vld [vmem:[%s1 + $0x8b0] sm:$0xff]
        %v487 = vld [vmem:[%s1 + $0x8b8] sm:$0xff]
        %v488 = vld [vmem:[%s1 + $0x8c0] sm:$0xff]
        %v489 = vld [vmem:[%s1 + $0x8c8] sm:$0xff]
        %v490 = vld [vmem:[%s1 + $0x8d0] sm:$0xff]
        %v491 = vld [vmem:[%s1 + $0x8d8] sm:$0xff]
        %v492 = vld [vmem:[%s1 + $0x8e0] sm:$0xff]
        %v493 = vld [vmem:[%s1 + $0x8e8] sm:$0xff]
        %v494 = vld [vmem:[%s1 + $0x8f0] sm:$0xff]
        %v495 = vld [vmem:[%s1 + $0x8f8] sm:$0xff]
        %v496 = vld [vmem:[%s1 + $0x900] sm:$0xff]
        %v497 = vld [vmem:[%s1 + $0x908] sm:$0xff]
        %v498 = vld [vmem:[%s1 + $0x910] sm:$0xff]
        %v499 = vld [vmem:[%s1 + $0x918] sm:$0xff]
        %v500 = vld [vmem:[%s1 + $0x920] sm:$0xff]
        %v501 = vld [vmem:[%s1 + $0x928] sm:$0xff]
        %v502 = vld [vmem:[%s1 + $0x930] sm:$0xff]
        %v503 = vld [vmem:[%s1 + $0x938] sm:$0xff]
        %v504 = vld [vmem:[%s1 + $0x940] sm:$0xff]
        %v505 = vld [vmem:[%s1 + $0x948] sm:$0xff]
        %v506 = vld [vmem:[%s1 + $0x950] sm:$0xff]
        %v507 = vld [vmem:[%s1 + $0x958] sm:$0xff]
        %v508 = vld [vmem:[%s1 + $0x960] sm:$0xff]
        %v509 = vld [vmem:[%s1 + $0x968] sm:$0xff]
        %v510 = vld [vmem:[%s1 + $0x970] sm:$0xff]
        %v511 = vld [vmem:[%s1 + $0x978] sm:$0xff]
        %v512 = vld [vmem:[%s1 + $0x980] sm:$0xff]
        %v513 = vld [vmem:[%s1 + $0x988] sm:$0xff]
        %v514 = vld [vmem:[%s1 + $0x990] sm:$0xff]
        %v515 = vld [vmem:[%s1 + $0x998] sm:$0xff]
        %v516 = vld [vmem:[%s1 + $0x9a0] sm:$0xff]
        %v517 = vld [vmem:[%s1 + $0x9a8] sm:$0xff]
        %v518 = vld [vmem:[%s1 + $0x9b0] sm:$0xff]
        %v519 = vld [vmem:[%s1 + $0x9b8] sm:$0xff]
        %v520 = vld [vmem:[%s1 + $0x9c0] sm:$0xff]
        %v521 = vld [vmem:[%s1 + $0x9c8] sm:$0xff]
        %v522 = vld [vmem:[%s1 + $0x9d0] sm:$0xff]
        %v523 = vld [vmem:[%s1 + $0x9d8] sm:$0xff]
        %v524 = vld [vmem:[%s1 + $0x9e0] sm:$0xff]
        %v525 = vld [vmem:[%s1 + $0x9e8] sm:$0xff]
        %v526 = vld [vmem:[%s1 + $0x9f0] sm:$0xff]
        %v527 = vld [vmem:[%s1 + $0x9f8] sm:$0xff]
        %v528 = vld [vmem:[%s1 + $0xa00] sm:$0xff]
        %v529 = vld [vmem:[%s1 + $0xa08] sm:$0xff]
        %v530 = vld [vmem:[%s1 + $0xa10] sm:$0xff]
        %v531 = vld [vmem:[%s1 + $0xa18] sm:$0xff]
        %v532 = vld [vmem:[%s1 + $0xa20] sm:$0xff]
        %v533 = vld [vmem:[%s1 + $0xa28] sm:$0xff]
        %v534 = vld [vmem:[%s1 + $0xa30] sm:$0xff]
        %v535 = vld [vmem:[%s1 + $0xa38] sm:$0xff]
        %v536 = vld [vmem:[%s1 + $0xa40] sm:$0xff]
        %v537 = vld [vmem:[%s1 + $0xa48] sm:$0xff]
        %v538 = vld [vmem:[%s1 + $0xa50] sm:$0xff]
        %v539 = vld [vmem:[%s1 + $0xa58] sm:$0xff]
        %v540 = vld [vmem:[%s1 + $0xa60] sm:$0xff]
        %v541 = vld [vmem:[%s1 + $0xa68] sm:$0xff]
        %v542 = vld [vmem:[%s1 + $0xa70] sm:$0xff]
        %v543 = vld [vmem:[%s1 + $0xa78] sm:$0xff]
        %v544 = vld [vmem:[%s1 + $0xa80] sm:$0xff]
        %v545 = vld [vmem:[%s1 + $0xa88] sm:$0xff]
        %v546 = vld [vmem:[%s1 + $0xa90] sm:$0xff]
        %v547 = vld [vmem:[%s1 + $0xa98] sm:$0xff]
        %v548 = vld [vmem:[%s1 + $0xaa0] sm:$0xff]
        %v549 = vld [vmem:[%s1 + $0xaa8] sm:$0xff]
        %v550 = vld [vmem:[%s1 + $0xab0] sm:$0xff]
        %v551 = vld [vmem:[%s1 + $0xab8] sm:$0xff]
        %v552 = vld [vmem:[%s1 + $0xac0] sm:$0xff]
        %v553 = vld [vmem:[%s1 + $0xac8] sm:$0xff]
        %v554 = vld [vmem:[%s1 + $0xad0] sm:$0xff]
        %v555 = vld [vmem:[%s1 + $0xad8] sm:$0xff]
        %v556 = vld [vmem:[%s1 + $0xae0] sm:$0xff]
        %v557 = vld [vmem:[%s1 + $0xae8] sm:$0xff]
        %v558 = vld [vmem:[%s1 + $0xaf0] sm:$0xff]
        %v559 = vld [vmem:[%s1 + $0xaf8] sm:$0xff]
        %v561 = vcombine.high %v207, %v207
        %563 = vmatprep.subr.mxu0 %v209
        %564 = vmatpush1.msra.mxu0 %v208
        %565 = vmatprep.subr.mxu0 %v220
        %566 = vmatpush1.msra.mxu0 %v219
        %567 = vmatprep.subr.mxu0 %v231
        %568 = vmatpush1.msra.mxu0 %v230
        %569 = vmatprep.subr.mxu0 %v242
        %570 = vmatpush1.msra.mxu0 %v241
        %571 = vmatprep.subr.mxu0 %v253
        %572 = vmatpush1.msra.mxu0 %v252
        %573 = vmatprep.subr.mxu0 %v264
        %574 = vmatpush1.msra.mxu0 %v263
        %575 = vmatprep.subr.mxu0 %v275
        %576 = vmatpush1.msra.mxu0 %v274
        %577 = vmatprep.subr.mxu0 %v286
        %578 = vmatpush1.msra.mxu0 %v285
        %579 = vmatprep.subr.mxu0 %v297
        %580 = vmatpush1.msra.mxu0 %v296
        %581 = vmatprep.subr.mxu0 %v308
        %582 = vmatpush1.msra.mxu0 %v307
        %583 = vmatprep.subr.mxu0 %v319
        %584 = vmatpush1.msra.mxu0 %v318
        %585 = vmatprep.subr.mxu0 %v330
        %586 = vmatpush1.msra.mxu0 %v329
        %587 = vmatprep.subr.mxu0 %v341
        %588 = vmatpush1.msra.mxu0 %v340
        %589 = vmatprep.subr.mxu0 %v352
        %590 = vmatpush1.msra.mxu0 %v351
        %591 = vmatprep.subr.mxu0 %v363
        %592 = vmatpush1.msra.mxu0 %v362
        %593 = vmatprep.subr.mxu0 %v374
        %594 = vmatpush1.msra.mxu0 %v373
        %595 = vmatprep.subr.mxu0 %v385
        %596 = vmatpush1.msra.mxu0 %v384
        %597 = vmatprep.subr.mxu0 %v396
        %598 = vmatpush1.msra.mxu0 %v395
        %599 = vmatprep.subr.mxu0 %v407
        %600 = vmatpush1.msra.mxu0 %v406
        %601 = vmatprep.subr.mxu0 %v418
        %602 = vmatpush1.msra.mxu0 %v417
        %603 = vmatprep.subr.mxu0 %v429
        %604 = vmatpush1.msra.mxu0 %v428
        %605 = vmatprep.subr.mxu0 %v440
        %606 = vmatpush1.msra.mxu0 %v439
        %607 = vmatprep.subr.mxu0 %v451
        %608 = vmatpush1.msra.mxu0 %v450
        %609 = vmatprep.subr.mxu0 %v462
        %610 = vmatpush1.msra.mxu0 %v461
        %611 = vmatprep.subr.mxu0 %v473
        %612 = vmatpush1.msra.mxu0 %v472
        %613 = vmatprep.subr.mxu0 %v484
        %614 = vmatpush1.msra.mxu0 %v483
        %615 = vmatprep.subr.mxu0 %v495
        %616 = vmatpush1.msra.mxu0 %v494
        %617 = vmatprep.subr.mxu0 %v506
        %618 = vmatpush1.msra.mxu0 %v505
        %619 = vmatprep.subr.mxu0 %v517
        %620 = vmatpush1.msra.mxu0 %v516
        %621 = vmatprep.subr.mxu0 %v528
        %622 = vmatpush1.msra.mxu0 %v527
        %623 = vmatprep.subr.mxu0 %v539
        %624 = vmatpush1.msra.mxu0 %v538
        %625 = vmatprep.subr.mxu0 %v550
        %626 = vmatpush1.msra.mxu0 %v549
        %627 = vmatprep.mubr.f32.mxu0 %v561
        %628 = vmatmul.mubr.f32.gmra.mrb[0].mxu0 %v207
        %v629 = vpop.f32.mrb[0].mxu0
        %v630 = vadd.f32 0.0, %v629
        %v631 = vpop.f32.mrb[0].mxu0
        %v632 = vadd.f32 0.0, %v631
        %633 = vdwg.mxu0
        %634 = vmatprep.subr.mxu0 %v211
        %635 = vmatpush1.msra.mxu0 %v210
        %636 = vmatprep.subr.mxu0 %v222
        %637 = vmatpush1.msra.mxu0 %v221
        %638 = vmatprep.subr.mxu0 %v233
        %639 = vmatpush1.msra.mxu0 %v232
        %640 = vmatprep.subr.mxu0 %v244
        %641 = vmatpush1.msra.mxu0 %v243
        %642 = vmatprep.subr.mxu0 %v255
        %643 = vmatpush1.msra.mxu0 %v254
        %644 = vmatprep.subr.mxu0 %v266
        %645 = vmatpush1.msra.mxu0 %v265
        %646 = vmatprep.subr.mxu0 %v277
        %647 = vmatpush1.msra.mxu0 %v276
        %648 = vmatprep.subr.mxu0 %v288
        %649 = vmatpush1.msra.mxu0 %v287
        %650 = vmatprep.subr.mxu0 %v299
        %651 = vmatpush1.msra.mxu0 %v298
        %652 = vmatprep.subr.mxu0 %v310
        %653 = vmatpush1.msra.mxu0 %v309
        %654 = vmatprep.subr.mxu0 %v321
        %655 = vmatpush1.msra.mxu0 %v320
        %656 = vmatprep.subr.mxu0 %v332
        %657 = vmatpush1.msra.mxu0 %v331
        %658 = vmatprep.subr.mxu0 %v343
        %659 = vmatpush1.msra.mxu0 %v342
        %660 = vmatprep.subr.mxu0 %v354
        %661 = vmatpush1.msra.mxu0 %v353
        %662 = vmatprep.subr.mxu0 %v365
        %663 = vmatpush1.msra.mxu0 %v364
        %664 = vmatprep.subr.mxu0 %v376
        %665 = vmatpush1.msra.mxu0 %v375
        %666 = vmatprep.subr.mxu0 %v387
        %667 = vmatpush1.msra.mxu0 %v386
        %668 = vmatprep.subr.mxu0 %v398
        %669 = vmatpush1.msra.mxu0 %v397
        %670 = vmatprep.subr.mxu0 %v409
        %671 = vmatpush1.msra.mxu0 %v408
        %672 = vmatprep.subr.mxu0 %v420
        %673 = vmatpush1.msra.mxu0 %v419
        %674 = vmatprep.subr.mxu0 %v431
        %675 = vmatpush1.msra.mxu0 %v430
        %676 = vmatprep.subr.mxu0 %v442
        %677 = vmatpush1.msra.mxu0 %v441
        %678 = vmatprep.subr.mxu0 %v453
        %679 = vmatpush1.msra.mxu0 %v452
        %680 = vmatprep.subr.mxu0 %v464
        %681 = vmatpush1.msra.mxu0 %v463
        %682 = vmatprep.subr.mxu0 %v475
        %683 = vmatpush1.msra.mxu0 %v474
        %684 = vmatprep.subr.mxu0 %v486
        %685 = vmatpush1.msra.mxu0 %v485
        %686 = vmatprep.subr.mxu0 %v497
        %687 = vmatpush1.msra.mxu0 %v496
        %688 = vmatprep.subr.mxu0 %v508
        %689 = vmatpush1.msra.mxu0 %v507
        %690 = vmatprep.subr.mxu0 %v519
        %691 = vmatpush1.msra.mxu0 %v518
        %692 = vmatprep.subr.mxu0 %v530
        %693 = vmatpush1.msra.mxu0 %v529
        %694 = vmatprep.subr.mxu0 %v541
        %695 = vmatpush1.msra.mxu0 %v540
        %696 = vmatprep.subr.mxu0 %v552
        %697 = vmatpush1.msra.mxu0 %v551
        %698 = vmatprep.mubr.f32.mxu0 %v561
        %699 = vmatmul.mubr.f32.gmra.mrb[0].mxu0 %v207
        %v700 = vpop.f32.mrb[0].mxu0
        %v701 = vadd.f32 0.0, %v700
        %v702 = vpop.f32.mrb[0].mxu0
        %v703 = vadd.f32 0.0, %v702
        %704 = vdwg.mxu0
        %705 = vmatprep.subr.mxu0 %v213
        %706 = vmatpush1.msra.mxu0 %v212
        %707 = vmatprep.subr.mxu0 %v224
        %708 = vmatpush1.msra.mxu0 %v223
        %709 = vmatprep.subr.mxu0 %v235
        %710 = vmatpush1.msra.mxu0 %v234
        %711 = vmatprep.subr.mxu0 %v246
        %712 = vmatpush1.msra.mxu0 %v245
        %713 = vmatprep.subr.mxu0 %v257
        %714 = vmatpush1.msra.mxu0 %v256
        %715 = vmatprep.subr.mxu0 %v268
        %716 = vmatpush1.msra.mxu0 %v267
        %717 = vmatprep.subr.mxu0 %v279
        %718 = vmatpush1.msra.mxu0 %v278
        %719 = vmatprep.subr.mxu0 %v290
        %720 = vmatpush1.msra.mxu0 %v289
        %721 = vmatprep.subr.mxu0 %v301
        %722 = vmatpush1.msra.mxu0 %v300
        %723 = vmatprep.subr.mxu0 %v312
        %724 = vmatpush1.msra.mxu0 %v311
        %725 = vmatprep.subr.mxu0 %v323
        %726 = vmatpush1.msra.mxu0 %v322
        %727 = vmatprep.subr.mxu0 %v334
        %728 = vmatpush1.msra.mxu0 %v333
        %729 = vmatprep.subr.mxu0 %v345
        %730 = vmatpush1.msra.mxu0 %v344
        %731 = vmatprep.subr.mxu0 %v356
        %732 = vmatpush1.msra.mxu0 %v355
        %733 = vmatprep.subr.mxu0 %v367
        %734 = vmatpush1.msra.mxu0 %v366
        %735 = vmatprep.subr.mxu0 %v378
        %736 = vmatpush1.msra.mxu0 %v377
        %737 = vmatprep.subr.mxu0 %v389
        %738 = vmatpush1.msra.mxu0 %v388
        %739 = vmatprep.subr.mxu0 %v400
        %740 = vmatpush1.msra.mxu0 %v399
        %741 = vmatprep.subr.mxu0 %v411
        %742 = vmatpush1.msra.mxu0 %v410
        %743 = vmatprep.subr.mxu0 %v422
        %744 = vmatpush1.msra.mxu0 %v421
        %745 = vmatprep.subr.mxu0 %v433
        %746 = vmatpush1.msra.mxu0 %v432
        %747 = vmatprep.subr.mxu0 %v444
        %748 = vmatpush1.msra.mxu0 %v443
        %749 = vmatprep.subr.mxu0 %v455
        %750 = vmatpush1.msra.mxu0 %v454
        %751 = vmatprep.subr.mxu0 %v466
        %752 = vmatpush1.msra.mxu0 %v465
        %753 = vmatprep.subr.mxu0 %v477
        %754 = vmatpush1.msra.mxu0 %v476
        %755 = vmatprep.subr.mxu0 %v488
        %756 = vmatpush1.msra.mxu0 %v487
        %757 = vmatprep.subr.mxu0 %v499
        %758 = vmatpush1.msra.mxu0 %v498
        %759 = vmatprep.subr.mxu0 %v510
        %760 = vmatpush1.msra.mxu0 %v509
        %761 = vmatprep.subr.mxu0 %v521
        %762 = vmatpush1.msra.mxu0 %v520
        %763 = vmatprep.subr.mxu0 %v532
        %764 = vmatpush1.msra.mxu0 %v531
        %765 = vmatprep.subr.mxu0 %v543
        %766 = vmatpush1.msra.mxu0 %v542
        %767 = vmatprep.subr.mxu0 %v554
        %768 = vmatpush1.msra.mxu0 %v553
        %769 = vmatprep.mubr.f32.mxu0 %v561
        %770 = vmatmul.mubr.f32.gmra.mrb[0].mxu0 %v207
        %v771 = vpop.f32.mrb[0].mxu0
        %v772 = vadd.f32 0.0, %v771
        %v773 = vpop.f32.mrb[0].mxu0
        %v774 = vadd.f32 0.0, %v773
        %775 = vdwg.mxu0
        %776 = vmatprep.subr.mxu0 %v215
        %777 = vmatpush1.msra.mxu0 %v214
        %778 = vmatprep.subr.mxu0 %v226
        %779 = vmatpush1.msra.mxu0 %v225
        %780 = vmatprep.subr.mxu0 %v237
        %781 = vmatpush1.msra.mxu0 %v236
        %782 = vmatprep.subr.mxu0 %v248
        %783 = vmatpush1.msra.mxu0 %v247
        %784 = vmatprep.subr.mxu0 %v259
        %785 = vmatpush1.msra.mxu0 %v258
        %786 = vmatprep.subr.mxu0 %v270
        %787 = vmatpush1.msra.mxu0 %v269
        %788 = vmatprep.subr.mxu0 %v281
        %789 = vmatpush1.msra.mxu0 %v280
        %790 = vmatprep.subr.mxu0 %v292
        %791 = vmatpush1.msra.mxu0 %v291
        %792 = vmatprep.subr.mxu0 %v303
        %793 = vmatpush1.msra.mxu0 %v302
        %794 = vmatprep.subr.mxu0 %v314
        %795 = vmatpush1.msra.mxu0 %v313
        %796 = vmatprep.subr.mxu0 %v325
        %797 = vmatpush1.msra.mxu0 %v324
        %798 = vmatprep.subr.mxu0 %v336
        %799 = vmatpush1.msra.mxu0 %v335
        %800 = vmatprep.subr.mxu0 %v347
        %801 = vmatpush1.msra.mxu0 %v346
        %802 = vmatprep.subr.mxu0 %v358
        %803 = vmatpush1.msra.mxu0 %v357
        %804 = vmatprep.subr.mxu0 %v369
        %805 = vmatpush1.msra.mxu0 %v368
        %806 = vmatprep.subr.mxu0 %v380
        %807 = vmatpush1.msra.mxu0 %v379
        %808 = vmatprep.subr.mxu0 %v391
        %809 = vmatpush1.msra.mxu0 %v390
        %810 = vmatprep.subr.mxu0 %v402
        %811 = vmatpush1.msra.mxu0 %v401
        %812 = vmatprep.subr.mxu0 %v413
        %813 = vmatpush1.msra.mxu0 %v412
        %814 = vmatprep.subr.mxu0 %v424
        %815 = vmatpush1.msra.mxu0 %v423
        %816 = vmatprep.subr.mxu0 %v435
        %817 = vmatpush1.msra.mxu0 %v434
        %818 = vmatprep.subr.mxu0 %v446
        %819 = vmatpush1.msra.mxu0 %v445
        %820 = vmatprep.subr.mxu0 %v457
        %821 = vmatpush1.msra.mxu0 %v456
        %822 = vmatprep.subr.mxu0 %v468
        %823 = vmatpush1.msra.mxu0 %v467
        %824 = vmatprep.subr.mxu0 %v479
        %825 = vmatpush1.msra.mxu0 %v478
        %826 = vmatprep.subr.mxu0 %v490
        %827 = vmatpush1.msra.mxu0 %v489
        %828 = vmatprep.subr.mxu0 %v501
        %829 = vmatpush1.msra.mxu0 %v500
        %830 = vmatprep.subr.mxu0 %v512
        %831 = vmatpush1.msra.mxu0 %v511
        %832 = vmatprep.subr.mxu0 %v523
        %833 = vmatpush1.msra.mxu0 %v522
        %834 = vmatprep.subr.mxu0 %v534
        %835 = vmatpush1.msra.mxu0 %v533
        %836 = vmatprep.subr.mxu0 %v545
        %837 = vmatpush1.msra.mxu0 %v544
        %838 = vmatprep.subr.mxu0 %v556
        %839 = vmatpush1.msra.mxu0 %v555
        %840 = vmatprep.mubr.f32.mxu0 %v561
        %841 = vmatmul.mubr.f32.gmra.mrb[0].mxu0 %v207
        %v842 = vpop.f32.mrb[0].mxu0
        %v843 = vadd.f32 0.0, %v842
        %v844 = vpop.f32.mrb[0].mxu0
        %v845 = vadd.f32 0.0, %v844
        %846 = vdwg.mxu0
        %847 = vmatprep.subr.mxu0 %v217
        %848 = vmatpush1.msra.mxu0 %v216
        %849 = vmatprep.subr.mxu0 %v228
        %850 = vmatpush1.msra.mxu0 %v227
        %851 = vmatprep.subr.mxu0 %v239
        %852 = vmatpush1.msra.mxu0 %v238
        %853 = vmatprep.subr.mxu0 %v250
        %854 = vmatpush1.msra.mxu0 %v249
        %855 = vmatprep.subr.mxu0 %v261
        %856 = vmatpush1.msra.mxu0 %v260
        %857 = vmatprep.subr.mxu0 %v272
        %858 = vmatpush1.msra.mxu0 %v271
        %859 = vmatprep.subr.mxu0 %v283
        %860 = vmatpush1.msra.mxu0 %v282
        %861 = vmatprep.subr.mxu0 %v294
        %862 = vmatpush1.msra.mxu0 %v293
        %863 = vmatprep.subr.mxu0 %v305
        %864 = vmatpush1.msra.mxu0 %v304
        %865 = vmatprep.subr.mxu0 %v316
        %866 = vmatpush1.msra.mxu0 %v315
        %867 = vmatprep.subr.mxu0 %v327
        %868 = vmatpush1.msra.mxu0 %v326
        %869 = vmatprep.subr.mxu0 %v338
        %870 = vmatpush1.msra.mxu0 %v337
        %871 = vmatprep.subr.mxu0 %v349
        %872 = vmatpush1.msra.mxu0 %v348
        %873 = vmatprep.subr.mxu0 %v360
        %874 = vmatpush1.msra.mxu0 %v359
        %875 = vmatprep.subr.mxu0 %v371
        %876 = vmatpush1.msra.mxu0 %v370
        %877 = vmatprep.subr.mxu0 %v382
        %878 = vmatpush1.msra.mxu0 %v381
        %879 = vmatprep.subr.mxu0 %v393
        %880 = vmatpush1.msra.mxu0 %v392
        %881 = vmatprep.subr.mxu0 %v404
        %882 = vmatpush1.msra.mxu0 %v403
        %883 = vmatprep.subr.mxu0 %v415
        %884 = vmatpush1.msra.mxu0 %v414
        %885 = vmatprep.subr.mxu0 %v426
        %886 = vmatpush1.msra.mxu0 %v425
        %887 = vmatprep.subr.mxu0 %v437
        %888 = vmatpush1.msra.mxu0 %v436
        %889 = vmatprep.subr.mxu0 %v448
        %890 = vmatpush1.msra.mxu0 %v447
        %891 = vmatprep.subr.mxu0 %v459
        %892 = vmatpush1.msra.mxu0 %v458
        %893 = vmatprep.subr.mxu0 %v470
        %894 = vmatpush1.msra.mxu0 %v469
        %895 = vmatprep.subr.mxu0 %v481
        %896 = vmatpush1.msra.mxu0 %v480
        %897 = vmatprep.subr.mxu0 %v492
        %898 = vmatpush1.msra.mxu0 %v491
        %899 = vmatprep.subr.mxu0 %v503
        %900 = vmatpush1.msra.mxu0 %v502
        %901 = vmatprep.subr.mxu0 %v514
        %902 = vmatpush1.msra.mxu0 %v513
        %903 = vmatprep.subr.mxu0 %v525
        %904 = vmatpush1.msra.mxu0 %v524
        %905 = vmatprep.subr.mxu0 %v536
        %906 = vmatpush1.msra.mxu0 %v535
        %907 = vmatprep.subr.mxu0 %v547
        %908 = vmatpush1.msra.mxu0 %v546
        %909 = vmatprep.subr.mxu0 %v558
        %910 = vmatpush1.msra.mxu0 %v557
        %911 = vmatprep.mubr.f32.mxu0 %v561
        %912 = vmatmul.mubr.f32.gmra.mrb[0].mxu0 %v207
        %v913 = vpop.f32.mrb[0].mxu0
        %v914 = vadd.f32 0.0, %v913
        %v915 = vpop.f32.mrb[0].mxu0
        %v916 = vadd.f32 0.0, %v915
        %917 = vdwg.mxu0
        %918 = vmatprep.subr.mxu0 0.0
        %919 = vmatpush1.msra.mxu0 %v218
        %920 = vmatprep.subr.mxu0 0.0
        %921 = vmatpush1.msra.mxu0 %v229
        %922 = vmatprep.subr.mxu0 0.0
        %923 = vmatpush1.msra.mxu0 %v240
        %924 = vmatprep.subr.mxu0 0.0
        %925 = vmatpush1.msra.mxu0 %v251
        %926 = vmatprep.subr.mxu0 0.0
        %927 = vmatpush1.msra.mxu0 %v262
        %928 = vmatprep.subr.mxu0 0.0
        %929 = vmatpush1.msra.mxu0 %v273
        %930 = vmatprep.subr.mxu0 0.0
        %931 = vmatpush1.msra.mxu0 %v284
        %932 = vmatprep.subr.mxu0 0.0
        %933 = vmatpush1.msra.mxu0 %v295
        %934 = vmatprep.subr.mxu0 0.0
        %935 = vmatpush1.msra.mxu0 %v306
        %936 = vmatprep.subr.mxu0 0.0
        %937 = vmatpush1.msra.mxu0 %v317
        %938 = vmatprep.subr.mxu0 0.0
        %939 = vmatpush1.msra.mxu0 %v328
        %940 = vmatprep.subr.mxu0 0.0
        %941 = vmatpush1.msra.mxu0 %v339
        %942 = vmatprep.subr.mxu0 0.0
        %943 = vmatpush1.msra.mxu0 %v350
        %944 = vmatprep.subr.mxu0 0.0
        %945 = vmatpush1.msra.mxu0 %v361
        %946 = vmatprep.subr.mxu0 0.0
        %947 = vmatpush1.msra.mxu0 %v372
        %948 = vmatprep.subr.mxu0 0.0
        %949 = vmatpush1.msra.mxu0 %v383
        %950 = vmatprep.subr.mxu0 0.0
        %951 = vmatpush1.msra.mxu0 %v394
        %952 = vmatprep.subr.mxu0 0.0
        %953 = vmatpush1.msra.mxu0 %v405
        %954 = vmatprep.subr.mxu0 0.0
        %955 = vmatpush1.msra.mxu0 %v416
        %956 = vmatprep.subr.mxu0 0.0
        %957 = vmatpush1.msra.mxu0 %v427
        %958 = vmatprep.subr.mxu0 0.0
        %959 = vmatpush1.msra.mxu0 %v438
        %960 = vmatprep.subr.mxu0 0.0
        %961 = vmatpush1.msra.mxu0 %v449
        %962 = vmatprep.subr.mxu0 0.0
        %963 = vmatpush1.msra.mxu0 %v460
        %964 = vmatprep.subr.mxu0 0.0
        %965 = vmatpush1.msra.mxu0 %v471
        %966 = vmatprep.subr.mxu0 0.0
        %967 = vmatpush1.msra.mxu0 %v482
        %968 = vmatprep.subr.mxu0 0.0
        %969 = vmatpush1.msra.mxu0 %v493
        %970 = vmatprep.subr.mxu0 0.0
        %971 = vmatpush1.msra.mxu0 %v504
        %972 = vmatprep.subr.mxu0 0.0
        %973 = vmatpush1.msra.mxu0 %v515
        %974 = vmatprep.subr.mxu0 0.0
        %975 = vmatpush1.msra.mxu0 %v526
        %976 = vmatprep.subr.mxu0 0.0
        %977 = vmatpush1.msra.mxu0 %v537
        %978 = vmatprep.subr.mxu0 0.0
        %979 = vmatpush1.msra.mxu0 %v548
        %980 = vmatprep.subr.mxu0 0.0
        %981 = vmatpush1.msra.mxu0 %v559
        %982 = vmatprep.mubr.f32.mxu0 %v561
        %983 = vmatmul.mubr.f32.gmra.mrb[0].mxu0 %v207
        %v984 = vpop.f32.mrb[0].mxu0
        %v985 = vadd.f32 0.0, %v984
        %v986 = vpop.f32.mrb[0].mxu0
        %987 = vdwg.mxu0
        %988 = vst [vmem:[#allocation2] sm:$0xf] %v630
        %989 = vst [vmem:[#allocation2 + $0x8] sm:$0xf] %v632
        %990 = vst [vmem:[#allocation2 + $0x10] sm:$0xf] %v701
        %991 = vst [vmem:[#allocation2 + $0x18] sm:$0xf] %v703
        %992 = vst [vmem:[#allocation2 + $0x20] sm:$0xf] %v772
        %993 = vst [vmem:[#allocation2 + $0x28] sm:$0xf] %v774
        %994 = vst [vmem:[#allocation2 + $0x30] sm:$0xf] %v843
        %995 = vst [vmem:[#allocation2 + $0x38] sm:$0xf] %v845
        %996 = vst [vmem:[#allocation2 + $0x40] sm:$0xf] %v914
        %997 = vst [vmem:[#allocation2 + $0x48] sm:$0xf] %v916
        %vm998 = vcmask 125952
        %999 = vst.msk [vmem:[#allocation2 + $0x50] sm:$0xf] %vm998, %v985
        %v1000 = vld [vmem:[%s3] sm:$0xff]
        %1002 = vset.pattern.permute.xlu0 0
        %1003 = vperm.xlu0 %1002, %v1000
        %v1004 = vpop.permute.xlu0 %1003
        %v1006 = vld [vmem:[%s2] sm:$0xff]
        %v1007 = vld [vmem:[#allocation2] sm:$0xff]
        %v1008 = vld [vmem:[#allocation2 + $0x8] sm:$0xff]
        %v1009 = vld [vmem:[#allocation2 + $0x10] sm:$0xff]
        %v1010 = vld [vmem:[#allocation2 + $0x18] sm:$0xff]
        %v1011 = vld [vmem:[#allocation2 + $0x20] sm:$0xff]
        %v1012 = vld [vmem:[#allocation2 + $0x28] sm:$0xff]
        %v1013 = vld [vmem:[#allocation2 + $0x30] sm:$0xff]
        %v1014 = vld [vmem:[#allocation2 + $0x38] sm:$0xff]
        %v1015 = vld [vmem:[#allocation2 + $0x40] sm:$0xff]
        %vm1016 = vcmask 64512
        %v1018 = vsel %vm1016, %v1006, 0
        %1020 = vmatprep.subr.mxu0 %v1008
        %1021 = vmatpush1.msra.mxu0 %v1007
        %1022 = vmatprep.subr.mxu0 0.0
        %1023 = vmatpush1.msra.mxu0 0.0
        %1024 = vmatprep.subr.mxu0 0.0
        %1025 = vmatpush1.msra.mxu0 0.0
        %1026 = vmatprep.subr.mxu0 0.0
        %1027 = vmatpush1.msra.mxu0 0.0
        %1028 = vmatprep.subr.mxu0 0.0
        %1029 = vmatpush1.msra.mxu0 0.0
        %1030 = vmatprep.subr.mxu0 0.0
        %1031 = vmatpush1.msra.mxu0 0.0
        %1032 = vmatprep.subr.mxu0 0.0
        %1033 = vmatpush1.msra.mxu0 0.0
        %1034 = vmatprep.subr.mxu0 0.0
        %1035 = vmatpush1.msra.mxu0 0.0
        %1036 = vmatprep.subr.mxu0 0.0
        %1037 = vmatpush1.msra.mxu0 0.0
        %1038 = vmatprep.subr.mxu0 0.0
        %1039 = vmatpush1.msra.mxu0 0.0
        %1040 = vmatprep.subr.mxu0 0.0
        %1041 = vmatpush1.msra.mxu0 0.0
        %1042 = vmatprep.subr.mxu0 0.0
        %1043 = vmatpush1.msra.mxu0 0.0
        %1044 = vmatprep.subr.mxu0 0.0
        %1045 = vmatpush1.msra.mxu0 0.0
        %1046 = vmatprep.subr.mxu0 0.0
        %1047 = vmatpush1.msra.mxu0 0.0
        %1048 = vmatprep.subr.mxu0 0.0
        %1049 = vmatpush1.msra.mxu0 0.0
        %1050 = vmatprep.subr.mxu0 0.0
        %1051 = vmatpush1.msra.mxu0 0.0
        %1052 = vmatprep.subr.mxu0 0.0
        %1053 = vmatpush1.msra.mxu0 0.0
        %1054 = vmatprep.subr.mxu0 0.0
        %1055 = vmatpush1.msra.mxu0 0.0
        %1056 = vmatprep.subr.mxu0 0.0
        %1057 = vmatpush1.msra.mxu0 0.0
        %1058 = vmatprep.subr.mxu0 0.0
        %1059 = vmatpush1.msra.mxu0 0.0
        %1060 = vmatprep.subr.mxu0 0.0
        %1061 = vmatpush1.msra.mxu0 0.0
        %1062 = vmatprep.subr.mxu0 0.0
        %1063 = vmatpush1.msra.mxu0 0.0
        %1064 = vmatprep.subr.mxu0 0.0
        %1065 = vmatpush1.msra.mxu0 0.0
        %1066 = vmatprep.subr.mxu0 0.0
        %1067 = vmatpush1.msra.mxu0 0.0
        %1068 = vmatprep.subr.mxu0 0.0
        %1069 = vmatpush1.msra.mxu0 0.0
        %1070 = vmatprep.subr.mxu0 0.0
        %1071 = vmatpush1.msra.mxu0 0.0
        %1072 = vmatprep.subr.mxu0 0.0
        %1073 = vmatpush1.msra.mxu0 0.0
        %1074 = vmatprep.subr.mxu0 0.0
        %1075 = vmatpush1.msra.mxu0 0.0
        %1076 = vmatprep.subr.mxu0 0.0
        %1077 = vmatpush1.msra.mxu0 0.0
        %1078 = vmatprep.subr.mxu0 0.0
        %1079 = vmatpush1.msra.mxu0 0.0
        %1080 = vmatprep.subr.mxu0 0.0
        %1081 = vmatpush1.msra.mxu0 0.0
        %1082 = vmatprep.subr.mxu0 0.0
        %1083 = vmatpush1.msra.mxu0 0.0
        %1084 = vmatprep.mubr.f32.mxu0 0.0
        %1085 = vmatmul.mubr.f32.gmra.mrb[0].mxu0 %v1018
        %v1086 = vpop.f32.mrb[0].mxu0
        %v1087 = vadd.f32 0.0, %v1086
        %v1088 = vpop.f32.mrb[0].mxu0
        %v1089 = vadd.f32 0.0, %v1088
        %1090 = vdwg.mxu0
        %1091 = vmatprep.subr.mxu0 %v1010
        %1092 = vmatpush1.msra.mxu0 %v1009
        %1093 = vmatprep.subr.mxu0 0.0
        %1094 = vmatpush1.msra.mxu0 0.0
        %1095 = vmatprep.subr.mxu0 0.0
        %1096 = vmatpush1.msra.mxu0 0.0
        %1097 = vmatprep.subr.mxu0 0.0
        %1098 = vmatpush1.msra.mxu0 0.0
        %1099 = vmatprep.subr.mxu0 0.0
        %1100 = vmatpush1.msra.mxu0 0.0
        %1101 = vmatprep.subr.mxu0 0.0
        %1102 = vmatpush1.msra.mxu0 0.0
        %1103 = vmatprep.subr.mxu0 0.0
        %1104 = vmatpush1.msra.mxu0 0.0
        %1105 = vmatprep.subr.mxu0 0.0
        %1106 = vmatpush1.msra.mxu0 0.0
        %1107 = vmatprep.subr.mxu0 0.0
        %1108 = vmatpush1.msra.mxu0 0.0
        %1109 = vmatprep.subr.mxu0 0.0
        %1110 = vmatpush1.msra.mxu0 0.0
        %1111 = vmatprep.subr.mxu0 0.0
        %1112 = vmatpush1.msra.mxu0 0.0
        %1113 = vmatprep.subr.mxu0 0.0
        %1114 = vmatpush1.msra.mxu0 0.0
        %1115 = vmatprep.subr.mxu0 0.0
        %1116 = vmatpush1.msra.mxu0 0.0
        %1117 = vmatprep.subr.mxu0 0.0
        %1118 = vmatpush1.msra.mxu0 0.0
        %1119 = vmatprep.subr.mxu0 0.0
        %1120 = vmatpush1.msra.mxu0 0.0
        %1121 = vmatprep.subr.mxu0 0.0
        %1122 = vmatpush1.msra.mxu0 0.0
        %1123 = vmatprep.subr.mxu0 0.0
        %1124 = vmatpush1.msra.mxu0 0.0
        %1125 = vmatprep.subr.mxu0 0.0
        %1126 = vmatpush1.msra.mxu0 0.0
        %1127 = vmatprep.subr.mxu0 0.0
        %1128 = vmatpush1.msra.mxu0 0.0
        %1129 = vmatprep.subr.mxu0 0.0
        %1130 = vmatpush1.msra.mxu0 0.0
        %1131 = vmatprep.subr.mxu0 0.0
        %1132 = vmatpush1.msra.mxu0 0.0
        %1133 = vmatprep.subr.mxu0 0.0
        %1134 = vmatpush1.msra.mxu0 0.0
        %1135 = vmatprep.subr.mxu0 0.0
        %1136 = vmatpush1.msra.mxu0 0.0
        %1137 = vmatprep.subr.mxu0 0.0
        %1138 = vmatpush1.msra.mxu0 0.0
        %1139 = vmatprep.subr.mxu0 0.0
        %1140 = vmatpush1.msra.mxu0 0.0
        %1141 = vmatprep.subr.mxu0 0.0
        %1142 = vmatpush1.msra.mxu0 0.0
        %1143 = vmatprep.subr.mxu0 0.0
        %1144 = vmatpush1.msra.mxu0 0.0
        %1145 = vmatprep.subr.mxu0 0.0
        %1146 = vmatpush1.msra.mxu0 0.0
        %1147 = vmatprep.subr.mxu0 0.0
        %1148 = vmatpush1.msra.mxu0 0.0
        %1149 = vmatprep.subr.mxu0 0.0
        %1150 = vmatpush1.msra.mxu0 0.0
        %1151 = vmatprep.subr.mxu0 0.0
        %1152 = vmatpush1.msra.mxu0 0.0
        %1153 = vmatprep.subr.mxu0 0.0
        %1154 = vmatpush1.msra.mxu0 0.0
        %1155 = vmatprep.mubr.f32.mxu0 0.0
        %1156 = vmatmul.mubr.f32.gmra.mrb[0].mxu0 %v1018
        %v1157 = vpop.f32.mrb[0].mxu0
        %v1158 = vadd.f32 0.0, %v1157
        %v1159 = vpop.f32.mrb[0].mxu0
        %v1160 = vadd.f32 0.0, %v1159
        %1161 = vdwg.mxu0
        %1162 = vmatprep.subr.mxu0 %v1012
        %1163 = vmatpush1.msra.mxu0 %v1011
        %1164 = vmatprep.subr.mxu0 0.0
        %1165 = vmatpush1.msra.mxu0 0.0
        %1166 = vmatprep.subr.mxu0 0.0
        %1167 = vmatpush1.msra.mxu0 0.0
        %1168 = vmatprep.subr.mxu0 0.0
        %1169 = vmatpush1.msra.mxu0 0.0
        %1170 = vmatprep.subr.mxu0 0.0
        %1171 = vmatpush1.msra.mxu0 0.0
        %1172 = vmatprep.subr.mxu0 0.0
        %1173 = vmatpush1.msra.mxu0 0.0
        %1174 = vmatprep.subr.mxu0 0.0
        %1175 = vmatpush1.msra.mxu0 0.0
        %1176 = vmatprep.subr.mxu0 0.0
        %1177 = vmatpush1.msra.mxu0 0.0
        %1178 = vmatprep.subr.mxu0 0.0
        %1179 = vmatpush1.msra.mxu0 0.0
        %1180 = vmatprep.subr.mxu0 0.0
        %1181 = vmatpush1.msra.mxu0 0.0
        %1182 = vmatprep.subr.mxu0 0.0
        %1183 = vmatpush1.msra.mxu0 0.0
        %1184 = vmatprep.subr.mxu0 0.0
        %1185 = vmatpush1.msra.mxu0 0.0
        %1186 = vmatprep.subr.mxu0 0.0
        %1187 = vmatpush1.msra.mxu0 0.0
        %1188 = vmatprep.subr.mxu0 0.0
        %1189 = vmatpush1.msra.mxu0 0.0
        %1190 = vmatprep.subr.mxu0 0.0
        %1191 = vmatpush1.msra.mxu0 0.0
        %1192 = vmatprep.subr.mxu0 0.0
        %1193 = vmatpush1.msra.mxu0 0.0
        %1194 = vmatprep.subr.mxu0 0.0
        %1195 = vmatpush1.msra.mxu0 0.0
        %1196 = vmatprep.subr.mxu0 0.0
        %1197 = vmatpush1.msra.mxu0 0.0
        %1198 = vmatprep.subr.mxu0 0.0
        %1199 = vmatpush1.msra.mxu0 0.0
        %1200 = vmatprep.subr.mxu0 0.0
        %1201 = vmatpush1.msra.mxu0 0.0
        %1202 = vmatprep.subr.mxu0 0.0
        %1203 = vmatpush1.msra.mxu0 0.0
        %1204 = vmatprep.subr.mxu0 0.0
        %1205 = vmatpush1.msra.mxu0 0.0
        %1206 = vmatprep.subr.mxu0 0.0
        %1207 = vmatpush1.msra.mxu0 0.0
        %1208 = vmatprep.subr.mxu0 0.0
        %1209 = vmatpush1.msra.mxu0 0.0
        %1210 = vmatprep.subr.mxu0 0.0
        %1211 = vmatpush1.msra.mxu0 0.0
        %1212 = vmatprep.subr.mxu0 0.0
        %1213 = vmatpush1.msra.mxu0 0.0
        %1214 = vmatprep.subr.mxu0 0.0
        %1215 = vmatpush1.msra.mxu0 0.0
        %1216 = vmatprep.subr.mxu0 0.0
        %1217 = vmatpush1.msra.mxu0 0.0
        %1218 = vmatprep.subr.mxu0 0.0
        %1219 = vmatpush1.msra.mxu0 0.0
        %1220 = vmatprep.subr.mxu0 0.0
        %1221 = vmatpush1.msra.mxu0 0.0
        %1222 = vmatprep.subr.mxu0 0.0
        %1223 = vmatpush1.msra.mxu0 0.0
        %1224 = vmatprep.subr.mxu0 0.0
        %1225 = vmatpush1.msra.mxu0 0.0
        %1226 = vmatprep.mubr.f32.mxu0 0.0
        %1227 = vmatmul.mubr.f32.gmra.mrb[0].mxu0 %v1018
        %v1228 = vpop.f32.mrb[0].mxu0
        %v1229 = vadd.f32 0.0, %v1228
        %v1230 = vpop.f32.mrb[0].mxu0
        %v1231 = vadd.f32 0.0, %v1230
        %1232 = vdwg.mxu0
        %1233 = vmatprep.subr.mxu0 %v1014
        %1234 = vmatpush1.msra.mxu0 %v1013
        %1235 = vmatprep.subr.mxu0 0.0
        %1236 = vmatpush1.msra.mxu0 0.0
        %1237 = vmatprep.subr.mxu0 0.0
        %1238 = vmatpush1.msra.mxu0 0.0
        %1239 = vmatprep.subr.mxu0 0.0
        %1240 = vmatpush1.msra.mxu0 0.0
        %1241 = vmatprep.subr.mxu0 0.0
        %1242 = vmatpush1.msra.mxu0 0.0
        %1243 = vmatprep.subr.mxu0 0.0
        %1244 = vmatpush1.msra.mxu0 0.0
        %1245 = vmatprep.subr.mxu0 0.0
        %1246 = vmatpush1.msra.mxu0 0.0
        %1247 = vmatprep.subr.mxu0 0.0
        %1248 = vmatpush1.msra.mxu0 0.0
        %1249 = vmatprep.subr.mxu0 0.0
        %1250 = vmatpush1.msra.mxu0 0.0
        %1251 = vmatprep.subr.mxu0 0.0
        %1252 = vmatpush1.msra.mxu0 0.0
        %1253 = vmatprep.subr.mxu0 0.0
        %1254 = vmatpush1.msra.mxu0 0.0
        %1255 = vmatprep.subr.mxu0 0.0
        %1256 = vmatpush1.msra.mxu0 0.0
        %1257 = vmatprep.subr.mxu0 0.0
        %1258 = vmatpush1.msra.mxu0 0.0
        %1259 = vmatprep.subr.mxu0 0.0
        %1260 = vmatpush1.msra.mxu0 0.0
        %1261 = vmatprep.subr.mxu0 0.0
        %1262 = vmatpush1.msra.mxu0 0.0
        %1263 = vmatprep.subr.mxu0 0.0
        %1264 = vmatpush1.msra.mxu0 0.0
        %1265 = vmatprep.subr.mxu0 0.0
        %1266 = vmatpush1.msra.mxu0 0.0
        %1267 = vmatprep.subr.mxu0 0.0
        %1268 = vmatpush1.msra.mxu0 0.0
        %1269 = vmatprep.subr.mxu0 0.0
        %1270 = vmatpush1.msra.mxu0 0.0
        %1271 = vmatprep.subr.mxu0 0.0
        %1272 = vmatpush1.msra.mxu0 0.0
        %1273 = vmatprep.subr.mxu0 0.0
        %1274 = vmatpush1.msra.mxu0 0.0
        %1275 = vmatprep.subr.mxu0 0.0
        %1276 = vmatpush1.msra.mxu0 0.0
        %1277 = vmatprep.subr.mxu0 0.0
        %1278 = vmatpush1.msra.mxu0 0.0
        %1279 = vmatprep.subr.mxu0 0.0
        %1280 = vmatpush1.msra.mxu0 0.0
        %1281 = vmatprep.subr.mxu0 0.0
        %1282 = vmatpush1.msra.mxu0 0.0
        %1283 = vmatprep.subr.mxu0 0.0
        %1284 = vmatpush1.msra.mxu0 0.0
        %1285 = vmatprep.subr.mxu0 0.0
        %1286 = vmatpush1.msra.mxu0 0.0
        %1287 = vmatprep.subr.mxu0 0.0
        %1288 = vmatpush1.msra.mxu0 0.0
        %1289 = vmatprep.subr.mxu0 0.0
        %1290 = vmatpush1.msra.mxu0 0.0
        %1291 = vmatprep.subr.mxu0 0.0
        %1292 = vmatpush1.msra.mxu0 0.0
        %1293 = vmatprep.subr.mxu0 0.0
        %1294 = vmatpush1.msra.mxu0 0.0
        %1295 = vmatprep.subr.mxu0 0.0
        %1296 = vmatpush1.msra.mxu0 0.0
        %1297 = vmatprep.mubr.f32.mxu0 0.0
        %1298 = vmatmul.mubr.f32.gmra.mrb[0].mxu0 %v1018
        %v1299 = vpop.f32.mrb[0].mxu0
        %v1300 = vadd.f32 0.0, %v1299
        %v1301 = vpop.f32.mrb[0].mxu0
        %v1302 = vadd.f32 0.0, %v1301
        %1303 = vdwg.mxu0
        %1304 = vmatprep.subr.mxu0 0.0
        %1305 = vmatpush1.msra.mxu0 %v1015
        %1306 = vmatprep.subr.mxu0 0.0
        %1307 = vmatpush1.msra.mxu0 0.0
        %1308 = vmatprep.subr.mxu0 0.0
        %1309 = vmatpush1.msra.mxu0 0.0
        %1310 = vmatprep.subr.mxu0 0.0
        %1311 = vmatpush1.msra.mxu0 0.0
        %1312 = vmatprep.subr.mxu0 0.0
        %1313 = vmatpush1.msra.mxu0 0.0
        %1314 = vmatprep.subr.mxu0 0.0
        %1315 = vmatpush1.msra.mxu0 0.0
        %1316 = vmatprep.subr.mxu0 0.0
        %1317 = vmatpush1.msra.mxu0 0.0
        %1318 = vmatprep.subr.mxu0 0.0
        %1319 = vmatpush1.msra.mxu0 0.0
        %1320 = vmatprep.subr.mxu0 0.0
        %1321 = vmatpush1.msra.mxu0 0.0
        %1322 = vmatprep.subr.mxu0 0.0
        %1323 = vmatpush1.msra.mxu0 0.0
        %1324 = vmatprep.subr.mxu0 0.0
        %1325 = vmatpush1.msra.mxu0 0.0
        %1326 = vmatprep.subr.mxu0 0.0
        %1327 = vmatpush1.msra.mxu0 0.0
        %1328 = vmatprep.subr.mxu0 0.0
        %1329 = vmatpush1.msra.mxu0 0.0
        %1330 = vmatprep.subr.mxu0 0.0
        %1331 = vmatpush1.msra.mxu0 0.0
        %1332 = vmatprep.subr.mxu0 0.0
        %1333 = vmatpush1.msra.mxu0 0.0
        %1334 = vmatprep.subr.mxu0 0.0
        %1335 = vmatpush1.msra.mxu0 0.0
        %1336 = vmatprep.subr.mxu0 0.0
        %1337 = vmatpush1.msra.mxu0 0.0
        %1338 = vmatprep.subr.mxu0 0.0
        %1339 = vmatpush1.msra.mxu0 0.0
        %1340 = vmatprep.subr.mxu0 0.0
        %1341 = vmatpush1.msra.mxu0 0.0
        %1342 = vmatprep.subr.mxu0 0.0
        %1343 = vmatpush1.msra.mxu0 0.0
        %1344 = vmatprep.subr.mxu0 0.0
        %1345 = vmatpush1.msra.mxu0 0.0
        %1346 = vmatprep.subr.mxu0 0.0
        %1347 = vmatpush1.msra.mxu0 0.0
        %1348 = vmatprep.subr.mxu0 0.0
        %1349 = vmatpush1.msra.mxu0 0.0
        %1350 = vmatprep.subr.mxu0 0.0
        %1351 = vmatpush1.msra.mxu0 0.0
        %1352 = vmatprep.subr.mxu0 0.0
        %1353 = vmatpush1.msra.mxu0 0.0
        %1354 = vmatprep.subr.mxu0 0.0
        %1355 = vmatpush1.msra.mxu0 0.0
        %1356 = vmatprep.subr.mxu0 0.0
        %1357 = vmatpush1.msra.mxu0 0.0
        %1358 = vmatprep.subr.mxu0 0.0
        %1359 = vmatpush1.msra.mxu0 0.0
        %1360 = vmatprep.subr.mxu0 0.0
        %1361 = vmatpush1.msra.mxu0 0.0
        %1362 = vmatprep.subr.mxu0 0.0
        %1363 = vmatpush1.msra.mxu0 0.0
        %1364 = vmatprep.subr.mxu0 0.0
        %1365 = vmatpush1.msra.mxu0 0.0
        %1366 = vmatprep.subr.mxu0 0.0
        %1367 = vmatpush1.msra.mxu0 0.0
        %1368 = vmatprep.mubr.f32.mxu0 0.0
        %1369 = vmatmul.mubr.f32.gmra.mrb[0].mxu0 %v1018
        %v1370 = vpop.f32.mrb[0].mxu0
        %v1371 = vadd.f32 0.0, %v1370
        %v1372 = vpop.f32.mrb[0].mxu0
        %1373 = vdwg.mxu0
        %v1374 = vadd.f32 %v1004, %v1087
        %v1375 = vadd.f32 %v1004, %v1089
        %v1376 = vadd.f32 %v1004, %v1158
        %v1377 = vadd.f32 %v1004, %v1160
        %v1378 = vadd.f32 %v1004, %v1229
        %v1379 = vadd.f32 %v1004, %v1231
        %v1380 = vadd.f32 %v1004, %v1300
        %v1381 = vadd.f32 %v1004, %v1302
        %v1382 = vadd.f32 %v1004, %v1371
        %s1383 = scalar_lea.vmem %s2, 8
        %v1384 = vld [vmem:[%s1383] sm:$0xff]
        %v1385 = vld [vmem:[#allocation2] sm:$0xff]
        %v1386 = vld [vmem:[#allocation2 + $0x8] sm:$0xff]
        %v1387 = vld [vmem:[#allocation2 + $0x10] sm:$0xff]
        %v1388 = vld [vmem:[#allocation2 + $0x18] sm:$0xff]
        %v1389 = vld [vmem:[#allocation2 + $0x20] sm:$0xff]
        %v1390 = vld [vmem:[#allocation2 + $0x28] sm:$0xff]
        %v1391 = vld [vmem:[#allocation2 + $0x30] sm:$0xff]
        %v1392 = vld [vmem:[#allocation2 + $0x38] sm:$0xff]
        %v1393 = vld [vmem:[#allocation2 + $0x40] sm:$0xff]
        %v1394 = vld [vmem:[#allocation2 + $0x48] sm:$0xff]
        %1405 = vrot.lane.b32.xlu0 %v1385, 127
        %v1406 = vpop.permute.xlu0 %1405
        %1407 = vrot.lane.b32.xlu0 %v1386, 127
        %v1408 = vpop.permute.xlu0 %1407
        %1409 = vrot.lane.b32.xlu0 %v1387, 127
        %v1410 = vpop.permute.xlu0 %1409
        %1411 = vrot.lane.b32.xlu0 %v1388, 127
        %v1412 = vpop.permute.xlu0 %1411
        %1413 = vrot.lane.b32.xlu0 %v1389, 127
        %v1414 = vpop.permute.xlu0 %1413
        %1415 = vrot.lane.b32.xlu0 %v1390, 127
        %v1416 = vpop.permute.xlu0 %1415
        %1417 = vrot.lane.b32.xlu0 %v1391, 127
        %v1418 = vpop.permute.xlu0 %1417
        %1419 = vrot.lane.b32.xlu0 %v1392, 127
        %v1420 = vpop.permute.xlu0 %1419
        %1421 = vrot.lane.b32.xlu0 %v1393, 127
        %v1422 = vpop.permute.xlu0 %1421
        %1423 = vrot.lane.b32.xlu0 %v1394, 127
        %v1424 = vpop.permute.xlu0 %1423
        %vm1425 = vcmask 1039360
        %v1426 = vsel %vm1425, %v1406, %v1408
        %v1427 = vsel %vm1425, %v1408, %v1410
        %v1428 = vsel %vm1425, %v1410, %v1412
        %v1429 = vsel %vm1425, %v1412, %v1414
        %v1430 = vsel %vm1425, %v1414, %v1416
        %v1431 = vsel %vm1425, %v1416, %v1418
        %v1432 = vsel %vm1425, %v1418, %v1420
        %v1433 = vsel %vm1425, %v1420, %v1422
        %v1434 = vsel %vm1425, %v1422, %v1424
        %v1445 = vsel %vm1016, %v1384, 0
        %1447 = vmatprep.subr.mxu0 %v1427
        %1448 = vmatpush1.msra.mxu0 %v1426
        %1449 = vmatprep.subr.mxu0 0.0
        %1450 = vmatpush1.msra.mxu0 0.0
        %1451 = vmatprep.subr.mxu0 0.0
        %1452 = vmatpush1.msra.mxu0 0.0
        %1453 = vmatprep.subr.mxu0 0.0
        %1454 = vmatpush1.msra.mxu0 0.0
        %1455 = vmatprep.subr.mxu0 0.0
        %1456 = vmatpush1.msra.mxu0 0.0
        %1457 = vmatprep.subr.mxu0 0.0
        %1458 = vmatpush1.msra.mxu0 0.0
        %1459 = vmatprep.subr.mxu0 0.0
        %1460 = vmatpush1.msra.mxu0 0.0
        %1461 = vmatprep.subr.mxu0 0.0
        %1462 = vmatpush1.msra.mxu0 0.0
        %1463 = vmatprep.subr.mxu0 0.0
        %1464 = vmatpush1.msra.mxu0 0.0
        %1465 = vmatprep.subr.mxu0 0.0
        %1466 = vmatpush1.msra.mxu0 0.0
        %1467 = vmatprep.subr.mxu0 0.0
        %1468 = vmatpush1.msra.mxu0 0.0
        %1469 = vmatprep.subr.mxu0 0.0
        %1470 = vmatpush1.msra.mxu0 0.0
        %1471 = vmatprep.subr.mxu0 0.0
        %1472 = vmatpush1.msra.mxu0 0.0
        %1473 = vmatprep.subr.mxu0 0.0
        %1474 = vmatpush1.msra.mxu0 0.0
        %1475 = vmatprep.subr.mxu0 0.0
        %1476 = vmatpush1.msra.mxu0 0.0
        %1477 = vmatprep.subr.mxu0 0.0
        %1478 = vmatpush1.msra.mxu0 0.0
        %1479 = vmatprep.subr.mxu0 0.0
        %1480 = vmatpush1.msra.mxu0 0.0
        %1481 = vmatprep.subr.mxu0 0.0
        %1482 = vmatpush1.msra.mxu0 0.0
        %1483 = vmatprep.subr.mxu0 0.0
        %1484 = vmatpush1.msra.mxu0 0.0
        %1485 = vmatprep.subr.mxu0 0.0
        %1486 = vmatpush1.msra.mxu0 0.0
        %1487 = vmatprep.subr.mxu0 0.0
        %1488 = vmatpush1.msra.mxu0 0.0
        %1489 = vmatprep.subr.mxu0 0.0
        %1490 = vmatpush1.msra.mxu0 0.0
        %1491 = vmatprep.subr.mxu0 0.0
        %1492 = vmatpush1.msra.mxu0 0.0
        %1493 = vmatprep.subr.mxu0 0.0
        %1494 = vmatpush1.msra.mxu0 0.0
        %1495 = vmatprep.subr.mxu0 0.0
        %1496 = vmatpush1.msra.mxu0 0.0
        %1497 = vmatprep.subr.mxu0 0.0
        %1498 = vmatpush1.msra.mxu0 0.0
        %1499 = vmatprep.subr.mxu0 0.0
        %1500 = vmatpush1.msra.mxu0 0.0
        %1501 = vmatprep.subr.mxu0 0.0
        %1502 = vmatpush1.msra.mxu0 0.0
        %1503 = vmatprep.subr.mxu0 0.0
        %1504 = vmatpush1.msra.mxu0 0.0
        %1505 = vmatprep.subr.mxu0 0.0
        %1506 = vmatpush1.msra.mxu0 0.0
        %1507 = vmatprep.subr.mxu0 0.0
        %1508 = vmatpush1.msra.mxu0 0.0
        %1509 = vmatprep.subr.mxu0 0.0
        %1510 = vmatpush1.msra.mxu0 0.0
        %1511 = vmatprep.mubr.f32.mxu0 0.0
        %1512 = vmatmul.mubr.f32.gmra.mrb[0].mxu0 %v1445
        %v1513 = vpop.f32.mrb[0].mxu0
        %v1514 = vadd.f32 0.0, %v1513
        %v1515 = vpop.f32.mrb[0].mxu0
        %v1516 = vadd.f32 0.0, %v1515
        %1517 = vdwg.mxu0
        %1518 = vmatprep.subr.mxu0 %v1429
        %1519 = vmatpush1.msra.mxu0 %v1428
        %1520 = vmatprep.subr.mxu0 0.0
        %1521 = vmatpush1.msra.mxu0 0.0
        %1522 = vmatprep.subr.mxu0 0.0
        %1523 = vmatpush1.msra.mxu0 0.0
        %1524 = vmatprep.subr.mxu0 0.0
        %1525 = vmatpush1.msra.mxu0 0.0
        %1526 = vmatprep.subr.mxu0 0.0
        %1527 = vmatpush1.msra.mxu0 0.0
        %1528 = vmatprep.subr.mxu0 0.0
        %1529 = vmatpush1.msra.mxu0 0.0
        %1530 = vmatprep.subr.mxu0 0.0
        %1531 = vmatpush1.msra.mxu0 0.0
        %1532 = vmatprep.subr.mxu0 0.0
        %1533 = vmatpush1.msra.mxu0 0.0
        %1534 = vmatprep.subr.mxu0 0.0
        %1535 = vmatpush1.msra.mxu0 0.0
        %1536 = vmatprep.subr.mxu0 0.0
        %1537 = vmatpush1.msra.mxu0 0.0
        %1538 = vmatprep.subr.mxu0 0.0
        %1539 = vmatpush1.msra.mxu0 0.0
        %1540 = vmatprep.subr.mxu0 0.0
        %1541 = vmatpush1.msra.mxu0 0.0
        %1542 = vmatprep.subr.mxu0 0.0
        %1543 = vmatpush1.msra.mxu0 0.0
        %1544 = vmatprep.subr.mxu0 0.0
        %1545 = vmatpush1.msra.mxu0 0.0
        %1546 = vmatprep.subr.mxu0 0.0
        %1547 = vmatpush1.msra.mxu0 0.0
        %1548 = vmatprep.subr.mxu0 0.0
        %1549 = vmatpush1.msra.mxu0 0.0
        %1550 = vmatprep.subr.mxu0 0.0
        %1551 = vmatpush1.msra.mxu0 0.0
        %1552 = vmatprep.subr.mxu0 0.0
        %1553 = vmatpush1.msra.mxu0 0.0
        %1554 = vmatprep.subr.mxu0 0.0
        %1555 = vmatpush1.msra.mxu0 0.0
        %1556 = vmatprep.subr.mxu0 0.0
        %1557 = vmatpush1.msra.mxu0 0.0
        %1558 = vmatprep.subr.mxu0 0.0
        %1559 = vmatpush1.msra.mxu0 0.0
        %1560 = vmatprep.subr.mxu0 0.0
        %1561 = vmatpush1.msra.mxu0 0.0
        %1562 = vmatprep.subr.mxu0 0.0
        %1563 = vmatpush1.msra.mxu0 0.0
        %1564 = vmatprep.subr.mxu0 0.0
        %1565 = vmatpush1.msra.mxu0 0.0
        %1566 = vmatprep.subr.mxu0 0.0
        %1567 = vmatpush1.msra.mxu0 0.0
        %1568 = vmatprep.subr.mxu0 0.0
        %1569 = vmatpush1.msra.mxu0 0.0
        %1570 = vmatprep.subr.mxu0 0.0
        %1571 = vmatpush1.msra.mxu0 0.0
        %1572 = vmatprep.subr.mxu0 0.0
        %1573 = vmatpush1.msra.mxu0 0.0
        %1574 = vmatprep.subr.mxu0 0.0
        %1575 = vmatpush1.msra.mxu0 0.0
        %1576 = vmatprep.subr.mxu0 0.0
        %1577 = vmatpush1.msra.mxu0 0.0
        %1578 = vmatprep.subr.mxu0 0.0
        %1579 = vmatpush1.msra.mxu0 0.0
        %1580 = vmatprep.subr.mxu0 0.0
        %1581 = vmatpush1.msra.mxu0 0.0
        %1582 = vmatprep.mubr.f32.mxu0 0.0
        %1583 = vmatmul.mubr.f32.gmra.mrb[0].mxu0 %v1445
        %v1584 = vpop.f32.mrb[0].mxu0
        %v1585 = vadd.f32 0.0, %v1584
        %v1586 = vpop.f32.mrb[0].mxu0
        %v1587 = vadd.f32 0.0, %v1586
        %1588 = vdwg.mxu0
        %1589 = vmatprep.subr.mxu0 %v1431
        %1590 = vmatpush1.msra.mxu0 %v1430
        %1591 = vmatprep.subr.mxu0 0.0
        %1592 = vmatpush1.msra.mxu0 0.0
        %1593 = vmatprep.subr.mxu0 0.0
        %1594 = vmatpush1.msra.mxu0 0.0
        %1595 = vmatprep.subr.mxu0 0.0
        %1596 = vmatpush1.msra.mxu0 0.0
        %1597 = vmatprep.subr.mxu0 0.0
        %1598 = vmatpush1.msra.mxu0 0.0
        %1599 = vmatprep.subr.mxu0 0.0
        %1600 = vmatpush1.msra.mxu0 0.0
        %1601 = vmatprep.subr.mxu0 0.0
        %1602 = vmatpush1.msra.mxu0 0.0
        %1603 = vmatprep.subr.mxu0 0.0
        %1604 = vmatpush1.msra.mxu0 0.0
        %1605 = vmatprep.subr.mxu0 0.0
        %1606 = vmatpush1.msra.mxu0 0.0
        %1607 = vmatprep.subr.mxu0 0.0
        %1608 = vmatpush1.msra.mxu0 0.0
        %1609 = vmatprep.subr.mxu0 0.0
        %1610 = vmatpush1.msra.mxu0 0.0
        %1611 = vmatprep.subr.mxu0 0.0
        %1612 = vmatpush1.msra.mxu0 0.0
        %1613 = vmatprep.subr.mxu0 0.0
        %1614 = vmatpush1.msra.mxu0 0.0
        %1615 = vmatprep.subr.mxu0 0.0
        %1616 = vmatpush1.msra.mxu0 0.0
        %1617 = vmatprep.subr.mxu0 0.0
        %1618 = vmatpush1.msra.mxu0 0.0
        %1619 = vmatprep.subr.mxu0 0.0
        %1620 = vmatpush1.msra.mxu0 0.0
        %1621 = vmatprep.subr.mxu0 0.0
        %1622 = vmatpush1.msra.mxu0 0.0
        %1623 = vmatprep.subr.mxu0 0.0
        %1624 = vmatpush1.msra.mxu0 0.0
        %1625 = vmatprep.subr.mxu0 0.0
        %1626 = vmatpush1.msra.mxu0 0.0
        %1627 = vmatprep.subr.mxu0 0.0
        %1628 = vmatpush1.msra.mxu0 0.0
        %1629 = vmatprep.subr.mxu0 0.0
        %1630 = vmatpush1.msra.mxu0 0.0
        %1631 = vmatprep.subr.mxu0 0.0
        %1632 = vmatpush1.msra.mxu0 0.0
        %1633 = vmatprep.subr.mxu0 0.0
        %1634 = vmatpush1.msra.mxu0 0.0
        %1635 = vmatprep.subr.mxu0 0.0
        %1636 = vmatpush1.msra.mxu0 0.0
        %1637 = vmatprep.subr.mxu0 0.0
        %1638 = vmatpush1.msra.mxu0 0.0
        %1639 = vmatprep.subr.mxu0 0.0
        %1640 = vmatpush1.msra.mxu0 0.0
        %1641 = vmatprep.subr.mxu0 0.0
        %1642 = vmatpush1.msra.mxu0 0.0
        %1643 = vmatprep.subr.mxu0 0.0
        %1644 = vmatpush1.msra.mxu0 0.0
        %1645 = vmatprep.subr.mxu0 0.0
        %1646 = vmatpush1.msra.mxu0 0.0
        %1647 = vmatprep.subr.mxu0 0.0
        %1648 = vmatpush1.msra.mxu0 0.0
        %1649 = vmatprep.subr.mxu0 0.0
        %1650 = vmatpush1.msra.mxu0 0.0
        %1651 = vmatprep.subr.mxu0 0.0
        %1652 = vmatpush1.msra.mxu0 0.0
        %1653 = vmatprep.mubr.f32.mxu0 0.0
        %1654 = vmatmul.mubr.f32.gmra.mrb[0].mxu0 %v1445
        %v1655 = vpop.f32.mrb[0].mxu0
        %v1656 = vadd.f32 0.0, %v1655
        %v1657 = vpop.f32.mrb[0].mxu0
        %v1658 = vadd.f32 0.0, %v1657
        %1659 = vdwg.mxu0
        %1660 = vmatprep.subr.mxu0 %v1433
        %1661 = vmatpush1.msra.mxu0 %v1432
        %1662 = vmatprep.subr.mxu0 0.0
        %1663 = vmatpush1.msra.mxu0 0.0
        %1664 = vmatprep.subr.mxu0 0.0
        %1665 = vmatpush1.msra.mxu0 0.0
        %1666 = vmatprep.subr.mxu0 0.0
        %1667 = vmatpush1.msra.mxu0 0.0
        %1668 = vmatprep.subr.mxu0 0.0
        %1669 = vmatpush1.msra.mxu0 0.0
        %1670 = vmatprep.subr.mxu0 0.0
        %1671 = vmatpush1.msra.mxu0 0.0
        %1672 = vmatprep.subr.mxu0 0.0
        %1673 = vmatpush1.msra.mxu0 0.0
        %1674 = vmatprep.subr.mxu0 0.0
        %1675 = vmatpush1.msra.mxu0 0.0
        %1676 = vmatprep.subr.mxu0 0.0
        %1677 = vmatpush1.msra.mxu0 0.0
        %1678 = vmatprep.subr.mxu0 0.0
        %1679 = vmatpush1.msra.mxu0 0.0
        %1680 = vmatprep.subr.mxu0 0.0
        %1681 = vmatpush1.msra.mxu0 0.0
        %1682 = vmatprep.subr.mxu0 0.0
        %1683 = vmatpush1.msra.mxu0 0.0
        %1684 = vmatprep.subr.mxu0 0.0
        %1685 = vmatpush1.msra.mxu0 0.0
        %1686 = vmatprep.subr.mxu0 0.0
        %1687 = vmatpush1.msra.mxu0 0.0
        %1688 = vmatprep.subr.mxu0 0.0
        %1689 = vmatpush1.msra.mxu0 0.0
        %1690 = vmatprep.subr.mxu0 0.0
        %1691 = vmatpush1.msra.mxu0 0.0
        %1692 = vmatprep.subr.mxu0 0.0
        %1693 = vmatpush1.msra.mxu0 0.0
        %1694 = vmatprep.subr.mxu0 0.0
        %1695 = vmatpush1.msra.mxu0 0.0
        %1696 = vmatprep.subr.mxu0 0.0
        %1697 = vmatpush1.msra.mxu0 0.0
        %1698 = vmatprep.subr.mxu0 0.0
        %1699 = vmatpush1.msra.mxu0 0.0
        %1700 = vmatprep.subr.mxu0 0.0
        %1701 = vmatpush1.msra.mxu0 0.0
        %1702 = vmatprep.subr.mxu0 0.0
        %1703 = vmatpush1.msra.mxu0 0.0
        %1704 = vmatprep.subr.mxu0 0.0
        %1705 = vmatpush1.msra.mxu0 0.0
        %1706 = vmatprep.subr.mxu0 0.0
        %1707 = vmatpush1.msra.mxu0 0.0
        %1708 = vmatprep.subr.mxu0 0.0
        %1709 = vmatpush1.msra.mxu0 0.0
        %1710 = vmatprep.subr.mxu0 0.0
        %1711 = vmatpush1.msra.mxu0 0.0
        %1712 = vmatprep.subr.mxu0 0.0
        %1713 = vmatpush1.msra.mxu0 0.0
        %1714 = vmatprep.subr.mxu0 0.0
        %1715 = vmatpush1.msra.mxu0 0.0
        %1716 = vmatprep.subr.mxu0 0.0
        %1717 = vmatpush1.msra.mxu0 0.0
        %1718 = vmatprep.subr.mxu0 0.0
        %1719 = vmatpush1.msra.mxu0 0.0
        %1720 = vmatprep.subr.mxu0 0.0
        %1721 = vmatpush1.msra.mxu0 0.0
        %1722 = vmatprep.subr.mxu0 0.0
        %1723 = vmatpush1.msra.mxu0 0.0
        %1724 = vmatprep.mubr.f32.mxu0 0.0
        %1725 = vmatmul.mubr.f32.gmra.mrb[0].mxu0 %v1445
        %v1726 = vpop.f32.mrb[0].mxu0
        %v1727 = vadd.f32 0.0, %v1726
        %v1728 = vpop.f32.mrb[0].mxu0
        %v1729 = vadd.f32 0.0, %v1728
        %1730 = vdwg.mxu0
        %1731 = vmatprep.subr.mxu0 0.0
        %1732 = vmatpush1.msra.mxu0 %v1434
        %1733 = vmatprep.subr.mxu0 0.0
        %1734 = vmatpush1.msra.mxu0 0.0
        %1735 = vmatprep.subr.mxu0 0.0
        %1736 = vmatpush1.msra.mxu0 0.0
        %1737 = vmatprep.subr.mxu0 0.0
        %1738 = vmatpush1.msra.mxu0 0.0
        %1739 = vmatprep.subr.mxu0 0.0
        %1740 = vmatpush1.msra.mxu0 0.0
        %1741 = vmatprep.subr.mxu0 0.0
        %1742 = vmatpush1.msra.mxu0 0.0
        %1743 = vmatprep.subr.mxu0 0.0
        %1744 = vmatpush1.msra.mxu0 0.0
        %1745 = vmatprep.subr.mxu0 0.0
        %1746 = vmatpush1.msra.mxu0 0.0
        %1747 = vmatprep.subr.mxu0 0.0
        %1748 = vmatpush1.msra.mxu0 0.0
        %1749 = vmatprep.subr.mxu0 0.0
        %1750 = vmatpush1.msra.mxu0 0.0
        %1751 = vmatprep.subr.mxu0 0.0
        %1752 = vmatpush1.msra.mxu0 0.0
        %1753 = vmatprep.subr.mxu0 0.0
        %1754 = vmatpush1.msra.mxu0 0.0
        %1755 = vmatprep.subr.mxu0 0.0
        %1756 = vmatpush1.msra.mxu0 0.0
        %1757 = vmatprep.subr.mxu0 0.0
        %1758 = vmatpush1.msra.mxu0 0.0
        %1759 = vmatprep.subr.mxu0 0.0
        %1760 = vmatpush1.msra.mxu0 0.0
        %1761 = vmatprep.subr.mxu0 0.0
        %1762 = vmatpush1.msra.mxu0 0.0
        %1763 = vmatprep.subr.mxu0 0.0
        %1764 = vmatpush1.msra.mxu0 0.0
        %1765 = vmatprep.subr.mxu0 0.0
        %1766 = vmatpush1.msra.mxu0 0.0
        %1767 = vmatprep.subr.mxu0 0.0
        %1768 = vmatpush1.msra.mxu0 0.0
        %1769 = vmatprep.subr.mxu0 0.0
        %1770 = vmatpush1.msra.mxu0 0.0
        %1771 = vmatprep.subr.mxu0 0.0
        %1772 = vmatpush1.msra.mxu0 0.0
        %1773 = vmatprep.subr.mxu0 0.0
        %1774 = vmatpush1.msra.mxu0 0.0
        %1775 = vmatprep.subr.mxu0 0.0
        %1776 = vmatpush1.msra.mxu0 0.0
        %1777 = vmatprep.subr.mxu0 0.0
        %1778 = vmatpush1.msra.mxu0 0.0
        %1779 = vmatprep.subr.mxu0 0.0
        %1780 = vmatpush1.msra.mxu0 0.0
        %1781 = vmatprep.subr.mxu0 0.0
        %1782 = vmatpush1.msra.mxu0 0.0
        %1783 = vmatprep.subr.mxu0 0.0
        %1784 = vmatpush1.msra.mxu0 0.0
        %1785 = vmatprep.subr.mxu0 0.0
        %1786 = vmatpush1.msra.mxu0 0.0
        %1787 = vmatprep.subr.mxu0 0.0
        %1788 = vmatpush1.msra.mxu0 0.0
        %1789 = vmatprep.subr.mxu0 0.0
        %1790 = vmatpush1.msra.mxu0 0.0
        %1791 = vmatprep.subr.mxu0 0.0
        %1792 = vmatpush1.msra.mxu0 0.0
        %1793 = vmatprep.subr.mxu0 0.0
        %1794 = vmatpush1.msra.mxu0 0.0
        %1795 = vmatprep.mubr.f32.mxu0 0.0
        %1796 = vmatmul.mubr.f32.gmra.mrb[0].mxu0 %v1445
        %v1797 = vpop.f32.mrb[0].mxu0
        %v1798 = vadd.f32 0.0, %v1797
        %v1799 = vpop.f32.mrb[0].mxu0
        %1800 = vdwg.mxu0
        %v1801 = vadd.f32 %v1374, %v1514
        %v1802 = vadd.f32 %v1375, %v1516
        %v1803 = vadd.f32 %v1376, %v1585
        %v1804 = vadd.f32 %v1377, %v1587
        %v1805 = vadd.f32 %v1378, %v1656
        %v1806 = vadd.f32 %v1379, %v1658
        %v1807 = vadd.f32 %v1380, %v1727
        %v1808 = vadd.f32 %v1381, %v1729
        %v1809 = vadd.f32 %v1382, %v1798
        %s1810 = scalar_lea.vmem %s2, 16
        %v1811 = vld [vmem:[%s1810] sm:$0xff]
        %1812 = vrot.lane.b32.xlu0 %v1385, 126
        %v1813 = vpop.permute.xlu0 %1812
        %1814 = vrot.lane.b32.xlu0 %v1386, 126
        %v1815 = vpop.permute.xlu0 %1814
        %1816 = vrot.lane.b32.xlu0 %v1387, 126
        %v1817 = vpop.permute.xlu0 %1816
        %1818 = vrot.lane.b32.xlu0 %v1388, 126
        %v1819 = vpop.permute.xlu0 %1818
        %1820 = vrot.lane.b32.xlu0 %v1389, 126
        %v1821 = vpop.permute.xlu0 %1820
        %1822 = vrot.lane.b32.xlu0 %v1390, 126
        %v1823 = vpop.permute.xlu0 %1822
        %1824 = vrot.lane.b32.xlu0 %v1391, 126
        %v1825 = vpop.permute.xlu0 %1824
        %1826 = vrot.lane.b32.xlu0 %v1392, 126
        %v1827 = vpop.permute.xlu0 %1826
        %1828 = vrot.lane.b32.xlu0 %v1393, 126
        %v1829 = vpop.permute.xlu0 %1828
        %1830 = vrot.lane.b32.xlu0 %v1394, 126
        %v1831 = vpop.permute.xlu0 %1830
        %vm1832 = vcmask 1031168
        %v1833 = vsel %vm1832, %v1813, %v1815
        %v1834 = vsel %vm1832, %v1815, %v1817
        %v1835 = vsel %vm1832, %v1817, %v1819
        %v1836 = vsel %vm1832, %v1819, %v1821
        %v1837 = vsel %vm1832, %v1821, %v1823
        %v1838 = vsel %vm1832, %v1823, %v1825
        %v1839 = vsel %vm1832, %v1825, %v1827
        %v1840 = vsel %vm1832, %v1827, %v1829
        %v1841 = vsel %vm1832, %v1829, %v1831
        %v1852 = vsel %vm1016, %v1811, 0
        %1854 = vmatprep.subr.mxu0 %v1834
        %1855 = vmatpush1.msra.mxu0 %v1833
        %1856 = vmatprep.subr.mxu0 0.0
        %1857 = vmatpush1.msra.mxu0 0.0
        %1858 = vmatprep.subr.mxu0 0.0
        %1859 = vmatpush1.msra.mxu0 0.0
        %1860 = vmatprep.subr.mxu0 0.0
        %1861 = vmatpush1.msra.mxu0 0.0
        %1862 = vmatprep.subr.mxu0 0.0
        %1863 = vmatpush1.msra.mxu0 0.0
        %1864 = vmatprep.subr.mxu0 0.0
        %1865 = vmatpush1.msra.mxu0 0.0
        %1866 = vmatprep.subr.mxu0 0.0
        %1867 = vmatpush1.msra.mxu0 0.0
        %1868 = vmatprep.subr.mxu0 0.0
        %1869 = vmatpush1.msra.mxu0 0.0
        %1870 = vmatprep.subr.mxu0 0.0
        %1871 = vmatpush1.msra.mxu0 0.0
        %1872 = vmatprep.subr.mxu0 0.0
        %1873 = vmatpush1.msra.mxu0 0.0
        %1874 = vmatprep.subr.mxu0 0.0
        %1875 = vmatpush1.msra.mxu0 0.0
        %1876 = vmatprep.subr.mxu0 0.0
        %1877 = vmatpush1.msra.mxu0 0.0
        %1878 = vmatprep.subr.mxu0 0.0
        %1879 = vmatpush1.msra.mxu0 0.0
        %1880 = vmatprep.subr.mxu0 0.0
        %1881 = vmatpush1.msra.mxu0 0.0
        %1882 = vmatprep.subr.mxu0 0.0
        %1883 = vmatpush1.msra.mxu0 0.0
        %1884 = vmatprep.subr.mxu0 0.0
        %1885 = vmatpush1.msra.mxu0 0.0
        %1886 = vmatprep.subr.mxu0 0.0
        %1887 = vmatpush1.msra.mxu0 0.0
        %1888 = vmatprep.subr.mxu0 0.0
        %1889 = vmatpush1.msra.mxu0 0.0
        %1890 = vmatprep.subr.mxu0 0.0
        %1891 = vmatpush1.msra.mxu0 0.0
        %1892 = vmatprep.subr.mxu0 0.0
        %1893 = vmatpush1.msra.mxu0 0.0
        %1894 = vmatprep.subr.mxu0 0.0
        %1895 = vmatpush1.msra.mxu0 0.0
        %1896 = vmatprep.subr.mxu0 0.0
        %1897 = vmatpush1.msra.mxu0 0.0
        %1898 = vmatprep.subr.mxu0 0.0
        %1899 = vmatpush1.msra.mxu0 0.0
        %1900 = vmatprep.subr.mxu0 0.0
        %1901 = vmatpush1.msra.mxu0 0.0
        %1902 = vmatprep.subr.mxu0 0.0
        %1903 = vmatpush1.msra.mxu0 0.0
        %1904 = vmatprep.subr.mxu0 0.0
        %1905 = vmatpush1.msra.mxu0 0.0
        %1906 = vmatprep.subr.mxu0 0.0
        %1907 = vmatpush1.msra.mxu0 0.0
        %1908 = vmatprep.subr.mxu0 0.0
        %1909 = vmatpush1.msra.mxu0 0.0
        %1910 = vmatprep.subr.mxu0 0.0
        %1911 = vmatpush1.msra.mxu0 0.0
        %1912 = vmatprep.subr.mxu0 0.0
        %1913 = vmatpush1.msra.mxu0 0.0
        %1914 = vmatprep.subr.mxu0 0.0
        %1915 = vmatpush1.msra.mxu0 0.0
        %1916 = vmatprep.subr.mxu0 0.0
        %1917 = vmatpush1.msra.mxu0 0.0
        %1918 = vmatprep.mubr.f32.mxu0 0.0
        %1919 = vmatmul.mubr.f32.gmra.mrb[0].mxu0 %v1852
        %v1920 = vpop.f32.mrb[0].mxu0
        %v1921 = vadd.f32 0.0, %v1920
        %v1922 = vpop.f32.mrb[0].mxu0
        %v1923 = vadd.f32 0.0, %v1922
        %1924 = vdwg.mxu0
        %1925 = vmatprep.subr.mxu0 %v1836
        %1926 = vmatpush1.msra.mxu0 %v1835
        %1927 = vmatprep.subr.mxu0 0.0
        %1928 = vmatpush1.msra.mxu0 0.0
        %1929 = vmatprep.subr.mxu0 0.0
        %1930 = vmatpush1.msra.mxu0 0.0
        %1931 = vmatprep.subr.mxu0 0.0
        %1932 = vmatpush1.msra.mxu0 0.0
        %1933 = vmatprep.subr.mxu0 0.0
        %1934 = vmatpush1.msra.mxu0 0.0
        %1935 = vmatprep.subr.mxu0 0.0
        %1936 = vmatpush1.msra.mxu0 0.0
        %1937 = vmatprep.subr.mxu0 0.0
        %1938 = vmatpush1.msra.mxu0 0.0
        %1939 = vmatprep.subr.mxu0 0.0
        %1940 = vmatpush1.msra.mxu0 0.0
        %1941 = vmatprep.subr.mxu0 0.0
        %1942 = vmatpush1.msra.mxu0 0.0
        %1943 = vmatprep.subr.mxu0 0.0
        %1944 = vmatpush1.msra.mxu0 0.0
        %1945 = vmatprep.subr.mxu0 0.0
        %1946 = vmatpush1.msra.mxu0 0.0
        %1947 = vmatprep.subr.mxu0 0.0
        %1948 = vmatpush1.msra.mxu0 0.0
        %1949 = vmatprep.subr.mxu0 0.0
        %1950 = vmatpush1.msra.mxu0 0.0
        %1951 = vmatprep.subr.mxu0 0.0
        %1952 = vmatpush1.msra.mxu0 0.0
        %1953 = vmatprep.subr.mxu0 0.0
        %1954 = vmatpush1.msra.mxu0 0.0
        %1955 = vmatprep.subr.mxu0 0.0
        %1956 = vmatpush1.msra.mxu0 0.0
        %1957 = vmatprep.subr.mxu0 0.0
        %1958 = vmatpush1.msra.mxu0 0.0
        %1959 = vmatprep.subr.mxu0 0.0
        %1960 = vmatpush1.msra.mxu0 0.0
        %1961 = vmatprep.subr.mxu0 0.0
        %1962 = vmatpush1.msra.mxu0 0.0
        %1963 = vmatprep.subr.mxu0 0.0
        %1964 = vmatpush1.msra.mxu0 0.0
        %1965 = vmatprep.subr.mxu0 0.0
        %1966 = vmatpush1.msra.mxu0 0.0
        %1967 = vmatprep.subr.mxu0 0.0
        %1968 = vmatpush1.msra.mxu0 0.0
        %1969 = vmatprep.subr.mxu0 0.0
        %1970 = vmatpush1.msra.mxu0 0.0
        %1971 = vmatprep.subr.mxu0 0.0
        %1972 = vmatpush1.msra.mxu0 0.0
        %1973 = vmatprep.subr.mxu0 0.0
        %1974 = vmatpush1.msra.mxu0 0.0
        %1975 = vmatprep.subr.mxu0 0.0
        %1976 = vmatpush1.msra.mxu0 0.0
        %1977 = vmatprep.subr.mxu0 0.0
        %1978 = vmatpush1.msra.mxu0 0.0
        %1979 = vmatprep.subr.mxu0 0.0
        %1980 = vmatpush1.msra.mxu0 0.0
        %1981 = vmatprep.subr.mxu0 0.0
        %1982 = vmatpush1.msra.mxu0 0.0
        %1983 = vmatprep.subr.mxu0 0.0
        %1984 = vmatpush1.msra.mxu0 0.0
        %1985 = vmatprep.subr.mxu0 0.0
        %1986 = vmatpush1.msra.mxu0 0.0
        %1987 = vmatprep.subr.mxu0 0.0
        %1988 = vmatpush1.msra.mxu0 0.0
        %1989 = vmatprep.mubr.f32.mxu0 0.0
        %1990 = vmatmul.mubr.f32.gmra.mrb[0].mxu0 %v1852
        %v1991 = vpop.f32.mrb[0].mxu0
        %v1992 = vadd.f32 0.0, %v1991
        %v1993 = vpop.f32.mrb[0].mxu0
        %v1994 = vadd.f32 0.0, %v1993
        %1995 = vdwg.mxu0
        %1996 = vmatprep.subr.mxu0 %v1838
        %1997 = vmatpush1.msra.mxu0 %v1837
        %1998 = vmatprep.subr.mxu0 0.0
        %1999 = vmatpush1.msra.mxu0 0.0
        %2000 = vmatprep.subr.mxu0 0.0
        %2001 = vmatpush1.msra.mxu0 0.0
        %2002 = vmatprep.subr.mxu0 0.0
        %2003 = vmatpush1.msra.mxu0 0.0
        %2004 = vmatprep.subr.mxu0 0.0
        %2005 = vmatpush1.msra.mxu0 0.0
        %2006 = vmatprep.subr.mxu0 0.0
        %2007 = vmatpush1.msra.mxu0 0.0
        %2008 = vmatprep.subr.mxu0 0.0
        %2009 = vmatpush1.msra.mxu0 0.0
        %2010 = vmatprep.subr.mxu0 0.0
        %2011 = vmatpush1.msra.mxu0 0.0
        %2012 = vmatprep.subr.mxu0 0.0
        %2013 = vmatpush1.msra.mxu0 0.0
        %2014 = vmatprep.subr.mxu0 0.0
        %2015 = vmatpush1.msra.mxu0 0.0
        %2016 = vmatprep.subr.mxu0 0.0
        %2017 = vmatpush1.msra.mxu0 0.0
        %2018 = vmatprep.subr.mxu0 0.0
        %2019 = vmatpush1.msra.mxu0 0.0
        %2020 = vmatprep.subr.mxu0 0.0
        %2021 = vmatpush1.msra.mxu0 0.0
        %2022 = vmatprep.subr.mxu0 0.0
        %2023 = vmatpush1.msra.mxu0 0.0
        %2024 = vmatprep.subr.mxu0 0.0
        %2025 = vmatpush1.msra.mxu0 0.0
        %2026 = vmatprep.subr.mxu0 0.0
        %2027 = vmatpush1.msra.mxu0 0.0
        %2028 = vmatprep.subr.mxu0 0.0
        %2029 = vmatpush1.msra.mxu0 0.0
        %2030 = vmatprep.subr.mxu0 0.0
        %2031 = vmatpush1.msra.mxu0 0.0
        %2032 = vmatprep.subr.mxu0 0.0
        %2033 = vmatpush1.msra.mxu0 0.0
        %2034 = vmatprep.subr.mxu0 0.0
        %2035 = vmatpush1.msra.mxu0 0.0
        %2036 = vmatprep.subr.mxu0 0.0
        %2037 = vmatpush1.msra.mxu0 0.0
        %2038 = vmatprep.subr.mxu0 0.0
        %2039 = vmatpush1.msra.mxu0 0.0
        %2040 = vmatprep.subr.mxu0 0.0
        %2041 = vmatpush1.msra.mxu0 0.0
        %2042 = vmatprep.subr.mxu0 0.0
        %2043 = vmatpush1.msra.mxu0 0.0
        %2044 = vmatprep.subr.mxu0 0.0
        %2045 = vmatpush1.msra.mxu0 0.0
        %2046 = vmatprep.subr.mxu0 0.0
        %2047 = vmatpush1.msra.mxu0 0.0
        %2048 = vmatprep.subr.mxu0 0.0
        %2049 = vmatpush1.msra.mxu0 0.0
        %2050 = vmatprep.subr.mxu0 0.0
        %2051 = vmatpush1.msra.mxu0 0.0
        %2052 = vmatprep.subr.mxu0 0.0
        %2053 = vmatpush1.msra.mxu0 0.0
        %2054 = vmatprep.subr.mxu0 0.0
        %2055 = vmatpush1.msra.mxu0 0.0
        %2056 = vmatprep.subr.mxu0 0.0
        %2057 = vmatpush1.msra.mxu0 0.0
        %2058 = vmatprep.subr.mxu0 0.0
        %2059 = vmatpush1.msra.mxu0 0.0
        %2060 = vmatprep.mubr.f32.mxu0 0.0
        %2061 = vmatmul.mubr.f32.gmra.mrb[0].mxu0 %v1852
        %v2062 = vpop.f32.mrb[0].mxu0
        %v2063 = vadd.f32 0.0, %v2062
        %v2064 = vpop.f32.mrb[0].mxu0
        %v2065 = vadd.f32 0.0, %v2064
        %2066 = vdwg.mxu0
        %2067 = vmatprep.subr.mxu0 %v1840
        %2068 = vmatpush1.msra.mxu0 %v1839
        %2069 = vmatprep.subr.mxu0 0.0
        %2070 = vmatpush1.msra.mxu0 0.0
        %2071 = vmatprep.subr.mxu0 0.0
        %2072 = vmatpush1.msra.mxu0 0.0
        %2073 = vmatprep.subr.mxu0 0.0
        %2074 = vmatpush1.msra.mxu0 0.0
        %2075 = vmatprep.subr.mxu0 0.0
        %2076 = vmatpush1.msra.mxu0 0.0
        %2077 = vmatprep.subr.mxu0 0.0
        %2078 = vmatpush1.msra.mxu0 0.0
        %2079 = vmatprep.subr.mxu0 0.0
        %2080 = vmatpush1.msra.mxu0 0.0
        %2081 = vmatprep.subr.mxu0 0.0
        %2082 = vmatpush1.msra.mxu0 0.0
        %2083 = vmatprep.subr.mxu0 0.0
        %2084 = vmatpush1.msra.mxu0 0.0
        %2085 = vmatprep.subr.mxu0 0.0
        %2086 = vmatpush1.msra.mxu0 0.0
        %2087 = vmatprep.subr.mxu0 0.0
        %2088 = vmatpush1.msra.mxu0 0.0
        %2089 = vmatprep.subr.mxu0 0.0
        %2090 = vmatpush1.msra.mxu0 0.0
        %2091 = vmatprep.subr.mxu0 0.0
        %2092 = vmatpush1.msra.mxu0 0.0
        %2093 = vmatprep.subr.mxu0 0.0
        %2094 = vmatpush1.msra.mxu0 0.0
        %2095 = vmatprep.subr.mxu0 0.0
        %2096 = vmatpush1.msra.mxu0 0.0
        %2097 = vmatprep.subr.mxu0 0.0
        %2098 = vmatpush1.msra.mxu0 0.0
        %2099 = vmatprep.subr.mxu0 0.0
        %2100 = vmatpush1.msra.mxu0 0.0
        %2101 = vmatprep.subr.mxu0 0.0
        %2102 = vmatpush1.msra.mxu0 0.0
        %2103 = vmatprep.subr.mxu0 0.0
        %2104 = vmatpush1.msra.mxu0 0.0
        %2105 = vmatprep.subr.mxu0 0.0
        %2106 = vmatpush1.msra.mxu0 0.0
        %2107 = vmatprep.subr.mxu0 0.0
        %2108 = vmatpush1.msra.mxu0 0.0
        %2109 = vmatprep.subr.mxu0 0.0
        %2110 = vmatpush1.msra.mxu0 0.0
        %2111 = vmatprep.subr.mxu0 0.0
        %2112 = vmatpush1.msra.mxu0 0.0
        %2113 = vmatprep.subr.mxu0 0.0
        %2114 = vmatpush1.msra.mxu0 0.0
        %2115 = vmatprep.subr.mxu0 0.0
        %2116 = vmatpush1.msra.mxu0 0.0
        %2117 = vmatprep.subr.mxu0 0.0
        %2118 = vmatpush1.msra.mxu0 0.0
        %2119 = vmatprep.subr.mxu0 0.0
        %2120 = vmatpush1.msra.mxu0 0.0
        %2121 = vmatprep.subr.mxu0 0.0
        %2122 = vmatpush1.msra.mxu0 0.0
        %2123 = vmatprep.subr.mxu0 0.0
        %2124 = vmatpush1.msra.mxu0 0.0
        %2125 = vmatprep.subr.mxu0 0.0
        %2126 = vmatpush1.msra.mxu0 0.0
        %2127 = vmatprep.subr.mxu0 0.0
        %2128 = vmatpush1.msra.mxu0 0.0
        %2129 = vmatprep.subr.mxu0 0.0
        %2130 = vmatpush1.msra.mxu0 0.0
        %2131 = vmatprep.mubr.f32.mxu0 0.0
        %2132 = vmatmul.mubr.f32.gmra.mrb[0].mxu0 %v1852
        %v2133 = vpop.f32.mrb[0].mxu0
        %v2134 = vadd.f32 0.0, %v2133
        %v2135 = vpop.f32.mrb[0].mxu0
        %v2136 = vadd.f32 0.0, %v2135
        %2137 = vdwg.mxu0
        %2138 = vmatprep.subr.mxu0 0.0
        %2139 = vmatpush1.msra.mxu0 %v1841
        %2140 = vmatprep.subr.mxu0 0.0
        %2141 = vmatpush1.msra.mxu0 0.0
        %2142 = vmatprep.subr.mxu0 0.0
        %2143 = vmatpush1.msra.mxu0 0.0
        %2144 = vmatprep.subr.mxu0 0.0
        %2145 = vmatpush1.msra.mxu0 0.0
        %2146 = vmatprep.subr.mxu0 0.0
        %2147 = vmatpush1.msra.mxu0 0.0
        %2148 = vmatprep.subr.mxu0 0.0
        %2149 = vmatpush1.msra.mxu0 0.0
        %2150 = vmatprep.subr.mxu0 0.0
        %2151 = vmatpush1.msra.mxu0 0.0
        %2152 = vmatprep.subr.mxu0 0.0
        %2153 = vmatpush1.msra.mxu0 0.0
        %2154 = vmatprep.subr.mxu0 0.0
        %2155 = vmatpush1.msra.mxu0 0.0
        %2156 = vmatprep.subr.mxu0 0.0
        %2157 = vmatpush1.msra.mxu0 0.0
        %2158 = vmatprep.subr.mxu0 0.0
        %2159 = vmatpush1.msra.mxu0 0.0
        %2160 = vmatprep.subr.mxu0 0.0
        %2161 = vmatpush1.msra.mxu0 0.0
        %2162 = vmatprep.subr.mxu0 0.0
        %2163 = vmatpush1.msra.mxu0 0.0
        %2164 = vmatprep.subr.mxu0 0.0
        %2165 = vmatpush1.msra.mxu0 0.0
        %2166 = vmatprep.subr.mxu0 0.0
        %2167 = vmatpush1.msra.mxu0 0.0
        %2168 = vmatprep.subr.mxu0 0.0
        %2169 = vmatpush1.msra.mxu0 0.0
        %2170 = vmatprep.subr.mxu0 0.0
        %2171 = vmatpush1.msra.mxu0 0.0
        %2172 = vmatprep.subr.mxu0 0.0
        %2173 = vmatpush1.msra.mxu0 0.0
        %2174 = vmatprep.subr.mxu0 0.0
        %2175 = vmatpush1.msra.mxu0 0.0
        %2176 = vmatprep.subr.mxu0 0.0
        %2177 = vmatpush1.msra.mxu0 0.0
        %2178 = vmatprep.subr.mxu0 0.0
        %2179 = vmatpush1.msra.mxu0 0.0
        %2180 = vmatprep.subr.mxu0 0.0
        %2181 = vmatpush1.msra.mxu0 0.0
        %2182 = vmatprep.subr.mxu0 0.0
        %2183 = vmatpush1.msra.mxu0 0.0
        %2184 = vmatprep.subr.mxu0 0.0
        %2185 = vmatpush1.msra.mxu0 0.0
        %2186 = vmatprep.subr.mxu0 0.0
        %2187 = vmatpush1.msra.mxu0 0.0
        %2188 = vmatprep.subr.mxu0 0.0
        %2189 = vmatpush1.msra.mxu0 0.0
        %2190 = vmatprep.subr.mxu0 0.0
        %2191 = vmatpush1.msra.mxu0 0.0
        %2192 = vmatprep.subr.mxu0 0.0
        %2193 = vmatpush1.msra.mxu0 0.0
        %2194 = vmatprep.subr.mxu0 0.0
        %2195 = vmatpush1.msra.mxu0 0.0
        %2196 = vmatprep.subr.mxu0 0.0
        %2197 = vmatpush1.msra.mxu0 0.0
        %2198 = vmatprep.subr.mxu0 0.0
        %2199 = vmatpush1.msra.mxu0 0.0
        %2200 = vmatprep.subr.mxu0 0.0
        %2201 = vmatpush1.msra.mxu0 0.0
        %2202 = vmatprep.mubr.f32.mxu0 0.0
        %2203 = vmatmul.mubr.f32.gmra.mrb[0].mxu0 %v1852
        %v2204 = vpop.f32.mrb[0].mxu0
        %v2205 = vadd.f32 0.0, %v2204
        %v2206 = vpop.f32.mrb[0].mxu0
        %2207 = vdwg.mxu0
        %v2208 = vadd.f32 %v1801, %v1921
        %v2209 = vadd.f32 %v1802, %v1923
        %v2210 = vadd.f32 %v1803, %v1992
        %v2211 = vadd.f32 %v1804, %v1994
        %v2212 = vadd.f32 %v1805, %v2063
        %v2213 = vadd.f32 %v1806, %v2065
        %v2214 = vadd.f32 %v1807, %v2134
        %v2215 = vadd.f32 %v1808, %v2136
        %v2216 = vadd.f32 %v1809, %v2205
        %s2217 = scalar_lea.vmem %s2, 24
        %v2218 = vld [vmem:[%s2217] sm:$0xff]
        %2219 = vrot.lane.b32.xlu0 %v1385, 125
        %v2220 = vpop.permute.xlu0 %2219
        %2221 = vrot.lane.b32.xlu0 %v1386, 125
        %v2222 = vpop.permute.xlu0 %2221
        %2223 = vrot.lane.b32.xlu0 %v1387, 125
        %v2224 = vpop.permute.xlu0 %2223
        %2225 = vrot.lane.b32.xlu0 %v1388, 125
        %v2226 = vpop.permute.xlu0 %2225
        %2227 = vrot.lane.b32.xlu0 %v1389, 125
        %v2228 = vpop.permute.xlu0 %2227
        %2229 = vrot.lane.b32.xlu0 %v1390, 125
        %v2230 = vpop.permute.xlu0 %2229
        %2231 = vrot.lane.b32.xlu0 %v1391, 125
        %v2232 = vpop.permute.xlu0 %2231
        %2233 = vrot.lane.b32.xlu0 %v1392, 125
        %v2234 = vpop.permute.xlu0 %2233
        %2235 = vrot.lane.b32.xlu0 %v1393, 125
        %v2236 = vpop.permute.xlu0 %2235
        %2237 = vrot.lane.b32.xlu0 %v1394, 125
        %v2238 = vpop.permute.xlu0 %2237
        %vm2239 = vcmask 1022976
        %v2240 = vsel %vm2239, %v2220, %v2222
        %v2241 = vsel %vm2239, %v2222, %v2224
        %v2242 = vsel %vm2239, %v2224, %v2226
        %v2243 = vsel %vm2239, %v2226, %v2228
        %v2244 = vsel %vm2239, %v2228, %v2230
        %v2245 = vsel %vm2239, %v2230, %v2232
        %v2246 = vsel %vm2239, %v2232, %v2234
        %v2247 = vsel %vm2239, %v2234, %v2236
        %v2248 = vsel %vm2239, %v2236, %v2238
        %v2259 = vsel %vm1016, %v2218, 0
        %2261 = vmatprep.subr.mxu0 %v2241
        %2262 = vmatpush1.msra.mxu0 %v2240
        %2263 = vmatprep.subr.mxu0 0.0
        %2264 = vmatpush1.msra.mxu0 0.0
        %2265 = vmatprep.subr.mxu0 0.0
        %2266 = vmatpush1.msra.mxu0 0.0
        %2267 = vmatprep.subr.mxu0 0.0
        %2268 = vmatpush1.msra.mxu0 0.0
        %2269 = vmatprep.subr.mxu0 0.0
        %2270 = vmatpush1.msra.mxu0 0.0
        %2271 = vmatprep.subr.mxu0 0.0
        %2272 = vmatpush1.msra.mxu0 0.0
        %2273 = vmatprep.subr.mxu0 0.0
        %2274 = vmatpush1.msra.mxu0 0.0
        %2275 = vmatprep.subr.mxu0 0.0
        %2276 = vmatpush1.msra.mxu0 0.0
        %2277 = vmatprep.subr.mxu0 0.0
        %2278 = vmatpush1.msra.mxu0 0.0
        %2279 = vmatprep.subr.mxu0 0.0
        %2280 = vmatpush1.msra.mxu0 0.0
        %2281 = vmatprep.subr.mxu0 0.0
        %2282 = vmatpush1.msra.mxu0 0.0
        %2283 = vmatprep.subr.mxu0 0.0
        %2284 = vmatpush1.msra.mxu0 0.0
        %2285 = vmatprep.subr.mxu0 0.0
        %2286 = vmatpush1.msra.mxu0 0.0
        %2287 = vmatprep.subr.mxu0 0.0
        %2288 = vmatpush1.msra.mxu0 0.0
        %2289 = vmatprep.subr.mxu0 0.0
        %2290 = vmatpush1.msra.mxu0 0.0
        %2291 = vmatprep.subr.mxu0 0.0
        %2292 = vmatpush1.msra.mxu0 0.0
        %2293 = vmatprep.subr.mxu0 0.0
        %2294 = vmatpush1.msra.mxu0 0.0
        %2295 = vmatprep.subr.mxu0 0.0
        %2296 = vmatpush1.msra.mxu0 0.0
        %2297 = vmatprep.subr.mxu0 0.0
        %2298 = vmatpush1.msra.mxu0 0.0
        %2299 = vmatprep.subr.mxu0 0.0
        %2300 = vmatpush1.msra.mxu0 0.0
        %2301 = vmatprep.subr.mxu0 0.0
        %2302 = vmatpush1.msra.mxu0 0.0
        %2303 = vmatprep.subr.mxu0 0.0
        %2304 = vmatpush1.msra.mxu0 0.0
        %2305 = vmatprep.subr.mxu0 0.0
        %2306 = vmatpush1.msra.mxu0 0.0
        %2307 = vmatprep.subr.mxu0 0.0
        %2308 = vmatpush1.msra.mxu0 0.0
        %2309 = vmatprep.subr.mxu0 0.0
        %2310 = vmatpush1.msra.mxu0 0.0
        %2311 = vmatprep.subr.mxu0 0.0
        %2312 = vmatpush1.msra.mxu0 0.0
        %2313 = vmatprep.subr.mxu0 0.0
        %2314 = vmatpush1.msra.mxu0 0.0
        %2315 = vmatprep.subr.mxu0 0.0
        %2316 = vmatpush1.msra.mxu0 0.0
        %2317 = vmatprep.subr.mxu0 0.0
        %2318 = vmatpush1.msra.mxu0 0.0
        %2319 = vmatprep.subr.mxu0 0.0
        %2320 = vmatpush1.msra.mxu0 0.0
        %2321 = vmatprep.subr.mxu0 0.0
        %2322 = vmatpush1.msra.mxu0 0.0
        %2323 = vmatprep.subr.mxu0 0.0
        %2324 = vmatpush1.msra.mxu0 0.0
        %2325 = vmatprep.mubr.f32.mxu0 0.0
        %2326 = vmatmul.mubr.f32.gmra.mrb[0].mxu0 %v2259
        %v2327 = vpop.f32.mrb[0].mxu0
        %v2328 = vadd.f32 0.0, %v2327
        %v2329 = vpop.f32.mrb[0].mxu0
        %v2330 = vadd.f32 0.0, %v2329
        %2331 = vdwg.mxu0
        %2332 = vmatprep.subr.mxu0 %v2243
        %2333 = vmatpush1.msra.mxu0 %v2242
        %2334 = vmatprep.subr.mxu0 0.0
        %2335 = vmatpush1.msra.mxu0 0.0
        %2336 = vmatprep.subr.mxu0 0.0
        %2337 = vmatpush1.msra.mxu0 0.0
        %2338 = vmatprep.subr.mxu0 0.0
        %2339 = vmatpush1.msra.mxu0 0.0
        %2340 = vmatprep.subr.mxu0 0.0
        %2341 = vmatpush1.msra.mxu0 0.0
        %2342 = vmatprep.subr.mxu0 0.0
        %2343 = vmatpush1.msra.mxu0 0.0
        %2344 = vmatprep.subr.mxu0 0.0
        %2345 = vmatpush1.msra.mxu0 0.0
        %2346 = vmatprep.subr.mxu0 0.0
        %2347 = vmatpush1.msra.mxu0 0.0
        %2348 = vmatprep.subr.mxu0 0.0
        %2349 = vmatpush1.msra.mxu0 0.0
        %2350 = vmatprep.subr.mxu0 0.0
        %2351 = vmatpush1.msra.mxu0 0.0
        %2352 = vmatprep.subr.mxu0 0.0
        %2353 = vmatpush1.msra.mxu0 0.0
        %2354 = vmatprep.subr.mxu0 0.0
        %2355 = vmatpush1.msra.mxu0 0.0
        %2356 = vmatprep.subr.mxu0 0.0
        %2357 = vmatpush1.msra.mxu0 0.0
        %2358 = vmatprep.subr.mxu0 0.0
        %2359 = vmatpush1.msra.mxu0 0.0
        %2360 = vmatprep.subr.mxu0 0.0
        %2361 = vmatpush1.msra.mxu0 0.0
        %2362 = vmatprep.subr.mxu0 0.0
        %2363 = vmatpush1.msra.mxu0 0.0
        %2364 = vmatprep.subr.mxu0 0.0
        %2365 = vmatpush1.msra.mxu0 0.0
        %2366 = vmatprep.subr.mxu0 0.0
        %2367 = vmatpush1.msra.mxu0 0.0
        %2368 = vmatprep.subr.mxu0 0.0
        %2369 = vmatpush1.msra.mxu0 0.0
        %2370 = vmatprep.subr.mxu0 0.0
        %2371 = vmatpush1.msra.mxu0 0.0
        %2372 = vmatprep.subr.mxu0 0.0
        %2373 = vmatpush1.msra.mxu0 0.0
        %2374 = vmatprep.subr.mxu0 0.0
        %2375 = vmatpush1.msra.mxu0 0.0
        %2376 = vmatprep.subr.mxu0 0.0
        %2377 = vmatpush1.msra.mxu0 0.0
        %2378 = vmatprep.subr.mxu0 0.0
        %2379 = vmatpush1.msra.mxu0 0.0
        %2380 = vmatprep.subr.mxu0 0.0
        %2381 = vmatpush1.msra.mxu0 0.0
        %2382 = vmatprep.subr.mxu0 0.0
        %2383 = vmatpush1.msra.mxu0 0.0
        %2384 = vmatprep.subr.mxu0 0.0
        %2385 = vmatpush1.msra.mxu0 0.0
        %2386 = vmatprep.subr.mxu0 0.0
        %2387 = vmatpush1.msra.mxu0 0.0
        %2388 = vmatprep.subr.mxu0 0.0
        %2389 = vmatpush1.msra.mxu0 0.0
        %2390 = vmatprep.subr.mxu0 0.0
        %2391 = vmatpush1.msra.mxu0 0.0
        %2392 = vmatprep.subr.mxu0 0.0
        %2393 = vmatpush1.msra.mxu0 0.0
        %2394 = vmatprep.subr.mxu0 0.0
        %2395 = vmatpush1.msra.mxu0 0.0
        %2396 = vmatprep.mubr.f32.mxu0 0.0
        %2397 = vmatmul.mubr.f32.gmra.mrb[0].mxu0 %v2259
        %v2398 = vpop.f32.mrb[0].mxu0
        %v2399 = vadd.f32 0.0, %v2398
        %v2400 = vpop.f32.mrb[0].mxu0
        %v2401 = vadd.f32 0.0, %v2400
        %2402 = vdwg.mxu0
        %2403 = vmatprep.subr.mxu0 %v2245
        %2404 = vmatpush1.msra.mxu0 %v2244
        %2405 = vmatprep.subr.mxu0 0.0
        %2406 = vmatpush1.msra.mxu0 0.0
        %2407 = vmatprep.subr.mxu0 0.0
        %2408 = vmatpush1.msra.mxu0 0.0
        %2409 = vmatprep.subr.mxu0 0.0
        %2410 = vmatpush1.msra.mxu0 0.0
        %2411 = vmatprep.subr.mxu0 0.0
        %2412 = vmatpush1.msra.mxu0 0.0
        %2413 = vmatprep.subr.mxu0 0.0
        %2414 = vmatpush1.msra.mxu0 0.0
        %2415 = vmatprep.subr.mxu0 0.0
        %2416 = vmatpush1.msra.mxu0 0.0
        %2417 = vmatprep.subr.mxu0 0.0
        %2418 = vmatpush1.msra.mxu0 0.0
        %2419 = vmatprep.subr.mxu0 0.0
        %2420 = vmatpush1.msra.mxu0 0.0
        %2421 = vmatprep.subr.mxu0 0.0
        %2422 = vmatpush1.msra.mxu0 0.0
        %2423 = vmatprep.subr.mxu0 0.0
        %2424 = vmatpush1.msra.mxu0 0.0
        %2425 = vmatprep.subr.mxu0 0.0
        %2426 = vmatpush1.msra.mxu0 0.0
        %2427 = vmatprep.subr.mxu0 0.0
        %2428 = vmatpush1.msra.mxu0 0.0
        %2429 = vmatprep.subr.mxu0 0.0
        %2430 = vmatpush1.msra.mxu0 0.0
        %2431 = vmatprep.subr.mxu0 0.0
        %2432 = vmatpush1.msra.mxu0 0.0
        %2433 = vmatprep.subr.mxu0 0.0
        %2434 = vmatpush1.msra.mxu0 0.0
        %2435 = vmatprep.subr.mxu0 0.0
        %2436 = vmatpush1.msra.mxu0 0.0
        %2437 = vmatprep.subr.mxu0 0.0
        %2438 = vmatpush1.msra.mxu0 0.0
        %2439 = vmatprep.subr.mxu0 0.0
        %2440 = vmatpush1.msra.mxu0 0.0
        %2441 = vmatprep.subr.mxu0 0.0
        %2442 = vmatpush1.msra.mxu0 0.0
        %2443 = vmatprep.subr.mxu0 0.0
        %2444 = vmatpush1.msra.mxu0 0.0
        %2445 = vmatprep.subr.mxu0 0.0
        %2446 = vmatpush1.msra.mxu0 0.0
        %2447 = vmatprep.subr.mxu0 0.0
        %2448 = vmatpush1.msra.mxu0 0.0
        %2449 = vmatprep.subr.mxu0 0.0
        %2450 = vmatpush1.msra.mxu0 0.0
        %2451 = vmatprep.subr.mxu0 0.0
        %2452 = vmatpush1.msra.mxu0 0.0
        %2453 = vmatprep.subr.mxu0 0.0
        %2454 = vmatpush1.msra.mxu0 0.0
        %2455 = vmatprep.subr.mxu0 0.0
        %2456 = vmatpush1.msra.mxu0 0.0
        %2457 = vmatprep.subr.mxu0 0.0
        %2458 = vmatpush1.msra.mxu0 0.0
        %2459 = vmatprep.subr.mxu0 0.0
        %2460 = vmatpush1.msra.mxu0 0.0
        %2461 = vmatprep.subr.mxu0 0.0
        %2462 = vmatpush1.msra.mxu0 0.0
        %2463 = vmatprep.subr.mxu0 0.0
        %2464 = vmatpush1.msra.mxu0 0.0
        %2465 = vmatprep.subr.mxu0 0.0
        %2466 = vmatpush1.msra.mxu0 0.0
        %2467 = vmatprep.mubr.f32.mxu0 0.0
        %2468 = vmatmul.mubr.f32.gmra.mrb[0].mxu0 %v2259
        %v2469 = vpop.f32.mrb[0].mxu0
        %v2470 = vadd.f32 0.0, %v2469
        %v2471 = vpop.f32.mrb[0].mxu0
        %v2472 = vadd.f32 0.0, %v2471
        %2473 = vdwg.mxu0
        %2474 = vmatprep.subr.mxu0 %v2247
        %2475 = vmatpush1.msra.mxu0 %v2246
        %2476 = vmatprep.subr.mxu0 0.0
        %2477 = vmatpush1.msra.mxu0 0.0
        %2478 = vmatprep.subr.mxu0 0.0
        %2479 = vmatpush1.msra.mxu0 0.0
        %2480 = vmatprep.subr.mxu0 0.0
        %2481 = vmatpush1.msra.mxu0 0.0
        %2482 = vmatprep.subr.mxu0 0.0
        %2483 = vmatpush1.msra.mxu0 0.0
        %2484 = vmatprep.subr.mxu0 0.0
        %2485 = vmatpush1.msra.mxu0 0.0
        %2486 = vmatprep.subr.mxu0 0.0
        %2487 = vmatpush1.msra.mxu0 0.0
        %2488 = vmatprep.subr.mxu0 0.0
        %2489 = vmatpush1.msra.mxu0 0.0
        %2490 = vmatprep.subr.mxu0 0.0
        %2491 = vmatpush1.msra.mxu0 0.0
        %2492 = vmatprep.subr.mxu0 0.0
        %2493 = vmatpush1.msra.mxu0 0.0
        %2494 = vmatprep.subr.mxu0 0.0
        %2495 = vmatpush1.msra.mxu0 0.0
        %2496 = vmatprep.subr.mxu0 0.0
        %2497 = vmatpush1.msra.mxu0 0.0
        %2498 = vmatprep.subr.mxu0 0.0
        %2499 = vmatpush1.msra.mxu0 0.0
        %2500 = vmatprep.subr.mxu0 0.0
        %2501 = vmatpush1.msra.mxu0 0.0
        %2502 = vmatprep.subr.mxu0 0.0
        %2503 = vmatpush1.msra.mxu0 0.0
        %2504 = vmatprep.subr.mxu0 0.0
        %2505 = vmatpush1.msra.mxu0 0.0
        %2506 = vmatprep.subr.mxu0 0.0
        %2507 = vmatpush1.msra.mxu0 0.0
        %2508 = vmatprep.subr.mxu0 0.0
        %2509 = vmatpush1.msra.mxu0 0.0
        %2510 = vmatprep.subr.mxu0 0.0
        %2511 = vmatpush1.msra.mxu0 0.0
        %2512 = vmatprep.subr.mxu0 0.0
        %2513 = vmatpush1.msra.mxu0 0.0
        %2514 = vmatprep.subr.mxu0 0.0
        %2515 = vmatpush1.msra.mxu0 0.0
        %2516 = vmatprep.subr.mxu0 0.0
        %2517 = vmatpush1.msra.mxu0 0.0
        %2518 = vmatprep.subr.mxu0 0.0
        %2519 = vmatpush1.msra.mxu0 0.0
        %2520 = vmatprep.subr.mxu0 0.0
        %2521 = vmatpush1.msra.mxu0 0.0
        %2522 = vmatprep.subr.mxu0 0.0
        %2523 = vmatpush1.msra.mxu0 0.0
        %2524 = vmatprep.subr.mxu0 0.0
        %2525 = vmatpush1.msra.mxu0 0.0
        %2526 = vmatprep.subr.mxu0 0.0
        %2527 = vmatpush1.msra.mxu0 0.0
        %2528 = vmatprep.subr.mxu0 0.0
        %2529 = vmatpush1.msra.mxu0 0.0
        %2530 = vmatprep.subr.mxu0 0.0
        %2531 = vmatpush1.msra.mxu0 0.0
        %2532 = vmatprep.subr.mxu0 0.0
        %2533 = vmatpush1.msra.mxu0 0.0
        %2534 = vmatprep.subr.mxu0 0.0
        %2535 = vmatpush1.msra.mxu0 0.0
        %2536 = vmatprep.subr.mxu0 0.0
        %2537 = vmatpush1.msra.mxu0 0.0
        %2538 = vmatprep.mubr.f32.mxu0 0.0
        %2539 = vmatmul.mubr.f32.gmra.mrb[0].mxu0 %v2259
        %v2540 = vpop.f32.mrb[0].mxu0
        %v2541 = vadd.f32 0.0, %v2540
        %v2542 = vpop.f32.mrb[0].mxu0
        %v2543 = vadd.f32 0.0, %v2542
        %2544 = vdwg.mxu0
        %2545 = vmatprep.subr.mxu0 0.0
        %2546 = vmatpush1.msra.mxu0 %v2248
        %2547 = vmatprep.subr.mxu0 0.0
        %2548 = vmatpush1.msra.mxu0 0.0
        %2549 = vmatprep.subr.mxu0 0.0
        %2550 = vmatpush1.msra.mxu0 0.0
        %2551 = vmatprep.subr.mxu0 0.0
        %2552 = vmatpush1.msra.mxu0 0.0
        %2553 = vmatprep.subr.mxu0 0.0
        %2554 = vmatpush1.msra.mxu0 0.0
        %2555 = vmatprep.subr.mxu0 0.0
        %2556 = vmatpush1.msra.mxu0 0.0
        %2557 = vmatprep.subr.mxu0 0.0
        %2558 = vmatpush1.msra.mxu0 0.0
        %2559 = vmatprep.subr.mxu0 0.0
        %2560 = vmatpush1.msra.mxu0 0.0
        %2561 = vmatprep.subr.mxu0 0.0
        %2562 = vmatpush1.msra.mxu0 0.0
        %2563 = vmatprep.subr.mxu0 0.0
        %2564 = vmatpush1.msra.mxu0 0.0
        %2565 = vmatprep.subr.mxu0 0.0
        %2566 = vmatpush1.msra.mxu0 0.0
        %2567 = vmatprep.subr.mxu0 0.0
        %2568 = vmatpush1.msra.mxu0 0.0
        %2569 = vmatprep.subr.mxu0 0.0
        %2570 = vmatpush1.msra.mxu0 0.0
        %2571 = vmatprep.subr.mxu0 0.0
        %2572 = vmatpush1.msra.mxu0 0.0
        %2573 = vmatprep.subr.mxu0 0.0
        %2574 = vmatpush1.msra.mxu0 0.0
        %2575 = vmatprep.subr.mxu0 0.0
        %2576 = vmatpush1.msra.mxu0 0.0
        %2577 = vmatprep.subr.mxu0 0.0
        %2578 = vmatpush1.msra.mxu0 0.0
        %2579 = vmatprep.subr.mxu0 0.0
        %2580 = vmatpush1.msra.mxu0 0.0
        %2581 = vmatprep.subr.mxu0 0.0
        %2582 = vmatpush1.msra.mxu0 0.0
        %2583 = vmatprep.subr.mxu0 0.0
        %2584 = vmatpush1.msra.mxu0 0.0
        %2585 = vmatprep.subr.mxu0 0.0
        %2586 = vmatpush1.msra.mxu0 0.0
        %2587 = vmatprep.subr.mxu0 0.0
        %2588 = vmatpush1.msra.mxu0 0.0
        %2589 = vmatprep.subr.mxu0 0.0
        %2590 = vmatpush1.msra.mxu0 0.0
        %2591 = vmatprep.subr.mxu0 0.0
        %2592 = vmatpush1.msra.mxu0 0.0
        %2593 = vmatprep.subr.mxu0 0.0
        %2594 = vmatpush1.msra.mxu0 0.0
        %2595 = vmatprep.subr.mxu0 0.0
        %2596 = vmatpush1.msra.mxu0 0.0
        %2597 = vmatprep.subr.mxu0 0.0
        %2598 = vmatpush1.msra.mxu0 0.0
        %2599 = vmatprep.subr.mxu0 0.0
        %2600 = vmatpush1.msra.mxu0 0.0
        %2601 = vmatprep.subr.mxu0 0.0
        %2602 = vmatpush1.msra.mxu0 0.0
        %2603 = vmatprep.subr.mxu0 0.0
        %2604 = vmatpush1.msra.mxu0 0.0
        %2605 = vmatprep.subr.mxu0 0.0
        %2606 = vmatpush1.msra.mxu0 0.0
        %2607 = vmatprep.subr.mxu0 0.0
        %2608 = vmatpush1.msra.mxu0 0.0
        %2609 = vmatprep.mubr.f32.mxu0 0.0
        %2610 = vmatmul.mubr.f32.gmra.mrb[0].mxu0 %v2259
        %v2611 = vpop.f32.mrb[0].mxu0
        %v2612 = vadd.f32 0.0, %v2611
        %v2613 = vpop.f32.mrb[0].mxu0
        %2614 = vdwg.mxu0
        %v2615 = vadd.f32 %v2208, %v2328
        %v2616 = vadd.f32 %v2209, %v2330
        %v2617 = vadd.f32 %v2210, %v2399
        %v2618 = vadd.f32 %v2211, %v2401
        %v2619 = vadd.f32 %v2212, %v2470
        %v2620 = vadd.f32 %v2213, %v2472
        %v2621 = vadd.f32 %v2214, %v2541
        %v2622 = vadd.f32 %v2215, %v2543
        %v2623 = vadd.f32 %v2216, %v2612
        %s2624 = scalar_lea.vmem %s2, 32
        %v2625 = vld [vmem:[%s2624] sm:$0xff]
        %2626 = vrot.lane.b32.xlu0 %v1385, 124
        %v2627 = vpop.permute.xlu0 %2626
        %2628 = vrot.lane.b32.xlu0 %v1386, 124
        %v2629 = vpop.permute.xlu0 %2628
        %2630 = vrot.lane.b32.xlu0 %v1387, 124
        %v2631 = vpop.permute.xlu0 %2630
        %2632 = vrot.lane.b32.xlu0 %v1388, 124
        %v2633 = vpop.permute.xlu0 %2632
        %2634 = vrot.lane.b32.xlu0 %v1389, 124
        %v2635 = vpop.permute.xlu0 %2634
        %2636 = vrot.lane.b32.xlu0 %v1390, 124
        %v2637 = vpop.permute.xlu0 %2636
        %2638 = vrot.lane.b32.xlu0 %v1391, 124
        %v2639 = vpop.permute.xlu0 %2638
        %2640 = vrot.lane.b32.xlu0 %v1392, 124
        %v2641 = vpop.permute.xlu0 %2640
        %2642 = vrot.lane.b32.xlu0 %v1393, 124
        %v2643 = vpop.permute.xlu0 %2642
        %2644 = vrot.lane.b32.xlu0 %v1394, 124
        %v2645 = vpop.permute.xlu0 %2644
        %vm2646 = vcmask 1014784
        %v2647 = vsel %vm2646, %v2627, %v2629
        %v2648 = vsel %vm2646, %v2629, %v2631
        %v2649 = vsel %vm2646, %v2631, %v2633
        %v2650 = vsel %vm2646, %v2633, %v2635
        %v2651 = vsel %vm2646, %v2635, %v2637
        %v2652 = vsel %vm2646, %v2637, %v2639
        %v2653 = vsel %vm2646, %v2639, %v2641
        %v2654 = vsel %vm2646, %v2641, %v2643
        %v2655 = vsel %vm2646, %v2643, %v2645
        %v2666 = vsel %vm1016, %v2625, 0
        %2668 = vmatprep.subr.mxu0 %v2648
        %2669 = vmatpush1.msra.mxu0 %v2647
        %2670 = vmatprep.subr.mxu0 0.0
        %2671 = vmatpush1.msra.mxu0 0.0
        %2672 = vmatprep.subr.mxu0 0.0
        %2673 = vmatpush1.msra.mxu0 0.0
        %2674 = vmatprep.subr.mxu0 0.0
        %2675 = vmatpush1.msra.mxu0 0.0
        %2676 = vmatprep.subr.mxu0 0.0
        %2677 = vmatpush1.msra.mxu0 0.0
        %2678 = vmatprep.subr.mxu0 0.0
        %2679 = vmatpush1.msra.mxu0 0.0
        %2680 = vmatprep.subr.mxu0 0.0
        %2681 = vmatpush1.msra.mxu0 0.0
        %2682 = vmatprep.subr.mxu0 0.0
        %2683 = vmatpush1.msra.mxu0 0.0
        %2684 = vmatprep.subr.mxu0 0.0
        %2685 = vmatpush1.msra.mxu0 0.0
        %2686 = vmatprep.subr.mxu0 0.0
        %2687 = vmatpush1.msra.mxu0 0.0
        %2688 = vmatprep.subr.mxu0 0.0
        %2689 = vmatpush1.msra.mxu0 0.0
        %2690 = vmatprep.subr.mxu0 0.0
        %2691 = vmatpush1.msra.mxu0 0.0
        %2692 = vmatprep.subr.mxu0 0.0
        %2693 = vmatpush1.msra.mxu0 0.0
        %2694 = vmatprep.subr.mxu0 0.0
        %2695 = vmatpush1.msra.mxu0 0.0
        %2696 = vmatprep.subr.mxu0 0.0
        %2697 = vmatpush1.msra.mxu0 0.0
        %2698 = vmatprep.subr.mxu0 0.0
        %2699 = vmatpush1.msra.mxu0 0.0
        %2700 = vmatprep.subr.mxu0 0.0
        %2701 = vmatpush1.msra.mxu0 0.0
        %2702 = vmatprep.subr.mxu0 0.0
        %2703 = vmatpush1.msra.mxu0 0.0
        %2704 = vmatprep.subr.mxu0 0.0
        %2705 = vmatpush1.msra.mxu0 0.0
        %2706 = vmatprep.subr.mxu0 0.0
        %2707 = vmatpush1.msra.mxu0 0.0
        %2708 = vmatprep.subr.mxu0 0.0
        %2709 = vmatpush1.msra.mxu0 0.0
        %2710 = vmatprep.subr.mxu0 0.0
        %2711 = vmatpush1.msra.mxu0 0.0
        %2712 = vmatprep.subr.mxu0 0.0
        %2713 = vmatpush1.msra.mxu0 0.0
        %2714 = vmatprep.subr.mxu0 0.0
        %2715 = vmatpush1.msra.mxu0 0.0
        %2716 = vmatprep.subr.mxu0 0.0
        %2717 = vmatpush1.msra.mxu0 0.0
        %2718 = vmatprep.subr.mxu0 0.0
        %2719 = vmatpush1.msra.mxu0 0.0
        %2720 = vmatprep.subr.mxu0 0.0
        %2721 = vmatpush1.msra.mxu0 0.0
        %2722 = vmatprep.subr.mxu0 0.0
        %2723 = vmatpush1.msra.mxu0 0.0
        %2724 = vmatprep.subr.mxu0 0.0
        %2725 = vmatpush1.msra.mxu0 0.0
        %2726 = vmatprep.subr.mxu0 0.0
        %2727 = vmatpush1.msra.mxu0 0.0
        %2728 = vmatprep.subr.mxu0 0.0
        %2729 = vmatpush1.msra.mxu0 0.0
        %2730 = vmatprep.subr.mxu0 0.0
        %2731 = vmatpush1.msra.mxu0 0.0
        %2732 = vmatprep.mubr.f32.mxu0 0.0
        %2733 = vmatmul.mubr.f32.gmra.mrb[0].mxu0 %v2666
        %v2734 = vpop.f32.mrb[0].mxu0
        %v2735 = vadd.f32 0.0, %v2734
        %v2736 = vpop.f32.mrb[0].mxu0
        %v2737 = vadd.f32 0.0, %v2736
        %2738 = vdwg.mxu0
        %2739 = vmatprep.subr.mxu0 %v2650
        %2740 = vmatpush1.msra.mxu0 %v2649
        %2741 = vmatprep.subr.mxu0 0.0
        %2742 = vmatpush1.msra.mxu0 0.0
        %2743 = vmatprep.subr.mxu0 0.0
        %2744 = vmatpush1.msra.mxu0 0.0
        %2745 = vmatprep.subr.mxu0 0.0
        %2746 = vmatpush1.msra.mxu0 0.0
        %2747 = vmatprep.subr.mxu0 0.0
        %2748 = vmatpush1.msra.mxu0 0.0
        %2749 = vmatprep.subr.mxu0 0.0
        %2750 = vmatpush1.msra.mxu0 0.0
        %2751 = vmatprep.subr.mxu0 0.0
        %2752 = vmatpush1.msra.mxu0 0.0
        %2753 = vmatprep.subr.mxu0 0.0
        %2754 = vmatpush1.msra.mxu0 0.0
        %2755 = vmatprep.subr.mxu0 0.0
        %2756 = vmatpush1.msra.mxu0 0.0
        %2757 = vmatprep.subr.mxu0 0.0
        %2758 = vmatpush1.msra.mxu0 0.0
        %2759 = vmatprep.subr.mxu0 0.0
        %2760 = vmatpush1.msra.mxu0 0.0
        %2761 = vmatprep.subr.mxu0 0.0
        %2762 = vmatpush1.msra.mxu0 0.0
        %2763 = vmatprep.subr.mxu0 0.0
        %2764 = vmatpush1.msra.mxu0 0.0
        %2765 = vmatprep.subr.mxu0 0.0
        %2766 = vmatpush1.msra.mxu0 0.0
        %2767 = vmatprep.subr.mxu0 0.0
        %2768 = vmatpush1.msra.mxu0 0.0
        %2769 = vmatprep.subr.mxu0 0.0
        %2770 = vmatpush1.msra.mxu0 0.0
        %2771 = vmatprep.subr.mxu0 0.0
        %2772 = vmatpush1.msra.mxu0 0.0
        %2773 = vmatprep.subr.mxu0 0.0
        %2774 = vmatpush1.msra.mxu0 0.0
        %2775 = vmatprep.subr.mxu0 0.0
        %2776 = vmatpush1.msra.mxu0 0.0
        %2777 = vmatprep.subr.mxu0 0.0
        %2778 = vmatpush1.msra.mxu0 0.0
        %2779 = vmatprep.subr.mxu0 0.0
        %2780 = vmatpush1.msra.mxu0 0.0
        %2781 = vmatprep.subr.mxu0 0.0
        %2782 = vmatpush1.msra.mxu0 0.0
        %2783 = vmatprep.subr.mxu0 0.0
        %2784 = vmatpush1.msra.mxu0 0.0
        %2785 = vmatprep.subr.mxu0 0.0
        %2786 = vmatpush1.msra.mxu0 0.0
        %2787 = vmatprep.subr.mxu0 0.0
        %2788 = vmatpush1.msra.mxu0 0.0
        %2789 = vmatprep.subr.mxu0 0.0
        %2790 = vmatpush1.msra.mxu0 0.0
        %2791 = vmatprep.subr.mxu0 0.0
        %2792 = vmatpush1.msra.mxu0 0.0
        %2793 = vmatprep.subr.mxu0 0.0
        %2794 = vmatpush1.msra.mxu0 0.0
        %2795 = vmatprep.subr.mxu0 0.0
        %2796 = vmatpush1.msra.mxu0 0.0
        %2797 = vmatprep.subr.mxu0 0.0
        %2798 = vmatpush1.msra.mxu0 0.0
        %2799 = vmatprep.subr.mxu0 0.0
        %2800 = vmatpush1.msra.mxu0 0.0
        %2801 = vmatprep.subr.mxu0 0.0
        %2802 = vmatpush1.msra.mxu0 0.0
        %2803 = vmatprep.mubr.f32.mxu0 0.0
        %2804 = vmatmul.mubr.f32.gmra.mrb[0].mxu0 %v2666
        %v2805 = vpop.f32.mrb[0].mxu0
        %v2806 = vadd.f32 0.0, %v2805
        %v2807 = vpop.f32.mrb[0].mxu0
        %v2808 = vadd.f32 0.0, %v2807
        %2809 = vdwg.mxu0
        %2810 = vmatprep.subr.mxu0 %v2652
        %2811 = vmatpush1.msra.mxu0 %v2651
        %2812 = vmatprep.subr.mxu0 0.0
        %2813 = vmatpush1.msra.mxu0 0.0
        %2814 = vmatprep.subr.mxu0 0.0
        %2815 = vmatpush1.msra.mxu0 0.0
        %2816 = vmatprep.subr.mxu0 0.0
        %2817 = vmatpush1.msra.mxu0 0.0
        %2818 = vmatprep.subr.mxu0 0.0
        %2819 = vmatpush1.msra.mxu0 0.0
        %2820 = vmatprep.subr.mxu0 0.0
        %2821 = vmatpush1.msra.mxu0 0.0
        %2822 = vmatprep.subr.mxu0 0.0
        %2823 = vmatpush1.msra.mxu0 0.0
        %2824 = vmatprep.subr.mxu0 0.0
        %2825 = vmatpush1.msra.mxu0 0.0
        %2826 = vmatprep.subr.mxu0 0.0
        %2827 = vmatpush1.msra.mxu0 0.0
        %2828 = vmatprep.subr.mxu0 0.0
        %2829 = vmatpush1.msra.mxu0 0.0
        %2830 = vmatprep.subr.mxu0 0.0
        %2831 = vmatpush1.msra.mxu0 0.0
        %2832 = vmatprep.subr.mxu0 0.0
        %2833 = vmatpush1.msra.mxu0 0.0
        %2834 = vmatprep.subr.mxu0 0.0
        %2835 = vmatpush1.msra.mxu0 0.0
        %2836 = vmatprep.subr.mxu0 0.0
        %2837 = vmatpush1.msra.mxu0 0.0
        %2838 = vmatprep.subr.mxu0 0.0
        %2839 = vmatpush1.msra.mxu0 0.0
        %2840 = vmatprep.subr.mxu0 0.0
        %2841 = vmatpush1.msra.mxu0 0.0
        %2842 = vmatprep.subr.mxu0 0.0
        %2843 = vmatpush1.msra.mxu0 0.0
        %2844 = vmatprep.subr.mxu0 0.0
        %2845 = vmatpush1.msra.mxu0 0.0
        %2846 = vmatprep.subr.mxu0 0.0
        %2847 = vmatpush1.msra.mxu0 0.0
        %2848 = vmatprep.subr.mxu0 0.0
        %2849 = vmatpush1.msra.mxu0 0.0
        %2850 = vmatprep.subr.mxu0 0.0
        %2851 = vmatpush1.msra.mxu0 0.0
        %2852 = vmatprep.subr.mxu0 0.0
        %2853 = vmatpush1.msra.mxu0 0.0
        %2854 = vmatprep.subr.mxu0 0.0
        %2855 = vmatpush1.msra.mxu0 0.0
        %2856 = vmatprep.subr.mxu0 0.0
        %2857 = vmatpush1.msra.mxu0 0.0
        %2858 = vmatprep.subr.mxu0 0.0
        %2859 = vmatpush1.msra.mxu0 0.0
        %2860 = vmatprep.subr.mxu0 0.0
        %2861 = vmatpush1.msra.mxu0 0.0
        %2862 = vmatprep.subr.mxu0 0.0
        %2863 = vmatpush1.msra.mxu0 0.0
        %2864 = vmatprep.subr.mxu0 0.0
        %2865 = vmatpush1.msra.mxu0 0.0
        %2866 = vmatprep.subr.mxu0 0.0
        %2867 = vmatpush1.msra.mxu0 0.0
        %2868 = vmatprep.subr.mxu0 0.0
        %2869 = vmatpush1.msra.mxu0 0.0
        %2870 = vmatprep.subr.mxu0 0.0
        %2871 = vmatpush1.msra.mxu0 0.0
        %2872 = vmatprep.subr.mxu0 0.0
        %2873 = vmatpush1.msra.mxu0 0.0
        %2874 = vmatprep.mubr.f32.mxu0 0.0
        %2875 = vmatmul.mubr.f32.gmra.mrb[0].mxu0 %v2666
        %v2876 = vpop.f32.mrb[0].mxu0
        %v2877 = vadd.f32 0.0, %v2876
        %v2878 = vpop.f32.mrb[0].mxu0
        %v2879 = vadd.f32 0.0, %v2878
        %2880 = vdwg.mxu0
        %2881 = vmatprep.subr.mxu0 %v2654
        %2882 = vmatpush1.msra.mxu0 %v2653
        %2883 = vmatprep.subr.mxu0 0.0
        %2884 = vmatpush1.msra.mxu0 0.0
        %2885 = vmatprep.subr.mxu0 0.0
        %2886 = vmatpush1.msra.mxu0 0.0
        %2887 = vmatprep.subr.mxu0 0.0
        %2888 = vmatpush1.msra.mxu0 0.0
        %2889 = vmatprep.subr.mxu0 0.0
        %2890 = vmatpush1.msra.mxu0 0.0
        %2891 = vmatprep.subr.mxu0 0.0
        %2892 = vmatpush1.msra.mxu0 0.0
        %2893 = vmatprep.subr.mxu0 0.0
        %2894 = vmatpush1.msra.mxu0 0.0
        %2895 = vmatprep.subr.mxu0 0.0
        %2896 = vmatpush1.msra.mxu0 0.0
        %2897 = vmatprep.subr.mxu0 0.0
        %2898 = vmatpush1.msra.mxu0 0.0
        %2899 = vmatprep.subr.mxu0 0.0
        %2900 = vmatpush1.msra.mxu0 0.0
        %2901 = vmatprep.subr.mxu0 0.0
        %2902 = vmatpush1.msra.mxu0 0.0
        %2903 = vmatprep.subr.mxu0 0.0
        %2904 = vmatpush1.msra.mxu0 0.0
        %2905 = vmatprep.subr.mxu0 0.0
        %2906 = vmatpush1.msra.mxu0 0.0
        %2907 = vmatprep.subr.mxu0 0.0
        %2908 = vmatpush1.msra.mxu0 0.0
        %2909 = vmatprep.subr.mxu0 0.0
        %2910 = vmatpush1.msra.mxu0 0.0
        %2911 = vmatprep.subr.mxu0 0.0
        %2912 = vmatpush1.msra.mxu0 0.0
        %2913 = vmatprep.subr.mxu0 0.0
        %2914 = vmatpush1.msra.mxu0 0.0
        %2915 = vmatprep.subr.mxu0 0.0
        %2916 = vmatpush1.msra.mxu0 0.0
        %2917 = vmatprep.subr.mxu0 0.0
        %2918 = vmatpush1.msra.mxu0 0.0
        %2919 = vmatprep.subr.mxu0 0.0
        %2920 = vmatpush1.msra.mxu0 0.0
        %2921 = vmatprep.subr.mxu0 0.0
        %2922 = vmatpush1.msra.mxu0 0.0
        %2923 = vmatprep.subr.mxu0 0.0
        %2924 = vmatpush1.msra.mxu0 0.0
        %2925 = vmatprep.subr.mxu0 0.0
        %2926 = vmatpush1.msra.mxu0 0.0
        %2927 = vmatprep.subr.mxu0 0.0
        %2928 = vmatpush1.msra.mxu0 0.0
        %2929 = vmatprep.subr.mxu0 0.0
        %2930 = vmatpush1.msra.mxu0 0.0
        %2931 = vmatprep.subr.mxu0 0.0
        %2932 = vmatpush1.msra.mxu0 0.0
        %2933 = vmatprep.subr.mxu0 0.0
        %2934 = vmatpush1.msra.mxu0 0.0
        %2935 = vmatprep.subr.mxu0 0.0
        %2936 = vmatpush1.msra.mxu0 0.0
        %2937 = vmatprep.subr.mxu0 0.0
        %2938 = vmatpush1.msra.mxu0 0.0
        %2939 = vmatprep.subr.mxu0 0.0
        %2940 = vmatpush1.msra.mxu0 0.0
        %2941 = vmatprep.subr.mxu0 0.0
        %2942 = vmatpush1.msra.mxu0 0.0
        %2943 = vmatprep.subr.mxu0 0.0
        %2944 = vmatpush1.msra.mxu0 0.0
        %2945 = vmatprep.mubr.f32.mxu0 0.0
        %2946 = vmatmul.mubr.f32.gmra.mrb[0].mxu0 %v2666
        %v2947 = vpop.f32.mrb[0].mxu0
        %v2948 = vadd.f32 0.0, %v2947
        %v2949 = vpop.f32.mrb[0].mxu0
        %v2950 = vadd.f32 0.0, %v2949
        %2951 = vdwg.mxu0
        %2952 = vmatprep.subr.mxu0 0.0
        %2953 = vmatpush1.msra.mxu0 %v2655
        %2954 = vmatprep.subr.mxu0 0.0
        %2955 = vmatpush1.msra.mxu0 0.0
        %2956 = vmatprep.subr.mxu0 0.0
        %2957 = vmatpush1.msra.mxu0 0.0
        %2958 = vmatprep.subr.mxu0 0.0
        %2959 = vmatpush1.msra.mxu0 0.0
        %2960 = vmatprep.subr.mxu0 0.0
        %2961 = vmatpush1.msra.mxu0 0.0
        %2962 = vmatprep.subr.mxu0 0.0
        %2963 = vmatpush1.msra.mxu0 0.0
        %2964 = vmatprep.subr.mxu0 0.0
        %2965 = vmatpush1.msra.mxu0 0.0
        %2966 = vmatprep.subr.mxu0 0.0
        %2967 = vmatpush1.msra.mxu0 0.0
        %2968 = vmatprep.subr.mxu0 0.0
        %2969 = vmatpush1.msra.mxu0 0.0
        %2970 = vmatprep.subr.mxu0 0.0
        %2971 = vmatpush1.msra.mxu0 0.0
        %2972 = vmatprep.subr.mxu0 0.0
        %2973 = vmatpush1.msra.mxu0 0.0
        %2974 = vmatprep.subr.mxu0 0.0
        %2975 = vmatpush1.msra.mxu0 0.0
        %2976 = vmatprep.subr.mxu0 0.0
        %2977 = vmatpush1.msra.mxu0 0.0
        %2978 = vmatprep.subr.mxu0 0.0
        %2979 = vmatpush1.msra.mxu0 0.0
        %2980 = vmatprep.subr.mxu0 0.0
        %2981 = vmatpush1.msra.mxu0 0.0
        %2982 = vmatprep.subr.mxu0 0.0
        %2983 = vmatpush1.msra.mxu0 0.0
        %2984 = vmatprep.subr.mxu0 0.0
        %2985 = vmatpush1.msra.mxu0 0.0
        %2986 = vmatprep.subr.mxu0 0.0
        %2987 = vmatpush1.msra.mxu0 0.0
        %2988 = vmatprep.subr.mxu0 0.0
        %2989 = vmatpush1.msra.mxu0 0.0
        %2990 = vmatprep.subr.mxu0 0.0
        %2991 = vmatpush1.msra.mxu0 0.0
        %2992 = vmatprep.subr.mxu0 0.0
        %2993 = vmatpush1.msra.mxu0 0.0
        %2994 = vmatprep.subr.mxu0 0.0
        %2995 = vmatpush1.msra.mxu0 0.0
        %2996 = vmatprep.subr.mxu0 0.0
        %2997 = vmatpush1.msra.mxu0 0.0
        %2998 = vmatprep.subr.mxu0 0.0
        %2999 = vmatpush1.msra.mxu0 0.0
        %3000 = vmatprep.subr.mxu0 0.0
        %3001 = vmatpush1.msra.mxu0 0.0
        %3002 = vmatprep.subr.mxu0 0.0
        %3003 = vmatpush1.msra.mxu0 0.0
        %3004 = vmatprep.subr.mxu0 0.0
        %3005 = vmatpush1.msra.mxu0 0.0
        %3006 = vmatprep.subr.mxu0 0.0
        %3007 = vmatpush1.msra.mxu0 0.0
        %3008 = vmatprep.subr.mxu0 0.0
        %3009 = vmatpush1.msra.mxu0 0.0
        %3010 = vmatprep.subr.mxu0 0.0
        %3011 = vmatpush1.msra.mxu0 0.0
        %3012 = vmatprep.subr.mxu0 0.0
        %3013 = vmatpush1.msra.mxu0 0.0
        %3014 = vmatprep.subr.mxu0 0.0
        %3015 = vmatpush1.msra.mxu0 0.0
        %3016 = vmatprep.mubr.f32.mxu0 0.0
        %3017 = vmatmul.mubr.f32.gmra.mrb[0].mxu0 %v2666
        %v3018 = vpop.f32.mrb[0].mxu0
        %v3019 = vadd.f32 0.0, %v3018
        %v3020 = vpop.f32.mrb[0].mxu0
        %3021 = vdwg.mxu0
        %v3022 = vadd.f32 %v2615, %v2735
        %v3023 = vadd.f32 %v2616, %v2737
        %v3024 = vadd.f32 %v2617, %v2806
        %v3025 = vadd.f32 %v2618, %v2808
        %v3026 = vadd.f32 %v2619, %v2877
        %v3027 = vadd.f32 %v2620, %v2879
        %v3028 = vadd.f32 %v2621, %v2948
        %v3029 = vadd.f32 %v2622, %v2950
        %v3030 = vadd.f32 %v2623, %v3019
        %s3031 = scalar_lea.vmem %s2, 40
        %v3032 = vld [vmem:[%s3031] sm:$0xff]
        %3033 = vrot.lane.b32.xlu0 %v1385, 92
        %v3034 = vpop.permute.xlu0 %3033
        %3035 = vrot.lane.b32.xlu0 %v1386, 92
        %v3036 = vpop.permute.xlu0 %3035
        %3037 = vrot.lane.b32.xlu0 %v1387, 92
        %v3038 = vpop.permute.xlu0 %3037
        %3039 = vrot.lane.b32.xlu0 %v1388, 92
        %v3040 = vpop.permute.xlu0 %3039
        %3041 = vrot.lane.b32.xlu0 %v1389, 92
        %v3042 = vpop.permute.xlu0 %3041
        %3043 = vrot.lane.b32.xlu0 %v1390, 92
        %v3044 = vpop.permute.xlu0 %3043
        %3045 = vrot.lane.b32.xlu0 %v1391, 92
        %v3046 = vpop.permute.xlu0 %3045
        %3047 = vrot.lane.b32.xlu0 %v1392, 92
        %v3048 = vpop.permute.xlu0 %3047
        %3049 = vrot.lane.b32.xlu0 %v1393, 92
        %v3050 = vpop.permute.xlu0 %3049
        %3051 = vrot.lane.b32.xlu0 %v1394, 92
        %v3052 = vpop.permute.xlu0 %3051
        %vm3053 = vcmask 752640
        %v3054 = vsel %vm3053, %v3034, %v3036
        %v3055 = vsel %vm3053, %v3036, %v3038
        %v3056 = vsel %vm3053, %v3038, %v3040
        %v3057 = vsel %vm3053, %v3040, %v3042
        %v3058 = vsel %vm3053, %v3042, %v3044
        %v3059 = vsel %vm3053, %v3044, %v3046
        %v3060 = vsel %vm3053, %v3046, %v3048
        %v3061 = vsel %vm3053, %v3048, %v3050
        %v3062 = vsel %vm3053, %v3050, %v3052
        %v3073 = vsel %vm1016, %v3032, 0
        %3075 = vmatprep.subr.mxu0 %v3055
        %3076 = vmatpush1.msra.mxu0 %v3054
        %3077 = vmatprep.subr.mxu0 0.0
        %3078 = vmatpush1.msra.mxu0 0.0
        %3079 = vmatprep.subr.mxu0 0.0
        %3080 = vmatpush1.msra.mxu0 0.0
        %3081 = vmatprep.subr.mxu0 0.0
        %3082 = vmatpush1.msra.mxu0 0.0
        %3083 = vmatprep.subr.mxu0 0.0
        %3084 = vmatpush1.msra.mxu0 0.0
        %3085 = vmatprep.subr.mxu0 0.0
        %3086 = vmatpush1.msra.mxu0 0.0
        %3087 = vmatprep.subr.mxu0 0.0
        %3088 = vmatpush1.msra.mxu0 0.0
        %3089 = vmatprep.subr.mxu0 0.0
        %3090 = vmatpush1.msra.mxu0 0.0
        %3091 = vmatprep.subr.mxu0 0.0
        %3092 = vmatpush1.msra.mxu0 0.0
        %3093 = vmatprep.subr.mxu0 0.0
        %3094 = vmatpush1.msra.mxu0 0.0
        %3095 = vmatprep.subr.mxu0 0.0
        %3096 = vmatpush1.msra.mxu0 0.0
        %3097 = vmatprep.subr.mxu0 0.0
        %3098 = vmatpush1.msra.mxu0 0.0
        %3099 = vmatprep.subr.mxu0 0.0
        %3100 = vmatpush1.msra.mxu0 0.0
        %3101 = vmatprep.subr.mxu0 0.0
        %3102 = vmatpush1.msra.mxu0 0.0
        %3103 = vmatprep.subr.mxu0 0.0
        %3104 = vmatpush1.msra.mxu0 0.0
        %3105 = vmatprep.subr.mxu0 0.0
        %3106 = vmatpush1.msra.mxu0 0.0
        %3107 = vmatprep.subr.mxu0 0.0
        %3108 = vmatpush1.msra.mxu0 0.0
        %3109 = vmatprep.subr.mxu0 0.0
        %3110 = vmatpush1.msra.mxu0 0.0
        %3111 = vmatprep.subr.mxu0 0.0
        %3112 = vmatpush1.msra.mxu0 0.0
        %3113 = vmatprep.subr.mxu0 0.0
        %3114 = vmatpush1.msra.mxu0 0.0
        %3115 = vmatprep.subr.mxu0 0.0
        %3116 = vmatpush1.msra.mxu0 0.0
        %3117 = vmatprep.subr.mxu0 0.0
        %3118 = vmatpush1.msra.mxu0 0.0
        %3119 = vmatprep.subr.mxu0 0.0
        %3120 = vmatpush1.msra.mxu0 0.0
        %3121 = vmatprep.subr.mxu0 0.0
        %3122 = vmatpush1.msra.mxu0 0.0
        %3123 = vmatprep.subr.mxu0 0.0
        %3124 = vmatpush1.msra.mxu0 0.0
        %3125 = vmatprep.subr.mxu0 0.0
        %3126 = vmatpush1.msra.mxu0 0.0
        %3127 = vmatprep.subr.mxu0 0.0
        %3128 = vmatpush1.msra.mxu0 0.0
        %3129 = vmatprep.subr.mxu0 0.0
        %3130 = vmatpush1.msra.mxu0 0.0
        %3131 = vmatprep.subr.mxu0 0.0
        %3132 = vmatpush1.msra.mxu0 0.0
        %3133 = vmatprep.subr.mxu0 0.0
        %3134 = vmatpush1.msra.mxu0 0.0
        %3135 = vmatprep.subr.mxu0 0.0
        %3136 = vmatpush1.msra.mxu0 0.0
        %3137 = vmatprep.subr.mxu0 0.0
        %3138 = vmatpush1.msra.mxu0 0.0
        %3139 = vmatprep.mubr.f32.mxu0 0.0
        %3140 = vmatmul.mubr.f32.gmra.mrb[0].mxu0 %v3073
        %v3141 = vpop.f32.mrb[0].mxu0
        %v3142 = vadd.f32 0.0, %v3141
        %v3143 = vpop.f32.mrb[0].mxu0
        %v3144 = vadd.f32 0.0, %v3143
        %3145 = vdwg.mxu0
        %3146 = vmatprep.subr.mxu0 %v3057
        %3147 = vmatpush1.msra.mxu0 %v3056
        %3148 = vmatprep.subr.mxu0 0.0
        %3149 = vmatpush1.msra.mxu0 0.0
        %3150 = vmatprep.subr.mxu0 0.0
        %3151 = vmatpush1.msra.mxu0 0.0
        %3152 = vmatprep.subr.mxu0 0.0
        %3153 = vmatpush1.msra.mxu0 0.0
        %3154 = vmatprep.subr.mxu0 0.0
        %3155 = vmatpush1.msra.mxu0 0.0
        %3156 = vmatprep.subr.mxu0 0.0
        %3157 = vmatpush1.msra.mxu0 0.0
        %3158 = vmatprep.subr.mxu0 0.0
        %3159 = vmatpush1.msra.mxu0 0.0
        %3160 = vmatprep.subr.mxu0 0.0
        %3161 = vmatpush1.msra.mxu0 0.0
        %3162 = vmatprep.subr.mxu0 0.0
        %3163 = vmatpush1.msra.mxu0 0.0
        %3164 = vmatprep.subr.mxu0 0.0
        %3165 = vmatpush1.msra.mxu0 0.0
        %3166 = vmatprep.subr.mxu0 0.0
        %3167 = vmatpush1.msra.mxu0 0.0
        %3168 = vmatprep.subr.mxu0 0.0
        %3169 = vmatpush1.msra.mxu0 0.0
        %3170 = vmatprep.subr.mxu0 0.0
        %3171 = vmatpush1.msra.mxu0 0.0
        %3172 = vmatprep.subr.mxu0 0.0
        %3173 = vmatpush1.msra.mxu0 0.0
        %3174 = vmatprep.subr.mxu0 0.0
        %3175 = vmatpush1.msra.mxu0 0.0
        %3176 = vmatprep.subr.mxu0 0.0
        %3177 = vmatpush1.msra.mxu0 0.0
        %3178 = vmatprep.subr.mxu0 0.0
        %3179 = vmatpush1.msra.mxu0 0.0
        %3180 = vmatprep.subr.mxu0 0.0
        %3181 = vmatpush1.msra.mxu0 0.0
        %3182 = vmatprep.subr.mxu0 0.0
        %3183 = vmatpush1.msra.mxu0 0.0
        %3184 = vmatprep.subr.mxu0 0.0
        %3185 = vmatpush1.msra.mxu0 0.0
        %3186 = vmatprep.subr.mxu0 0.0
        %3187 = vmatpush1.msra.mxu0 0.0
        %3188 = vmatprep.subr.mxu0 0.0
        %3189 = vmatpush1.msra.mxu0 0.0
        %3190 = vmatprep.subr.mxu0 0.0
        %3191 = vmatpush1.msra.mxu0 0.0
        %3192 = vmatprep.subr.mxu0 0.0
        %3193 = vmatpush1.msra.mxu0 0.0
        %3194 = vmatprep.subr.mxu0 0.0
        %3195 = vmatpush1.msra.mxu0 0.0
        %3196 = vmatprep.subr.mxu0 0.0
        %3197 = vmatpush1.msra.mxu0 0.0
        %3198 = vmatprep.subr.mxu0 0.0
        %3199 = vmatpush1.msra.mxu0 0.0
        %3200 = vmatprep.subr.mxu0 0.0
        %3201 = vmatpush1.msra.mxu0 0.0
        %3202 = vmatprep.subr.mxu0 0.0
        %3203 = vmatpush1.msra.mxu0 0.0
        %3204 = vmatprep.subr.mxu0 0.0
        %3205 = vmatpush1.msra.mxu0 0.0
        %3206 = vmatprep.subr.mxu0 0.0
        %3207 = vmatpush1.msra.mxu0 0.0
        %3208 = vmatprep.subr.mxu0 0.0
        %3209 = vmatpush1.msra.mxu0 0.0
        %3210 = vmatprep.mubr.f32.mxu0 0.0
        %3211 = vmatmul.mubr.f32.gmra.mrb[0].mxu0 %v3073
        %v3212 = vpop.f32.mrb[0].mxu0
        %v3213 = vadd.f32 0.0, %v3212
        %v3214 = vpop.f32.mrb[0].mxu0
        %v3215 = vadd.f32 0.0, %v3214
        %3216 = vdwg.mxu0
        %3217 = vmatprep.subr.mxu0 %v3059
        %3218 = vmatpush1.msra.mxu0 %v3058
        %3219 = vmatprep.subr.mxu0 0.0
        %3220 = vmatpush1.msra.mxu0 0.0
        %3221 = vmatprep.subr.mxu0 0.0
        %3222 = vmatpush1.msra.mxu0 0.0
        %3223 = vmatprep.subr.mxu0 0.0
        %3224 = vmatpush1.msra.mxu0 0.0
        %3225 = vmatprep.subr.mxu0 0.0
        %3226 = vmatpush1.msra.mxu0 0.0
        %3227 = vmatprep.subr.mxu0 0.0
        %3228 = vmatpush1.msra.mxu0 0.0
        %3229 = vmatprep.subr.mxu0 0.0
        %3230 = vmatpush1.msra.mxu0 0.0
        %3231 = vmatprep.subr.mxu0 0.0
        %3232 = vmatpush1.msra.mxu0 0.0
        %3233 = vmatprep.subr.mxu0 0.0
        %3234 = vmatpush1.msra.mxu0 0.0
        %3235 = vmatprep.subr.mxu0 0.0
        %3236 = vmatpush1.msra.mxu0 0.0
        %3237 = vmatprep.subr.mxu0 0.0
        %3238 = vmatpush1.msra.mxu0 0.0
        %3239 = vmatprep.subr.mxu0 0.0
        %3240 = vmatpush1.msra.mxu0 0.0
        %3241 = vmatprep.subr.mxu0 0.0
        %3242 = vmatpush1.msra.mxu0 0.0
        %3243 = vmatprep.subr.mxu0 0.0
        %3244 = vmatpush1.msra.mxu0 0.0
        %3245 = vmatprep.subr.mxu0 0.0
        %3246 = vmatpush1.msra.mxu0 0.0
        %3247 = vmatprep.subr.mxu0 0.0
        %3248 = vmatpush1.msra.mxu0 0.0
        %3249 = vmatprep.subr.mxu0 0.0
        %3250 = vmatpush1.msra.mxu0 0.0
        %3251 = vmatprep.subr.mxu0 0.0
        %3252 = vmatpush1.msra.mxu0 0.0
        %3253 = vmatprep.subr.mxu0 0.0
        %3254 = vmatpush1.msra.mxu0 0.0
        %3255 = vmatprep.subr.mxu0 0.0
        %3256 = vmatpush1.msra.mxu0 0.0
        %3257 = vmatprep.subr.mxu0 0.0
        %3258 = vmatpush1.msra.mxu0 0.0
        %3259 = vmatprep.subr.mxu0 0.0
        %3260 = vmatpush1.msra.mxu0 0.0
        %3261 = vmatprep.subr.mxu0 0.0
        %3262 = vmatpush1.msra.mxu0 0.0
        %3263 = vmatprep.subr.mxu0 0.0
        %3264 = vmatpush1.msra.mxu0 0.0
        %3265 = vmatprep.subr.mxu0 0.0
        %3266 = vmatpush1.msra.mxu0 0.0
        %3267 = vmatprep.subr.mxu0 0.0
        %3268 = vmatpush1.msra.mxu0 0.0
        %3269 = vmatprep.subr.mxu0 0.0
        %3270 = vmatpush1.msra.mxu0 0.0
        %3271 = vmatprep.subr.mxu0 0.0
        %3272 = vmatpush1.msra.mxu0 0.0
        %3273 = vmatprep.subr.mxu0 0.0
        %3274 = vmatpush1.msra.mxu0 0.0
        %3275 = vmatprep.subr.mxu0 0.0
        %3276 = vmatpush1.msra.mxu0 0.0
        %3277 = vmatprep.subr.mxu0 0.0
        %3278 = vmatpush1.msra.mxu0 0.0
        %3279 = vmatprep.subr.mxu0 0.0
        %3280 = vmatpush1.msra.mxu0 0.0
        %3281 = vmatprep.mubr.f32.mxu0 0.0
        %3282 = vmatmul.mubr.f32.gmra.mrb[0].mxu0 %v3073
        %v3283 = vpop.f32.mrb[0].mxu0
        %v3284 = vadd.f32 0.0, %v3283
        %v3285 = vpop.f32.mrb[0].mxu0
        %v3286 = vadd.f32 0.0, %v3285
        %3287 = vdwg.mxu0
        %3288 = vmatprep.subr.mxu0 %v3061
        %3289 = vmatpush1.msra.mxu0 %v3060
        %3290 = vmatprep.subr.mxu0 0.0
        %3291 = vmatpush1.msra.mxu0 0.0
        %3292 = vmatprep.subr.mxu0 0.0
        %3293 = vmatpush1.msra.mxu0 0.0
        %3294 = vmatprep.subr.mxu0 0.0
        %3295 = vmatpush1.msra.mxu0 0.0
        %3296 = vmatprep.subr.mxu0 0.0
        %3297 = vmatpush1.msra.mxu0 0.0
        %3298 = vmatprep.subr.mxu0 0.0
        %3299 = vmatpush1.msra.mxu0 0.0
        %3300 = vmatprep.subr.mxu0 0.0
        %3301 = vmatpush1.msra.mxu0 0.0
        %3302 = vmatprep.subr.mxu0 0.0
        %3303 = vmatpush1.msra.mxu0 0.0
        %3304 = vmatprep.subr.mxu0 0.0
        %3305 = vmatpush1.msra.mxu0 0.0
        %3306 = vmatprep.subr.mxu0 0.0
        %3307 = vmatpush1.msra.mxu0 0.0
        %3308 = vmatprep.subr.mxu0 0.0
        %3309 = vmatpush1.msra.mxu0 0.0
        %3310 = vmatprep.subr.mxu0 0.0
        %3311 = vmatpush1.msra.mxu0 0.0
        %3312 = vmatprep.subr.mxu0 0.0
        %3313 = vmatpush1.msra.mxu0 0.0
        %3314 = vmatprep.subr.mxu0 0.0
        %3315 = vmatpush1.msra.mxu0 0.0
        %3316 = vmatprep.subr.mxu0 0.0
        %3317 = vmatpush1.msra.mxu0 0.0
        %3318 = vmatprep.subr.mxu0 0.0
        %3319 = vmatpush1.msra.mxu0 0.0
        %3320 = vmatprep.subr.mxu0 0.0
        %3321 = vmatpush1.msra.mxu0 0.0
        %3322 = vmatprep.subr.mxu0 0.0
        %3323 = vmatpush1.msra.mxu0 0.0
        %3324 = vmatprep.subr.mxu0 0.0
        %3325 = vmatpush1.msra.mxu0 0.0
        %3326 = vmatprep.subr.mxu0 0.0
        %3327 = vmatpush1.msra.mxu0 0.0
        %3328 = vmatprep.subr.mxu0 0.0
        %3329 = vmatpush1.msra.mxu0 0.0
        %3330 = vmatprep.subr.mxu0 0.0
        %3331 = vmatpush1.msra.mxu0 0.0
        %3332 = vmatprep.subr.mxu0 0.0
        %3333 = vmatpush1.msra.mxu0 0.0
        %3334 = vmatprep.subr.mxu0 0.0
        %3335 = vmatpush1.msra.mxu0 0.0
        %3336 = vmatprep.subr.mxu0 0.0
        %3337 = vmatpush1.msra.mxu0 0.0
        %3338 = vmatprep.subr.mxu0 0.0
        %3339 = vmatpush1.msra.mxu0 0.0
        %3340 = vmatprep.subr.mxu0 0.0
        %3341 = vmatpush1.msra.mxu0 0.0
        %3342 = vmatprep.subr.mxu0 0.0
        %3343 = vmatpush1.msra.mxu0 0.0
        %3344 = vmatprep.subr.mxu0 0.0
        %3345 = vmatpush1.msra.mxu0 0.0
        %3346 = vmatprep.subr.mxu0 0.0
        %3347 = vmatpush1.msra.mxu0 0.0
        %3348 = vmatprep.subr.mxu0 0.0
        %3349 = vmatpush1.msra.mxu0 0.0
        %3350 = vmatprep.subr.mxu0 0.0
        %3351 = vmatpush1.msra.mxu0 0.0
        %3352 = vmatprep.mubr.f32.mxu0 0.0
        %3353 = vmatmul.mubr.f32.gmra.mrb[0].mxu0 %v3073
        %v3354 = vpop.f32.mrb[0].mxu0
        %v3355 = vadd.f32 0.0, %v3354
        %v3356 = vpop.f32.mrb[0].mxu0
        %v3357 = vadd.f32 0.0, %v3356
        %3358 = vdwg.mxu0
        %3359 = vmatprep.subr.mxu0 0.0
        %3360 = vmatpush1.msra.mxu0 %v3062
        %3361 = vmatprep.subr.mxu0 0.0
        %3362 = vmatpush1.msra.mxu0 0.0
        %3363 = vmatprep.subr.mxu0 0.0
        %3364 = vmatpush1.msra.mxu0 0.0
        %3365 = vmatprep.subr.mxu0 0.0
        %3366 = vmatpush1.msra.mxu0 0.0
        %3367 = vmatprep.subr.mxu0 0.0
        %3368 = vmatpush1.msra.mxu0 0.0
        %3369 = vmatprep.subr.mxu0 0.0
        %3370 = vmatpush1.msra.mxu0 0.0
        %3371 = vmatprep.subr.mxu0 0.0
        %3372 = vmatpush1.msra.mxu0 0.0
        %3373 = vmatprep.subr.mxu0 0.0
        %3374 = vmatpush1.msra.mxu0 0.0
        %3375 = vmatprep.subr.mxu0 0.0
        %3376 = vmatpush1.msra.mxu0 0.0
        %3377 = vmatprep.subr.mxu0 0.0
        %3378 = vmatpush1.msra.mxu0 0.0
        %3379 = vmatprep.subr.mxu0 0.0
        %3380 = vmatpush1.msra.mxu0 0.0
        %3381 = vmatprep.subr.mxu0 0.0
        %3382 = vmatpush1.msra.mxu0 0.0
        %3383 = vmatprep.subr.mxu0 0.0
        %3384 = vmatpush1.msra.mxu0 0.0
        %3385 = vmatprep.subr.mxu0 0.0
        %3386 = vmatpush1.msra.mxu0 0.0
        %3387 = vmatprep.subr.mxu0 0.0
        %3388 = vmatpush1.msra.mxu0 0.0
        %3389 = vmatprep.subr.mxu0 0.0
        %3390 = vmatpush1.msra.mxu0 0.0
        %3391 = vmatprep.subr.mxu0 0.0
        %3392 = vmatpush1.msra.mxu0 0.0
        %3393 = vmatprep.subr.mxu0 0.0
        %3394 = vmatpush1.msra.mxu0 0.0
        %3395 = vmatprep.subr.mxu0 0.0
        %3396 = vmatpush1.msra.mxu0 0.0
        %3397 = vmatprep.subr.mxu0 0.0
        %3398 = vmatpush1.msra.mxu0 0.0
        %3399 = vmatprep.subr.mxu0 0.0
        %3400 = vmatpush1.msra.mxu0 0.0
        %3401 = vmatprep.subr.mxu0 0.0
        %3402 = vmatpush1.msra.mxu0 0.0
        %3403 = vmatprep.subr.mxu0 0.0
        %3404 = vmatpush1.msra.mxu0 0.0
        %3405 = vmatprep.subr.mxu0 0.0
        %3406 = vmatpush1.msra.mxu0 0.0
        %3407 = vmatprep.subr.mxu0 0.0
        %3408 = vmatpush1.msra.mxu0 0.0
        %3409 = vmatprep.subr.mxu0 0.0
        %3410 = vmatpush1.msra.mxu0 0.0
        %3411 = vmatprep.subr.mxu0 0.0
        %3412 = vmatpush1.msra.mxu0 0.0
        %3413 = vmatprep.subr.mxu0 0.0
        %3414 = vmatpush1.msra.mxu0 0.0
        %3415 = vmatprep.subr.mxu0 0.0
        %3416 = vmatpush1.msra.mxu0 0.0
        %3417 = vmatprep.subr.mxu0 0.0
        %3418 = vmatpush1.msra.mxu0 0.0
        %3419 = vmatprep.subr.mxu0 0.0
        %3420 = vmatpush1.msra.mxu0 0.0
        %3421 = vmatprep.subr.mxu0 0.0
        %3422 = vmatpush1.msra.mxu0 0.0
        %3423 = vmatprep.mubr.f32.mxu0 0.0
        %3424 = vmatmul.mubr.f32.gmra.mrb[0].mxu0 %v3073
        %v3425 = vpop.f32.mrb[0].mxu0
        %v3426 = vadd.f32 0.0, %v3425
        %v3427 = vpop.f32.mrb[0].mxu0
        %3428 = vdwg.mxu0
        %v3429 = vadd.f32 %v3022, %v3142
        %v3430 = vadd.f32 %v3023, %v3144
        %v3431 = vadd.f32 %v3024, %v3213
        %v3432 = vadd.f32 %v3025, %v3215
        %v3433 = vadd.f32 %v3026, %v3284
        %v3434 = vadd.f32 %v3027, %v3286
        %v3435 = vadd.f32 %v3028, %v3355
        %v3436 = vadd.f32 %v3029, %v3357
        %v3437 = vadd.f32 %v3030, %v3426
        %s3438 = scalar_lea.vmem %s2, 48
        %v3439 = vld [vmem:[%s3438] sm:$0xff]
        %3440 = vrot.lane.b32.xlu0 %v1385, 91
        %v3441 = vpop.permute.xlu0 %3440
        %3442 = vrot.lane.b32.xlu0 %v1386, 91
        %v3443 = vpop.permute.xlu0 %3442
        %3444 = vrot.lane.b32.xlu0 %v1387, 91
        %v3445 = vpop.permute.xlu0 %3444
        %3446 = vrot.lane.b32.xlu0 %v1388, 91
        %v3447 = vpop.permute.xlu0 %3446
        %3448 = vrot.lane.b32.xlu0 %v1389, 91
        %v3449 = vpop.permute.xlu0 %3448
        %3450 = vrot.lane.b32.xlu0 %v1390, 91
        %v3451 = vpop.permute.xlu0 %3450
        %3452 = vrot.lane.b32.xlu0 %v1391, 91
        %v3453 = vpop.permute.xlu0 %3452
        %3454 = vrot.lane.b32.xlu0 %v1392, 91
        %v3455 = vpop.permute.xlu0 %3454
        %3456 = vrot.lane.b32.xlu0 %v1393, 91
        %v3457 = vpop.permute.xlu0 %3456
        %3458 = vrot.lane.b32.xlu0 %v1394, 91
        %v3459 = vpop.permute.xlu0 %3458
        %vm3460 = vcmask 744448
        %v3461 = vsel %vm3460, %v3441, %v3443
        %v3462 = vsel %vm3460, %v3443, %v3445
        %v3463 = vsel %vm3460, %v3445, %v3447
        %v3464 = vsel %vm3460, %v3447, %v3449
        %v3465 = vsel %vm3460, %v3449, %v3451
        %v3466 = vsel %vm3460, %v3451, %v3453
        %v3467 = vsel %vm3460, %v3453, %v3455
        %v3468 = vsel %vm3460, %v3455, %v3457
        %v3469 = vsel %vm3460, %v3457, %v3459
        %v3480 = vsel %vm1016, %v3439, 0
        %3482 = vmatprep.subr.mxu0 %v3462
        %3483 = vmatpush1.msra.mxu0 %v3461
        %3484 = vmatprep.subr.mxu0 0.0
        %3485 = vmatpush1.msra.mxu0 0.0
        %3486 = vmatprep.subr.mxu0 0.0
        %3487 = vmatpush1.msra.mxu0 0.0
        %3488 = vmatprep.subr.mxu0 0.0
        %3489 = vmatpush1.msra.mxu0 0.0
        %3490 = vmatprep.subr.mxu0 0.0
        %3491 = vmatpush1.msra.mxu0 0.0
        %3492 = vmatprep.subr.mxu0 0.0
        %3493 = vmatpush1.msra.mxu0 0.0
        %3494 = vmatprep.subr.mxu0 0.0
        %3495 = vmatpush1.msra.mxu0 0.0
        %3496 = vmatprep.subr.mxu0 0.0
        %3497 = vmatpush1.msra.mxu0 0.0
        %3498 = vmatprep.subr.mxu0 0.0
        %3499 = vmatpush1.msra.mxu0 0.0
        %3500 = vmatprep.subr.mxu0 0.0
        %3501 = vmatpush1.msra.mxu0 0.0
        %3502 = vmatprep.subr.mxu0 0.0
        %3503 = vmatpush1.msra.mxu0 0.0
        %3504 = vmatprep.subr.mxu0 0.0
        %3505 = vmatpush1.msra.mxu0 0.0
        %3506 = vmatprep.subr.mxu0 0.0
        %3507 = vmatpush1.msra.mxu0 0.0
        %3508 = vmatprep.subr.mxu0 0.0
        %3509 = vmatpush1.msra.mxu0 0.0
        %3510 = vmatprep.subr.mxu0 0.0
        %3511 = vmatpush1.msra.mxu0 0.0
        %3512 = vmatprep.subr.mxu0 0.0
        %3513 = vmatpush1.msra.mxu0 0.0
        %3514 = vmatprep.subr.mxu0 0.0
        %3515 = vmatpush1.msra.mxu0 0.0
        %3516 = vmatprep.subr.mxu0 0.0
        %3517 = vmatpush1.msra.mxu0 0.0
        %3518 = vmatprep.subr.mxu0 0.0
        %3519 = vmatpush1.msra.mxu0 0.0
        %3520 = vmatprep.subr.mxu0 0.0
        %3521 = vmatpush1.msra.mxu0 0.0
        %3522 = vmatprep.subr.mxu0 0.0
        %3523 = vmatpush1.msra.mxu0 0.0
        %3524 = vmatprep.subr.mxu0 0.0
        %3525 = vmatpush1.msra.mxu0 0.0
        %3526 = vmatprep.subr.mxu0 0.0
        %3527 = vmatpush1.msra.mxu0 0.0
        %3528 = vmatprep.subr.mxu0 0.0
        %3529 = vmatpush1.msra.mxu0 0.0
        %3530 = vmatprep.subr.mxu0 0.0
        %3531 = vmatpush1.msra.mxu0 0.0
        %3532 = vmatprep.subr.mxu0 0.0
        %3533 = vmatpush1.msra.mxu0 0.0
        %3534 = vmatprep.subr.mxu0 0.0
        %3535 = vmatpush1.msra.mxu0 0.0
        %3536 = vmatprep.subr.mxu0 0.0
        %3537 = vmatpush1.msra.mxu0 0.0
        %3538 = vmatprep.subr.mxu0 0.0
        %3539 = vmatpush1.msra.mxu0 0.0
        %3540 = vmatprep.subr.mxu0 0.0
        %3541 = vmatpush1.msra.mxu0 0.0
        %3542 = vmatprep.subr.mxu0 0.0
        %3543 = vmatpush1.msra.mxu0 0.0
        %3544 = vmatprep.subr.mxu0 0.0
        %3545 = vmatpush1.msra.mxu0 0.0
        %3546 = vmatprep.mubr.f32.mxu0 0.0
        %3547 = vmatmul.mubr.f32.gmra.mrb[0].mxu0 %v3480
        %v3548 = vpop.f32.mrb[0].mxu0
        %v3549 = vadd.f32 0.0, %v3548
        %v3550 = vpop.f32.mrb[0].mxu0
        %v3551 = vadd.f32 0.0, %v3550
        %3552 = vdwg.mxu0
        %3553 = vmatprep.subr.mxu0 %v3464
        %3554 = vmatpush1.msra.mxu0 %v3463
        %3555 = vmatprep.subr.mxu0 0.0
        %3556 = vmatpush1.msra.mxu0 0.0
        %3557 = vmatprep.subr.mxu0 0.0
        %3558 = vmatpush1.msra.mxu0 0.0
        %3559 = vmatprep.subr.mxu0 0.0
        %3560 = vmatpush1.msra.mxu0 0.0
        %3561 = vmatprep.subr.mxu0 0.0
        %3562 = vmatpush1.msra.mxu0 0.0
        %3563 = vmatprep.subr.mxu0 0.0
        %3564 = vmatpush1.msra.mxu0 0.0
        %3565 = vmatprep.subr.mxu0 0.0
        %3566 = vmatpush1.msra.mxu0 0.0
        %3567 = vmatprep.subr.mxu0 0.0
        %3568 = vmatpush1.msra.mxu0 0.0
        %3569 = vmatprep.subr.mxu0 0.0
        %3570 = vmatpush1.msra.mxu0 0.0
        %3571 = vmatprep.subr.mxu0 0.0
        %3572 = vmatpush1.msra.mxu0 0.0
        %3573 = vmatprep.subr.mxu0 0.0
        %3574 = vmatpush1.msra.mxu0 0.0
        %3575 = vmatprep.subr.mxu0 0.0
        %3576 = vmatpush1.msra.mxu0 0.0
        %3577 = vmatprep.subr.mxu0 0.0
        %3578 = vmatpush1.msra.mxu0 0.0
        %3579 = vmatprep.subr.mxu0 0.0
        %3580 = vmatpush1.msra.mxu0 0.0
        %3581 = vmatprep.subr.mxu0 0.0
        %3582 = vmatpush1.msra.mxu0 0.0
        %3583 = vmatprep.subr.mxu0 0.0
        %3584 = vmatpush1.msra.mxu0 0.0
        %3585 = vmatprep.subr.mxu0 0.0
        %3586 = vmatpush1.msra.mxu0 0.0
        %3587 = vmatprep.subr.mxu0 0.0
        %3588 = vmatpush1.msra.mxu0 0.0
        %3589 = vmatprep.subr.mxu0 0.0
        %3590 = vmatpush1.msra.mxu0 0.0
        %3591 = vmatprep.subr.mxu0 0.0
        %3592 = vmatpush1.msra.mxu0 0.0
        %3593 = vmatprep.subr.mxu0 0.0
        %3594 = vmatpush1.msra.mxu0 0.0
        %3595 = vmatprep.subr.mxu0 0.0
        %3596 = vmatpush1.msra.mxu0 0.0
        %3597 = vmatprep.subr.mxu0 0.0
        %3598 = vmatpush1.msra.mxu0 0.0
        %3599 = vmatprep.subr.mxu0 0.0
        %3600 = vmatpush1.msra.mxu0 0.0
        %3601 = vmatprep.subr.mxu0 0.0
        %3602 = vmatpush1.msra.mxu0 0.0
        %3603 = vmatprep.subr.mxu0 0.0
        %3604 = vmatpush1.msra.mxu0 0.0
        %3605 = vmatprep.subr.mxu0 0.0
        %3606 = vmatpush1.msra.mxu0 0.0
        %3607 = vmatprep.subr.mxu0 0.0
        %3608 = vmatpush1.msra.mxu0 0.0
        %3609 = vmatprep.subr.mxu0 0.0
        %3610 = vmatpush1.msra.mxu0 0.0
        %3611 = vmatprep.subr.mxu0 0.0
        %3612 = vmatpush1.msra.mxu0 0.0
        %3613 = vmatprep.subr.mxu0 0.0
        %3614 = vmatpush1.msra.mxu0 0.0
        %3615 = vmatprep.subr.mxu0 0.0
        %3616 = vmatpush1.msra.mxu0 0.0
        %3617 = vmatprep.mubr.f32.mxu0 0.0
        %3618 = vmatmul.mubr.f32.gmra.mrb[0].mxu0 %v3480
        %v3619 = vpop.f32.mrb[0].mxu0
        %v3620 = vadd.f32 0.0, %v3619
        %v3621 = vpop.f32.mrb[0].mxu0
        %v3622 = vadd.f32 0.0, %v3621
        %3623 = vdwg.mxu0
        %3624 = vmatprep.subr.mxu0 %v3466
        %3625 = vmatpush1.msra.mxu0 %v3465
        %3626 = vmatprep.subr.mxu0 0.0
        %3627 = vmatpush1.msra.mxu0 0.0
        %3628 = vmatprep.subr.mxu0 0.0
        %3629 = vmatpush1.msra.mxu0 0.0
        %3630 = vmatprep.subr.mxu0 0.0
        %3631 = vmatpush1.msra.mxu0 0.0
        %3632 = vmatprep.subr.mxu0 0.0
        %3633 = vmatpush1.msra.mxu0 0.0
        %3634 = vmatprep.subr.mxu0 0.0
        %3635 = vmatpush1.msra.mxu0 0.0
        %3636 = vmatprep.subr.mxu0 0.0
        %3637 = vmatpush1.msra.mxu0 0.0
        %3638 = vmatprep.subr.mxu0 0.0
        %3639 = vmatpush1.msra.mxu0 0.0
        %3640 = vmatprep.subr.mxu0 0.0
        %3641 = vmatpush1.msra.mxu0 0.0
        %3642 = vmatprep.subr.mxu0 0.0
        %3643 = vmatpush1.msra.mxu0 0.0
        %3644 = vmatprep.subr.mxu0 0.0
        %3645 = vmatpush1.msra.mxu0 0.0
        %3646 = vmatprep.subr.mxu0 0.0
        %3647 = vmatpush1.msra.mxu0 0.0
        %3648 = vmatprep.subr.mxu0 0.0
        %3649 = vmatpush1.msra.mxu0 0.0
        %3650 = vmatprep.subr.mxu0 0.0
        %3651 = vmatpush1.msra.mxu0 0.0
        %3652 = vmatprep.subr.mxu0 0.0
        %3653 = vmatpush1.msra.mxu0 0.0
        %3654 = vmatprep.subr.mxu0 0.0
        %3655 = vmatpush1.msra.mxu0 0.0
        %3656 = vmatprep.subr.mxu0 0.0
        %3657 = vmatpush1.msra.mxu0 0.0
        %3658 = vmatprep.subr.mxu0 0.0
        %3659 = vmatpush1.msra.mxu0 0.0
        %3660 = vmatprep.subr.mxu0 0.0
        %3661 = vmatpush1.msra.mxu0 0.0
        %3662 = vmatprep.subr.mxu0 0.0
        %3663 = vmatpush1.msra.mxu0 0.0
        %3664 = vmatprep.subr.mxu0 0.0
        %3665 = vmatpush1.msra.mxu0 0.0
        %3666 = vmatprep.subr.mxu0 0.0
        %3667 = vmatpush1.msra.mxu0 0.0
        %3668 = vmatprep.subr.mxu0 0.0
        %3669 = vmatpush1.msra.mxu0 0.0
        %3670 = vmatprep.subr.mxu0 0.0
        %3671 = vmatpush1.msra.mxu0 0.0
        %3672 = vmatprep.subr.mxu0 0.0
        %3673 = vmatpush1.msra.mxu0 0.0
        %3674 = vmatprep.subr.mxu0 0.0
        %3675 = vmatpush1.msra.mxu0 0.0
        %3676 = vmatprep.subr.mxu0 0.0
        %3677 = vmatpush1.msra.mxu0 0.0
        %3678 = vmatprep.subr.mxu0 0.0
        %3679 = vmatpush1.msra.mxu0 0.0
        %3680 = vmatprep.subr.mxu0 0.0
        %3681 = vmatpush1.msra.mxu0 0.0
        %3682 = vmatprep.subr.mxu0 0.0
        %3683 = vmatpush1.msra.mxu0 0.0
        %3684 = vmatprep.subr.mxu0 0.0
        %3685 = vmatpush1.msra.mxu0 0.0
        %3686 = vmatprep.subr.mxu0 0.0
        %3687 = vmatpush1.msra.mxu0 0.0
        %3688 = vmatprep.mubr.f32.mxu0 0.0
        %3689 = vmatmul.mubr.f32.gmra.mrb[0].mxu0 %v3480
        %v3690 = vpop.f32.mrb[0].mxu0
        %v3691 = vadd.f32 0.0, %v3690
        %v3692 = vpop.f32.mrb[0].mxu0
        %v3693 = vadd.f32 0.0, %v3692
        %3694 = vdwg.mxu0
        %3695 = vmatprep.subr.mxu0 %v3468
        %3696 = vmatpush1.msra.mxu0 %v3467
        %3697 = vmatprep.subr.mxu0 0.0
        %3698 = vmatpush1.msra.mxu0 0.0
        %3699 = vmatprep.subr.mxu0 0.0
        %3700 = vmatpush1.msra.mxu0 0.0
        %3701 = vmatprep.subr.mxu0 0.0
        %3702 = vmatpush1.msra.mxu0 0.0
        %3703 = vmatprep.subr.mxu0 0.0
        %3704 = vmatpush1.msra.mxu0 0.0
        %3705 = vmatprep.subr.mxu0 0.0
        %3706 = vmatpush1.msra.mxu0 0.0
        %3707 = vmatprep.subr.mxu0 0.0
        %3708 = vmatpush1.msra.mxu0 0.0
        %3709 = vmatprep.subr.mxu0 0.0
        %3710 = vmatpush1.msra.mxu0 0.0
        %3711 = vmatprep.subr.mxu0 0.0
        %3712 = vmatpush1.msra.mxu0 0.0
        %3713 = vmatprep.subr.mxu0 0.0
        %3714 = vmatpush1.msra.mxu0 0.0
        %3715 = vmatprep.subr.mxu0 0.0
        %3716 = vmatpush1.msra.mxu0 0.0
        %3717 = vmatprep.subr.mxu0 0.0
        %3718 = vmatpush1.msra.mxu0 0.0
        %3719 = vmatprep.subr.mxu0 0.0
        %3720 = vmatpush1.msra.mxu0 0.0
        %3721 = vmatprep.subr.mxu0 0.0
        %3722 = vmatpush1.msra.mxu0 0.0
        %3723 = vmatprep.subr.mxu0 0.0
        %3724 = vmatpush1.msra.mxu0 0.0
        %3725 = vmatprep.subr.mxu0 0.0
        %3726 = vmatpush1.msra.mxu0 0.0
        %3727 = vmatprep.subr.mxu0 0.0
        %3728 = vmatpush1.msra.mxu0 0.0
        %3729 = vmatprep.subr.mxu0 0.0
        %3730 = vmatpush1.msra.mxu0 0.0
        %3731 = vmatprep.subr.mxu0 0.0
        %3732 = vmatpush1.msra.mxu0 0.0
        %3733 = vmatprep.subr.mxu0 0.0
        %3734 = vmatpush1.msra.mxu0 0.0
        %3735 = vmatprep.subr.mxu0 0.0
        %3736 = vmatpush1.msra.mxu0 0.0
        %3737 = vmatprep.subr.mxu0 0.0
        %3738 = vmatpush1.msra.mxu0 0.0
        %3739 = vmatprep.subr.mxu0 0.0
        %3740 = vmatpush1.msra.mxu0 0.0
        %3741 = vmatprep.subr.mxu0 0.0
        %3742 = vmatpush1.msra.mxu0 0.0
        %3743 = vmatprep.subr.mxu0 0.0
        %3744 = vmatpush1.msra.mxu0 0.0
        %3745 = vmatprep.subr.mxu0 0.0
        %3746 = vmatpush1.msra.mxu0 0.0
        %3747 = vmatprep.subr.mxu0 0.0
        %3748 = vmatpush1.msra.mxu0 0.0
        %3749 = vmatprep.subr.mxu0 0.0
        %3750 = vmatpush1.msra.mxu0 0.0
        %3751 = vmatprep.subr.mxu0 0.0
        %3752 = vmatpush1.msra.mxu0 0.0
        %3753 = vmatprep.subr.mxu0 0.0
        %3754 = vmatpush1.msra.mxu0 0.0
        %3755 = vmatprep.subr.mxu0 0.0
        %3756 = vmatpush1.msra.mxu0 0.0
        %3757 = vmatprep.subr.mxu0 0.0
        %3758 = vmatpush1.msra.mxu0 0.0
        %3759 = vmatprep.mubr.f32.mxu0 0.0
        %3760 = vmatmul.mubr.f32.gmra.mrb[0].mxu0 %v3480
        %v3761 = vpop.f32.mrb[0].mxu0
        %v3762 = vadd.f32 0.0, %v3761
        %v3763 = vpop.f32.mrb[0].mxu0
        %v3764 = vadd.f32 0.0, %v3763
        %3765 = vdwg.mxu0
        %3766 = vmatprep.subr.mxu0 0.0
        %3767 = vmatpush1.msra.mxu0 %v3469
        %3768 = vmatprep.subr.mxu0 0.0
        %3769 = vmatpush1.msra.mxu0 0.0
        %3770 = vmatprep.subr.mxu0 0.0
        %3771 = vmatpush1.msra.mxu0 0.0
        %3772 = vmatprep.subr.mxu0 0.0
        %3773 = vmatpush1.msra.mxu0 0.0
        %3774 = vmatprep.subr.mxu0 0.0
        %3775 = vmatpush1.msra.mxu0 0.0
        %3776 = vmatprep.subr.mxu0 0.0
        %3777 = vmatpush1.msra.mxu0 0.0
        %3778 = vmatprep.subr.mxu0 0.0
        %3779 = vmatpush1.msra.mxu0 0.0
        %3780 = vmatprep.subr.mxu0 0.0
        %3781 = vmatpush1.msra.mxu0 0.0
        %3782 = vmatprep.subr.mxu0 0.0
        %3783 = vmatpush1.msra.mxu0 0.0
        %3784 = vmatprep.subr.mxu0 0.0
        %3785 = vmatpush1.msra.mxu0 0.0
        %3786 = vmatprep.subr.mxu0 0.0
        %3787 = vmatpush1.msra.mxu0 0.0
        %3788 = vmatprep.subr.mxu0 0.0
        %3789 = vmatpush1.msra.mxu0 0.0
        %3790 = vmatprep.subr.mxu0 0.0
        %3791 = vmatpush1.msra.mxu0 0.0
        %3792 = vmatprep.subr.mxu0 0.0
        %3793 = vmatpush1.msra.mxu0 0.0
        %3794 = vmatprep.subr.mxu0 0.0
        %3795 = vmatpush1.msra.mxu0 0.0
        %3796 = vmatprep.subr.mxu0 0.0
        %3797 = vmatpush1.msra.mxu0 0.0
        %3798 = vmatprep.subr.mxu0 0.0
        %3799 = vmatpush1.msra.mxu0 0.0
        %3800 = vmatprep.subr.mxu0 0.0
        %3801 = vmatpush1.msra.mxu0 0.0
        %3802 = vmatprep.subr.mxu0 0.0
        %3803 = vmatpush1.msra.mxu0 0.0
        %3804 = vmatprep.subr.mxu0 0.0
        %3805 = vmatpush1.msra.mxu0 0.0
        %3806 = vmatprep.subr.mxu0 0.0
        %3807 = vmatpush1.msra.mxu0 0.0
        %3808 = vmatprep.subr.mxu0 0.0
        %3809 = vmatpush1.msra.mxu0 0.0
        %3810 = vmatprep.subr.mxu0 0.0
        %3811 = vmatpush1.msra.mxu0 0.0
        %3812 = vmatprep.subr.mxu0 0.0
        %3813 = vmatpush1.msra.mxu0 0.0
        %3814 = vmatprep.subr.mxu0 0.0
        %3815 = vmatpush1.msra.mxu0 0.0
        %3816 = vmatprep.subr.mxu0 0.0
        %3817 = vmatpush1.msra.mxu0 0.0
        %3818 = vmatprep.subr.mxu0 0.0
        %3819 = vmatpush1.msra.mxu0 0.0
        %3820 = vmatprep.subr.mxu0 0.0
        %3821 = vmatpush1.msra.mxu0 0.0
        %3822 = vmatprep.subr.mxu0 0.0
        %3823 = vmatpush1.msra.mxu0 0.0
        %3824 = vmatprep.subr.mxu0 0.0
        %3825 = vmatpush1.msra.mxu0 0.0
        %3826 = vmatprep.subr.mxu0 0.0
        %3827 = vmatpush1.msra.mxu0 0.0
        %3828 = vmatprep.subr.mxu0 0.0
        %3829 = vmatpush1.msra.mxu0 0.0
        %3830 = vmatprep.mubr.f32.mxu0 0.0
        %3831 = vmatmul.mubr.f32.gmra.mrb[0].mxu0 %v3480
        %v3832 = vpop.f32.mrb[0].mxu0
        %v3833 = vadd.f32 0.0, %v3832
        %v3834 = vpop.f32.mrb[0].mxu0
        %3835 = vdwg.mxu0
        %v3836 = vadd.f32 %v3429, %v3549
        %v3837 = vadd.f32 %v3430, %v3551
        %v3838 = vadd.f32 %v3431, %v3620
        %v3839 = vadd.f32 %v3432, %v3622
        %v3840 = vadd.f32 %v3433, %v3691
        %v3841 = vadd.f32 %v3434, %v3693
        %v3842 = vadd.f32 %v3435, %v3762
        %v3843 = vadd.f32 %v3436, %v3764
        %v3844 = vadd.f32 %v3437, %v3833
        %s3845 = scalar_lea.vmem %s2, 56
        %v3846 = vld [vmem:[%s3845] sm:$0xff]
        %3847 = vrot.lane.b32.xlu0 %v1385, 90
        %v3848 = vpop.permute.xlu0 %3847
        %3849 = vrot.lane.b32.xlu0 %v1386, 90
        %v3850 = vpop.permute.xlu0 %3849
        %3851 = vrot.lane.b32.xlu0 %v1387, 90
        %v3852 = vpop.permute.xlu0 %3851
        %3853 = vrot.lane.b32.xlu0 %v1388, 90
        %v3854 = vpop.permute.xlu0 %3853
        %3855 = vrot.lane.b32.xlu0 %v1389, 90
        %v3856 = vpop.permute.xlu0 %3855
        %3857 = vrot.lane.b32.xlu0 %v1390, 90
        %v3858 = vpop.permute.xlu0 %3857
        %3859 = vrot.lane.b32.xlu0 %v1391, 90
        %v3860 = vpop.permute.xlu0 %3859
        %3861 = vrot.lane.b32.xlu0 %v1392, 90
        %v3862 = vpop.permute.xlu0 %3861
        %3863 = vrot.lane.b32.xlu0 %v1393, 90
        %v3864 = vpop.permute.xlu0 %3863
        %3865 = vrot.lane.b32.xlu0 %v1394, 90
        %v3866 = vpop.permute.xlu0 %3865
        %vm3867 = vcmask 736256
        %v3868 = vsel %vm3867, %v3848, %v3850
        %v3869 = vsel %vm3867, %v3850, %v3852
        %v3870 = vsel %vm3867, %v3852, %v3854
        %v3871 = vsel %vm3867, %v3854, %v3856
        %v3872 = vsel %vm3867, %v3856, %v3858
        %v3873 = vsel %vm3867, %v3858, %v3860
        %v3874 = vsel %vm3867, %v3860, %v3862
        %v3875 = vsel %vm3867, %v3862, %v3864
        %v3876 = vsel %vm3867, %v3864, %v3866
        %v3887 = vsel %vm1016, %v3846, 0
        %3889 = vmatprep.subr.mxu0 %v3869
        %3890 = vmatpush1.msra.mxu0 %v3868
        %3891 = vmatprep.subr.mxu0 0.0
        %3892 = vmatpush1.msra.mxu0 0.0
        %3893 = vmatprep.subr.mxu0 0.0
        %3894 = vmatpush1.msra.mxu0 0.0
        %3895 = vmatprep.subr.mxu0 0.0
        %3896 = vmatpush1.msra.mxu0 0.0
        %3897 = vmatprep.subr.mxu0 0.0
        %3898 = vmatpush1.msra.mxu0 0.0
        %3899 = vmatprep.subr.mxu0 0.0
        %3900 = vmatpush1.msra.mxu0 0.0
        %3901 = vmatprep.subr.mxu0 0.0
        %3902 = vmatpush1.msra.mxu0 0.0
        %3903 = vmatprep.subr.mxu0 0.0
        %3904 = vmatpush1.msra.mxu0 0.0
        %3905 = vmatprep.subr.mxu0 0.0
        %3906 = vmatpush1.msra.mxu0 0.0
        %3907 = vmatprep.subr.mxu0 0.0
        %3908 = vmatpush1.msra.mxu0 0.0
        %3909 = vmatprep.subr.mxu0 0.0
        %3910 = vmatpush1.msra.mxu0 0.0
        %3911 = vmatprep.subr.mxu0 0.0
        %3912 = vmatpush1.msra.mxu0 0.0
        %3913 = vmatprep.subr.mxu0 0.0
        %3914 = vmatpush1.msra.mxu0 0.0
        %3915 = vmatprep.subr.mxu0 0.0
        %3916 = vmatpush1.msra.mxu0 0.0
        %3917 = vmatprep.subr.mxu0 0.0
        %3918 = vmatpush1.msra.mxu0 0.0
        %3919 = vmatprep.subr.mxu0 0.0
        %3920 = vmatpush1.msra.mxu0 0.0
        %3921 = vmatprep.subr.mxu0 0.0
        %3922 = vmatpush1.msra.mxu0 0.0
        %3923 = vmatprep.subr.mxu0 0.0
        %3924 = vmatpush1.msra.mxu0 0.0
        %3925 = vmatprep.subr.mxu0 0.0
        %3926 = vmatpush1.msra.mxu0 0.0
        %3927 = vmatprep.subr.mxu0 0.0
        %3928 = vmatpush1.msra.mxu0 0.0
        %3929 = vmatprep.subr.mxu0 0.0
        %3930 = vmatpush1.msra.mxu0 0.0
        %3931 = vmatprep.subr.mxu0 0.0
        %3932 = vmatpush1.msra.mxu0 0.0
        %3933 = vmatprep.subr.mxu0 0.0
        %3934 = vmatpush1.msra.mxu0 0.0
        %3935 = vmatprep.subr.mxu0 0.0
        %3936 = vmatpush1.msra.mxu0 0.0
        %3937 = vmatprep.subr.mxu0 0.0
        %3938 = vmatpush1.msra.mxu0 0.0
        %3939 = vmatprep.subr.mxu0 0.0
        %3940 = vmatpush1.msra.mxu0 0.0
        %3941 = vmatprep.subr.mxu0 0.0
        %3942 = vmatpush1.msra.mxu0 0.0
        %3943 = vmatprep.subr.mxu0 0.0
        %3944 = vmatpush1.msra.mxu0 0.0
        %3945 = vmatprep.subr.mxu0 0.0
        %3946 = vmatpush1.msra.mxu0 0.0
        %3947 = vmatprep.subr.mxu0 0.0
        %3948 = vmatpush1.msra.mxu0 0.0
        %3949 = vmatprep.subr.mxu0 0.0
        %3950 = vmatpush1.msra.mxu0 0.0
        %3951 = vmatprep.subr.mxu0 0.0
        %3952 = vmatpush1.msra.mxu0 0.0
        %3953 = vmatprep.mubr.f32.mxu0 0.0
        %3954 = vmatmul.mubr.f32.gmra.mrb[0].mxu0 %v3887
        %v3955 = vpop.f32.mrb[0].mxu0
        %v3956 = vadd.f32 0.0, %v3955
        %v3957 = vpop.f32.mrb[0].mxu0
        %v3958 = vadd.f32 0.0, %v3957
        %3959 = vdwg.mxu0
        %3960 = vmatprep.subr.mxu0 %v3871
        %3961 = vmatpush1.msra.mxu0 %v3870
        %3962 = vmatprep.subr.mxu0 0.0
        %3963 = vmatpush1.msra.mxu0 0.0
        %3964 = vmatprep.subr.mxu0 0.0
        %3965 = vmatpush1.msra.mxu0 0.0
        %3966 = vmatprep.subr.mxu0 0.0
        %3967 = vmatpush1.msra.mxu0 0.0
        %3968 = vmatprep.subr.mxu0 0.0
        %3969 = vmatpush1.msra.mxu0 0.0
        %3970 = vmatprep.subr.mxu0 0.0
        %3971 = vmatpush1.msra.mxu0 0.0
        %3972 = vmatprep.subr.mxu0 0.0
        %3973 = vmatpush1.msra.mxu0 0.0
        %3974 = vmatprep.subr.mxu0 0.0
        %3975 = vmatpush1.msra.mxu0 0.0
        %3976 = vmatprep.subr.mxu0 0.0
        %3977 = vmatpush1.msra.mxu0 0.0
        %3978 = vmatprep.subr.mxu0 0.0
        %3979 = vmatpush1.msra.mxu0 0.0
        %3980 = vmatprep.subr.mxu0 0.0
        %3981 = vmatpush1.msra.mxu0 0.0
        %3982 = vmatprep.subr.mxu0 0.0
        %3983 = vmatpush1.msra.mxu0 0.0
        %3984 = vmatprep.subr.mxu0 0.0
        %3985 = vmatpush1.msra.mxu0 0.0
        %3986 = vmatprep.subr.mxu0 0.0
        %3987 = vmatpush1.msra.mxu0 0.0
        %3988 = vmatprep.subr.mxu0 0.0
        %3989 = vmatpush1.msra.mxu0 0.0
        %3990 = vmatprep.subr.mxu0 0.0
        %3991 = vmatpush1.msra.mxu0 0.0
        %3992 = vmatprep.subr.mxu0 0.0
        %3993 = vmatpush1.msra.mxu0 0.0
        %3994 = vmatprep.subr.mxu0 0.0
        %3995 = vmatpush1.msra.mxu0 0.0
        %3996 = vmatprep.subr.mxu0 0.0
        %3997 = vmatpush1.msra.mxu0 0.0
        %3998 = vmatprep.subr.mxu0 0.0
        %3999 = vmatpush1.msra.mxu0 0.0
        %4000 = vmatprep.subr.mxu0 0.0
        %4001 = vmatpush1.msra.mxu0 0.0
        %4002 = vmatprep.subr.mxu0 0.0
        %4003 = vmatpush1.msra.mxu0 0.0
        %4004 = vmatprep.subr.mxu0 0.0
        %4005 = vmatpush1.msra.mxu0 0.0
        %4006 = vmatprep.subr.mxu0 0.0
        %4007 = vmatpush1.msra.mxu0 0.0
        %4008 = vmatprep.subr.mxu0 0.0
        %4009 = vmatpush1.msra.mxu0 0.0
        %4010 = vmatprep.subr.mxu0 0.0
        %4011 = vmatpush1.msra.mxu0 0.0
        %4012 = vmatprep.subr.mxu0 0.0
        %4013 = vmatpush1.msra.mxu0 0.0
        %4014 = vmatprep.subr.mxu0 0.0
        %4015 = vmatpush1.msra.mxu0 0.0
        %4016 = vmatprep.subr.mxu0 0.0
        %4017 = vmatpush1.msra.mxu0 0.0
        %4018 = vmatprep.subr.mxu0 0.0
        %4019 = vmatpush1.msra.mxu0 0.0
        %4020 = vmatprep.subr.mxu0 0.0
        %4021 = vmatpush1.msra.mxu0 0.0
        %4022 = vmatprep.subr.mxu0 0.0
        %4023 = vmatpush1.msra.mxu0 0.0
        %4024 = vmatprep.mubr.f32.mxu0 0.0
        %4025 = vmatmul.mubr.f32.gmra.mrb[0].mxu0 %v3887
        %v4026 = vpop.f32.mrb[0].mxu0
        %v4027 = vadd.f32 0.0, %v4026
        %v4028 = vpop.f32.mrb[0].mxu0
        %v4029 = vadd.f32 0.0, %v4028
        %4030 = vdwg.mxu0
        %4031 = vmatprep.subr.mxu0 %v3873
        %4032 = vmatpush1.msra.mxu0 %v3872
        %4033 = vmatprep.subr.mxu0 0.0
        %4034 = vmatpush1.msra.mxu0 0.0
        %4035 = vmatprep.subr.mxu0 0.0
        %4036 = vmatpush1.msra.mxu0 0.0
        %4037 = vmatprep.subr.mxu0 0.0
        %4038 = vmatpush1.msra.mxu0 0.0
        %4039 = vmatprep.subr.mxu0 0.0
        %4040 = vmatpush1.msra.mxu0 0.0
        %4041 = vmatprep.subr.mxu0 0.0
        %4042 = vmatpush1.msra.mxu0 0.0
        %4043 = vmatprep.subr.mxu0 0.0
        %4044 = vmatpush1.msra.mxu0 0.0
        %4045 = vmatprep.subr.mxu0 0.0
        %4046 = vmatpush1.msra.mxu0 0.0
        %4047 = vmatprep.subr.mxu0 0.0
        %4048 = vmatpush1.msra.mxu0 0.0
        %4049 = vmatprep.subr.mxu0 0.0
        %4050 = vmatpush1.msra.mxu0 0.0
        %4051 = vmatprep.subr.mxu0 0.0
        %4052 = vmatpush1.msra.mxu0 0.0
        %4053 = vmatprep.subr.mxu0 0.0
        %4054 = vmatpush1.msra.mxu0 0.0
        %4055 = vmatprep.subr.mxu0 0.0
        %4056 = vmatpush1.msra.mxu0 0.0
        %4057 = vmatprep.subr.mxu0 0.0
        %4058 = vmatpush1.msra.mxu0 0.0
        %4059 = vmatprep.subr.mxu0 0.0
        %4060 = vmatpush1.msra.mxu0 0.0
        %4061 = vmatprep.subr.mxu0 0.0
        %4062 = vmatpush1.msra.mxu0 0.0
        %4063 = vmatprep.subr.mxu0 0.0
        %4064 = vmatpush1.msra.mxu0 0.0
        %4065 = vmatprep.subr.mxu0 0.0
        %4066 = vmatpush1.msra.mxu0 0.0
        %4067 = vmatprep.subr.mxu0 0.0
        %4068 = vmatpush1.msra.mxu0 0.0
        %4069 = vmatprep.subr.mxu0 0.0
        %4070 = vmatpush1.msra.mxu0 0.0
        %4071 = vmatprep.subr.mxu0 0.0
        %4072 = vmatpush1.msra.mxu0 0.0
        %4073 = vmatprep.subr.mxu0 0.0
        %4074 = vmatpush1.msra.mxu0 0.0
        %4075 = vmatprep.subr.mxu0 0.0
        %4076 = vmatpush1.msra.mxu0 0.0
        %4077 = vmatprep.subr.mxu0 0.0
        %4078 = vmatpush1.msra.mxu0 0.0
        %4079 = vmatprep.subr.mxu0 0.0
        %4080 = vmatpush1.msra.mxu0 0.0
        %4081 = vmatprep.subr.mxu0 0.0
        %4082 = vmatpush1.msra.mxu0 0.0
        %4083 = vmatprep.subr.mxu0 0.0
        %4084 = vmatpush1.msra.mxu0 0.0
        %4085 = vmatprep.subr.mxu0 0.0
        %4086 = vmatpush1.msra.mxu0 0.0
        %4087 = vmatprep.subr.mxu0 0.0
        %4088 = vmatpush1.msra.mxu0 0.0
        %4089 = vmatprep.subr.mxu0 0.0
        %4090 = vmatpush1.msra.mxu0 0.0
        %4091 = vmatprep.subr.mxu0 0.0
        %4092 = vmatpush1.msra.mxu0 0.0
        %4093 = vmatprep.subr.mxu0 0.0
        %4094 = vmatpush1.msra.mxu0 0.0
        %4095 = vmatprep.mubr.f32.mxu0 0.0
        %4096 = vmatmul.mubr.f32.gmra.mrb[0].mxu0 %v3887
        %v4097 = vpop.f32.mrb[0].mxu0
        %v4098 = vadd.f32 0.0, %v4097
        %v4099 = vpop.f32.mrb[0].mxu0
        %v4100 = vadd.f32 0.0, %v4099
        %4101 = vdwg.mxu0
        %4102 = vmatprep.subr.mxu0 %v3875
        %4103 = vmatpush1.msra.mxu0 %v3874
        %4104 = vmatprep.subr.mxu0 0.0
        %4105 = vmatpush1.msra.mxu0 0.0
        %4106 = vmatprep.subr.mxu0 0.0
        %4107 = vmatpush1.msra.mxu0 0.0
        %4108 = vmatprep.subr.mxu0 0.0
        %4109 = vmatpush1.msra.mxu0 0.0
        %4110 = vmatprep.subr.mxu0 0.0
        %4111 = vmatpush1.msra.mxu0 0.0
        %4112 = vmatprep.subr.mxu0 0.0
        %4113 = vmatpush1.msra.mxu0 0.0
        %4114 = vmatprep.subr.mxu0 0.0
        %4115 = vmatpush1.msra.mxu0 0.0
        %4116 = vmatprep.subr.mxu0 0.0
        %4117 = vmatpush1.msra.mxu0 0.0
        %4118 = vmatprep.subr.mxu0 0.0
        %4119 = vmatpush1.msra.mxu0 0.0
        %4120 = vmatprep.subr.mxu0 0.0
        %4121 = vmatpush1.msra.mxu0 0.0
        %4122 = vmatprep.subr.mxu0 0.0
        %4123 = vmatpush1.msra.mxu0 0.0
        %4124 = vmatprep.subr.mxu0 0.0
        %4125 = vmatpush1.msra.mxu0 0.0
        %4126 = vmatprep.subr.mxu0 0.0
        %4127 = vmatpush1.msra.mxu0 0.0
        %4128 = vmatprep.subr.mxu0 0.0
        %4129 = vmatpush1.msra.mxu0 0.0
        %4130 = vmatprep.subr.mxu0 0.0
        %4131 = vmatpush1.msra.mxu0 0.0
        %4132 = vmatprep.subr.mxu0 0.0
        %4133 = vmatpush1.msra.mxu0 0.0
        %4134 = vmatprep.subr.mxu0 0.0
        %4135 = vmatpush1.msra.mxu0 0.0
        %4136 = vmatprep.subr.mxu0 0.0
        %4137 = vmatpush1.msra.mxu0 0.0
        %4138 = vmatprep.subr.mxu0 0.0
        %4139 = vmatpush1.msra.mxu0 0.0
        %4140 = vmatprep.subr.mxu0 0.0
        %4141 = vmatpush1.msra.mxu0 0.0
        %4142 = vmatprep.subr.mxu0 0.0
        %4143 = vmatpush1.msra.mxu0 0.0
        %4144 = vmatprep.subr.mxu0 0.0
        %4145 = vmatpush1.msra.mxu0 0.0
        %4146 = vmatprep.subr.mxu0 0.0
        %4147 = vmatpush1.msra.mxu0 0.0
        %4148 = vmatprep.subr.mxu0 0.0
        %4149 = vmatpush1.msra.mxu0 0.0
        %4150 = vmatprep.subr.mxu0 0.0
        %4151 = vmatpush1.msra.mxu0 0.0
        %4152 = vmatprep.subr.mxu0 0.0
        %4153 = vmatpush1.msra.mxu0 0.0
        %4154 = vmatprep.subr.mxu0 0.0
        %4155 = vmatpush1.msra.mxu0 0.0
        %4156 = vmatprep.subr.mxu0 0.0
        %4157 = vmatpush1.msra.mxu0 0.0
        %4158 = vmatprep.subr.mxu0 0.0
        %4159 = vmatpush1.msra.mxu0 0.0
        %4160 = vmatprep.subr.mxu0 0.0
        %4161 = vmatpush1.msra.mxu0 0.0
        %4162 = vmatprep.subr.mxu0 0.0
        %4163 = vmatpush1.msra.mxu0 0.0
        %4164 = vmatprep.subr.mxu0 0.0
        %4165 = vmatpush1.msra.mxu0 0.0
        %4166 = vmatprep.mubr.f32.mxu0 0.0
        %4167 = vmatmul.mubr.f32.gmra.mrb[0].mxu0 %v3887
        %v4168 = vpop.f32.mrb[0].mxu0
        %v4169 = vadd.f32 0.0, %v4168
        %v4170 = vpop.f32.mrb[0].mxu0
        %v4171 = vadd.f32 0.0, %v4170
        %4172 = vdwg.mxu0
        %4173 = vmatprep.subr.mxu0 0.0
        %4174 = vmatpush1.msra.mxu0 %v3876
        %4175 = vmatprep.subr.mxu0 0.0
        %4176 = vmatpush1.msra.mxu0 0.0
        %4177 = vmatprep.subr.mxu0 0.0
        %4178 = vmatpush1.msra.mxu0 0.0
        %4179 = vmatprep.subr.mxu0 0.0
        %4180 = vmatpush1.msra.mxu0 0.0
        %4181 = vmatprep.subr.mxu0 0.0
        %4182 = vmatpush1.msra.mxu0 0.0
        %4183 = vmatprep.subr.mxu0 0.0
        %4184 = vmatpush1.msra.mxu0 0.0
        %4185 = vmatprep.subr.mxu0 0.0
        %4186 = vmatpush1.msra.mxu0 0.0
        %4187 = vmatprep.subr.mxu0 0.0
        %4188 = vmatpush1.msra.mxu0 0.0
        %4189 = vmatprep.subr.mxu0 0.0
        %4190 = vmatpush1.msra.mxu0 0.0
        %4191 = vmatprep.subr.mxu0 0.0
        %4192 = vmatpush1.msra.mxu0 0.0
        %4193 = vmatprep.subr.mxu0 0.0
        %4194 = vmatpush1.msra.mxu0 0.0
        %4195 = vmatprep.subr.mxu0 0.0
        %4196 = vmatpush1.msra.mxu0 0.0
        %4197 = vmatprep.subr.mxu0 0.0
        %4198 = vmatpush1.msra.mxu0 0.0
        %4199 = vmatprep.subr.mxu0 0.0
        %4200 = vmatpush1.msra.mxu0 0.0
        %4201 = vmatprep.subr.mxu0 0.0
        %4202 = vmatpush1.msra.mxu0 0.0
        %4203 = vmatprep.subr.mxu0 0.0
        %4204 = vmatpush1.msra.mxu0 0.0
        %4205 = vmatprep.subr.mxu0 0.0
        %4206 = vmatpush1.msra.mxu0 0.0
        %4207 = vmatprep.subr.mxu0 0.0
        %4208 = vmatpush1.msra.mxu0 0.0
        %4209 = vmatprep.subr.mxu0 0.0
        %4210 = vmatpush1.msra.mxu0 0.0
        %4211 = vmatprep.subr.mxu0 0.0
        %4212 = vmatpush1.msra.mxu0 0.0
        %4213 = vmatprep.subr.mxu0 0.0
        %4214 = vmatpush1.msra.mxu0 0.0
        %4215 = vmatprep.subr.mxu0 0.0
        %4216 = vmatpush1.msra.mxu0 0.0
        %4217 = vmatprep.subr.mxu0 0.0
        %4218 = vmatpush1.msra.mxu0 0.0
        %4219 = vmatprep.subr.mxu0 0.0
        %4220 = vmatpush1.msra.mxu0 0.0
        %4221 = vmatprep.subr.mxu0 0.0
        %4222 = vmatpush1.msra.mxu0 0.0
        %4223 = vmatprep.subr.mxu0 0.0
        %4224 = vmatpush1.msra.mxu0 0.0
        %4225 = vmatprep.subr.mxu0 0.0
        %4226 = vmatpush1.msra.mxu0 0.0
        %4227 = vmatprep.subr.mxu0 0.0
        %4228 = vmatpush1.msra.mxu0 0.0
        %4229 = vmatprep.subr.mxu0 0.0
        %4230 = vmatpush1.msra.mxu0 0.0
        %4231 = vmatprep.subr.mxu0 0.0
        %4232 = vmatpush1.msra.mxu0 0.0
        %4233 = vmatprep.subr.mxu0 0.0
        %4234 = vmatpush1.msra.mxu0 0.0
        %4235 = vmatprep.subr.mxu0 0.0
        %4236 = vmatpush1.msra.mxu0 0.0
        %4237 = vmatprep.mubr.f32.mxu0 0.0
        %4238 = vmatmul.mubr.f32.gmra.mrb[0].mxu0 %v3887
        %v4239 = vpop.f32.mrb[0].mxu0
        %v4240 = vadd.f32 0.0, %v4239
        %v4241 = vpop.f32.mrb[0].mxu0
        %4242 = vdwg.mxu0
        %v4243 = vadd.f32 %v3836, %v3956
        %v4244 = vadd.f32 %v3837, %v3958
        %v4245 = vadd.f32 %v3838, %v4027
        %v4246 = vadd.f32 %v3839, %v4029
        %v4247 = vadd.f32 %v3840, %v4098
        %v4248 = vadd.f32 %v3841, %v4100
        %v4249 = vadd.f32 %v3842, %v4169
        %v4250 = vadd.f32 %v3843, %v4171
        %v4251 = vadd.f32 %v3844, %v4240
        %s4252 = scalar_lea.vmem %s2, 64
        %v4253 = vld [vmem:[%s4252] sm:$0xff]
        %4254 = vrot.lane.b32.xlu0 %v1385, 89
        %v4255 = vpop.permute.xlu0 %4254
        %4256 = vrot.lane.b32.xlu0 %v1386, 89
        %v4257 = vpop.permute.xlu0 %4256
        %4258 = vrot.lane.b32.xlu0 %v1387, 89
        %v4259 = vpop.permute.xlu0 %4258
        %4260 = vrot.lane.b32.xlu0 %v1388, 89
        %v4261 = vpop.permute.xlu0 %4260
        %4262 = vrot.lane.b32.xlu0 %v1389, 89
        %v4263 = vpop.permute.xlu0 %4262
        %4264 = vrot.lane.b32.xlu0 %v1390, 89
        %v4265 = vpop.permute.xlu0 %4264
        %4266 = vrot.lane.b32.xlu0 %v1391, 89
        %v4267 = vpop.permute.xlu0 %4266
        %4268 = vrot.lane.b32.xlu0 %v1392, 89
        %v4269 = vpop.permute.xlu0 %4268
        %4270 = vrot.lane.b32.xlu0 %v1393, 89
        %v4271 = vpop.permute.xlu0 %4270
        %4272 = vrot.lane.b32.xlu0 %v1394, 89
        %v4273 = vpop.permute.xlu0 %4272
        %vm4274 = vcmask 728064
        %v4275 = vsel %vm4274, %v4255, %v4257
        %v4276 = vsel %vm4274, %v4257, %v4259
        %v4277 = vsel %vm4274, %v4259, %v4261
        %v4278 = vsel %vm4274, %v4261, %v4263
        %v4279 = vsel %vm4274, %v4263, %v4265
        %v4280 = vsel %vm4274, %v4265, %v4267
        %v4281 = vsel %vm4274, %v4267, %v4269
        %v4282 = vsel %vm4274, %v4269, %v4271
        %v4283 = vsel %vm4274, %v4271, %v4273
        %v4294 = vsel %vm1016, %v4253, 0
        %4296 = vmatprep.subr.mxu0 %v4276
        %4297 = vmatpush1.msra.mxu0 %v4275
        %4298 = vmatprep.subr.mxu0 0.0
        %4299 = vmatpush1.msra.mxu0 0.0
        %4300 = vmatprep.subr.mxu0 0.0
        %4301 = vmatpush1.msra.mxu0 0.0
        %4302 = vmatprep.subr.mxu0 0.0
        %4303 = vmatpush1.msra.mxu0 0.0
        %4304 = vmatprep.subr.mxu0 0.0
        %4305 = vmatpush1.msra.mxu0 0.0
        %4306 = vmatprep.subr.mxu0 0.0
        %4307 = vmatpush1.msra.mxu0 0.0
        %4308 = vmatprep.subr.mxu0 0.0
        %4309 = vmatpush1.msra.mxu0 0.0
        %4310 = vmatprep.subr.mxu0 0.0
        %4311 = vmatpush1.msra.mxu0 0.0
        %4312 = vmatprep.subr.mxu0 0.0
        %4313 = vmatpush1.msra.mxu0 0.0
        %4314 = vmatprep.subr.mxu0 0.0
        %4315 = vmatpush1.msra.mxu0 0.0
        %4316 = vmatprep.subr.mxu0 0.0
        %4317 = vmatpush1.msra.mxu0 0.0
        %4318 = vmatprep.subr.mxu0 0.0
        %4319 = vmatpush1.msra.mxu0 0.0
        %4320 = vmatprep.subr.mxu0 0.0
        %4321 = vmatpush1.msra.mxu0 0.0
        %4322 = vmatprep.subr.mxu0 0.0
        %4323 = vmatpush1.msra.mxu0 0.0
        %4324 = vmatprep.subr.mxu0 0.0
        %4325 = vmatpush1.msra.mxu0 0.0
        %4326 = vmatprep.subr.mxu0 0.0
        %4327 = vmatpush1.msra.mxu0 0.0
        %4328 = vmatprep.subr.mxu0 0.0
        %4329 = vmatpush1.msra.mxu0 0.0
        %4330 = vmatprep.subr.mxu0 0.0
        %4331 = vmatpush1.msra.mxu0 0.0
        %4332 = vmatprep.subr.mxu0 0.0
        %4333 = vmatpush1.msra.mxu0 0.0
        %4334 = vmatprep.subr.mxu0 0.0
        %4335 = vmatpush1.msra.mxu0 0.0
        %4336 = vmatprep.subr.mxu0 0.0
        %4337 = vmatpush1.msra.mxu0 0.0
        %4338 = vmatprep.subr.mxu0 0.0
        %4339 = vmatpush1.msra.mxu0 0.0
        %4340 = vmatprep.subr.mxu0 0.0
        %4341 = vmatpush1.msra.mxu0 0.0
        %4342 = vmatprep.subr.mxu0 0.0
        %4343 = vmatpush1.msra.mxu0 0.0
        %4344 = vmatprep.subr.mxu0 0.0
        %4345 = vmatpush1.msra.mxu0 0.0
        %4346 = vmatprep.subr.mxu0 0.0
        %4347 = vmatpush1.msra.mxu0 0.0
        %4348 = vmatprep.subr.mxu0 0.0
        %4349 = vmatpush1.msra.mxu0 0.0
        %4350 = vmatprep.subr.mxu0 0.0
        %4351 = vmatpush1.msra.mxu0 0.0
        %4352 = vmatprep.subr.mxu0 0.0
        %4353 = vmatpush1.msra.mxu0 0.0
        %4354 = vmatprep.subr.mxu0 0.0
        %4355 = vmatpush1.msra.mxu0 0.0
        %4356 = vmatprep.subr.mxu0 0.0
        %4357 = vmatpush1.msra.mxu0 0.0
        %4358 = vmatprep.subr.mxu0 0.0
        %4359 = vmatpush1.msra.mxu0 0.0
        %4360 = vmatprep.mubr.f32.mxu0 0.0
        %4361 = vmatmul.mubr.f32.gmra.mrb[0].mxu0 %v4294
        %v4362 = vpop.f32.mrb[0].mxu0
        %v4363 = vadd.f32 0.0, %v4362
        %v4364 = vpop.f32.mrb[0].mxu0
        %v4365 = vadd.f32 0.0, %v4364
        %4366 = vdwg.mxu0
        %4367 = vmatprep.subr.mxu0 %v4278
        %4368 = vmatpush1.msra.mxu0 %v4277
        %4369 = vmatprep.subr.mxu0 0.0
        %4370 = vmatpush1.msra.mxu0 0.0
        %4371 = vmatprep.subr.mxu0 0.0
        %4372 = vmatpush1.msra.mxu0 0.0
        %4373 = vmatprep.subr.mxu0 0.0
        %4374 = vmatpush1.msra.mxu0 0.0
        %4375 = vmatprep.subr.mxu0 0.0
        %4376 = vmatpush1.msra.mxu0 0.0
        %4377 = vmatprep.subr.mxu0 0.0
        %4378 = vmatpush1.msra.mxu0 0.0
        %4379 = vmatprep.subr.mxu0 0.0
        %4380 = vmatpush1.msra.mxu0 0.0
        %4381 = vmatprep.subr.mxu0 0.0
        %4382 = vmatpush1.msra.mxu0 0.0
        %4383 = vmatprep.subr.mxu0 0.0
        %4384 = vmatpush1.msra.mxu0 0.0
        %4385 = vmatprep.subr.mxu0 0.0
        %4386 = vmatpush1.msra.mxu0 0.0
        %4387 = vmatprep.subr.mxu0 0.0
        %4388 = vmatpush1.msra.mxu0 0.0
        %4389 = vmatprep.subr.mxu0 0.0
        %4390 = vmatpush1.msra.mxu0 0.0
        %4391 = vmatprep.subr.mxu0 0.0
        %4392 = vmatpush1.msra.mxu0 0.0
        %4393 = vmatprep.subr.mxu0 0.0
        %4394 = vmatpush1.msra.mxu0 0.0
        %4395 = vmatprep.subr.mxu0 0.0
        %4396 = vmatpush1.msra.mxu0 0.0
        %4397 = vmatprep.subr.mxu0 0.0
        %4398 = vmatpush1.msra.mxu0 0.0
        %4399 = vmatprep.subr.mxu0 0.0
        %4400 = vmatpush1.msra.mxu0 0.0
        %4401 = vmatprep.subr.mxu0 0.0
        %4402 = vmatpush1.msra.mxu0 0.0
        %4403 = vmatprep.subr.mxu0 0.0
        %4404 = vmatpush1.msra.mxu0 0.0
        %4405 = vmatprep.subr.mxu0 0.0
        %4406 = vmatpush1.msra.mxu0 0.0
        %4407 = vmatprep.subr.mxu0 0.0
        %4408 = vmatpush1.msra.mxu0 0.0
        %4409 = vmatprep.subr.mxu0 0.0
        %4410 = vmatpush1.msra.mxu0 0.0
        %4411 = vmatprep.subr.mxu0 0.0
        %4412 = vmatpush1.msra.mxu0 0.0
        %4413 = vmatprep.subr.mxu0 0.0
        %4414 = vmatpush1.msra.mxu0 0.0
        %4415 = vmatprep.subr.mxu0 0.0
        %4416 = vmatpush1.msra.mxu0 0.0
        %4417 = vmatprep.subr.mxu0 0.0
        %4418 = vmatpush1.msra.mxu0 0.0
        %4419 = vmatprep.subr.mxu0 0.0
        %4420 = vmatpush1.msra.mxu0 0.0
        %4421 = vmatprep.subr.mxu0 0.0
        %4422 = vmatpush1.msra.mxu0 0.0
        %4423 = vmatprep.subr.mxu0 0.0
        %4424 = vmatpush1.msra.mxu0 0.0
        %4425 = vmatprep.subr.mxu0 0.0
        %4426 = vmatpush1.msra.mxu0 0.0
        %4427 = vmatprep.subr.mxu0 0.0
        %4428 = vmatpush1.msra.mxu0 0.0
        %4429 = vmatprep.subr.mxu0 0.0
        %4430 = vmatpush1.msra.mxu0 0.0
        %4431 = vmatprep.mubr.f32.mxu0 0.0
        %4432 = vmatmul.mubr.f32.gmra.mrb[0].mxu0 %v4294
        %v4433 = vpop.f32.mrb[0].mxu0
        %v4434 = vadd.f32 0.0, %v4433
        %v4435 = vpop.f32.mrb[0].mxu0
        %v4436 = vadd.f32 0.0, %v4435
        %4437 = vdwg.mxu0
        %4438 = vmatprep.subr.mxu0 %v4280
        %4439 = vmatpush1.msra.mxu0 %v4279
        %4440 = vmatprep.subr.mxu0 0.0
        %4441 = vmatpush1.msra.mxu0 0.0
        %4442 = vmatprep.subr.mxu0 0.0
        %4443 = vmatpush1.msra.mxu0 0.0
        %4444 = vmatprep.subr.mxu0 0.0
        %4445 = vmatpush1.msra.mxu0 0.0
        %4446 = vmatprep.subr.mxu0 0.0
        %4447 = vmatpush1.msra.mxu0 0.0
        %4448 = vmatprep.subr.mxu0 0.0
        %4449 = vmatpush1.msra.mxu0 0.0
        %4450 = vmatprep.subr.mxu0 0.0
        %4451 = vmatpush1.msra.mxu0 0.0
        %4452 = vmatprep.subr.mxu0 0.0
        %4453 = vmatpush1.msra.mxu0 0.0
        %4454 = vmatprep.subr.mxu0 0.0
        %4455 = vmatpush1.msra.mxu0 0.0
        %4456 = vmatprep.subr.mxu0 0.0
        %4457 = vmatpush1.msra.mxu0 0.0
        %4458 = vmatprep.subr.mxu0 0.0
        %4459 = vmatpush1.msra.mxu0 0.0
        %4460 = vmatprep.subr.mxu0 0.0
        %4461 = vmatpush1.msra.mxu0 0.0
        %4462 = vmatprep.subr.mxu0 0.0
        %4463 = vmatpush1.msra.mxu0 0.0
        %4464 = vmatprep.subr.mxu0 0.0
        %4465 = vmatpush1.msra.mxu0 0.0
        %4466 = vmatprep.subr.mxu0 0.0
        %4467 = vmatpush1.msra.mxu0 0.0
        %4468 = vmatprep.subr.mxu0 0.0
        %4469 = vmatpush1.msra.mxu0 0.0
        %4470 = vmatprep.subr.mxu0 0.0
        %4471 = vmatpush1.msra.mxu0 0.0
        %4472 = vmatprep.subr.mxu0 0.0
        %4473 = vmatpush1.msra.mxu0 0.0
        %4474 = vmatprep.subr.mxu0 0.0
        %4475 = vmatpush1.msra.mxu0 0.0
        %4476 = vmatprep.subr.mxu0 0.0
        %4477 = vmatpush1.msra.mxu0 0.0
        %4478 = vmatprep.subr.mxu0 0.0
        %4479 = vmatpush1.msra.mxu0 0.0
        %4480 = vmatprep.subr.mxu0 0.0
        %4481 = vmatpush1.msra.mxu0 0.0
        %4482 = vmatprep.subr.mxu0 0.0
        %4483 = vmatpush1.msra.mxu0 0.0
        %4484 = vmatprep.subr.mxu0 0.0
        %4485 = vmatpush1.msra.mxu0 0.0
        %4486 = vmatprep.subr.mxu0 0.0
        %4487 = vmatpush1.msra.mxu0 0.0
        %4488 = vmatprep.subr.mxu0 0.0
        %4489 = vmatpush1.msra.mxu0 0.0
        %4490 = vmatprep.subr.mxu0 0.0
        %4491 = vmatpush1.msra.mxu0 0.0
        %4492 = vmatprep.subr.mxu0 0.0
        %4493 = vmatpush1.msra.mxu0 0.0
        %4494 = vmatprep.subr.mxu0 0.0
        %4495 = vmatpush1.msra.mxu0 0.0
        %4496 = vmatprep.subr.mxu0 0.0
        %4497 = vmatpush1.msra.mxu0 0.0
        %4498 = vmatprep.subr.mxu0 0.0
        %4499 = vmatpush1.msra.mxu0 0.0
        %4500 = vmatprep.subr.mxu0 0.0
        %4501 = vmatpush1.msra.mxu0 0.0
        %4502 = vmatprep.mubr.f32.mxu0 0.0
        %4503 = vmatmul.mubr.f32.gmra.mrb[0].mxu0 %v4294
        %v4504 = vpop.f32.mrb[0].mxu0
        %v4505 = vadd.f32 0.0, %v4504
        %v4506 = vpop.f32.mrb[0].mxu0
        %v4507 = vadd.f32 0.0, %v4506
        %4508 = vdwg.mxu0
        %4509 = vmatprep.subr.mxu0 %v4282
        %4510 = vmatpush1.msra.mxu0 %v4281
        %4511 = vmatprep.subr.mxu0 0.0
        %4512 = vmatpush1.msra.mxu0 0.0
        %4513 = vmatprep.subr.mxu0 0.0
        %4514 = vmatpush1.msra.mxu0 0.0
        %4515 = vmatprep.subr.mxu0 0.0
        %4516 = vmatpush1.msra.mxu0 0.0
        %4517 = vmatprep.subr.mxu0 0.0
        %4518 = vmatpush1.msra.mxu0 0.0
        %4519 = vmatprep.subr.mxu0 0.0
        %4520 = vmatpush1.msra.mxu0 0.0
        %4521 = vmatprep.subr.mxu0 0.0
        %4522 = vmatpush1.msra.mxu0 0.0
        %4523 = vmatprep.subr.mxu0 0.0
        %4524 = vmatpush1.msra.mxu0 0.0
        %4525 = vmatprep.subr.mxu0 0.0
        %4526 = vmatpush1.msra.mxu0 0.0
        %4527 = vmatprep.subr.mxu0 0.0
        %4528 = vmatpush1.msra.mxu0 0.0
        %4529 = vmatprep.subr.mxu0 0.0
        %4530 = vmatpush1.msra.mxu0 0.0
        %4531 = vmatprep.subr.mxu0 0.0
        %4532 = vmatpush1.msra.mxu0 0.0
        %4533 = vmatprep.subr.mxu0 0.0
        %4534 = vmatpush1.msra.mxu0 0.0
        %4535 = vmatprep.subr.mxu0 0.0
        %4536 = vmatpush1.msra.mxu0 0.0
        %4537 = vmatprep.subr.mxu0 0.0
        %4538 = vmatpush1.msra.mxu0 0.0
        %4539 = vmatprep.subr.mxu0 0.0
        %4540 = vmatpush1.msra.mxu0 0.0
        %4541 = vmatprep.subr.mxu0 0.0
        %4542 = vmatpush1.msra.mxu0 0.0
        %4543 = vmatprep.subr.mxu0 0.0
        %4544 = vmatpush1.msra.mxu0 0.0
        %4545 = vmatprep.subr.mxu0 0.0
        %4546 = vmatpush1.msra.mxu0 0.0
        %4547 = vmatprep.subr.mxu0 0.0
        %4548 = vmatpush1.msra.mxu0 0.0
        %4549 = vmatprep.subr.mxu0 0.0
        %4550 = vmatpush1.msra.mxu0 0.0
        %4551 = vmatprep.subr.mxu0 0.0
        %4552 = vmatpush1.msra.mxu0 0.0
        %4553 = vmatprep.subr.mxu0 0.0
        %4554 = vmatpush1.msra.mxu0 0.0
        %4555 = vmatprep.subr.mxu0 0.0
        %4556 = vmatpush1.msra.mxu0 0.0
        %4557 = vmatprep.subr.mxu0 0.0
        %4558 = vmatpush1.msra.mxu0 0.0
        %4559 = vmatprep.subr.mxu0 0.0
        %4560 = vmatpush1.msra.mxu0 0.0
        %4561 = vmatprep.subr.mxu0 0.0
        %4562 = vmatpush1.msra.mxu0 0.0
        %4563 = vmatprep.subr.mxu0 0.0
        %4564 = vmatpush1.msra.mxu0 0.0
        %4565 = vmatprep.subr.mxu0 0.0
        %4566 = vmatpush1.msra.mxu0 0.0
        %4567 = vmatprep.subr.mxu0 0.0
        %4568 = vmatpush1.msra.mxu0 0.0
        %4569 = vmatprep.subr.mxu0 0.0
        %4570 = vmatpush1.msra.mxu0 0.0
        %4571 = vmatprep.subr.mxu0 0.0
        %4572 = vmatpush1.msra.mxu0 0.0
        %4573 = vmatprep.mubr.f32.mxu0 0.0
        %4574 = vmatmul.mubr.f32.gmra.mrb[0].mxu0 %v4294
        %v4575 = vpop.f32.mrb[0].mxu0
        %v4576 = vadd.f32 0.0, %v4575
        %v4577 = vpop.f32.mrb[0].mxu0
        %v4578 = vadd.f32 0.0, %v4577
        %4579 = vdwg.mxu0
        %4580 = vmatprep.subr.mxu0 0.0
        %4581 = vmatpush1.msra.mxu0 %v4283
        %4582 = vmatprep.subr.mxu0 0.0
        %4583 = vmatpush1.msra.mxu0 0.0
        %4584 = vmatprep.subr.mxu0 0.0
        %4585 = vmatpush1.msra.mxu0 0.0
        %4586 = vmatprep.subr.mxu0 0.0
        %4587 = vmatpush1.msra.mxu0 0.0
        %4588 = vmatprep.subr.mxu0 0.0
        %4589 = vmatpush1.msra.mxu0 0.0
        %4590 = vmatprep.subr.mxu0 0.0
        %4591 = vmatpush1.msra.mxu0 0.0
        %4592 = vmatprep.subr.mxu0 0.0
        %4593 = vmatpush1.msra.mxu0 0.0
        %4594 = vmatprep.subr.mxu0 0.0
        %4595 = vmatpush1.msra.mxu0 0.0
        %4596 = vmatprep.subr.mxu0 0.0
        %4597 = vmatpush1.msra.mxu0 0.0
        %4598 = vmatprep.subr.mxu0 0.0
        %4599 = vmatpush1.msra.mxu0 0.0
        %4600 = vmatprep.subr.mxu0 0.0
        %4601 = vmatpush1.msra.mxu0 0.0
        %4602 = vmatprep.subr.mxu0 0.0
        %4603 = vmatpush1.msra.mxu0 0.0
        %4604 = vmatprep.subr.mxu0 0.0
        %4605 = vmatpush1.msra.mxu0 0.0
        %4606 = vmatprep.subr.mxu0 0.0
        %4607 = vmatpush1.msra.mxu0 0.0
        %4608 = vmatprep.subr.mxu0 0.0
        %4609 = vmatpush1.msra.mxu0 0.0
        %4610 = vmatprep.subr.mxu0 0.0
        %4611 = vmatpush1.msra.mxu0 0.0
        %4612 = vmatprep.subr.mxu0 0.0
        %4613 = vmatpush1.msra.mxu0 0.0
        %4614 = vmatprep.subr.mxu0 0.0
        %4615 = vmatpush1.msra.mxu0 0.0
        %4616 = vmatprep.subr.mxu0 0.0
        %4617 = vmatpush1.msra.mxu0 0.0
        %4618 = vmatprep.subr.mxu0 0.0
        %4619 = vmatpush1.msra.mxu0 0.0
        %4620 = vmatprep.subr.mxu0 0.0
        %4621 = vmatpush1.msra.mxu0 0.0
        %4622 = vmatprep.subr.mxu0 0.0
        %4623 = vmatpush1.msra.mxu0 0.0
        %4624 = vmatprep.subr.mxu0 0.0
        %4625 = vmatpush1.msra.mxu0 0.0
        %4626 = vmatprep.subr.mxu0 0.0
        %4627 = vmatpush1.msra.mxu0 0.0
        %4628 = vmatprep.subr.mxu0 0.0
        %4629 = vmatpush1.msra.mxu0 0.0
        %4630 = vmatprep.subr.mxu0 0.0
        %4631 = vmatpush1.msra.mxu0 0.0
        %4632 = vmatprep.subr.mxu0 0.0
        %4633 = vmatpush1.msra.mxu0 0.0
        %4634 = vmatprep.subr.mxu0 0.0
        %4635 = vmatpush1.msra.mxu0 0.0
        %4636 = vmatprep.subr.mxu0 0.0
        %4637 = vmatpush1.msra.mxu0 0.0
        %4638 = vmatprep.subr.mxu0 0.0
        %4639 = vmatpush1.msra.mxu0 0.0
        %4640 = vmatprep.subr.mxu0 0.0
        %4641 = vmatpush1.msra.mxu0 0.0
        %4642 = vmatprep.subr.mxu0 0.0
        %4643 = vmatpush1.msra.mxu0 0.0
        %4644 = vmatprep.mubr.f32.mxu0 0.0
        %4645 = vmatmul.mubr.f32.gmra.mrb[0].mxu0 %v4294
        %v4646 = vpop.f32.mrb[0].mxu0
        %v4647 = vadd.f32 0.0, %v4646
        %v4648 = vpop.f32.mrb[0].mxu0
        %4649 = vdwg.mxu0
        %v4650 = vadd.f32 %v4243, %v4363
        %v4651 = vadd.f32 %v4244, %v4365
        %v4652 = vadd.f32 %v4245, %v4434
        %v4653 = vadd.f32 %v4246, %v4436
        %v4654 = vadd.f32 %v4247, %v4505
        %v4655 = vadd.f32 %v4248, %v4507
        %v4656 = vadd.f32 %v4249, %v4576
        %v4657 = vadd.f32 %v4250, %v4578
        %v4658 = vadd.f32 %v4251, %v4647
        %s4659 = scalar_lea.vmem %s2, 72
        %v4660 = vld [vmem:[%s4659] sm:$0xff]
        %4661 = vrot.lane.b32.xlu0 %v1385, 88
        %v4662 = vpop.permute.xlu0 %4661
        %4663 = vrot.lane.b32.xlu0 %v1386, 88
        %v4664 = vpop.permute.xlu0 %4663
        %4665 = vrot.lane.b32.xlu0 %v1387, 88
        %v4666 = vpop.permute.xlu0 %4665
        %4667 = vrot.lane.b32.xlu0 %v1388, 88
        %v4668 = vpop.permute.xlu0 %4667
        %4669 = vrot.lane.b32.xlu0 %v1389, 88
        %v4670 = vpop.permute.xlu0 %4669
        %4671 = vrot.lane.b32.xlu0 %v1390, 88
        %v4672 = vpop.permute.xlu0 %4671
        %4673 = vrot.lane.b32.xlu0 %v1391, 88
        %v4674 = vpop.permute.xlu0 %4673
        %4675 = vrot.lane.b32.xlu0 %v1392, 88
        %v4676 = vpop.permute.xlu0 %4675
        %4677 = vrot.lane.b32.xlu0 %v1393, 88
        %v4678 = vpop.permute.xlu0 %4677
        %4679 = vrot.lane.b32.xlu0 %v1394, 88
        %v4680 = vpop.permute.xlu0 %4679
        %vm4681 = vcmask 719872
        %v4682 = vsel %vm4681, %v4662, %v4664
        %v4683 = vsel %vm4681, %v4664, %v4666
        %v4684 = vsel %vm4681, %v4666, %v4668
        %v4685 = vsel %vm4681, %v4668, %v4670
        %v4686 = vsel %vm4681, %v4670, %v4672
        %v4687 = vsel %vm4681, %v4672, %v4674
        %v4688 = vsel %vm4681, %v4674, %v4676
        %v4689 = vsel %vm4681, %v4676, %v4678
        %v4690 = vsel %vm4681, %v4678, %v4680
        %v4701 = vsel %vm1016, %v4660, 0
        %4703 = vmatprep.subr.mxu0 %v4683
        %4704 = vmatpush1.msra.mxu0 %v4682
        %4705 = vmatprep.subr.mxu0 0.0
        %4706 = vmatpush1.msra.mxu0 0.0
        %4707 = vmatprep.subr.mxu0 0.0
        %4708 = vmatpush1.msra.mxu0 0.0
        %4709 = vmatprep.subr.mxu0 0.0
        %4710 = vmatpush1.msra.mxu0 0.0
        %4711 = vmatprep.subr.mxu0 0.0
        %4712 = vmatpush1.msra.mxu0 0.0
        %4713 = vmatprep.subr.mxu0 0.0
        %4714 = vmatpush1.msra.mxu0 0.0
        %4715 = vmatprep.subr.mxu0 0.0
        %4716 = vmatpush1.msra.mxu0 0.0
        %4717 = vmatprep.subr.mxu0 0.0
        %4718 = vmatpush1.msra.mxu0 0.0
        %4719 = vmatprep.subr.mxu0 0.0
        %4720 = vmatpush1.msra.mxu0 0.0
        %4721 = vmatprep.subr.mxu0 0.0
        %4722 = vmatpush1.msra.mxu0 0.0
        %4723 = vmatprep.subr.mxu0 0.0
        %4724 = vmatpush1.msra.mxu0 0.0
        %4725 = vmatprep.subr.mxu0 0.0
        %4726 = vmatpush1.msra.mxu0 0.0
        %4727 = vmatprep.subr.mxu0 0.0
        %4728 = vmatpush1.msra.mxu0 0.0
        %4729 = vmatprep.subr.mxu0 0.0
        %4730 = vmatpush1.msra.mxu0 0.0
        %4731 = vmatprep.subr.mxu0 0.0
        %4732 = vmatpush1.msra.mxu0 0.0
        %4733 = vmatprep.subr.mxu0 0.0
        %4734 = vmatpush1.msra.mxu0 0.0
        %4735 = vmatprep.subr.mxu0 0.0
        %4736 = vmatpush1.msra.mxu0 0.0
        %4737 = vmatprep.subr.mxu0 0.0
        %4738 = vmatpush1.msra.mxu0 0.0
        %4739 = vmatprep.subr.mxu0 0.0
        %4740 = vmatpush1.msra.mxu0 0.0
        %4741 = vmatprep.subr.mxu0 0.0
        %4742 = vmatpush1.msra.mxu0 0.0
        %4743 = vmatprep.subr.mxu0 0.0
        %4744 = vmatpush1.msra.mxu0 0.0
        %4745 = vmatprep.subr.mxu0 0.0
        %4746 = vmatpush1.msra.mxu0 0.0
        %4747 = vmatprep.subr.mxu0 0.0
        %4748 = vmatpush1.msra.mxu0 0.0
        %4749 = vmatprep.subr.mxu0 0.0
        %4750 = vmatpush1.msra.mxu0 0.0
        %4751 = vmatprep.subr.mxu0 0.0
        %4752 = vmatpush1.msra.mxu0 0.0
        %4753 = vmatprep.subr.mxu0 0.0
        %4754 = vmatpush1.msra.mxu0 0.0
        %4755 = vmatprep.subr.mxu0 0.0
        %4756 = vmatpush1.msra.mxu0 0.0
        %4757 = vmatprep.subr.mxu0 0.0
        %4758 = vmatpush1.msra.mxu0 0.0
        %4759 = vmatprep.subr.mxu0 0.0
        %4760 = vmatpush1.msra.mxu0 0.0
        %4761 = vmatprep.subr.mxu0 0.0
        %4762 = vmatpush1.msra.mxu0 0.0
        %4763 = vmatprep.subr.mxu0 0.0
        %4764 = vmatpush1.msra.mxu0 0.0
        %4765 = vmatprep.subr.mxu0 0.0
        %4766 = vmatpush1.msra.mxu0 0.0
        %4767 = vmatprep.mubr.f32.mxu0 0.0
        %4768 = vmatmul.mubr.f32.gmra.mrb[0].mxu0 %v4701
        %v4769 = vpop.f32.mrb[0].mxu0
        %v4770 = vadd.f32 0.0, %v4769
        %v4771 = vpop.f32.mrb[0].mxu0
        %v4772 = vadd.f32 0.0, %v4771
        %4773 = vdwg.mxu0
        %4774 = vmatprep.subr.mxu0 %v4685
        %4775 = vmatpush1.msra.mxu0 %v4684
        %4776 = vmatprep.subr.mxu0 0.0
        %4777 = vmatpush1.msra.mxu0 0.0
        %4778 = vmatprep.subr.mxu0 0.0
        %4779 = vmatpush1.msra.mxu0 0.0
        %4780 = vmatprep.subr.mxu0 0.0
        %4781 = vmatpush1.msra.mxu0 0.0
        %4782 = vmatprep.subr.mxu0 0.0
        %4783 = vmatpush1.msra.mxu0 0.0
        %4784 = vmatprep.subr.mxu0 0.0
        %4785 = vmatpush1.msra.mxu0 0.0
        %4786 = vmatprep.subr.mxu0 0.0
        %4787 = vmatpush1.msra.mxu0 0.0
        %4788 = vmatprep.subr.mxu0 0.0
        %4789 = vmatpush1.msra.mxu0 0.0
        %4790 = vmatprep.subr.mxu0 0.0
        %4791 = vmatpush1.msra.mxu0 0.0
        %4792 = vmatprep.subr.mxu0 0.0
        %4793 = vmatpush1.msra.mxu0 0.0
        %4794 = vmatprep.subr.mxu0 0.0
        %4795 = vmatpush1.msra.mxu0 0.0
        %4796 = vmatprep.subr.mxu0 0.0
        %4797 = vmatpush1.msra.mxu0 0.0
        %4798 = vmatprep.subr.mxu0 0.0
        %4799 = vmatpush1.msra.mxu0 0.0
        %4800 = vmatprep.subr.mxu0 0.0
        %4801 = vmatpush1.msra.mxu0 0.0
        %4802 = vmatprep.subr.mxu0 0.0
        %4803 = vmatpush1.msra.mxu0 0.0
        %4804 = vmatprep.subr.mxu0 0.0
        %4805 = vmatpush1.msra.mxu0 0.0
        %4806 = vmatprep.subr.mxu0 0.0
        %4807 = vmatpush1.msra.mxu0 0.0
        %4808 = vmatprep.subr.mxu0 0.0
        %4809 = vmatpush1.msra.mxu0 0.0
        %4810 = vmatprep.subr.mxu0 0.0
        %4811 = vmatpush1.msra.mxu0 0.0
        %4812 = vmatprep.subr.mxu0 0.0
        %4813 = vmatpush1.msra.mxu0 0.0
        %4814 = vmatprep.subr.mxu0 0.0
        %4815 = vmatpush1.msra.mxu0 0.0
        %4816 = vmatprep.subr.mxu0 0.0
        %4817 = vmatpush1.msra.mxu0 0.0
        %4818 = vmatprep.subr.mxu0 0.0
        %4819 = vmatpush1.msra.mxu0 0.0
        %4820 = vmatprep.subr.mxu0 0.0
        %4821 = vmatpush1.msra.mxu0 0.0
        %4822 = vmatprep.subr.mxu0 0.0
        %4823 = vmatpush1.msra.mxu0 0.0
        %4824 = vmatprep.subr.mxu0 0.0
        %4825 = vmatpush1.msra.mxu0 0.0
        %4826 = vmatprep.subr.mxu0 0.0
        %4827 = vmatpush1.msra.mxu0 0.0
        %4828 = vmatprep.subr.mxu0 0.0
        %4829 = vmatpush1.msra.mxu0 0.0
        %4830 = vmatprep.subr.mxu0 0.0
        %4831 = vmatpush1.msra.mxu0 0.0
        %4832 = vmatprep.subr.mxu0 0.0
        %4833 = vmatpush1.msra.mxu0 0.0
        %4834 = vmatprep.subr.mxu0 0.0
        %4835 = vmatpush1.msra.mxu0 0.0
        %4836 = vmatprep.subr.mxu0 0.0
        %4837 = vmatpush1.msra.mxu0 0.0
        %4838 = vmatprep.mubr.f32.mxu0 0.0
        %4839 = vmatmul.mubr.f32.gmra.mrb[0].mxu0 %v4701
        %v4840 = vpop.f32.mrb[0].mxu0
        %v4841 = vadd.f32 0.0, %v4840
        %v4842 = vpop.f32.mrb[0].mxu0
        %v4843 = vadd.f32 0.0, %v4842
        %4844 = vdwg.mxu0
        %4845 = vmatprep.subr.mxu0 %v4687
        %4846 = vmatpush1.msra.mxu0 %v4686
        %4847 = vmatprep.subr.mxu0 0.0
        %4848 = vmatpush1.msra.mxu0 0.0
        %4849 = vmatprep.subr.mxu0 0.0
        %4850 = vmatpush1.msra.mxu0 0.0
        %4851 = vmatprep.subr.mxu0 0.0
        %4852 = vmatpush1.msra.mxu0 0.0
        %4853 = vmatprep.subr.mxu0 0.0
        %4854 = vmatpush1.msra.mxu0 0.0
        %4855 = vmatprep.subr.mxu0 0.0
        %4856 = vmatpush1.msra.mxu0 0.0
        %4857 = vmatprep.subr.mxu0 0.0
        %4858 = vmatpush1.msra.mxu0 0.0
        %4859 = vmatprep.subr.mxu0 0.0
        %4860 = vmatpush1.msra.mxu0 0.0
        %4861 = vmatprep.subr.mxu0 0.0
        %4862 = vmatpush1.msra.mxu0 0.0
        %4863 = vmatprep.subr.mxu0 0.0
        %4864 = vmatpush1.msra.mxu0 0.0
        %4865 = vmatprep.subr.mxu0 0.0
        %4866 = vmatpush1.msra.mxu0 0.0
        %4867 = vmatprep.subr.mxu0 0.0
        %4868 = vmatpush1.msra.mxu0 0.0
        %4869 = vmatprep.subr.mxu0 0.0
        %4870 = vmatpush1.msra.mxu0 0.0
        %4871 = vmatprep.subr.mxu0 0.0
        %4872 = vmatpush1.msra.mxu0 0.0
        %4873 = vmatprep.subr.mxu0 0.0
        %4874 = vmatpush1.msra.mxu0 0.0
        %4875 = vmatprep.subr.mxu0 0.0
        %4876 = vmatpush1.msra.mxu0 0.0
        %4877 = vmatprep.subr.mxu0 0.0
        %4878 = vmatpush1.msra.mxu0 0.0
        %4879 = vmatprep.subr.mxu0 0.0
        %4880 = vmatpush1.msra.mxu0 0.0
        %4881 = vmatprep.subr.mxu0 0.0
        %4882 = vmatpush1.msra.mxu0 0.0
        %4883 = vmatprep.subr.mxu0 0.0
        %4884 = vmatpush1.msra.mxu0 0.0
        %4885 = vmatprep.subr.mxu0 0.0
        %4886 = vmatpush1.msra.mxu0 0.0
        %4887 = vmatprep.subr.mxu0 0.0
        %4888 = vmatpush1.msra.mxu0 0.0
        %4889 = vmatprep.subr.mxu0 0.0
        %4890 = vmatpush1.msra.mxu0 0.0
        %4891 = vmatprep.subr.mxu0 0.0
        %4892 = vmatpush1.msra.mxu0 0.0
        %4893 = vmatprep.subr.mxu0 0.0
        %4894 = vmatpush1.msra.mxu0 0.0
        %4895 = vmatprep.subr.mxu0 0.0
        %4896 = vmatpush1.msra.mxu0 0.0
        %4897 = vmatprep.subr.mxu0 0.0
        %4898 = vmatpush1.msra.mxu0 0.0
        %4899 = vmatprep.subr.mxu0 0.0
        %4900 = vmatpush1.msra.mxu0 0.0
        %4901 = vmatprep.subr.mxu0 0.0
        %4902 = vmatpush1.msra.mxu0 0.0
        %4903 = vmatprep.subr.mxu0 0.0
        %4904 = vmatpush1.msra.mxu0 0.0
        %4905 = vmatprep.subr.mxu0 0.0
        %4906 = vmatpush1.msra.mxu0 0.0
        %4907 = vmatprep.subr.mxu0 0.0
        %4908 = vmatpush1.msra.mxu0 0.0
        %4909 = vmatprep.mubr.f32.mxu0 0.0
        %4910 = vmatmul.mubr.f32.gmra.mrb[0].mxu0 %v4701
        %v4911 = vpop.f32.mrb[0].mxu0
        %v4912 = vadd.f32 0.0, %v4911
        %v4913 = vpop.f32.mrb[0].mxu0
        %v4914 = vadd.f32 0.0, %v4913
        %4915 = vdwg.mxu0
        %4916 = vmatprep.subr.mxu0 %v4689
        %4917 = vmatpush1.msra.mxu0 %v4688
        %4918 = vmatprep.subr.mxu0 0.0
        %4919 = vmatpush1.msra.mxu0 0.0
        %4920 = vmatprep.subr.mxu0 0.0
        %4921 = vmatpush1.msra.mxu0 0.0
        %4922 = vmatprep.subr.mxu0 0.0
        %4923 = vmatpush1.msra.mxu0 0.0
        %4924 = vmatprep.subr.mxu0 0.0
        %4925 = vmatpush1.msra.mxu0 0.0
        %4926 = vmatprep.subr.mxu0 0.0
        %4927 = vmatpush1.msra.mxu0 0.0
        %4928 = vmatprep.subr.mxu0 0.0
        %4929 = vmatpush1.msra.mxu0 0.0
        %4930 = vmatprep.subr.mxu0 0.0
        %4931 = vmatpush1.msra.mxu0 0.0
        %4932 = vmatprep.subr.mxu0 0.0
        %4933 = vmatpush1.msra.mxu0 0.0
        %4934 = vmatprep.subr.mxu0 0.0
        %4935 = vmatpush1.msra.mxu0 0.0
        %4936 = vmatprep.subr.mxu0 0.0
        %4937 = vmatpush1.msra.mxu0 0.0
        %4938 = vmatprep.subr.mxu0 0.0
        %4939 = vmatpush1.msra.mxu0 0.0
        %4940 = vmatprep.subr.mxu0 0.0
        %4941 = vmatpush1.msra.mxu0 0.0
        %4942 = vmatprep.subr.mxu0 0.0
        %4943 = vmatpush1.msra.mxu0 0.0
        %4944 = vmatprep.subr.mxu0 0.0
        %4945 = vmatpush1.msra.mxu0 0.0
        %4946 = vmatprep.subr.mxu0 0.0
        %4947 = vmatpush1.msra.mxu0 0.0
        %4948 = vmatprep.subr.mxu0 0.0
        %4949 = vmatpush1.msra.mxu0 0.0
        %4950 = vmatprep.subr.mxu0 0.0
        %4951 = vmatpush1.msra.mxu0 0.0
        %4952 = vmatprep.subr.mxu0 0.0
        %4953 = vmatpush1.msra.mxu0 0.0
        %4954 = vmatprep.subr.mxu0 0.0
        %4955 = vmatpush1.msra.mxu0 0.0
        %4956 = vmatprep.subr.mxu0 0.0
        %4957 = vmatpush1.msra.mxu0 0.0
        %4958 = vmatprep.subr.mxu0 0.0
        %4959 = vmatpush1.msra.mxu0 0.0
        %4960 = vmatprep.subr.mxu0 0.0
        %4961 = vmatpush1.msra.mxu0 0.0
        %4962 = vmatprep.subr.mxu0 0.0
        %4963 = vmatpush1.msra.mxu0 0.0
        %4964 = vmatprep.subr.mxu0 0.0
        %4965 = vmatpush1.msra.mxu0 0.0
        %4966 = vmatprep.subr.mxu0 0.0
        %4967 = vmatpush1.msra.mxu0 0.0
        %4968 = vmatprep.subr.mxu0 0.0
        %4969 = vmatpush1.msra.mxu0 0.0
        %4970 = vmatprep.subr.mxu0 0.0
        %4971 = vmatpush1.msra.mxu0 0.0
        %4972 = vmatprep.subr.mxu0 0.0
        %4973 = vmatpush1.msra.mxu0 0.0
        %4974 = vmatprep.subr.mxu0 0.0
        %4975 = vmatpush1.msra.mxu0 0.0
        %4976 = vmatprep.subr.mxu0 0.0
        %4977 = vmatpush1.msra.mxu0 0.0
        %4978 = vmatprep.subr.mxu0 0.0
        %4979 = vmatpush1.msra.mxu0 0.0
        %4980 = vmatprep.mubr.f32.mxu0 0.0
        %4981 = vmatmul.mubr.f32.gmra.mrb[0].mxu0 %v4701
        %v4982 = vpop.f32.mrb[0].mxu0
        %v4983 = vadd.f32 0.0, %v4982
        %v4984 = vpop.f32.mrb[0].mxu0
        %v4985 = vadd.f32 0.0, %v4984
        %4986 = vdwg.mxu0
        %4987 = vmatprep.subr.mxu0 0.0
        %4988 = vmatpush1.msra.mxu0 %v4690
        %4989 = vmatprep.subr.mxu0 0.0
        %4990 = vmatpush1.msra.mxu0 0.0
        %4991 = vmatprep.subr.mxu0 0.0
        %4992 = vmatpush1.msra.mxu0 0.0
        %4993 = vmatprep.subr.mxu0 0.0
        %4994 = vmatpush1.msra.mxu0 0.0
        %4995 = vmatprep.subr.mxu0 0.0
        %4996 = vmatpush1.msra.mxu0 0.0
        %4997 = vmatprep.subr.mxu0 0.0
        %4998 = vmatpush1.msra.mxu0 0.0
        %4999 = vmatprep.subr.mxu0 0.0
        %5000 = vmatpush1.msra.mxu0 0.0
        %5001 = vmatprep.subr.mxu0 0.0
        %5002 = vmatpush1.msra.mxu0 0.0
        %5003 = vmatprep.subr.mxu0 0.0
        %5004 = vmatpush1.msra.mxu0 0.0
        %5005 = vmatprep.subr.mxu0 0.0
        %5006 = vmatpush1.msra.mxu0 0.0
        %5007 = vmatprep.subr.mxu0 0.0
        %5008 = vmatpush1.msra.mxu0 0.0
        %5009 = vmatprep.subr.mxu0 0.0
        %5010 = vmatpush1.msra.mxu0 0.0
        %5011 = vmatprep.subr.mxu0 0.0
        %5012 = vmatpush1.msra.mxu0 0.0
        %5013 = vmatprep.subr.mxu0 0.0
        %5014 = vmatpush1.msra.mxu0 0.0
        %5015 = vmatprep.subr.mxu0 0.0
        %5016 = vmatpush1.msra.mxu0 0.0
        %5017 = vmatprep.subr.mxu0 0.0
        %5018 = vmatpush1.msra.mxu0 0.0
        %5019 = vmatprep.subr.mxu0 0.0
        %5020 = vmatpush1.msra.mxu0 0.0
        %5021 = vmatprep.subr.mxu0 0.0
        %5022 = vmatpush1.msra.mxu0 0.0
        %5023 = vmatprep.subr.mxu0 0.0
        %5024 = vmatpush1.msra.mxu0 0.0
        %5025 = vmatprep.subr.mxu0 0.0
        %5026 = vmatpush1.msra.mxu0 0.0
        %5027 = vmatprep.subr.mxu0 0.0
        %5028 = vmatpush1.msra.mxu0 0.0
        %5029 = vmatprep.subr.mxu0 0.0
        %5030 = vmatpush1.msra.mxu0 0.0
        %5031 = vmatprep.subr.mxu0 0.0
        %5032 = vmatpush1.msra.mxu0 0.0
        %5033 = vmatprep.subr.mxu0 0.0
        %5034 = vmatpush1.msra.mxu0 0.0
        %5035 = vmatprep.subr.mxu0 0.0
        %5036 = vmatpush1.msra.mxu0 0.0
        %5037 = vmatprep.subr.mxu0 0.0
        %5038 = vmatpush1.msra.mxu0 0.0
        %5039 = vmatprep.subr.mxu0 0.0
        %5040 = vmatpush1.msra.mxu0 0.0
        %5041 = vmatprep.subr.mxu0 0.0
        %5042 = vmatpush1.msra.mxu0 0.0
        %5043 = vmatprep.subr.mxu0 0.0
        %5044 = vmatpush1.msra.mxu0 0.0
        %5045 = vmatprep.subr.mxu0 0.0
        %5046 = vmatpush1.msra.mxu0 0.0
        %5047 = vmatprep.subr.mxu0 0.0
        %5048 = vmatpush1.msra.mxu0 0.0
        %5049 = vmatprep.subr.mxu0 0.0
        %5050 = vmatpush1.msra.mxu0 0.0
        %5051 = vmatprep.mubr.f32.mxu0 0.0
        %5052 = vmatmul.mubr.f32.gmra.mrb[0].mxu0 %v4701
        %v5053 = vpop.f32.mrb[0].mxu0
        %v5054 = vadd.f32 0.0, %v5053
        %v5055 = vpop.f32.mrb[0].mxu0
        %5056 = vdwg.mxu0
        %v5057 = vadd.f32 %v4650, %v4770
        %v5058 = vadd.f32 %v4651, %v4772
        %v5059 = vadd.f32 %v4652, %v4841
        %v5060 = vadd.f32 %v4653, %v4843
        %v5061 = vadd.f32 %v4654, %v4912
        %v5062 = vadd.f32 %v4655, %v4914
        %v5063 = vadd.f32 %v4656, %v4983
        %v5064 = vadd.f32 %v4657, %v4985
        %v5065 = vadd.f32 %v4658, %v5054
        %s5066 = scalar_lea.vmem %s2, 80
        %v5067 = vld [vmem:[%s5066] sm:$0xff]
        %5068 = vrot.lane.b32.xlu0 %v1385, 56
        %v5069 = vpop.permute.xlu0 %5068
        %5070 = vrot.lane.b32.xlu0 %v1386, 56
        %v5071 = vpop.permute.xlu0 %5070
        %5072 = vrot.lane.b32.xlu0 %v1387, 56
        %v5073 = vpop.permute.xlu0 %5072
        %5074 = vrot.lane.b32.xlu0 %v1388, 56
        %v5075 = vpop.permute.xlu0 %5074
        %5076 = vrot.lane.b32.xlu0 %v1389, 56
        %v5077 = vpop.permute.xlu0 %5076
        %5078 = vrot.lane.b32.xlu0 %v1390, 56
        %v5079 = vpop.permute.xlu0 %5078
        %5080 = vrot.lane.b32.xlu0 %v1391, 56
        %v5081 = vpop.permute.xlu0 %5080
        %5082 = vrot.lane.b32.xlu0 %v1392, 56
        %v5083 = vpop.permute.xlu0 %5082
        %5084 = vrot.lane.b32.xlu0 %v1393, 56
        %v5085 = vpop.permute.xlu0 %5084
        %5086 = vrot.lane.b32.xlu0 %v1394, 56
        %v5087 = vpop.permute.xlu0 %5086
        %vm5088 = vcmask 457728
        %v5089 = vsel %vm5088, %v5069, %v5071
        %v5090 = vsel %vm5088, %v5071, %v5073
        %v5091 = vsel %vm5088, %v5073, %v5075
        %v5092 = vsel %vm5088, %v5075, %v5077
        %v5093 = vsel %vm5088, %v5077, %v5079
        %v5094 = vsel %vm5088, %v5079, %v5081
        %v5095 = vsel %vm5088, %v5081, %v5083
        %v5096 = vsel %vm5088, %v5083, %v5085
        %v5097 = vsel %vm5088, %v5085, %v5087
        %v5108 = vsel %vm1016, %v5067, 0
        %5110 = vmatprep.subr.mxu0 %v5090
        %5111 = vmatpush1.msra.mxu0 %v5089
        %5112 = vmatprep.subr.mxu0 0.0
        %5113 = vmatpush1.msra.mxu0 0.0
        %5114 = vmatprep.subr.mxu0 0.0
        %5115 = vmatpush1.msra.mxu0 0.0
        %5116 = vmatprep.subr.mxu0 0.0
        %5117 = vmatpush1.msra.mxu0 0.0
        %5118 = vmatprep.subr.mxu0 0.0
        %5119 = vmatpush1.msra.mxu0 0.0
        %5120 = vmatprep.subr.mxu0 0.0
        %5121 = vmatpush1.msra.mxu0 0.0
        %5122 = vmatprep.subr.mxu0 0.0
        %5123 = vmatpush1.msra.mxu0 0.0
        %5124 = vmatprep.subr.mxu0 0.0
        %5125 = vmatpush1.msra.mxu0 0.0
        %5126 = vmatprep.subr.mxu0 0.0
        %5127 = vmatpush1.msra.mxu0 0.0
        %5128 = vmatprep.subr.mxu0 0.0
        %5129 = vmatpush1.msra.mxu0 0.0
        %5130 = vmatprep.subr.mxu0 0.0
        %5131 = vmatpush1.msra.mxu0 0.0
        %5132 = vmatprep.subr.mxu0 0.0
        %5133 = vmatpush1.msra.mxu0 0.0
        %5134 = vmatprep.subr.mxu0 0.0
        %5135 = vmatpush1.msra.mxu0 0.0
        %5136 = vmatprep.subr.mxu0 0.0
        %5137 = vmatpush1.msra.mxu0 0.0
        %5138 = vmatprep.subr.mxu0 0.0
        %5139 = vmatpush1.msra.mxu0 0.0
        %5140 = vmatprep.subr.mxu0 0.0
        %5141 = vmatpush1.msra.mxu0 0.0
        %5142 = vmatprep.subr.mxu0 0.0
        %5143 = vmatpush1.msra.mxu0 0.0
        %5144 = vmatprep.subr.mxu0 0.0
        %5145 = vmatpush1.msra.mxu0 0.0
        %5146 = vmatprep.subr.mxu0 0.0
        %5147 = vmatpush1.msra.mxu0 0.0
        %5148 = vmatprep.subr.mxu0 0.0
        %5149 = vmatpush1.msra.mxu0 0.0
        %5150 = vmatprep.subr.mxu0 0.0
        %5151 = vmatpush1.msra.mxu0 0.0
        %5152 = vmatprep.subr.mxu0 0.0
        %5153 = vmatpush1.msra.mxu0 0.0
        %5154 = vmatprep.subr.mxu0 0.0
        %5155 = vmatpush1.msra.mxu0 0.0
        %5156 = vmatprep.subr.mxu0 0.0
        %5157 = vmatpush1.msra.mxu0 0.0
        %5158 = vmatprep.subr.mxu0 0.0
        %5159 = vmatpush1.msra.mxu0 0.0
        %5160 = vmatprep.subr.mxu0 0.0
        %5161 = vmatpush1.msra.mxu0 0.0
        %5162 = vmatprep.subr.mxu0 0.0
        %5163 = vmatpush1.msra.mxu0 0.0
        %5164 = vmatprep.subr.mxu0 0.0
        %5165 = vmatpush1.msra.mxu0 0.0
        %5166 = vmatprep.subr.mxu0 0.0
        %5167 = vmatpush1.msra.mxu0 0.0
        %5168 = vmatprep.subr.mxu0 0.0
        %5169 = vmatpush1.msra.mxu0 0.0
        %5170 = vmatprep.subr.mxu0 0.0
        %5171 = vmatpush1.msra.mxu0 0.0
        %5172 = vmatprep.subr.mxu0 0.0
        %5173 = vmatpush1.msra.mxu0 0.0
        %5174 = vmatprep.mubr.f32.mxu0 0.0
        %5175 = vmatmul.mubr.f32.gmra.mrb[0].mxu0 %v5108
        %v5176 = vpop.f32.mrb[0].mxu0
        %v5177 = vadd.f32 0.0, %v5176
        %v5178 = vpop.f32.mrb[0].mxu0
        %v5179 = vadd.f32 0.0, %v5178
        %5180 = vdwg.mxu0
        %5181 = vmatprep.subr.mxu0 %v5092
        %5182 = vmatpush1.msra.mxu0 %v5091
        %5183 = vmatprep.subr.mxu0 0.0
        %5184 = vmatpush1.msra.mxu0 0.0
        %5185 = vmatprep.subr.mxu0 0.0
        %5186 = vmatpush1.msra.mxu0 0.0
        %5187 = vmatprep.subr.mxu0 0.0
        %5188 = vmatpush1.msra.mxu0 0.0
        %5189 = vmatprep.subr.mxu0 0.0
        %5190 = vmatpush1.msra.mxu0 0.0
        %5191 = vmatprep.subr.mxu0 0.0
        %5192 = vmatpush1.msra.mxu0 0.0
        %5193 = vmatprep.subr.mxu0 0.0
        %5194 = vmatpush1.msra.mxu0 0.0
        %5195 = vmatprep.subr.mxu0 0.0
        %5196 = vmatpush1.msra.mxu0 0.0
        %5197 = vmatprep.subr.mxu0 0.0
        %5198 = vmatpush1.msra.mxu0 0.0
        %5199 = vmatprep.subr.mxu0 0.0
        %5200 = vmatpush1.msra.mxu0 0.0
        %5201 = vmatprep.subr.mxu0 0.0
        %5202 = vmatpush1.msra.mxu0 0.0
        %5203 = vmatprep.subr.mxu0 0.0
        %5204 = vmatpush1.msra.mxu0 0.0
        %5205 = vmatprep.subr.mxu0 0.0
        %5206 = vmatpush1.msra.mxu0 0.0
        %5207 = vmatprep.subr.mxu0 0.0
        %5208 = vmatpush1.msra.mxu0 0.0
        %5209 = vmatprep.subr.mxu0 0.0
        %5210 = vmatpush1.msra.mxu0 0.0
        %5211 = vmatprep.subr.mxu0 0.0
        %5212 = vmatpush1.msra.mxu0 0.0
        %5213 = vmatprep.subr.mxu0 0.0
        %5214 = vmatpush1.msra.mxu0 0.0
        %5215 = vmatprep.subr.mxu0 0.0
        %5216 = vmatpush1.msra.mxu0 0.0
        %5217 = vmatprep.subr.mxu0 0.0
        %5218 = vmatpush1.msra.mxu0 0.0
        %5219 = vmatprep.subr.mxu0 0.0
        %5220 = vmatpush1.msra.mxu0 0.0
        %5221 = vmatprep.subr.mxu0 0.0
        %5222 = vmatpush1.msra.mxu0 0.0
        %5223 = vmatprep.subr.mxu0 0.0
        %5224 = vmatpush1.msra.mxu0 0.0
        %5225 = vmatprep.subr.mxu0 0.0
        %5226 = vmatpush1.msra.mxu0 0.0
        %5227 = vmatprep.subr.mxu0 0.0
        %5228 = vmatpush1.msra.mxu0 0.0
        %5229 = vmatprep.subr.mxu0 0.0
        %5230 = vmatpush1.msra.mxu0 0.0
        %5231 = vmatprep.subr.mxu0 0.0
        %5232 = vmatpush1.msra.mxu0 0.0
        %5233 = vmatprep.subr.mxu0 0.0
        %5234 = vmatpush1.msra.mxu0 0.0
        %5235 = vmatprep.subr.mxu0 0.0
        %5236 = vmatpush1.msra.mxu0 0.0
        %5237 = vmatprep.subr.mxu0 0.0
        %5238 = vmatpush1.msra.mxu0 0.0
        %5239 = vmatprep.subr.mxu0 0.0
        %5240 = vmatpush1.msra.mxu0 0.0
        %5241 = vmatprep.subr.mxu0 0.0
        %5242 = vmatpush1.msra.mxu0 0.0
        %5243 = vmatprep.subr.mxu0 0.0
        %5244 = vmatpush1.msra.mxu0 0.0
        %5245 = vmatprep.mubr.f32.mxu0 0.0
        %5246 = vmatmul.mubr.f32.gmra.mrb[0].mxu0 %v5108
        %v5247 = vpop.f32.mrb[0].mxu0
        %v5248 = vadd.f32 0.0, %v5247
        %v5249 = vpop.f32.mrb[0].mxu0
        %v5250 = vadd.f32 0.0, %v5249
        %5251 = vdwg.mxu0
        %5252 = vmatprep.subr.mxu0 %v5094
        %5253 = vmatpush1.msra.mxu0 %v5093
        %5254 = vmatprep.subr.mxu0 0.0
        %5255 = vmatpush1.msra.mxu0 0.0
        %5256 = vmatprep.subr.mxu0 0.0
        %5257 = vmatpush1.msra.mxu0 0.0
        %5258 = vmatprep.subr.mxu0 0.0
        %5259 = vmatpush1.msra.mxu0 0.0
        %5260 = vmatprep.subr.mxu0 0.0
        %5261 = vmatpush1.msra.mxu0 0.0
        %5262 = vmatprep.subr.mxu0 0.0
        %5263 = vmatpush1.msra.mxu0 0.0
        %5264 = vmatprep.subr.mxu0 0.0
        %5265 = vmatpush1.msra.mxu0 0.0
        %5266 = vmatprep.subr.mxu0 0.0
        %5267 = vmatpush1.msra.mxu0 0.0
        %5268 = vmatprep.subr.mxu0 0.0
        %5269 = vmatpush1.msra.mxu0 0.0
        %5270 = vmatprep.subr.mxu0 0.0
        %5271 = vmatpush1.msra.mxu0 0.0
        %5272 = vmatprep.subr.mxu0 0.0
        %5273 = vmatpush1.msra.mxu0 0.0
        %5274 = vmatprep.subr.mxu0 0.0
        %5275 = vmatpush1.msra.mxu0 0.0
        %5276 = vmatprep.subr.mxu0 0.0
        %5277 = vmatpush1.msra.mxu0 0.0
        %5278 = vmatprep.subr.mxu0 0.0
        %5279 = vmatpush1.msra.mxu0 0.0
        %5280 = vmatprep.subr.mxu0 0.0
        %5281 = vmatpush1.msra.mxu0 0.0
        %5282 = vmatprep.subr.mxu0 0.0
        %5283 = vmatpush1.msra.mxu0 0.0
        %5284 = vmatprep.subr.mxu0 0.0
        %5285 = vmatpush1.msra.mxu0 0.0
        %5286 = vmatprep.subr.mxu0 0.0
        %5287 = vmatpush1.msra.mxu0 0.0
        %5288 = vmatprep.subr.mxu0 0.0
        %5289 = vmatpush1.msra.mxu0 0.0
        %5290 = vmatprep.subr.mxu0 0.0
        %5291 = vmatpush1.msra.mxu0 0.0
        %5292 = vmatprep.subr.mxu0 0.0
        %5293 = vmatpush1.msra.mxu0 0.0
        %5294 = vmatprep.subr.mxu0 0.0
        %5295 = vmatpush1.msra.mxu0 0.0
        %5296 = vmatprep.subr.mxu0 0.0
        %5297 = vmatpush1.msra.mxu0 0.0
        %5298 = vmatprep.subr.mxu0 0.0
        %5299 = vmatpush1.msra.mxu0 0.0
        %5300 = vmatprep.subr.mxu0 0.0
        %5301 = vmatpush1.msra.mxu0 0.0
        %5302 = vmatprep.subr.mxu0 0.0
        %5303 = vmatpush1.msra.mxu0 0.0
        %5304 = vmatprep.subr.mxu0 0.0
        %5305 = vmatpush1.msra.mxu0 0.0
        %5306 = vmatprep.subr.mxu0 0.0
        %5307 = vmatpush1.msra.mxu0 0.0
        %5308 = vmatprep.subr.mxu0 0.0
        %5309 = vmatpush1.msra.mxu0 0.0
        %5310 = vmatprep.subr.mxu0 0.0
        %5311 = vmatpush1.msra.mxu0 0.0
        %5312 = vmatprep.subr.mxu0 0.0
        %5313 = vmatpush1.msra.mxu0 0.0
        %5314 = vmatprep.subr.mxu0 0.0
        %5315 = vmatpush1.msra.mxu0 0.0
        %5316 = vmatprep.mubr.f32.mxu0 0.0
        %5317 = vmatmul.mubr.f32.gmra.mrb[0].mxu0 %v5108
        %v5318 = vpop.f32.mrb[0].mxu0
        %v5319 = vadd.f32 0.0, %v5318
        %v5320 = vpop.f32.mrb[0].mxu0
        %v5321 = vadd.f32 0.0, %v5320
        %5322 = vdwg.mxu0
        %5323 = vmatprep.subr.mxu0 %v5096
        %5324 = vmatpush1.msra.mxu0 %v5095
        %5325 = vmatprep.subr.mxu0 0.0
        %5326 = vmatpush1.msra.mxu0 0.0
        %5327 = vmatprep.subr.mxu0 0.0
        %5328 = vmatpush1.msra.mxu0 0.0
        %5329 = vmatprep.subr.mxu0 0.0
        %5330 = vmatpush1.msra.mxu0 0.0
        %5331 = vmatprep.subr.mxu0 0.0
        %5332 = vmatpush1.msra.mxu0 0.0
        %5333 = vmatprep.subr.mxu0 0.0
        %5334 = vmatpush1.msra.mxu0 0.0
        %5335 = vmatprep.subr.mxu0 0.0
        %5336 = vmatpush1.msra.mxu0 0.0
        %5337 = vmatprep.subr.mxu0 0.0
        %5338 = vmatpush1.msra.mxu0 0.0
        %5339 = vmatprep.subr.mxu0 0.0
        %5340 = vmatpush1.msra.mxu0 0.0
        %5341 = vmatprep.subr.mxu0 0.0
        %5342 = vmatpush1.msra.mxu0 0.0
        %5343 = vmatprep.subr.mxu0 0.0
        %5344 = vmatpush1.msra.mxu0 0.0
        %5345 = vmatprep.subr.mxu0 0.0
        %5346 = vmatpush1.msra.mxu0 0.0
        %5347 = vmatprep.subr.mxu0 0.0
        %5348 = vmatpush1.msra.mxu0 0.0
        %5349 = vmatprep.subr.mxu0 0.0
        %5350 = vmatpush1.msra.mxu0 0.0
        %5351 = vmatprep.subr.mxu0 0.0
        %5352 = vmatpush1.msra.mxu0 0.0
        %5353 = vmatprep.subr.mxu0 0.0
        %5354 = vmatpush1.msra.mxu0 0.0
        %5355 = vmatprep.subr.mxu0 0.0
        %5356 = vmatpush1.msra.mxu0 0.0
        %5357 = vmatprep.subr.mxu0 0.0
        %5358 = vmatpush1.msra.mxu0 0.0
        %5359 = vmatprep.subr.mxu0 0.0
        %5360 = vmatpush1.msra.mxu0 0.0
        %5361 = vmatprep.subr.mxu0 0.0
        %5362 = vmatpush1.msra.mxu0 0.0
        %5363 = vmatprep.subr.mxu0 0.0
        %5364 = vmatpush1.msra.mxu0 0.0
        %5365 = vmatprep.subr.mxu0 0.0
        %5366 = vmatpush1.msra.mxu0 0.0
        %5367 = vmatprep.subr.mxu0 0.0
        %5368 = vmatpush1.msra.mxu0 0.0
        %5369 = vmatprep.subr.mxu0 0.0
        %5370 = vmatpush1.msra.mxu0 0.0
        %5371 = vmatprep.subr.mxu0 0.0
        %5372 = vmatpush1.msra.mxu0 0.0
        %5373 = vmatprep.subr.mxu0 0.0
        %5374 = vmatpush1.msra.mxu0 0.0
        %5375 = vmatprep.subr.mxu0 0.0
        %5376 = vmatpush1.msra.mxu0 0.0
        %5377 = vmatprep.subr.mxu0 0.0
        %5378 = vmatpush1.msra.mxu0 0.0
        %5379 = vmatprep.subr.mxu0 0.0
        %5380 = vmatpush1.msra.mxu0 0.0
        %5381 = vmatprep.subr.mxu0 0.0
        %5382 = vmatpush1.msra.mxu0 0.0
        %5383 = vmatprep.subr.mxu0 0.0
        %5384 = vmatpush1.msra.mxu0 0.0
        %5385 = vmatprep.subr.mxu0 0.0
        %5386 = vmatpush1.msra.mxu0 0.0
        %5387 = vmatprep.mubr.f32.mxu0 0.0
        %5388 = vmatmul.mubr.f32.gmra.mrb[0].mxu0 %v5108
        %v5389 = vpop.f32.mrb[0].mxu0
        %v5390 = vadd.f32 0.0, %v5389
        %v5391 = vpop.f32.mrb[0].mxu0
        %v5392 = vadd.f32 0.0, %v5391
        %5393 = vdwg.mxu0
        %5394 = vmatprep.subr.mxu0 0.0
        %5395 = vmatpush1.msra.mxu0 %v5097
        %5396 = vmatprep.subr.mxu0 0.0
        %5397 = vmatpush1.msra.mxu0 0.0
        %5398 = vmatprep.subr.mxu0 0.0
        %5399 = vmatpush1.msra.mxu0 0.0
        %5400 = vmatprep.subr.mxu0 0.0
        %5401 = vmatpush1.msra.mxu0 0.0
        %5402 = vmatprep.subr.mxu0 0.0
        %5403 = vmatpush1.msra.mxu0 0.0
        %5404 = vmatprep.subr.mxu0 0.0
        %5405 = vmatpush1.msra.mxu0 0.0
        %5406 = vmatprep.subr.mxu0 0.0
        %5407 = vmatpush1.msra.mxu0 0.0
        %5408 = vmatprep.subr.mxu0 0.0
        %5409 = vmatpush1.msra.mxu0 0.0
        %5410 = vmatprep.subr.mxu0 0.0
        %5411 = vmatpush1.msra.mxu0 0.0
        %5412 = vmatprep.subr.mxu0 0.0
        %5413 = vmatpush1.msra.mxu0 0.0
        %5414 = vmatprep.subr.mxu0 0.0
        %5415 = vmatpush1.msra.mxu0 0.0
        %5416 = vmatprep.subr.mxu0 0.0
        %5417 = vmatpush1.msra.mxu0 0.0
        %5418 = vmatprep.subr.mxu0 0.0
        %5419 = vmatpush1.msra.mxu0 0.0
        %5420 = vmatprep.subr.mxu0 0.0
        %5421 = vmatpush1.msra.mxu0 0.0
        %5422 = vmatprep.subr.mxu0 0.0
        %5423 = vmatpush1.msra.mxu0 0.0
        %5424 = vmatprep.subr.mxu0 0.0
        %5425 = vmatpush1.msra.mxu0 0.0
        %5426 = vmatprep.subr.mxu0 0.0
        %5427 = vmatpush1.msra.mxu0 0.0
        %5428 = vmatprep.subr.mxu0 0.0
        %5429 = vmatpush1.msra.mxu0 0.0
        %5430 = vmatprep.subr.mxu0 0.0
        %5431 = vmatpush1.msra.mxu0 0.0
        %5432 = vmatprep.subr.mxu0 0.0
        %5433 = vmatpush1.msra.mxu0 0.0
        %5434 = vmatprep.subr.mxu0 0.0
        %5435 = vmatpush1.msra.mxu0 0.0
        %5436 = vmatprep.subr.mxu0 0.0
        %5437 = vmatpush1.msra.mxu0 0.0
        %5438 = vmatprep.subr.mxu0 0.0
        %5439 = vmatpush1.msra.mxu0 0.0
        %5440 = vmatprep.subr.mxu0 0.0
        %5441 = vmatpush1.msra.mxu0 0.0
        %5442 = vmatprep.subr.mxu0 0.0
        %5443 = vmatpush1.msra.mxu0 0.0
        %5444 = vmatprep.subr.mxu0 0.0
        %5445 = vmatpush1.msra.mxu0 0.0
        %5446 = vmatprep.subr.mxu0 0.0
        %5447 = vmatpush1.msra.mxu0 0.0
        %5448 = vmatprep.subr.mxu0 0.0
        %5449 = vmatpush1.msra.mxu0 0.0
        %5450 = vmatprep.subr.mxu0 0.0
        %5451 = vmatpush1.msra.mxu0 0.0
        %5452 = vmatprep.subr.mxu0 0.0
        %5453 = vmatpush1.msra.mxu0 0.0
        %5454 = vmatprep.subr.mxu0 0.0
        %5455 = vmatpush1.msra.mxu0 0.0
        %5456 = vmatprep.subr.mxu0 0.0
        %5457 = vmatpush1.msra.mxu0 0.0
        %5458 = vmatprep.mubr.f32.mxu0 0.0
        %5459 = vmatmul.mubr.f32.gmra.mrb[0].mxu0 %v5108
        %v5460 = vpop.f32.mrb[0].mxu0
        %v5461 = vadd.f32 0.0, %v5460
        %v5462 = vpop.f32.mrb[0].mxu0
        %5463 = vdwg.mxu0
        %v5464 = vadd.f32 %v5057, %v5177
        %v5465 = vadd.f32 %v5058, %v5179
        %v5466 = vadd.f32 %v5059, %v5248
        %v5467 = vadd.f32 %v5060, %v5250
        %v5468 = vadd.f32 %v5061, %v5319
        %v5469 = vadd.f32 %v5062, %v5321
        %v5470 = vadd.f32 %v5063, %v5390
        %v5471 = vadd.f32 %v5064, %v5392
        %v5472 = vadd.f32 %v5065, %v5461
        %s5473 = scalar_lea.vmem %s2, 88
        %v5474 = vld [vmem:[%s5473] sm:$0xff]
        %5475 = vrot.lane.b32.xlu0 %v1385, 55
        %v5476 = vpop.permute.xlu0 %5475
        %5477 = vrot.lane.b32.xlu0 %v1386, 55
        %v5478 = vpop.permute.xlu0 %5477
        %5479 = vrot.lane.b32.xlu0 %v1387, 55
        %v5480 = vpop.permute.xlu0 %5479
        %5481 = vrot.lane.b32.xlu0 %v1388, 55
        %v5482 = vpop.permute.xlu0 %5481
        %5483 = vrot.lane.b32.xlu0 %v1389, 55
        %v5484 = vpop.permute.xlu0 %5483
        %5485 = vrot.lane.b32.xlu0 %v1390, 55
        %v5486 = vpop.permute.xlu0 %5485
        %5487 = vrot.lane.b32.xlu0 %v1391, 55
        %v5488 = vpop.permute.xlu0 %5487
        %5489 = vrot.lane.b32.xlu0 %v1392, 55
        %v5490 = vpop.permute.xlu0 %5489
        %5491 = vrot.lane.b32.xlu0 %v1393, 55
        %v5492 = vpop.permute.xlu0 %5491
        %5493 = vrot.lane.b32.xlu0 %v1394, 55
        %v5494 = vpop.permute.xlu0 %5493
        %vm5495 = vcmask 449536
        %v5496 = vsel %vm5495, %v5476, %v5478
        %v5497 = vsel %vm5495, %v5478, %v5480
        %v5498 = vsel %vm5495, %v5480, %v5482
        %v5499 = vsel %vm5495, %v5482, %v5484
        %v5500 = vsel %vm5495, %v5484, %v5486
        %v5501 = vsel %vm5495, %v5486, %v5488
        %v5502 = vsel %vm5495, %v5488, %v5490
        %v5503 = vsel %vm5495, %v5490, %v5492
        %v5504 = vsel %vm5495, %v5492, %v5494
        %v5515 = vsel %vm1016, %v5474, 0
        %5517 = vmatprep.subr.mxu0 %v5497
        %5518 = vmatpush1.msra.mxu0 %v5496
        %5519 = vmatprep.subr.mxu0 0.0
        %5520 = vmatpush1.msra.mxu0 0.0
        %5521 = vmatprep.subr.mxu0 0.0
        %5522 = vmatpush1.msra.mxu0 0.0
        %5523 = vmatprep.subr.mxu0 0.0
        %5524 = vmatpush1.msra.mxu0 0.0
        %5525 = vmatprep.subr.mxu0 0.0
        %5526 = vmatpush1.msra.mxu0 0.0
        %5527 = vmatprep.subr.mxu0 0.0
        %5528 = vmatpush1.msra.mxu0 0.0
        %5529 = vmatprep.subr.mxu0 0.0
        %5530 = vmatpush1.msra.mxu0 0.0
        %5531 = vmatprep.subr.mxu0 0.0
        %5532 = vmatpush1.msra.mxu0 0.0
        %5533 = vmatprep.subr.mxu0 0.0
        %5534 = vmatpush1.msra.mxu0 0.0
        %5535 = vmatprep.subr.mxu0 0.0
        %5536 = vmatpush1.msra.mxu0 0.0
        %5537 = vmatprep.subr.mxu0 0.0
        %5538 = vmatpush1.msra.mxu0 0.0
        %5539 = vmatprep.subr.mxu0 0.0
        %5540 = vmatpush1.msra.mxu0 0.0
        %5541 = vmatprep.subr.mxu0 0.0
        %5542 = vmatpush1.msra.mxu0 0.0
        %5543 = vmatprep.subr.mxu0 0.0
        %5544 = vmatpush1.msra.mxu0 0.0
        %5545 = vmatprep.subr.mxu0 0.0
        %5546 = vmatpush1.msra.mxu0 0.0
        %5547 = vmatprep.subr.mxu0 0.0
        %5548 = vmatpush1.msra.mxu0 0.0
        %5549 = vmatprep.subr.mxu0 0.0
        %5550 = vmatpush1.msra.mxu0 0.0
        %5551 = vmatprep.subr.mxu0 0.0
        %5552 = vmatpush1.msra.mxu0 0.0
        %5553 = vmatprep.subr.mxu0 0.0
        %5554 = vmatpush1.msra.mxu0 0.0
        %5555 = vmatprep.subr.mxu0 0.0
        %5556 = vmatpush1.msra.mxu0 0.0
        %5557 = vmatprep.subr.mxu0 0.0
        %5558 = vmatpush1.msra.mxu0 0.0
        %5559 = vmatprep.subr.mxu0 0.0
        %5560 = vmatpush1.msra.mxu0 0.0
        %5561 = vmatprep.subr.mxu0 0.0
        %5562 = vmatpush1.msra.mxu0 0.0
        %5563 = vmatprep.subr.mxu0 0.0
        %5564 = vmatpush1.msra.mxu0 0.0
        %5565 = vmatprep.subr.mxu0 0.0
        %5566 = vmatpush1.msra.mxu0 0.0
        %5567 = vmatprep.subr.mxu0 0.0
        %5568 = vmatpush1.msra.mxu0 0.0
        %5569 = vmatprep.subr.mxu0 0.0
        %5570 = vmatpush1.msra.mxu0 0.0
        %5571 = vmatprep.subr.mxu0 0.0
        %5572 = vmatpush1.msra.mxu0 0.0
        %5573 = vmatprep.subr.mxu0 0.0
        %5574 = vmatpush1.msra.mxu0 0.0
        %5575 = vmatprep.subr.mxu0 0.0
        %5576 = vmatpush1.msra.mxu0 0.0
        %5577 = vmatprep.subr.mxu0 0.0
        %5578 = vmatpush1.msra.mxu0 0.0
        %5579 = vmatprep.subr.mxu0 0.0
        %5580 = vmatpush1.msra.mxu0 0.0
        %5581 = vmatprep.mubr.f32.mxu0 0.0
        %5582 = vmatmul.mubr.f32.gmra.mrb[0].mxu0 %v5515
        %v5583 = vpop.f32.mrb[0].mxu0
        %v5584 = vadd.f32 0.0, %v5583
        %v5585 = vpop.f32.mrb[0].mxu0
        %v5586 = vadd.f32 0.0, %v5585
        %5587 = vdwg.mxu0
        %5588 = vmatprep.subr.mxu0 %v5499
        %5589 = vmatpush1.msra.mxu0 %v5498
        %5590 = vmatprep.subr.mxu0 0.0
        %5591 = vmatpush1.msra.mxu0 0.0
        %5592 = vmatprep.subr.mxu0 0.0
        %5593 = vmatpush1.msra.mxu0 0.0
        %5594 = vmatprep.subr.mxu0 0.0
        %5595 = vmatpush1.msra.mxu0 0.0
        %5596 = vmatprep.subr.mxu0 0.0
        %5597 = vmatpush1.msra.mxu0 0.0
        %5598 = vmatprep.subr.mxu0 0.0
        %5599 = vmatpush1.msra.mxu0 0.0
        %5600 = vmatprep.subr.mxu0 0.0
        %5601 = vmatpush1.msra.mxu0 0.0
        %5602 = vmatprep.subr.mxu0 0.0
        %5603 = vmatpush1.msra.mxu0 0.0
        %5604 = vmatprep.subr.mxu0 0.0
        %5605 = vmatpush1.msra.mxu0 0.0
        %5606 = vmatprep.subr.mxu0 0.0
        %5607 = vmatpush1.msra.mxu0 0.0
        %5608 = vmatprep.subr.mxu0 0.0
        %5609 = vmatpush1.msra.mxu0 0.0
        %5610 = vmatprep.subr.mxu0 0.0
        %5611 = vmatpush1.msra.mxu0 0.0
        %5612 = vmatprep.subr.mxu0 0.0
        %5613 = vmatpush1.msra.mxu0 0.0
        %5614 = vmatprep.subr.mxu0 0.0
        %5615 = vmatpush1.msra.mxu0 0.0
        %5616 = vmatprep.subr.mxu0 0.0
        %5617 = vmatpush1.msra.mxu0 0.0
        %5618 = vmatprep.subr.mxu0 0.0
        %5619 = vmatpush1.msra.mxu0 0.0
        %5620 = vmatprep.subr.mxu0 0.0
        %5621 = vmatpush1.msra.mxu0 0.0
        %5622 = vmatprep.subr.mxu0 0.0
        %5623 = vmatpush1.msra.mxu0 0.0
        %5624 = vmatprep.subr.mxu0 0.0
        %5625 = vmatpush1.msra.mxu0 0.0
        %5626 = vmatprep.subr.mxu0 0.0
        %5627 = vmatpush1.msra.mxu0 0.0
        %5628 = vmatprep.subr.mxu0 0.0
        %5629 = vmatpush1.msra.mxu0 0.0
        %5630 = vmatprep.subr.mxu0 0.0
        %5631 = vmatpush1.msra.mxu0 0.0
        %5632 = vmatprep.subr.mxu0 0.0
        %5633 = vmatpush1.msra.mxu0 0.0
        %5634 = vmatprep.subr.mxu0 0.0
        %5635 = vmatpush1.msra.mxu0 0.0
        %5636 = vmatprep.subr.mxu0 0.0
        %5637 = vmatpush1.msra.mxu0 0.0
        %5638 = vmatprep.subr.mxu0 0.0
        %5639 = vmatpush1.msra.mxu0 0.0
        %5640 = vmatprep.subr.mxu0 0.0
        %5641 = vmatpush1.msra.mxu0 0.0
        %5642 = vmatprep.subr.mxu0 0.0
        %5643 = vmatpush1.msra.mxu0 0.0
        %5644 = vmatprep.subr.mxu0 0.0
        %5645 = vmatpush1.msra.mxu0 0.0
        %5646 = vmatprep.subr.mxu0 0.0
        %5647 = vmatpush1.msra.mxu0 0.0
        %5648 = vmatprep.subr.mxu0 0.0
        %5649 = vmatpush1.msra.mxu0 0.0
        %5650 = vmatprep.subr.mxu0 0.0
        %5651 = vmatpush1.msra.mxu0 0.0
        %5652 = vmatprep.mubr.f32.mxu0 0.0
        %5653 = vmatmul.mubr.f32.gmra.mrb[0].mxu0 %v5515
        %v5654 = vpop.f32.mrb[0].mxu0
        %v5655 = vadd.f32 0.0, %v5654
        %v5656 = vpop.f32.mrb[0].mxu0
        %v5657 = vadd.f32 0.0, %v5656
        %5658 = vdwg.mxu0
        %5659 = vmatprep.subr.mxu0 %v5501
        %5660 = vmatpush1.msra.mxu0 %v5500
        %5661 = vmatprep.subr.mxu0 0.0
        %5662 = vmatpush1.msra.mxu0 0.0
        %5663 = vmatprep.subr.mxu0 0.0
        %5664 = vmatpush1.msra.mxu0 0.0
        %5665 = vmatprep.subr.mxu0 0.0
        %5666 = vmatpush1.msra.mxu0 0.0
        %5667 = vmatprep.subr.mxu0 0.0
        %5668 = vmatpush1.msra.mxu0 0.0
        %5669 = vmatprep.subr.mxu0 0.0
        %5670 = vmatpush1.msra.mxu0 0.0
        %5671 = vmatprep.subr.mxu0 0.0
        %5672 = vmatpush1.msra.mxu0 0.0
        %5673 = vmatprep.subr.mxu0 0.0
        %5674 = vmatpush1.msra.mxu0 0.0
        %5675 = vmatprep.subr.mxu0 0.0
        %5676 = vmatpush1.msra.mxu0 0.0
        %5677 = vmatprep.subr.mxu0 0.0
        %5678 = vmatpush1.msra.mxu0 0.0
        %5679 = vmatprep.subr.mxu0 0.0
        %5680 = vmatpush1.msra.mxu0 0.0
        %5681 = vmatprep.subr.mxu0 0.0
        %5682 = vmatpush1.msra.mxu0 0.0
        %5683 = vmatprep.subr.mxu0 0.0
        %5684 = vmatpush1.msra.mxu0 0.0
        %5685 = vmatprep.subr.mxu0 0.0
        %5686 = vmatpush1.msra.mxu0 0.0
        %5687 = vmatprep.subr.mxu0 0.0
        %5688 = vmatpush1.msra.mxu0 0.0
        %5689 = vmatprep.subr.mxu0 0.0
        %5690 = vmatpush1.msra.mxu0 0.0
        %5691 = vmatprep.subr.mxu0 0.0
        %5692 = vmatpush1.msra.mxu0 0.0
        %5693 = vmatprep.subr.mxu0 0.0
        %5694 = vmatpush1.msra.mxu0 0.0
        %5695 = vmatprep.subr.mxu0 0.0
        %5696 = vmatpush1.msra.mxu0 0.0
        %5697 = vmatprep.subr.mxu0 0.0
        %5698 = vmatpush1.msra.mxu0 0.0
        %5699 = vmatprep.subr.mxu0 0.0
        %5700 = vmatpush1.msra.mxu0 0.0
        %5701 = vmatprep.subr.mxu0 0.0
        %5702 = vmatpush1.msra.mxu0 0.0
        %5703 = vmatprep.subr.mxu0 0.0
        %5704 = vmatpush1.msra.mxu0 0.0
        %5705 = vmatprep.subr.mxu0 0.0
        %5706 = vmatpush1.msra.mxu0 0.0
        %5707 = vmatprep.subr.mxu0 0.0
        %5708 = vmatpush1.msra.mxu0 0.0
        %5709 = vmatprep.subr.mxu0 0.0
        %5710 = vmatpush1.msra.mxu0 0.0
        %5711 = vmatprep.subr.mxu0 0.0
        %5712 = vmatpush1.msra.mxu0 0.0
        %5713 = vmatprep.subr.mxu0 0.0
        %5714 = vmatpush1.msra.mxu0 0.0
        %5715 = vmatprep.subr.mxu0 0.0
        %5716 = vmatpush1.msra.mxu0 0.0
        %5717 = vmatprep.subr.mxu0 0.0
        %5718 = vmatpush1.msra.mxu0 0.0
        %5719 = vmatprep.subr.mxu0 0.0
        %5720 = vmatpush1.msra.mxu0 0.0
        %5721 = vmatprep.subr.mxu0 0.0
        %5722 = vmatpush1.msra.mxu0 0.0
        %5723 = vmatprep.mubr.f32.mxu0 0.0
        %5724 = vmatmul.mubr.f32.gmra.mrb[0].mxu0 %v5515
        %v5725 = vpop.f32.mrb[0].mxu0
        %v5726 = vadd.f32 0.0, %v5725
        %v5727 = vpop.f32.mrb[0].mxu0
        %v5728 = vadd.f32 0.0, %v5727
        %5729 = vdwg.mxu0
        %5730 = vmatprep.subr.mxu0 %v5503
        %5731 = vmatpush1.msra.mxu0 %v5502
        %5732 = vmatprep.subr.mxu0 0.0
        %5733 = vmatpush1.msra.mxu0 0.0
        %5734 = vmatprep.subr.mxu0 0.0
        %5735 = vmatpush1.msra.mxu0 0.0
        %5736 = vmatprep.subr.mxu0 0.0
        %5737 = vmatpush1.msra.mxu0 0.0
        %5738 = vmatprep.subr.mxu0 0.0
        %5739 = vmatpush1.msra.mxu0 0.0
        %5740 = vmatprep.subr.mxu0 0.0
        %5741 = vmatpush1.msra.mxu0 0.0
        %5742 = vmatprep.subr.mxu0 0.0
        %5743 = vmatpush1.msra.mxu0 0.0
        %5744 = vmatprep.subr.mxu0 0.0
        %5745 = vmatpush1.msra.mxu0 0.0
        %5746 = vmatprep.subr.mxu0 0.0
        %5747 = vmatpush1.msra.mxu0 0.0
        %5748 = vmatprep.subr.mxu0 0.0
        %5749 = vmatpush1.msra.mxu0 0.0
        %5750 = vmatprep.subr.mxu0 0.0
        %5751 = vmatpush1.msra.mxu0 0.0
        %5752 = vmatprep.subr.mxu0 0.0
        %5753 = vmatpush1.msra.mxu0 0.0
        %5754 = vmatprep.subr.mxu0 0.0
        %5755 = vmatpush1.msra.mxu0 0.0
        %5756 = vmatprep.subr.mxu0 0.0
        %5757 = vmatpush1.msra.mxu0 0.0
        %5758 = vmatprep.subr.mxu0 0.0
        %5759 = vmatpush1.msra.mxu0 0.0
        %5760 = vmatprep.subr.mxu0 0.0
        %5761 = vmatpush1.msra.mxu0 0.0
        %5762 = vmatprep.subr.mxu0 0.0
        %5763 = vmatpush1.msra.mxu0 0.0
        %5764 = vmatprep.subr.mxu0 0.0
        %5765 = vmatpush1.msra.mxu0 0.0
        %5766 = vmatprep.subr.mxu0 0.0
        %5767 = vmatpush1.msra.mxu0 0.0
        %5768 = vmatprep.subr.mxu0 0.0
        %5769 = vmatpush1.msra.mxu0 0.0
        %5770 = vmatprep.subr.mxu0 0.0
        %5771 = vmatpush1.msra.mxu0 0.0
        %5772 = vmatprep.subr.mxu0 0.0
        %5773 = vmatpush1.msra.mxu0 0.0
        %5774 = vmatprep.subr.mxu0 0.0
        %5775 = vmatpush1.msra.mxu0 0.0
        %5776 = vmatprep.subr.mxu0 0.0
        %5777 = vmatpush1.msra.mxu0 0.0
        %5778 = vmatprep.subr.mxu0 0.0
        %5779 = vmatpush1.msra.mxu0 0.0
        %5780 = vmatprep.subr.mxu0 0.0
        %5781 = vmatpush1.msra.mxu0 0.0
        %5782 = vmatprep.subr.mxu0 0.0
        %5783 = vmatpush1.msra.mxu0 0.0
        %5784 = vmatprep.subr.mxu0 0.0
        %5785 = vmatpush1.msra.mxu0 0.0
        %5786 = vmatprep.subr.mxu0 0.0
        %5787 = vmatpush1.msra.mxu0 0.0
        %5788 = vmatprep.subr.mxu0 0.0
        %5789 = vmatpush1.msra.mxu0 0.0
        %5790 = vmatprep.subr.mxu0 0.0
        %5791 = vmatpush1.msra.mxu0 0.0
        %5792 = vmatprep.subr.mxu0 0.0
        %5793 = vmatpush1.msra.mxu0 0.0
        %5794 = vmatprep.mubr.f32.mxu0 0.0
        %5795 = vmatmul.mubr.f32.gmra.mrb[0].mxu0 %v5515
        %v5796 = vpop.f32.mrb[0].mxu0
        %v5797 = vadd.f32 0.0, %v5796
        %v5798 = vpop.f32.mrb[0].mxu0
        %v5799 = vadd.f32 0.0, %v5798
        %5800 = vdwg.mxu0
        %5801 = vmatprep.subr.mxu0 0.0
        %5802 = vmatpush1.msra.mxu0 %v5504
        %5803 = vmatprep.subr.mxu0 0.0
        %5804 = vmatpush1.msra.mxu0 0.0
        %5805 = vmatprep.subr.mxu0 0.0
        %5806 = vmatpush1.msra.mxu0 0.0
        %5807 = vmatprep.subr.mxu0 0.0
        %5808 = vmatpush1.msra.mxu0 0.0
        %5809 = vmatprep.subr.mxu0 0.0
        %5810 = vmatpush1.msra.mxu0 0.0
        %5811 = vmatprep.subr.mxu0 0.0
        %5812 = vmatpush1.msra.mxu0 0.0
        %5813 = vmatprep.subr.mxu0 0.0
        %5814 = vmatpush1.msra.mxu0 0.0
        %5815 = vmatprep.subr.mxu0 0.0
        %5816 = vmatpush1.msra.mxu0 0.0
        %5817 = vmatprep.subr.mxu0 0.0
        %5818 = vmatpush1.msra.mxu0 0.0
        %5819 = vmatprep.subr.mxu0 0.0
        %5820 = vmatpush1.msra.mxu0 0.0
        %5821 = vmatprep.subr.mxu0 0.0
        %5822 = vmatpush1.msra.mxu0 0.0
        %5823 = vmatprep.subr.mxu0 0.0
        %5824 = vmatpush1.msra.mxu0 0.0
        %5825 = vmatprep.subr.mxu0 0.0
        %5826 = vmatpush1.msra.mxu0 0.0
        %5827 = vmatprep.subr.mxu0 0.0
        %5828 = vmatpush1.msra.mxu0 0.0
        %5829 = vmatprep.subr.mxu0 0.0
        %5830 = vmatpush1.msra.mxu0 0.0
        %5831 = vmatprep.subr.mxu0 0.0
        %5832 = vmatpush1.msra.mxu0 0.0
        %5833 = vmatprep.subr.mxu0 0.0
        %5834 = vmatpush1.msra.mxu0 0.0
        %5835 = vmatprep.subr.mxu0 0.0
        %5836 = vmatpush1.msra.mxu0 0.0
        %5837 = vmatprep.subr.mxu0 0.0
        %5838 = vmatpush1.msra.mxu0 0.0
        %5839 = vmatprep.subr.mxu0 0.0
        %5840 = vmatpush1.msra.mxu0 0.0
        %5841 = vmatprep.subr.mxu0 0.0
        %5842 = vmatpush1.msra.mxu0 0.0
        %5843 = vmatprep.subr.mxu0 0.0
        %5844 = vmatpush1.msra.mxu0 0.0
        %5845 = vmatprep.subr.mxu0 0.0
        %5846 = vmatpush1.msra.mxu0 0.0
        %5847 = vmatprep.subr.mxu0 0.0
        %5848 = vmatpush1.msra.mxu0 0.0
        %5849 = vmatprep.subr.mxu0 0.0
        %5850 = vmatpush1.msra.mxu0 0.0
        %5851 = vmatprep.subr.mxu0 0.0
        %5852 = vmatpush1.msra.mxu0 0.0
        %5853 = vmatprep.subr.mxu0 0.0
        %5854 = vmatpush1.msra.mxu0 0.0
        %5855 = vmatprep.subr.mxu0 0.0
        %5856 = vmatpush1.msra.mxu0 0.0
        %5857 = vmatprep.subr.mxu0 0.0
        %5858 = vmatpush1.msra.mxu0 0.0
        %5859 = vmatprep.subr.mxu0 0.0
        %5860 = vmatpush1.msra.mxu0 0.0
        %5861 = vmatprep.subr.mxu0 0.0
        %5862 = vmatpush1.msra.mxu0 0.0
        %5863 = vmatprep.subr.mxu0 0.0
        %5864 = vmatpush1.msra.mxu0 0.0
        %5865 = vmatprep.mubr.f32.mxu0 0.0
        %5866 = vmatmul.mubr.f32.gmra.mrb[0].mxu0 %v5515
        %v5867 = vpop.f32.mrb[0].mxu0
        %v5868 = vadd.f32 0.0, %v5867
        %v5869 = vpop.f32.mrb[0].mxu0
        %5870 = vdwg.mxu0
        %v5871 = vadd.f32 %v5464, %v5584
        %v5872 = vadd.f32 %v5465, %v5586
        %v5873 = vadd.f32 %v5466, %v5655
        %v5874 = vadd.f32 %v5467, %v5657
        %v5875 = vadd.f32 %v5468, %v5726
        %v5876 = vadd.f32 %v5469, %v5728
        %v5877 = vadd.f32 %v5470, %v5797
        %v5878 = vadd.f32 %v5471, %v5799
        %v5879 = vadd.f32 %v5472, %v5868
        %s5880 = scalar_lea.vmem %s2, 96
        %v5881 = vld [vmem:[%s5880] sm:$0xff]
        %5882 = vrot.lane.b32.xlu0 %v1385, 54
        %v5883 = vpop.permute.xlu0 %5882
        %5884 = vrot.lane.b32.xlu0 %v1386, 54
        %v5885 = vpop.permute.xlu0 %5884
        %5886 = vrot.lane.b32.xlu0 %v1387, 54
        %v5887 = vpop.permute.xlu0 %5886
        %5888 = vrot.lane.b32.xlu0 %v1388, 54
        %v5889 = vpop.permute.xlu0 %5888
        %5890 = vrot.lane.b32.xlu0 %v1389, 54
        %v5891 = vpop.permute.xlu0 %5890
        %5892 = vrot.lane.b32.xlu0 %v1390, 54
        %v5893 = vpop.permute.xlu0 %5892
        %5894 = vrot.lane.b32.xlu0 %v1391, 54
        %v5895 = vpop.permute.xlu0 %5894
        %5896 = vrot.lane.b32.xlu0 %v1392, 54
        %v5897 = vpop.permute.xlu0 %5896
        %5898 = vrot.lane.b32.xlu0 %v1393, 54
        %v5899 = vpop.permute.xlu0 %5898
        %5900 = vrot.lane.b32.xlu0 %v1394, 54
        %v5901 = vpop.permute.xlu0 %5900
        %vm5902 = vcmask 441344
        %v5903 = vsel %vm5902, %v5883, %v5885
        %v5904 = vsel %vm5902, %v5885, %v5887
        %v5905 = vsel %vm5902, %v5887, %v5889
        %v5906 = vsel %vm5902, %v5889, %v5891
        %v5907 = vsel %vm5902, %v5891, %v5893
        %v5908 = vsel %vm5902, %v5893, %v5895
        %v5909 = vsel %vm5902, %v5895, %v5897
        %v5910 = vsel %vm5902, %v5897, %v5899
        %v5911 = vsel %vm5902, %v5899, %v5901
        %v5922 = vsel %vm1016, %v5881, 0
        %5924 = vmatprep.subr.mxu0 %v5904
        %5925 = vmatpush1.msra.mxu0 %v5903
        %5926 = vmatprep.subr.mxu0 0.0
        %5927 = vmatpush1.msra.mxu0 0.0
        %5928 = vmatprep.subr.mxu0 0.0
        %5929 = vmatpush1.msra.mxu0 0.0
        %5930 = vmatprep.subr.mxu0 0.0
        %5931 = vmatpush1.msra.mxu0 0.0
        %5932 = vmatprep.subr.mxu0 0.0
        %5933 = vmatpush1.msra.mxu0 0.0
        %5934 = vmatprep.subr.mxu0 0.0
        %5935 = vmatpush1.msra.mxu0 0.0
        %5936 = vmatprep.subr.mxu0 0.0
        %5937 = vmatpush1.msra.mxu0 0.0
        %5938 = vmatprep.subr.mxu0 0.0
        %5939 = vmatpush1.msra.mxu0 0.0
        %5940 = vmatprep.subr.mxu0 0.0
        %5941 = vmatpush1.msra.mxu0 0.0
        %5942 = vmatprep.subr.mxu0 0.0
        %5943 = vmatpush1.msra.mxu0 0.0
        %5944 = vmatprep.subr.mxu0 0.0
        %5945 = vmatpush1.msra.mxu0 0.0
        %5946 = vmatprep.subr.mxu0 0.0
        %5947 = vmatpush1.msra.mxu0 0.0
        %5948 = vmatprep.subr.mxu0 0.0
        %5949 = vmatpush1.msra.mxu0 0.0
        %5950 = vmatprep.subr.mxu0 0.0
        %5951 = vmatpush1.msra.mxu0 0.0
        %5952 = vmatprep.subr.mxu0 0.0
        %5953 = vmatpush1.msra.mxu0 0.0
        %5954 = vmatprep.subr.mxu0 0.0
        %5955 = vmatpush1.msra.mxu0 0.0
        %5956 = vmatprep.subr.mxu0 0.0
        %5957 = vmatpush1.msra.mxu0 0.0
        %5958 = vmatprep.subr.mxu0 0.0
        %5959 = vmatpush1.msra.mxu0 0.0
        %5960 = vmatprep.subr.mxu0 0.0
        %5961 = vmatpush1.msra.mxu0 0.0
        %5962 = vmatprep.subr.mxu0 0.0
        %5963 = vmatpush1.msra.mxu0 0.0
        %5964 = vmatprep.subr.mxu0 0.0
        %5965 = vmatpush1.msra.mxu0 0.0
        %5966 = vmatprep.subr.mxu0 0.0
        %5967 = vmatpush1.msra.mxu0 0.0
        %5968 = vmatprep.subr.mxu0 0.0
        %5969 = vmatpush1.msra.mxu0 0.0
        %5970 = vmatprep.subr.mxu0 0.0
        %5971 = vmatpush1.msra.mxu0 0.0
        %5972 = vmatprep.subr.mxu0 0.0
        %5973 = vmatpush1.msra.mxu0 0.0
        %5974 = vmatprep.subr.mxu0 0.0
        %5975 = vmatpush1.msra.mxu0 0.0
        %5976 = vmatprep.subr.mxu0 0.0
        %5977 = vmatpush1.msra.mxu0 0.0
        %5978 = vmatprep.subr.mxu0 0.0
        %5979 = vmatpush1.msra.mxu0 0.0
        %5980 = vmatprep.subr.mxu0 0.0
        %5981 = vmatpush1.msra.mxu0 0.0
        %5982 = vmatprep.subr.mxu0 0.0
        %5983 = vmatpush1.msra.mxu0 0.0
        %5984 = vmatprep.subr.mxu0 0.0
        %5985 = vmatpush1.msra.mxu0 0.0
        %5986 = vmatprep.subr.mxu0 0.0
        %5987 = vmatpush1.msra.mxu0 0.0
        %5988 = vmatprep.mubr.f32.mxu0 0.0
        %5989 = vmatmul.mubr.f32.gmra.mrb[0].mxu0 %v5922
        %v5990 = vpop.f32.mrb[0].mxu0
        %v5991 = vadd.f32 0.0, %v5990
        %v5992 = vpop.f32.mrb[0].mxu0
        %v5993 = vadd.f32 0.0, %v5992
        %5994 = vdwg.mxu0
        %5995 = vmatprep.subr.mxu0 %v5906
        %5996 = vmatpush1.msra.mxu0 %v5905
        %5997 = vmatprep.subr.mxu0 0.0
        %5998 = vmatpush1.msra.mxu0 0.0
        %5999 = vmatprep.subr.mxu0 0.0
        %6000 = vmatpush1.msra.mxu0 0.0
        %6001 = vmatprep.subr.mxu0 0.0
        %6002 = vmatpush1.msra.mxu0 0.0
        %6003 = vmatprep.subr.mxu0 0.0
        %6004 = vmatpush1.msra.mxu0 0.0
        %6005 = vmatprep.subr.mxu0 0.0
        %6006 = vmatpush1.msra.mxu0 0.0
        %6007 = vmatprep.subr.mxu0 0.0
        %6008 = vmatpush1.msra.mxu0 0.0
        %6009 = vmatprep.subr.mxu0 0.0
        %6010 = vmatpush1.msra.mxu0 0.0
        %6011 = vmatprep.subr.mxu0 0.0
        %6012 = vmatpush1.msra.mxu0 0.0
        %6013 = vmatprep.subr.mxu0 0.0
        %6014 = vmatpush1.msra.mxu0 0.0
        %6015 = vmatprep.subr.mxu0 0.0
        %6016 = vmatpush1.msra.mxu0 0.0
        %6017 = vmatprep.subr.mxu0 0.0
        %6018 = vmatpush1.msra.mxu0 0.0
        %6019 = vmatprep.subr.mxu0 0.0
        %6020 = vmatpush1.msra.mxu0 0.0
        %6021 = vmatprep.subr.mxu0 0.0
        %6022 = vmatpush1.msra.mxu0 0.0
        %6023 = vmatprep.subr.mxu0 0.0
        %6024 = vmatpush1.msra.mxu0 0.0
        %6025 = vmatprep.subr.mxu0 0.0
        %6026 = vmatpush1.msra.mxu0 0.0
        %6027 = vmatprep.subr.mxu0 0.0
        %6028 = vmatpush1.msra.mxu0 0.0
        %6029 = vmatprep.subr.mxu0 0.0
        %6030 = vmatpush1.msra.mxu0 0.0
        %6031 = vmatprep.subr.mxu0 0.0
        %6032 = vmatpush1.msra.mxu0 0.0
        %6033 = vmatprep.subr.mxu0 0.0
        %6034 = vmatpush1.msra.mxu0 0.0
        %6035 = vmatprep.subr.mxu0 0.0
        %6036 = vmatpush1.msra.mxu0 0.0
        %6037 = vmatprep.subr.mxu0 0.0
        %6038 = vmatpush1.msra.mxu0 0.0
        %6039 = vmatprep.subr.mxu0 0.0
        %6040 = vmatpush1.msra.mxu0 0.0
        %6041 = vmatprep.subr.mxu0 0.0
        %6042 = vmatpush1.msra.mxu0 0.0
        %6043 = vmatprep.subr.mxu0 0.0
        %6044 = vmatpush1.msra.mxu0 0.0
        %6045 = vmatprep.subr.mxu0 0.0
        %6046 = vmatpush1.msra.mxu0 0.0
        %6047 = vmatprep.subr.mxu0 0.0
        %6048 = vmatpush1.msra.mxu0 0.0
        %6049 = vmatprep.subr.mxu0 0.0
        %6050 = vmatpush1.msra.mxu0 0.0
        %6051 = vmatprep.subr.mxu0 0.0
        %6052 = vmatpush1.msra.mxu0 0.0
        %6053 = vmatprep.subr.mxu0 0.0
        %6054 = vmatpush1.msra.mxu0 0.0
        %6055 = vmatprep.subr.mxu0 0.0
        %6056 = vmatpush1.msra.mxu0 0.0
        %6057 = vmatprep.subr.mxu0 0.0
        %6058 = vmatpush1.msra.mxu0 0.0
        %6059 = vmatprep.mubr.f32.mxu0 0.0
        %6060 = vmatmul.mubr.f32.gmra.mrb[0].mxu0 %v5922
        %v6061 = vpop.f32.mrb[0].mxu0
        %v6062 = vadd.f32 0.0, %v6061
        %v6063 = vpop.f32.mrb[0].mxu0
        %v6064 = vadd.f32 0.0, %v6063
        %6065 = vdwg.mxu0
        %6066 = vmatprep.subr.mxu0 %v5908
        %6067 = vmatpush1.msra.mxu0 %v5907
        %6068 = vmatprep.subr.mxu0 0.0
        %6069 = vmatpush1.msra.mxu0 0.0
        %6070 = vmatprep.subr.mxu0 0.0
        %6071 = vmatpush1.msra.mxu0 0.0
        %6072 = vmatprep.subr.mxu0 0.0
        %6073 = vmatpush1.msra.mxu0 0.0
        %6074 = vmatprep.subr.mxu0 0.0
        %6075 = vmatpush1.msra.mxu0 0.0
        %6076 = vmatprep.subr.mxu0 0.0
        %6077 = vmatpush1.msra.mxu0 0.0
        %6078 = vmatprep.subr.mxu0 0.0
        %6079 = vmatpush1.msra.mxu0 0.0
        %6080 = vmatprep.subr.mxu0 0.0
        %6081 = vmatpush1.msra.mxu0 0.0
        %6082 = vmatprep.subr.mxu0 0.0
        %6083 = vmatpush1.msra.mxu0 0.0
        %6084 = vmatprep.subr.mxu0 0.0
        %6085 = vmatpush1.msra.mxu0 0.0
        %6086 = vmatprep.subr.mxu0 0.0
        %6087 = vmatpush1.msra.mxu0 0.0
        %6088 = vmatprep.subr.mxu0 0.0
        %6089 = vmatpush1.msra.mxu0 0.0
        %6090 = vmatprep.subr.mxu0 0.0
        %6091 = vmatpush1.msra.mxu0 0.0
        %6092 = vmatprep.subr.mxu0 0.0
        %6093 = vmatpush1.msra.mxu0 0.0
        %6094 = vmatprep.subr.mxu0 0.0
        %6095 = vmatpush1.msra.mxu0 0.0
        %6096 = vmatprep.subr.mxu0 0.0
        %6097 = vmatpush1.msra.mxu0 0.0
        %6098 = vmatprep.subr.mxu0 0.0
        %6099 = vmatpush1.msra.mxu0 0.0
        %6100 = vmatprep.subr.mxu0 0.0
        %6101 = vmatpush1.msra.mxu0 0.0
        %6102 = vmatprep.subr.mxu0 0.0
        %6103 = vmatpush1.msra.mxu0 0.0
        %6104 = vmatprep.subr.mxu0 0.0
        %6105 = vmatpush1.msra.mxu0 0.0
        %6106 = vmatprep.subr.mxu0 0.0
        %6107 = vmatpush1.msra.mxu0 0.0
        %6108 = vmatprep.subr.mxu0 0.0
        %6109 = vmatpush1.msra.mxu0 0.0
        %6110 = vmatprep.subr.mxu0 0.0
        %6111 = vmatpush1.msra.mxu0 0.0
        %6112 = vmatprep.subr.mxu0 0.0
        %6113 = vmatpush1.msra.mxu0 0.0
        %6114 = vmatprep.subr.mxu0 0.0
        %6115 = vmatpush1.msra.mxu0 0.0
        %6116 = vmatprep.subr.mxu0 0.0
        %6117 = vmatpush1.msra.mxu0 0.0
        %6118 = vmatprep.subr.mxu0 0.0
        %6119 = vmatpush1.msra.mxu0 0.0
        %6120 = vmatprep.subr.mxu0 0.0
        %6121 = vmatpush1.msra.mxu0 0.0
        %6122 = vmatprep.subr.mxu0 0.0
        %6123 = vmatpush1.msra.mxu0 0.0
        %6124 = vmatprep.subr.mxu0 0.0
        %6125 = vmatpush1.msra.mxu0 0.0
        %6126 = vmatprep.subr.mxu0 0.0
        %6127 = vmatpush1.msra.mxu0 0.0
        %6128 = vmatprep.subr.mxu0 0.0
        %6129 = vmatpush1.msra.mxu0 0.0
        %6130 = vmatprep.mubr.f32.mxu0 0.0
        %6131 = vmatmul.mubr.f32.gmra.mrb[0].mxu0 %v5922
        %v6132 = vpop.f32.mrb[0].mxu0
        %v6133 = vadd.f32 0.0, %v6132
        %v6134 = vpop.f32.mrb[0].mxu0
        %v6135 = vadd.f32 0.0, %v6134
        %6136 = vdwg.mxu0
        %6137 = vmatprep.subr.mxu0 %v5910
        %6138 = vmatpush1.msra.mxu0 %v5909
        %6139 = vmatprep.subr.mxu0 0.0
        %6140 = vmatpush1.msra.mxu0 0.0
        %6141 = vmatprep.subr.mxu0 0.0
        %6142 = vmatpush1.msra.mxu0 0.0
        %6143 = vmatprep.subr.mxu0 0.0
        %6144 = vmatpush1.msra.mxu0 0.0
        %6145 = vmatprep.subr.mxu0 0.0
        %6146 = vmatpush1.msra.mxu0 0.0
        %6147 = vmatprep.subr.mxu0 0.0
        %6148 = vmatpush1.msra.mxu0 0.0
        %6149 = vmatprep.subr.mxu0 0.0
        %6150 = vmatpush1.msra.mxu0 0.0
        %6151 = vmatprep.subr.mxu0 0.0
        %6152 = vmatpush1.msra.mxu0 0.0
        %6153 = vmatprep.subr.mxu0 0.0
        %6154 = vmatpush1.msra.mxu0 0.0
        %6155 = vmatprep.subr.mxu0 0.0
        %6156 = vmatpush1.msra.mxu0 0.0
        %6157 = vmatprep.subr.mxu0 0.0
        %6158 = vmatpush1.msra.mxu0 0.0
        %6159 = vmatprep.subr.mxu0 0.0
        %6160 = vmatpush1.msra.mxu0 0.0
        %6161 = vmatprep.subr.mxu0 0.0
        %6162 = vmatpush1.msra.mxu0 0.0
        %6163 = vmatprep.subr.mxu0 0.0
        %6164 = vmatpush1.msra.mxu0 0.0
        %6165 = vmatprep.subr.mxu0 0.0
        %6166 = vmatpush1.msra.mxu0 0.0
        %6167 = vmatprep.subr.mxu0 0.0
        %6168 = vmatpush1.msra.mxu0 0.0
        %6169 = vmatprep.subr.mxu0 0.0
        %6170 = vmatpush1.msra.mxu0 0.0
        %6171 = vmatprep.subr.mxu0 0.0
        %6172 = vmatpush1.msra.mxu0 0.0
        %6173 = vmatprep.subr.mxu0 0.0
        %6174 = vmatpush1.msra.mxu0 0.0
        %6175 = vmatprep.subr.mxu0 0.0
        %6176 = vmatpush1.msra.mxu0 0.0
        %6177 = vmatprep.subr.mxu0 0.0
        %6178 = vmatpush1.msra.mxu0 0.0
        %6179 = vmatprep.subr.mxu0 0.0
        %6180 = vmatpush1.msra.mxu0 0.0
        %6181 = vmatprep.subr.mxu0 0.0
        %6182 = vmatpush1.msra.mxu0 0.0
        %6183 = vmatprep.subr.mxu0 0.0
        %6184 = vmatpush1.msra.mxu0 0.0
        %6185 = vmatprep.subr.mxu0 0.0
        %6186 = vmatpush1.msra.mxu0 0.0
        %6187 = vmatprep.subr.mxu0 0.0
        %6188 = vmatpush1.msra.mxu0 0.0
        %6189 = vmatprep.subr.mxu0 0.0
        %6190 = vmatpush1.msra.mxu0 0.0
        %6191 = vmatprep.subr.mxu0 0.0
        %6192 = vmatpush1.msra.mxu0 0.0
        %6193 = vmatprep.subr.mxu0 0.0
        %6194 = vmatpush1.msra.mxu0 0.0
        %6195 = vmatprep.subr.mxu0 0.0
        %6196 = vmatpush1.msra.mxu0 0.0
        %6197 = vmatprep.subr.mxu0 0.0
        %6198 = vmatpush1.msra.mxu0 0.0
        %6199 = vmatprep.subr.mxu0 0.0
        %6200 = vmatpush1.msra.mxu0 0.0
        %6201 = vmatprep.mubr.f32.mxu0 0.0
        %6202 = vmatmul.mubr.f32.gmra.mrb[0].mxu0 %v5922
        %v6203 = vpop.f32.mrb[0].mxu0
        %v6204 = vadd.f32 0.0, %v6203
        %v6205 = vpop.f32.mrb[0].mxu0
        %v6206 = vadd.f32 0.0, %v6205
        %6207 = vdwg.mxu0
        %6208 = vmatprep.subr.mxu0 0.0
        %6209 = vmatpush1.msra.mxu0 %v5911
        %6210 = vmatprep.subr.mxu0 0.0
        %6211 = vmatpush1.msra.mxu0 0.0
        %6212 = vmatprep.subr.mxu0 0.0
        %6213 = vmatpush1.msra.mxu0 0.0
        %6214 = vmatprep.subr.mxu0 0.0
        %6215 = vmatpush1.msra.mxu0 0.0
        %6216 = vmatprep.subr.mxu0 0.0
        %6217 = vmatpush1.msra.mxu0 0.0
        %6218 = vmatprep.subr.mxu0 0.0
        %6219 = vmatpush1.msra.mxu0 0.0
        %6220 = vmatprep.subr.mxu0 0.0
        %6221 = vmatpush1.msra.mxu0 0.0
        %6222 = vmatprep.subr.mxu0 0.0
        %6223 = vmatpush1.msra.mxu0 0.0
        %6224 = vmatprep.subr.mxu0 0.0
        %6225 = vmatpush1.msra.mxu0 0.0
        %6226 = vmatprep.subr.mxu0 0.0
        %6227 = vmatpush1.msra.mxu0 0.0
        %6228 = vmatprep.subr.mxu0 0.0
        %6229 = vmatpush1.msra.mxu0 0.0
        %6230 = vmatprep.subr.mxu0 0.0
        %6231 = vmatpush1.msra.mxu0 0.0
        %6232 = vmatprep.subr.mxu0 0.0
        %6233 = vmatpush1.msra.mxu0 0.0
        %6234 = vmatprep.subr.mxu0 0.0
        %6235 = vmatpush1.msra.mxu0 0.0
        %6236 = vmatprep.subr.mxu0 0.0
        %6237 = vmatpush1.msra.mxu0 0.0
        %6238 = vmatprep.subr.mxu0 0.0
        %6239 = vmatpush1.msra.mxu0 0.0
        %6240 = vmatprep.subr.mxu0 0.0
        %6241 = vmatpush1.msra.mxu0 0.0
        %6242 = vmatprep.subr.mxu0 0.0
        %6243 = vmatpush1.msra.mxu0 0.0
        %6244 = vmatprep.subr.mxu0 0.0
        %6245 = vmatpush1.msra.mxu0 0.0
        %6246 = vmatprep.subr.mxu0 0.0
        %6247 = vmatpush1.msra.mxu0 0.0
        %6248 = vmatprep.subr.mxu0 0.0
        %6249 = vmatpush1.msra.mxu0 0.0
        %6250 = vmatprep.subr.mxu0 0.0
        %6251 = vmatpush1.msra.mxu0 0.0
        %6252 = vmatprep.subr.mxu0 0.0
        %6253 = vmatpush1.msra.mxu0 0.0
        %6254 = vmatprep.subr.mxu0 0.0
        %6255 = vmatpush1.msra.mxu0 0.0
        %6256 = vmatprep.subr.mxu0 0.0
        %6257 = vmatpush1.msra.mxu0 0.0
        %6258 = vmatprep.subr.mxu0 0.0
        %6259 = vmatpush1.msra.mxu0 0.0
        %6260 = vmatprep.subr.mxu0 0.0
        %6261 = vmatpush1.msra.mxu0 0.0
        %6262 = vmatprep.subr.mxu0 0.0
        %6263 = vmatpush1.msra.mxu0 0.0
        %6264 = vmatprep.subr.mxu0 0.0
        %6265 = vmatpush1.msra.mxu0 0.0
        %6266 = vmatprep.subr.mxu0 0.0
        %6267 = vmatpush1.msra.mxu0 0.0
        %6268 = vmatprep.subr.mxu0 0.0
        %6269 = vmatpush1.msra.mxu0 0.0
        %6270 = vmatprep.subr.mxu0 0.0
        %6271 = vmatpush1.msra.mxu0 0.0
        %6272 = vmatprep.mubr.f32.mxu0 0.0
        %6273 = vmatmul.mubr.f32.gmra.mrb[0].mxu0 %v5922
        %v6274 = vpop.f32.mrb[0].mxu0
        %v6275 = vadd.f32 0.0, %v6274
        %v6276 = vpop.f32.mrb[0].mxu0
        %6277 = vdwg.mxu0
        %v6278 = vadd.f32 %v5871, %v5991
        %v6279 = vadd.f32 %v5872, %v5993
        %v6280 = vadd.f32 %v5873, %v6062
        %v6281 = vadd.f32 %v5874, %v6064
        %v6282 = vadd.f32 %v5875, %v6133
        %v6283 = vadd.f32 %v5876, %v6135
        %v6284 = vadd.f32 %v5877, %v6204
        %v6285 = vadd.f32 %v5878, %v6206
        %v6286 = vadd.f32 %v5879, %v6275
        %s6287 = scalar_lea.vmem %s2, 104
        %v6288 = vld [vmem:[%s6287] sm:$0xff]
        %6289 = vrot.lane.b32.xlu0 %v1385, 53
        %v6290 = vpop.permute.xlu0 %6289
        %6291 = vrot.lane.b32.xlu0 %v1386, 53
        %v6292 = vpop.permute.xlu0 %6291
        %6293 = vrot.lane.b32.xlu0 %v1387, 53
        %v6294 = vpop.permute.xlu0 %6293
        %6295 = vrot.lane.b32.xlu0 %v1388, 53
        %v6296 = vpop.permute.xlu0 %6295
        %6297 = vrot.lane.b32.xlu0 %v1389, 53
        %v6298 = vpop.permute.xlu0 %6297
        %6299 = vrot.lane.b32.xlu0 %v1390, 53
        %v6300 = vpop.permute.xlu0 %6299
        %6301 = vrot.lane.b32.xlu0 %v1391, 53
        %v6302 = vpop.permute.xlu0 %6301
        %6303 = vrot.lane.b32.xlu0 %v1392, 53
        %v6304 = vpop.permute.xlu0 %6303
        %6305 = vrot.lane.b32.xlu0 %v1393, 53
        %v6306 = vpop.permute.xlu0 %6305
        %6307 = vrot.lane.b32.xlu0 %v1394, 53
        %v6308 = vpop.permute.xlu0 %6307
        %vm6309 = vcmask 433152
        %v6310 = vsel %vm6309, %v6290, %v6292
        %v6311 = vsel %vm6309, %v6292, %v6294
        %v6312 = vsel %vm6309, %v6294, %v6296
        %v6313 = vsel %vm6309, %v6296, %v6298
        %v6314 = vsel %vm6309, %v6298, %v6300
        %v6315 = vsel %vm6309, %v6300, %v6302
        %v6316 = vsel %vm6309, %v6302, %v6304
        %v6317 = vsel %vm6309, %v6304, %v6306
        %v6318 = vsel %vm6309, %v6306, %v6308
        %v6329 = vsel %vm1016, %v6288, 0
        %6331 = vmatprep.subr.mxu0 %v6311
        %6332 = vmatpush1.msra.mxu0 %v6310
        %6333 = vmatprep.subr.mxu0 0.0
        %6334 = vmatpush1.msra.mxu0 0.0
        %6335 = vmatprep.subr.mxu0 0.0
        %6336 = vmatpush1.msra.mxu0 0.0
        %6337 = vmatprep.subr.mxu0 0.0
        %6338 = vmatpush1.msra.mxu0 0.0
        %6339 = vmatprep.subr.mxu0 0.0
        %6340 = vmatpush1.msra.mxu0 0.0
        %6341 = vmatprep.subr.mxu0 0.0
        %6342 = vmatpush1.msra.mxu0 0.0
        %6343 = vmatprep.subr.mxu0 0.0
        %6344 = vmatpush1.msra.mxu0 0.0
        %6345 = vmatprep.subr.mxu0 0.0
        %6346 = vmatpush1.msra.mxu0 0.0
        %6347 = vmatprep.subr.mxu0 0.0
        %6348 = vmatpush1.msra.mxu0 0.0
        %6349 = vmatprep.subr.mxu0 0.0
        %6350 = vmatpush1.msra.mxu0 0.0
        %6351 = vmatprep.subr.mxu0 0.0
        %6352 = vmatpush1.msra.mxu0 0.0
        %6353 = vmatprep.subr.mxu0 0.0
        %6354 = vmatpush1.msra.mxu0 0.0
        %6355 = vmatprep.subr.mxu0 0.0
        %6356 = vmatpush1.msra.mxu0 0.0
        %6357 = vmatprep.subr.mxu0 0.0
        %6358 = vmatpush1.msra.mxu0 0.0
        %6359 = vmatprep.subr.mxu0 0.0
        %6360 = vmatpush1.msra.mxu0 0.0
        %6361 = vmatprep.subr.mxu0 0.0
        %6362 = vmatpush1.msra.mxu0 0.0
        %6363 = vmatprep.subr.mxu0 0.0
        %6364 = vmatpush1.msra.mxu0 0.0
        %6365 = vmatprep.subr.mxu0 0.0
        %6366 = vmatpush1.msra.mxu0 0.0
        %6367 = vmatprep.subr.mxu0 0.0
        %6368 = vmatpush1.msra.mxu0 0.0
        %6369 = vmatprep.subr.mxu0 0.0
        %6370 = vmatpush1.msra.mxu0 0.0
        %6371 = vmatprep.subr.mxu0 0.0
        %6372 = vmatpush1.msra.mxu0 0.0
        %6373 = vmatprep.subr.mxu0 0.0
        %6374 = vmatpush1.msra.mxu0 0.0
        %6375 = vmatprep.subr.mxu0 0.0
        %6376 = vmatpush1.msra.mxu0 0.0
        %6377 = vmatprep.subr.mxu0 0.0
        %6378 = vmatpush1.msra.mxu0 0.0
        %6379 = vmatprep.subr.mxu0 0.0
        %6380 = vmatpush1.msra.mxu0 0.0
        %6381 = vmatprep.subr.mxu0 0.0
        %6382 = vmatpush1.msra.mxu0 0.0
        %6383 = vmatprep.subr.mxu0 0.0
        %6384 = vmatpush1.msra.mxu0 0.0
        %6385 = vmatprep.subr.mxu0 0.0
        %6386 = vmatpush1.msra.mxu0 0.0
        %6387 = vmatprep.subr.mxu0 0.0
        %6388 = vmatpush1.msra.mxu0 0.0
        %6389 = vmatprep.subr.mxu0 0.0
        %6390 = vmatpush1.msra.mxu0 0.0
        %6391 = vmatprep.subr.mxu0 0.0
        %6392 = vmatpush1.msra.mxu0 0.0
        %6393 = vmatprep.subr.mxu0 0.0
        %6394 = vmatpush1.msra.mxu0 0.0
        %6395 = vmatprep.mubr.f32.mxu0 0.0
        %6396 = vmatmul.mubr.f32.gmra.mrb[0].mxu0 %v6329
        %v6397 = vpop.f32.mrb[0].mxu0
        %v6398 = vadd.f32 0.0, %v6397
        %v6399 = vpop.f32.mrb[0].mxu0
        %v6400 = vadd.f32 0.0, %v6399
        %6401 = vdwg.mxu0
        %6402 = vmatprep.subr.mxu0 %v6313
        %6403 = vmatpush1.msra.mxu0 %v6312
        %6404 = vmatprep.subr.mxu0 0.0
        %6405 = vmatpush1.msra.mxu0 0.0
        %6406 = vmatprep.subr.mxu0 0.0
        %6407 = vmatpush1.msra.mxu0 0.0
        %6408 = vmatprep.subr.mxu0 0.0
        %6409 = vmatpush1.msra.mxu0 0.0
        %6410 = vmatprep.subr.mxu0 0.0
        %6411 = vmatpush1.msra.mxu0 0.0
        %6412 = vmatprep.subr.mxu0 0.0
        %6413 = vmatpush1.msra.mxu0 0.0
        %6414 = vmatprep.subr.mxu0 0.0
        %6415 = vmatpush1.msra.mxu0 0.0
        %6416 = vmatprep.subr.mxu0 0.0
        %6417 = vmatpush1.msra.mxu0 0.0
        %6418 = vmatprep.subr.mxu0 0.0
        %6419 = vmatpush1.msra.mxu0 0.0
        %6420 = vmatprep.subr.mxu0 0.0
        %6421 = vmatpush1.msra.mxu0 0.0
        %6422 = vmatprep.subr.mxu0 0.0
        %6423 = vmatpush1.msra.mxu0 0.0
        %6424 = vmatprep.subr.mxu0 0.0
        %6425 = vmatpush1.msra.mxu0 0.0
        %6426 = vmatprep.subr.mxu0 0.0
        %6427 = vmatpush1.msra.mxu0 0.0
        %6428 = vmatprep.subr.mxu0 0.0
        %6429 = vmatpush1.msra.mxu0 0.0
        %6430 = vmatprep.subr.mxu0 0.0
        %6431 = vmatpush1.msra.mxu0 0.0
        %6432 = vmatprep.subr.mxu0 0.0
        %6433 = vmatpush1.msra.mxu0 0.0
        %6434 = vmatprep.subr.mxu0 0.0
        %6435 = vmatpush1.msra.mxu0 0.0
        %6436 = vmatprep.subr.mxu0 0.0
        %6437 = vmatpush1.msra.mxu0 0.0
        %6438 = vmatprep.subr.mxu0 0.0
        %6439 = vmatpush1.msra.mxu0 0.0
        %6440 = vmatprep.subr.mxu0 0.0
        %6441 = vmatpush1.msra.mxu0 0.0
        %6442 = vmatprep.subr.mxu0 0.0
        %6443 = vmatpush1.msra.mxu0 0.0
        %6444 = vmatprep.subr.mxu0 0.0
        %6445 = vmatpush1.msra.mxu0 0.0
        %6446 = vmatprep.subr.mxu0 0.0
        %6447 = vmatpush1.msra.mxu0 0.0
        %6448 = vmatprep.subr.mxu0 0.0
        %6449 = vmatpush1.msra.mxu0 0.0
        %6450 = vmatprep.subr.mxu0 0.0
        %6451 = vmatpush1.msra.mxu0 0.0
        %6452 = vmatprep.subr.mxu0 0.0
        %6453 = vmatpush1.msra.mxu0 0.0
        %6454 = vmatprep.subr.mxu0 0.0
        %6455 = vmatpush1.msra.mxu0 0.0
        %6456 = vmatprep.subr.mxu0 0.0
        %6457 = vmatpush1.msra.mxu0 0.0
        %6458 = vmatprep.subr.mxu0 0.0
        %6459 = vmatpush1.msra.mxu0 0.0
        %6460 = vmatprep.subr.mxu0 0.0
        %6461 = vmatpush1.msra.mxu0 0.0
        %6462 = vmatprep.subr.mxu0 0.0
        %6463 = vmatpush1.msra.mxu0 0.0
        %6464 = vmatprep.subr.mxu0 0.0
        %6465 = vmatpush1.msra.mxu0 0.0
        %6466 = vmatprep.mubr.f32.mxu0 0.0
        %6467 = vmatmul.mubr.f32.gmra.mrb[0].mxu0 %v6329
        %v6468 = vpop.f32.mrb[0].mxu0
        %v6469 = vadd.f32 0.0, %v6468
        %v6470 = vpop.f32.mrb[0].mxu0
        %v6471 = vadd.f32 0.0, %v6470
        %6472 = vdwg.mxu0
        %6473 = vmatprep.subr.mxu0 %v6315
        %6474 = vmatpush1.msra.mxu0 %v6314
        %6475 = vmatprep.subr.mxu0 0.0
        %6476 = vmatpush1.msra.mxu0 0.0
        %6477 = vmatprep.subr.mxu0 0.0
        %6478 = vmatpush1.msra.mxu0 0.0
        %6479 = vmatprep.subr.mxu0 0.0
        %6480 = vmatpush1.msra.mxu0 0.0
        %6481 = vmatprep.subr.mxu0 0.0
        %6482 = vmatpush1.msra.mxu0 0.0
        %6483 = vmatprep.subr.mxu0 0.0
        %6484 = vmatpush1.msra.mxu0 0.0
        %6485 = vmatprep.subr.mxu0 0.0
        %6486 = vmatpush1.msra.mxu0 0.0
        %6487 = vmatprep.subr.mxu0 0.0
        %6488 = vmatpush1.msra.mxu0 0.0
        %6489 = vmatprep.subr.mxu0 0.0
        %6490 = vmatpush1.msra.mxu0 0.0
        %6491 = vmatprep.subr.mxu0 0.0
        %6492 = vmatpush1.msra.mxu0 0.0
        %6493 = vmatprep.subr.mxu0 0.0
        %6494 = vmatpush1.msra.mxu0 0.0
        %6495 = vmatprep.subr.mxu0 0.0
        %6496 = vmatpush1.msra.mxu0 0.0
        %6497 = vmatprep.subr.mxu0 0.0
        %6498 = vmatpush1.msra.mxu0 0.0
        %6499 = vmatprep.subr.mxu0 0.0
        %6500 = vmatpush1.msra.mxu0 0.0
        %6501 = vmatprep.subr.mxu0 0.0
        %6502 = vmatpush1.msra.mxu0 0.0
        %6503 = vmatprep.subr.mxu0 0.0
        %6504 = vmatpush1.msra.mxu0 0.0
        %6505 = vmatprep.subr.mxu0 0.0
        %6506 = vmatpush1.msra.mxu0 0.0
        %6507 = vmatprep.subr.mxu0 0.0
        %6508 = vmatpush1.msra.mxu0 0.0
        %6509 = vmatprep.subr.mxu0 0.0
        %6510 = vmatpush1.msra.mxu0 0.0
        %6511 = vmatprep.subr.mxu0 0.0
        %6512 = vmatpush1.msra.mxu0 0.0
        %6513 = vmatprep.subr.mxu0 0.0
        %6514 = vmatpush1.msra.mxu0 0.0
        %6515 = vmatprep.subr.mxu0 0.0
        %6516 = vmatpush1.msra.mxu0 0.0
        %6517 = vmatprep.subr.mxu0 0.0
        %6518 = vmatpush1.msra.mxu0 0.0
        %6519 = vmatprep.subr.mxu0 0.0
        %6520 = vmatpush1.msra.mxu0 0.0
        %6521 = vmatprep.subr.mxu0 0.0
        %6522 = vmatpush1.msra.mxu0 0.0
        %6523 = vmatprep.subr.mxu0 0.0
        %6524 = vmatpush1.msra.mxu0 0.0
        %6525 = vmatprep.subr.mxu0 0.0
        %6526 = vmatpush1.msra.mxu0 0.0
        %6527 = vmatprep.subr.mxu0 0.0
        %6528 = vmatpush1.msra.mxu0 0.0
        %6529 = vmatprep.subr.mxu0 0.0
        %6530 = vmatpush1.msra.mxu0 0.0
        %6531 = vmatprep.subr.mxu0 0.0
        %6532 = vmatpush1.msra.mxu0 0.0
        %6533 = vmatprep.subr.mxu0 0.0
        %6534 = vmatpush1.msra.mxu0 0.0
        %6535 = vmatprep.subr.mxu0 0.0
        %6536 = vmatpush1.msra.mxu0 0.0
        %6537 = vmatprep.mubr.f32.mxu0 0.0
        %6538 = vmatmul.mubr.f32.gmra.mrb[0].mxu0 %v6329
        %v6539 = vpop.f32.mrb[0].mxu0
        %v6540 = vadd.f32 0.0, %v6539
        %v6541 = vpop.f32.mrb[0].mxu0
        %v6542 = vadd.f32 0.0, %v6541
        %6543 = vdwg.mxu0
        %6544 = vmatprep.subr.mxu0 %v6317
        %6545 = vmatpush1.msra.mxu0 %v6316
        %6546 = vmatprep.subr.mxu0 0.0
        %6547 = vmatpush1.msra.mxu0 0.0
        %6548 = vmatprep.subr.mxu0 0.0
        %6549 = vmatpush1.msra.mxu0 0.0
        %6550 = vmatprep.subr.mxu0 0.0
        %6551 = vmatpush1.msra.mxu0 0.0
        %6552 = vmatprep.subr.mxu0 0.0
        %6553 = vmatpush1.msra.mxu0 0.0
        %6554 = vmatprep.subr.mxu0 0.0
        %6555 = vmatpush1.msra.mxu0 0.0
        %6556 = vmatprep.subr.mxu0 0.0
        %6557 = vmatpush1.msra.mxu0 0.0
        %6558 = vmatprep.subr.mxu0 0.0
        %6559 = vmatpush1.msra.mxu0 0.0
        %6560 = vmatprep.subr.mxu0 0.0
        %6561 = vmatpush1.msra.mxu0 0.0
        %6562 = vmatprep.subr.mxu0 0.0
        %6563 = vmatpush1.msra.mxu0 0.0
        %6564 = vmatprep.subr.mxu0 0.0
        %6565 = vmatpush1.msra.mxu0 0.0
        %6566 = vmatprep.subr.mxu0 0.0
        %6567 = vmatpush1.msra.mxu0 0.0
        %6568 = vmatprep.subr.mxu0 0.0
        %6569 = vmatpush1.msra.mxu0 0.0
        %6570 = vmatprep.subr.mxu0 0.0
        %6571 = vmatpush1.msra.mxu0 0.0
        %6572 = vmatprep.subr.mxu0 0.0
        %6573 = vmatpush1.msra.mxu0 0.0
        %6574 = vmatprep.subr.mxu0 0.0
        %6575 = vmatpush1.msra.mxu0 0.0
        %6576 = vmatprep.subr.mxu0 0.0
        %6577 = vmatpush1.msra.mxu0 0.0
        %6578 = vmatprep.subr.mxu0 0.0
        %6579 = vmatpush1.msra.mxu0 0.0
        %6580 = vmatprep.subr.mxu0 0.0
        %6581 = vmatpush1.msra.mxu0 0.0
        %6582 = vmatprep.subr.mxu0 0.0
        %6583 = vmatpush1.msra.mxu0 0.0
        %6584 = vmatprep.subr.mxu0 0.0
        %6585 = vmatpush1.msra.mxu0 0.0
        %6586 = vmatprep.subr.mxu0 0.0
        %6587 = vmatpush1.msra.mxu0 0.0
        %6588 = vmatprep.subr.mxu0 0.0
        %6589 = vmatpush1.msra.mxu0 0.0
        %6590 = vmatprep.subr.mxu0 0.0
        %6591 = vmatpush1.msra.mxu0 0.0
        %6592 = vmatprep.subr.mxu0 0.0
        %6593 = vmatpush1.msra.mxu0 0.0
        %6594 = vmatprep.subr.mxu0 0.0
        %6595 = vmatpush1.msra.mxu0 0.0
        %6596 = vmatprep.subr.mxu0 0.0
        %6597 = vmatpush1.msra.mxu0 0.0
        %6598 = vmatprep.subr.mxu0 0.0
        %6599 = vmatpush1.msra.mxu0 0.0
        %6600 = vmatprep.subr.mxu0 0.0
        %6601 = vmatpush1.msra.mxu0 0.0
        %6602 = vmatprep.subr.mxu0 0.0
        %6603 = vmatpush1.msra.mxu0 0.0
        %6604 = vmatprep.subr.mxu0 0.0
        %6605 = vmatpush1.msra.mxu0 0.0
        %6606 = vmatprep.subr.mxu0 0.0
        %6607 = vmatpush1.msra.mxu0 0.0
        %6608 = vmatprep.mubr.f32.mxu0 0.0
        %6609 = vmatmul.mubr.f32.gmra.mrb[0].mxu0 %v6329
        %v6610 = vpop.f32.mrb[0].mxu0
        %v6611 = vadd.f32 0.0, %v6610
        %v6612 = vpop.f32.mrb[0].mxu0
        %v6613 = vadd.f32 0.0, %v6612
        %6614 = vdwg.mxu0
        %6615 = vmatprep.subr.mxu0 0.0
        %6616 = vmatpush1.msra.mxu0 %v6318
        %6617 = vmatprep.subr.mxu0 0.0
        %6618 = vmatpush1.msra.mxu0 0.0
        %6619 = vmatprep.subr.mxu0 0.0
        %6620 = vmatpush1.msra.mxu0 0.0
        %6621 = vmatprep.subr.mxu0 0.0
        %6622 = vmatpush1.msra.mxu0 0.0
        %6623 = vmatprep.subr.mxu0 0.0
        %6624 = vmatpush1.msra.mxu0 0.0
        %6625 = vmatprep.subr.mxu0 0.0
        %6626 = vmatpush1.msra.mxu0 0.0
        %6627 = vmatprep.subr.mxu0 0.0
        %6628 = vmatpush1.msra.mxu0 0.0
        %6629 = vmatprep.subr.mxu0 0.0
        %6630 = vmatpush1.msra.mxu0 0.0
        %6631 = vmatprep.subr.mxu0 0.0
        %6632 = vmatpush1.msra.mxu0 0.0
        %6633 = vmatprep.subr.mxu0 0.0
        %6634 = vmatpush1.msra.mxu0 0.0
        %6635 = vmatprep.subr.mxu0 0.0
        %6636 = vmatpush1.msra.mxu0 0.0
        %6637 = vmatprep.subr.mxu0 0.0
        %6638 = vmatpush1.msra.mxu0 0.0
        %6639 = vmatprep.subr.mxu0 0.0
        %6640 = vmatpush1.msra.mxu0 0.0
        %6641 = vmatprep.subr.mxu0 0.0
        %6642 = vmatpush1.msra.mxu0 0.0
        %6643 = vmatprep.subr.mxu0 0.0
        %6644 = vmatpush1.msra.mxu0 0.0
        %6645 = vmatprep.subr.mxu0 0.0
        %6646 = vmatpush1.msra.mxu0 0.0
        %6647 = vmatprep.subr.mxu0 0.0
        %6648 = vmatpush1.msra.mxu0 0.0
        %6649 = vmatprep.subr.mxu0 0.0
        %6650 = vmatpush1.msra.mxu0 0.0
        %6651 = vmatprep.subr.mxu0 0.0
        %6652 = vmatpush1.msra.mxu0 0.0
        %6653 = vmatprep.subr.mxu0 0.0
        %6654 = vmatpush1.msra.mxu0 0.0
        %6655 = vmatprep.subr.mxu0 0.0
        %6656 = vmatpush1.msra.mxu0 0.0
        %6657 = vmatprep.subr.mxu0 0.0
        %6658 = vmatpush1.msra.mxu0 0.0
        %6659 = vmatprep.subr.mxu0 0.0
        %6660 = vmatpush1.msra.mxu0 0.0
        %6661 = vmatprep.subr.mxu0 0.0
        %6662 = vmatpush1.msra.mxu0 0.0
        %6663 = vmatprep.subr.mxu0 0.0
        %6664 = vmatpush1.msra.mxu0 0.0
        %6665 = vmatprep.subr.mxu0 0.0
        %6666 = vmatpush1.msra.mxu0 0.0
        %6667 = vmatprep.subr.mxu0 0.0
        %6668 = vmatpush1.msra.mxu0 0.0
        %6669 = vmatprep.subr.mxu0 0.0
        %6670 = vmatpush1.msra.mxu0 0.0
        %6671 = vmatprep.subr.mxu0 0.0
        %6672 = vmatpush1.msra.mxu0 0.0
        %6673 = vmatprep.subr.mxu0 0.0
        %6674 = vmatpush1.msra.mxu0 0.0
        %6675 = vmatprep.subr.mxu0 0.0
        %6676 = vmatpush1.msra.mxu0 0.0
        %6677 = vmatprep.subr.mxu0 0.0
        %6678 = vmatpush1.msra.mxu0 0.0
        %6679 = vmatprep.mubr.f32.mxu0 0.0
        %6680 = vmatmul.mubr.f32.gmra.mrb[0].mxu0 %v6329
        %v6681 = vpop.f32.mrb[0].mxu0
        %v6682 = vadd.f32 0.0, %v6681
        %v6683 = vpop.f32.mrb[0].mxu0
        %6684 = vdwg.mxu0
        %v6685 = vadd.f32 %v6278, %v6398
        %v6686 = vadd.f32 %v6279, %v6400
        %v6687 = vadd.f32 %v6280, %v6469
        %v6688 = vadd.f32 %v6281, %v6471
        %v6689 = vadd.f32 %v6282, %v6540
        %v6690 = vadd.f32 %v6283, %v6542
        %v6691 = vadd.f32 %v6284, %v6611
        %v6692 = vadd.f32 %v6285, %v6613
        %v6693 = vadd.f32 %v6286, %v6682
        %s6694 = scalar_lea.vmem %s2, 112
        %v6695 = vld [vmem:[%s6694] sm:$0xff]
        %6696 = vrot.lane.b32.xlu0 %v1385, 52
        %v6697 = vpop.permute.xlu0 %6696
        %6698 = vrot.lane.b32.xlu0 %v1386, 52
        %v6699 = vpop.permute.xlu0 %6698
        %6700 = vrot.lane.b32.xlu0 %v1387, 52
        %v6701 = vpop.permute.xlu0 %6700
        %6702 = vrot.lane.b32.xlu0 %v1388, 52
        %v6703 = vpop.permute.xlu0 %6702
        %6704 = vrot.lane.b32.xlu0 %v1389, 52
        %v6705 = vpop.permute.xlu0 %6704
        %6706 = vrot.lane.b32.xlu0 %v1390, 52
        %v6707 = vpop.permute.xlu0 %6706
        %6708 = vrot.lane.b32.xlu0 %v1391, 52
        %v6709 = vpop.permute.xlu0 %6708
        %6710 = vrot.lane.b32.xlu0 %v1392, 52
        %v6711 = vpop.permute.xlu0 %6710
        %6712 = vrot.lane.b32.xlu0 %v1393, 52
        %v6713 = vpop.permute.xlu0 %6712
        %6714 = vrot.lane.b32.xlu0 %v1394, 52
        %v6715 = vpop.permute.xlu0 %6714
        %vm6716 = vcmask 424960
        %v6717 = vsel %vm6716, %v6697, %v6699
        %v6718 = vsel %vm6716, %v6699, %v6701
        %v6719 = vsel %vm6716, %v6701, %v6703
        %v6720 = vsel %vm6716, %v6703, %v6705
        %v6721 = vsel %vm6716, %v6705, %v6707
        %v6722 = vsel %vm6716, %v6707, %v6709
        %v6723 = vsel %vm6716, %v6709, %v6711
        %v6724 = vsel %vm6716, %v6711, %v6713
        %v6725 = vsel %vm6716, %v6713, %v6715
        %v6736 = vsel %vm1016, %v6695, 0
        %6738 = vmatprep.subr.mxu0 %v6718
        %6739 = vmatpush1.msra.mxu0 %v6717
        %6740 = vmatprep.subr.mxu0 0.0
        %6741 = vmatpush1.msra.mxu0 0.0
        %6742 = vmatprep.subr.mxu0 0.0
        %6743 = vmatpush1.msra.mxu0 0.0
        %6744 = vmatprep.subr.mxu0 0.0
        %6745 = vmatpush1.msra.mxu0 0.0
        %6746 = vmatprep.subr.mxu0 0.0
        %6747 = vmatpush1.msra.mxu0 0.0
        %6748 = vmatprep.subr.mxu0 0.0
        %6749 = vmatpush1.msra.mxu0 0.0
        %6750 = vmatprep.subr.mxu0 0.0
        %6751 = vmatpush1.msra.mxu0 0.0
        %6752 = vmatprep.subr.mxu0 0.0
        %6753 = vmatpush1.msra.mxu0 0.0
        %6754 = vmatprep.subr.mxu0 0.0
        %6755 = vmatpush1.msra.mxu0 0.0
        %6756 = vmatprep.subr.mxu0 0.0
        %6757 = vmatpush1.msra.mxu0 0.0
        %6758 = vmatprep.subr.mxu0 0.0
        %6759 = vmatpush1.msra.mxu0 0.0
        %6760 = vmatprep.subr.mxu0 0.0
        %6761 = vmatpush1.msra.mxu0 0.0
        %6762 = vmatprep.subr.mxu0 0.0
        %6763 = vmatpush1.msra.mxu0 0.0
        %6764 = vmatprep.subr.mxu0 0.0
        %6765 = vmatpush1.msra.mxu0 0.0
        %6766 = vmatprep.subr.mxu0 0.0
        %6767 = vmatpush1.msra.mxu0 0.0
        %6768 = vmatprep.subr.mxu0 0.0
        %6769 = vmatpush1.msra.mxu0 0.0
        %6770 = vmatprep.subr.mxu0 0.0
        %6771 = vmatpush1.msra.mxu0 0.0
        %6772 = vmatprep.subr.mxu0 0.0
        %6773 = vmatpush1.msra.mxu0 0.0
        %6774 = vmatprep.subr.mxu0 0.0
        %6775 = vmatpush1.msra.mxu0 0.0
        %6776 = vmatprep.subr.mxu0 0.0
        %6777 = vmatpush1.msra.mxu0 0.0
        %6778 = vmatprep.subr.mxu0 0.0
        %6779 = vmatpush1.msra.mxu0 0.0
        %6780 = vmatprep.subr.mxu0 0.0
        %6781 = vmatpush1.msra.mxu0 0.0
        %6782 = vmatprep.subr.mxu0 0.0
        %6783 = vmatpush1.msra.mxu0 0.0
        %6784 = vmatprep.subr.mxu0 0.0
        %6785 = vmatpush1.msra.mxu0 0.0
        %6786 = vmatprep.subr.mxu0 0.0
        %6787 = vmatpush1.msra.mxu0 0.0
        %6788 = vmatprep.subr.mxu0 0.0
        %6789 = vmatpush1.msra.mxu0 0.0
        %6790 = vmatprep.subr.mxu0 0.0
        %6791 = vmatpush1.msra.mxu0 0.0
        %6792 = vmatprep.subr.mxu0 0.0
        %6793 = vmatpush1.msra.mxu0 0.0
        %6794 = vmatprep.subr.mxu0 0.0
        %6795 = vmatpush1.msra.mxu0 0.0
        %6796 = vmatprep.subr.mxu0 0.0
        %6797 = vmatpush1.msra.mxu0 0.0
        %6798 = vmatprep.subr.mxu0 0.0
        %6799 = vmatpush1.msra.mxu0 0.0
        %6800 = vmatprep.subr.mxu0 0.0
        %6801 = vmatpush1.msra.mxu0 0.0
        %6802 = vmatprep.mubr.f32.mxu0 0.0
        %6803 = vmatmul.mubr.f32.gmra.mrb[0].mxu0 %v6736
        %v6804 = vpop.f32.mrb[0].mxu0
        %v6805 = vadd.f32 0.0, %v6804
        %v6806 = vpop.f32.mrb[0].mxu0
        %v6807 = vadd.f32 0.0, %v6806
        %6808 = vdwg.mxu0
        %6809 = vmatprep.subr.mxu0 %v6720
        %6810 = vmatpush1.msra.mxu0 %v6719
        %6811 = vmatprep.subr.mxu0 0.0
        %6812 = vmatpush1.msra.mxu0 0.0
        %6813 = vmatprep.subr.mxu0 0.0
        %6814 = vmatpush1.msra.mxu0 0.0
        %6815 = vmatprep.subr.mxu0 0.0
        %6816 = vmatpush1.msra.mxu0 0.0
        %6817 = vmatprep.subr.mxu0 0.0
        %6818 = vmatpush1.msra.mxu0 0.0
        %6819 = vmatprep.subr.mxu0 0.0
        %6820 = vmatpush1.msra.mxu0 0.0
        %6821 = vmatprep.subr.mxu0 0.0
        %6822 = vmatpush1.msra.mxu0 0.0
        %6823 = vmatprep.subr.mxu0 0.0
        %6824 = vmatpush1.msra.mxu0 0.0
        %6825 = vmatprep.subr.mxu0 0.0
        %6826 = vmatpush1.msra.mxu0 0.0
        %6827 = vmatprep.subr.mxu0 0.0
        %6828 = vmatpush1.msra.mxu0 0.0
        %6829 = vmatprep.subr.mxu0 0.0
        %6830 = vmatpush1.msra.mxu0 0.0
        %6831 = vmatprep.subr.mxu0 0.0
        %6832 = vmatpush1.msra.mxu0 0.0
        %6833 = vmatprep.subr.mxu0 0.0
        %6834 = vmatpush1.msra.mxu0 0.0
        %6835 = vmatprep.subr.mxu0 0.0
        %6836 = vmatpush1.msra.mxu0 0.0
        %6837 = vmatprep.subr.mxu0 0.0
        %6838 = vmatpush1.msra.mxu0 0.0
        %6839 = vmatprep.subr.mxu0 0.0
        %6840 = vmatpush1.msra.mxu0 0.0
        %6841 = vmatprep.subr.mxu0 0.0
        %6842 = vmatpush1.msra.mxu0 0.0
        %6843 = vmatprep.subr.mxu0 0.0
        %6844 = vmatpush1.msra.mxu0 0.0
        %6845 = vmatprep.subr.mxu0 0.0
        %6846 = vmatpush1.msra.mxu0 0.0
        %6847 = vmatprep.subr.mxu0 0.0
        %6848 = vmatpush1.msra.mxu0 0.0
        %6849 = vmatprep.subr.mxu0 0.0
        %6850 = vmatpush1.msra.mxu0 0.0
        %6851 = vmatprep.subr.mxu0 0.0
        %6852 = vmatpush1.msra.mxu0 0.0
        %6853 = vmatprep.subr.mxu0 0.0
        %6854 = vmatpush1.msra.mxu0 0.0
        %6855 = vmatprep.subr.mxu0 0.0
        %6856 = vmatpush1.msra.mxu0 0.0
        %6857 = vmatprep.subr.mxu0 0.0
        %6858 = vmatpush1.msra.mxu0 0.0
        %6859 = vmatprep.subr.mxu0 0.0
        %6860 = vmatpush1.msra.mxu0 0.0
        %6861 = vmatprep.subr.mxu0 0.0
        %6862 = vmatpush1.msra.mxu0 0.0
        %6863 = vmatprep.subr.mxu0 0.0
        %6864 = vmatpush1.msra.mxu0 0.0
        %6865 = vmatprep.subr.mxu0 0.0
        %6866 = vmatpush1.msra.mxu0 0.0
        %6867 = vmatprep.subr.mxu0 0.0
        %6868 = vmatpush1.msra.mxu0 0.0
        %6869 = vmatprep.subr.mxu0 0.0
        %6870 = vmatpush1.msra.mxu0 0.0
        %6871 = vmatprep.subr.mxu0 0.0
        %6872 = vmatpush1.msra.mxu0 0.0
        %6873 = vmatprep.mubr.f32.mxu0 0.0
        %6874 = vmatmul.mubr.f32.gmra.mrb[0].mxu0 %v6736
        %v6875 = vpop.f32.mrb[0].mxu0
        %v6876 = vadd.f32 0.0, %v6875
        %v6877 = vpop.f32.mrb[0].mxu0
        %v6878 = vadd.f32 0.0, %v6877
        %6879 = vdwg.mxu0
        %6880 = vmatprep.subr.mxu0 %v6722
        %6881 = vmatpush1.msra.mxu0 %v6721
        %6882 = vmatprep.subr.mxu0 0.0
        %6883 = vmatpush1.msra.mxu0 0.0
        %6884 = vmatprep.subr.mxu0 0.0
        %6885 = vmatpush1.msra.mxu0 0.0
        %6886 = vmatprep.subr.mxu0 0.0
        %6887 = vmatpush1.msra.mxu0 0.0
        %6888 = vmatprep.subr.mxu0 0.0
        %6889 = vmatpush1.msra.mxu0 0.0
        %6890 = vmatprep.subr.mxu0 0.0
        %6891 = vmatpush1.msra.mxu0 0.0
        %6892 = vmatprep.subr.mxu0 0.0
        %6893 = vmatpush1.msra.mxu0 0.0
        %6894 = vmatprep.subr.mxu0 0.0
        %6895 = vmatpush1.msra.mxu0 0.0
        %6896 = vmatprep.subr.mxu0 0.0
        %6897 = vmatpush1.msra.mxu0 0.0
        %6898 = vmatprep.subr.mxu0 0.0
        %6899 = vmatpush1.msra.mxu0 0.0
        %6900 = vmatprep.subr.mxu0 0.0
        %6901 = vmatpush1.msra.mxu0 0.0
        %6902 = vmatprep.subr.mxu0 0.0
        %6903 = vmatpush1.msra.mxu0 0.0
        %6904 = vmatprep.subr.mxu0 0.0
        %6905 = vmatpush1.msra.mxu0 0.0
        %6906 = vmatprep.subr.mxu0 0.0
        %6907 = vmatpush1.msra.mxu0 0.0
        %6908 = vmatprep.subr.mxu0 0.0
        %6909 = vmatpush1.msra.mxu0 0.0
        %6910 = vmatprep.subr.mxu0 0.0
        %6911 = vmatpush1.msra.mxu0 0.0
        %6912 = vmatprep.subr.mxu0 0.0
        %6913 = vmatpush1.msra.mxu0 0.0
        %6914 = vmatprep.subr.mxu0 0.0
        %6915 = vmatpush1.msra.mxu0 0.0
        %6916 = vmatprep.subr.mxu0 0.0
        %6917 = vmatpush1.msra.mxu0 0.0
        %6918 = vmatprep.subr.mxu0 0.0
        %6919 = vmatpush1.msra.mxu0 0.0
        %6920 = vmatprep.subr.mxu0 0.0
        %6921 = vmatpush1.msra.mxu0 0.0
        %6922 = vmatprep.subr.mxu0 0.0
        %6923 = vmatpush1.msra.mxu0 0.0
        %6924 = vmatprep.subr.mxu0 0.0
        %6925 = vmatpush1.msra.mxu0 0.0
        %6926 = vmatprep.subr.mxu0 0.0
        %6927 = vmatpush1.msra.mxu0 0.0
        %6928 = vmatprep.subr.mxu0 0.0
        %6929 = vmatpush1.msra.mxu0 0.0
        %6930 = vmatprep.subr.mxu0 0.0
        %6931 = vmatpush1.msra.mxu0 0.0
        %6932 = vmatprep.subr.mxu0 0.0
        %6933 = vmatpush1.msra.mxu0 0.0
        %6934 = vmatprep.subr.mxu0 0.0
        %6935 = vmatpush1.msra.mxu0 0.0
        %6936 = vmatprep.subr.mxu0 0.0
        %6937 = vmatpush1.msra.mxu0 0.0
        %6938 = vmatprep.subr.mxu0 0.0
        %6939 = vmatpush1.msra.mxu0 0.0
        %6940 = vmatprep.subr.mxu0 0.0
        %6941 = vmatpush1.msra.mxu0 0.0
        %6942 = vmatprep.subr.mxu0 0.0
        %6943 = vmatpush1.msra.mxu0 0.0
        %6944 = vmatprep.mubr.f32.mxu0 0.0
        %6945 = vmatmul.mubr.f32.gmra.mrb[0].mxu0 %v6736
        %v6946 = vpop.f32.mrb[0].mxu0
        %v6947 = vadd.f32 0.0, %v6946
        %v6948 = vpop.f32.mrb[0].mxu0
        %v6949 = vadd.f32 0.0, %v6948
        %6950 = vdwg.mxu0
        %6951 = vmatprep.subr.mxu0 %v6724
        %6952 = vmatpush1.msra.mxu0 %v6723
        %6953 = vmatprep.subr.mxu0 0.0
        %6954 = vmatpush1.msra.mxu0 0.0
        %6955 = vmatprep.subr.mxu0 0.0
        %6956 = vmatpush1.msra.mxu0 0.0
        %6957 = vmatprep.subr.mxu0 0.0
        %6958 = vmatpush1.msra.mxu0 0.0
        %6959 = vmatprep.subr.mxu0 0.0
        %6960 = vmatpush1.msra.mxu0 0.0
        %6961 = vmatprep.subr.mxu0 0.0
        %6962 = vmatpush1.msra.mxu0 0.0
        %6963 = vmatprep.subr.mxu0 0.0
        %6964 = vmatpush1.msra.mxu0 0.0
        %6965 = vmatprep.subr.mxu0 0.0
        %6966 = vmatpush1.msra.mxu0 0.0
        %6967 = vmatprep.subr.mxu0 0.0
        %6968 = vmatpush1.msra.mxu0 0.0
        %6969 = vmatprep.subr.mxu0 0.0
        %6970 = vmatpush1.msra.mxu0 0.0
        %6971 = vmatprep.subr.mxu0 0.0
        %6972 = vmatpush1.msra.mxu0 0.0
        %6973 = vmatprep.subr.mxu0 0.0
        %6974 = vmatpush1.msra.mxu0 0.0
        %6975 = vmatprep.subr.mxu0 0.0
        %6976 = vmatpush1.msra.mxu0 0.0
        %6977 = vmatprep.subr.mxu0 0.0
        %6978 = vmatpush1.msra.mxu0 0.0
        %6979 = vmatprep.subr.mxu0 0.0
        %6980 = vmatpush1.msra.mxu0 0.0
        %6981 = vmatprep.subr.mxu0 0.0
        %6982 = vmatpush1.msra.mxu0 0.0
        %6983 = vmatprep.subr.mxu0 0.0
        %6984 = vmatpush1.msra.mxu0 0.0
        %6985 = vmatprep.subr.mxu0 0.0
        %6986 = vmatpush1.msra.mxu0 0.0
        %6987 = vmatprep.subr.mxu0 0.0
        %6988 = vmatpush1.msra.mxu0 0.0
        %6989 = vmatprep.subr.mxu0 0.0
        %6990 = vmatpush1.msra.mxu0 0.0
        %6991 = vmatprep.subr.mxu0 0.0
        %6992 = vmatpush1.msra.mxu0 0.0
        %6993 = vmatprep.subr.mxu0 0.0
        %6994 = vmatpush1.msra.mxu0 0.0
        %6995 = vmatprep.subr.mxu0 0.0
        %6996 = vmatpush1.msra.mxu0 0.0
        %6997 = vmatprep.subr.mxu0 0.0
        %6998 = vmatpush1.msra.mxu0 0.0
        %6999 = vmatprep.subr.mxu0 0.0
        %7000 = vmatpush1.msra.mxu0 0.0
        %7001 = vmatprep.subr.mxu0 0.0
        %7002 = vmatpush1.msra.mxu0 0.0
        %7003 = vmatprep.subr.mxu0 0.0
        %7004 = vmatpush1.msra.mxu0 0.0
        %7005 = vmatprep.subr.mxu0 0.0
        %7006 = vmatpush1.msra.mxu0 0.0
        %7007 = vmatprep.subr.mxu0 0.0
        %7008 = vmatpush1.msra.mxu0 0.0
        %7009 = vmatprep.subr.mxu0 0.0
        %7010 = vmatpush1.msra.mxu0 0.0
        %7011 = vmatprep.subr.mxu0 0.0
        %7012 = vmatpush1.msra.mxu0 0.0
        %7013 = vmatprep.subr.mxu0 0.0
        %7014 = vmatpush1.msra.mxu0 0.0
        %7015 = vmatprep.mubr.f32.mxu0 0.0
        %7016 = vmatmul.mubr.f32.gmra.mrb[0].mxu0 %v6736
        %v7017 = vpop.f32.mrb[0].mxu0
        %v7018 = vadd.f32 0.0, %v7017
        %v7019 = vpop.f32.mrb[0].mxu0
        %v7020 = vadd.f32 0.0, %v7019
        %7021 = vdwg.mxu0
        %7022 = vmatprep.subr.mxu0 0.0
        %7023 = vmatpush1.msra.mxu0 %v6725
        %7024 = vmatprep.subr.mxu0 0.0
        %7025 = vmatpush1.msra.mxu0 0.0
        %7026 = vmatprep.subr.mxu0 0.0
        %7027 = vmatpush1.msra.mxu0 0.0
        %7028 = vmatprep.subr.mxu0 0.0
        %7029 = vmatpush1.msra.mxu0 0.0
        %7030 = vmatprep.subr.mxu0 0.0
        %7031 = vmatpush1.msra.mxu0 0.0
        %7032 = vmatprep.subr.mxu0 0.0
        %7033 = vmatpush1.msra.mxu0 0.0
        %7034 = vmatprep.subr.mxu0 0.0
        %7035 = vmatpush1.msra.mxu0 0.0
        %7036 = vmatprep.subr.mxu0 0.0
        %7037 = vmatpush1.msra.mxu0 0.0
        %7038 = vmatprep.subr.mxu0 0.0
        %7039 = vmatpush1.msra.mxu0 0.0
        %7040 = vmatprep.subr.mxu0 0.0
        %7041 = vmatpush1.msra.mxu0 0.0
        %7042 = vmatprep.subr.mxu0 0.0
        %7043 = vmatpush1.msra.mxu0 0.0
        %7044 = vmatprep.subr.mxu0 0.0
        %7045 = vmatpush1.msra.mxu0 0.0
        %7046 = vmatprep.subr.mxu0 0.0
        %7047 = vmatpush1.msra.mxu0 0.0
        %7048 = vmatprep.subr.mxu0 0.0
        %7049 = vmatpush1.msra.mxu0 0.0
        %7050 = vmatprep.subr.mxu0 0.0
        %7051 = vmatpush1.msra.mxu0 0.0
        %7052 = vmatprep.subr.mxu0 0.0
        %7053 = vmatpush1.msra.mxu0 0.0
        %7054 = vmatprep.subr.mxu0 0.0
        %7055 = vmatpush1.msra.mxu0 0.0
        %7056 = vmatprep.subr.mxu0 0.0
        %7057 = vmatpush1.msra.mxu0 0.0
        %7058 = vmatprep.subr.mxu0 0.0
        %7059 = vmatpush1.msra.mxu0 0.0
        %7060 = vmatprep.subr.mxu0 0.0
        %7061 = vmatpush1.msra.mxu0 0.0
        %7062 = vmatprep.subr.mxu0 0.0
        %7063 = vmatpush1.msra.mxu0 0.0
        %7064 = vmatprep.subr.mxu0 0.0
        %7065 = vmatpush1.msra.mxu0 0.0
        %7066 = vmatprep.subr.mxu0 0.0
        %7067 = vmatpush1.msra.mxu0 0.0
        %7068 = vmatprep.subr.mxu0 0.0
        %7069 = vmatpush1.msra.mxu0 0.0
        %7070 = vmatprep.subr.mxu0 0.0
        %7071 = vmatpush1.msra.mxu0 0.0
        %7072 = vmatprep.subr.mxu0 0.0
        %7073 = vmatpush1.msra.mxu0 0.0
        %7074 = vmatprep.subr.mxu0 0.0
        %7075 = vmatpush1.msra.mxu0 0.0
        %7076 = vmatprep.subr.mxu0 0.0
        %7077 = vmatpush1.msra.mxu0 0.0
        %7078 = vmatprep.subr.mxu0 0.0
        %7079 = vmatpush1.msra.mxu0 0.0
        %7080 = vmatprep.subr.mxu0 0.0
        %7081 = vmatpush1.msra.mxu0 0.0
        %7082 = vmatprep.subr.mxu0 0.0
        %7083 = vmatpush1.msra.mxu0 0.0
        %7084 = vmatprep.subr.mxu0 0.0
        %7085 = vmatpush1.msra.mxu0 0.0
        %7086 = vmatprep.mubr.f32.mxu0 0.0
        %7087 = vmatmul.mubr.f32.gmra.mrb[0].mxu0 %v6736
        %v7088 = vpop.f32.mrb[0].mxu0
        %v7089 = vadd.f32 0.0, %v7088
        %v7090 = vpop.f32.mrb[0].mxu0
        %7091 = vdwg.mxu0
        %v7092 = vadd.f32 %v6685, %v6805
        %v7093 = vadd.f32 %v6686, %v6807
        %v7094 = vadd.f32 %v6687, %v6876
        %v7095 = vadd.f32 %v6688, %v6878
        %v7096 = vadd.f32 %v6689, %v6947
        %v7097 = vadd.f32 %v6690, %v6949
        %v7098 = vadd.f32 %v6691, %v7018
        %v7099 = vadd.f32 %v6692, %v7020
        %v7100 = vadd.f32 %v6693, %v7089
        %s7101 = scalar_lea.vmem %s2, 120
        %v7102 = vld [vmem:[%s7101] sm:$0xff]
        %7103 = vrot.lane.b32.xlu0 %v1385, 20
        %v7104 = vpop.permute.xlu0 %7103
        %7105 = vrot.lane.b32.xlu0 %v1386, 20
        %v7106 = vpop.permute.xlu0 %7105
        %7107 = vrot.lane.b32.xlu0 %v1387, 20
        %v7108 = vpop.permute.xlu0 %7107
        %7109 = vrot.lane.b32.xlu0 %v1388, 20
        %v7110 = vpop.permute.xlu0 %7109
        %7111 = vrot.lane.b32.xlu0 %v1389, 20
        %v7112 = vpop.permute.xlu0 %7111
        %7113 = vrot.lane.b32.xlu0 %v1390, 20
        %v7114 = vpop.permute.xlu0 %7113
        %7115 = vrot.lane.b32.xlu0 %v1391, 20
        %v7116 = vpop.permute.xlu0 %7115
        %7117 = vrot.lane.b32.xlu0 %v1392, 20
        %v7118 = vpop.permute.xlu0 %7117
        %7119 = vrot.lane.b32.xlu0 %v1393, 20
        %v7120 = vpop.permute.xlu0 %7119
        %7121 = vrot.lane.b32.xlu0 %v1394, 20
        %v7122 = vpop.permute.xlu0 %7121
        %vm7123 = vcmask 162816
        %v7124 = vsel %vm7123, %v7104, %v7106
        %v7125 = vsel %vm7123, %v7106, %v7108
        %v7126 = vsel %vm7123, %v7108, %v7110
        %v7127 = vsel %vm7123, %v7110, %v7112
        %v7128 = vsel %vm7123, %v7112, %v7114
        %v7129 = vsel %vm7123, %v7114, %v7116
        %v7130 = vsel %vm7123, %v7116, %v7118
        %v7131 = vsel %vm7123, %v7118, %v7120
        %v7132 = vsel %vm7123, %v7120, %v7122
        %v7143 = vsel %vm1016, %v7102, 0
        %7145 = vmatprep.subr.mxu0 %v7125
        %7146 = vmatpush1.msra.mxu0 %v7124
        %7147 = vmatprep.subr.mxu0 0.0
        %7148 = vmatpush1.msra.mxu0 0.0
        %7149 = vmatprep.subr.mxu0 0.0
        %7150 = vmatpush1.msra.mxu0 0.0
        %7151 = vmatprep.subr.mxu0 0.0
        %7152 = vmatpush1.msra.mxu0 0.0
        %7153 = vmatprep.subr.mxu0 0.0
        %7154 = vmatpush1.msra.mxu0 0.0
        %7155 = vmatprep.subr.mxu0 0.0
        %7156 = vmatpush1.msra.mxu0 0.0
        %7157 = vmatprep.subr.mxu0 0.0
        %7158 = vmatpush1.msra.mxu0 0.0
        %7159 = vmatprep.subr.mxu0 0.0
        %7160 = vmatpush1.msra.mxu0 0.0
        %7161 = vmatprep.subr.mxu0 0.0
        %7162 = vmatpush1.msra.mxu0 0.0
        %7163 = vmatprep.subr.mxu0 0.0
        %7164 = vmatpush1.msra.mxu0 0.0
        %7165 = vmatprep.subr.mxu0 0.0
        %7166 = vmatpush1.msra.mxu0 0.0
        %7167 = vmatprep.subr.mxu0 0.0
        %7168 = vmatpush1.msra.mxu0 0.0
        %7169 = vmatprep.subr.mxu0 0.0
        %7170 = vmatpush1.msra.mxu0 0.0
        %7171 = vmatprep.subr.mxu0 0.0
        %7172 = vmatpush1.msra.mxu0 0.0
        %7173 = vmatprep.subr.mxu0 0.0
        %7174 = vmatpush1.msra.mxu0 0.0
        %7175 = vmatprep.subr.mxu0 0.0
        %7176 = vmatpush1.msra.mxu0 0.0
        %7177 = vmatprep.subr.mxu0 0.0
        %7178 = vmatpush1.msra.mxu0 0.0
        %7179 = vmatprep.subr.mxu0 0.0
        %7180 = vmatpush1.msra.mxu0 0.0
        %7181 = vmatprep.subr.mxu0 0.0
        %7182 = vmatpush1.msra.mxu0 0.0
        %7183 = vmatprep.subr.mxu0 0.0
        %7184 = vmatpush1.msra.mxu0 0.0
        %7185 = vmatprep.subr.mxu0 0.0
        %7186 = vmatpush1.msra.mxu0 0.0
        %7187 = vmatprep.subr.mxu0 0.0
        %7188 = vmatpush1.msra.mxu0 0.0
        %7189 = vmatprep.subr.mxu0 0.0
        %7190 = vmatpush1.msra.mxu0 0.0
        %7191 = vmatprep.subr.mxu0 0.0
        %7192 = vmatpush1.msra.mxu0 0.0
        %7193 = vmatprep.subr.mxu0 0.0
        %7194 = vmatpush1.msra.mxu0 0.0
        %7195 = vmatprep.subr.mxu0 0.0
        %7196 = vmatpush1.msra.mxu0 0.0
        %7197 = vmatprep.subr.mxu0 0.0
        %7198 = vmatpush1.msra.mxu0 0.0
        %7199 = vmatprep.subr.mxu0 0.0
        %7200 = vmatpush1.msra.mxu0 0.0
        %7201 = vmatprep.subr.mxu0 0.0
        %7202 = vmatpush1.msra.mxu0 0.0
        %7203 = vmatprep.subr.mxu0 0.0
        %7204 = vmatpush1.msra.mxu0 0.0
        %7205 = vmatprep.subr.mxu0 0.0
        %7206 = vmatpush1.msra.mxu0 0.0
        %7207 = vmatprep.subr.mxu0 0.0
        %7208 = vmatpush1.msra.mxu0 0.0
        %7209 = vmatprep.mubr.f32.mxu0 0.0
        %7210 = vmatmul.mubr.f32.gmra.mrb[0].mxu0 %v7143
        %v7211 = vpop.f32.mrb[0].mxu0
        %v7212 = vadd.f32 0.0, %v7211
        %v7213 = vpop.f32.mrb[0].mxu0
        %v7214 = vadd.f32 0.0, %v7213
        %7215 = vdwg.mxu0
        %7216 = vmatprep.subr.mxu0 %v7127
        %7217 = vmatpush1.msra.mxu0 %v7126
        %7218 = vmatprep.subr.mxu0 0.0
        %7219 = vmatpush1.msra.mxu0 0.0
        %7220 = vmatprep.subr.mxu0 0.0
        %7221 = vmatpush1.msra.mxu0 0.0
        %7222 = vmatprep.subr.mxu0 0.0
        %7223 = vmatpush1.msra.mxu0 0.0
        %7224 = vmatprep.subr.mxu0 0.0
        %7225 = vmatpush1.msra.mxu0 0.0
        %7226 = vmatprep.subr.mxu0 0.0
        %7227 = vmatpush1.msra.mxu0 0.0
        %7228 = vmatprep.subr.mxu0 0.0
        %7229 = vmatpush1.msra.mxu0 0.0
        %7230 = vmatprep.subr.mxu0 0.0
        %7231 = vmatpush1.msra.mxu0 0.0
        %7232 = vmatprep.subr.mxu0 0.0
        %7233 = vmatpush1.msra.mxu0 0.0
        %7234 = vmatprep.subr.mxu0 0.0
        %7235 = vmatpush1.msra.mxu0 0.0
        %7236 = vmatprep.subr.mxu0 0.0
        %7237 = vmatpush1.msra.mxu0 0.0
        %7238 = vmatprep.subr.mxu0 0.0
        %7239 = vmatpush1.msra.mxu0 0.0
        %7240 = vmatprep.subr.mxu0 0.0
        %7241 = vmatpush1.msra.mxu0 0.0
        %7242 = vmatprep.subr.mxu0 0.0
        %7243 = vmatpush1.msra.mxu0 0.0
        %7244 = vmatprep.subr.mxu0 0.0
        %7245 = vmatpush1.msra.mxu0 0.0
        %7246 = vmatprep.subr.mxu0 0.0
        %7247 = vmatpush1.msra.mxu0 0.0
        %7248 = vmatprep.subr.mxu0 0.0
        %7249 = vmatpush1.msra.mxu0 0.0
        %7250 = vmatprep.subr.mxu0 0.0
        %7251 = vmatpush1.msra.mxu0 0.0
        %7252 = vmatprep.subr.mxu0 0.0
        %7253 = vmatpush1.msra.mxu0 0.0
        %7254 = vmatprep.subr.mxu0 0.0
        %7255 = vmatpush1.msra.mxu0 0.0
        %7256 = vmatprep.subr.mxu0 0.0
        %7257 = vmatpush1.msra.mxu0 0.0
        %7258 = vmatprep.subr.mxu0 0.0
        %7259 = vmatpush1.msra.mxu0 0.0
        %7260 = vmatprep.subr.mxu0 0.0
        %7261 = vmatpush1.msra.mxu0 0.0
        %7262 = vmatprep.subr.mxu0 0.0
        %7263 = vmatpush1.msra.mxu0 0.0
        %7264 = vmatprep.subr.mxu0 0.0
        %7265 = vmatpush1.msra.mxu0 0.0
        %7266 = vmatprep.subr.mxu0 0.0
        %7267 = vmatpush1.msra.mxu0 0.0
        %7268 = vmatprep.subr.mxu0 0.0
        %7269 = vmatpush1.msra.mxu0 0.0
        %7270 = vmatprep.subr.mxu0 0.0
        %7271 = vmatpush1.msra.mxu0 0.0
        %7272 = vmatprep.subr.mxu0 0.0
        %7273 = vmatpush1.msra.mxu0 0.0
        %7274 = vmatprep.subr.mxu0 0.0
        %7275 = vmatpush1.msra.mxu0 0.0
        %7276 = vmatprep.subr.mxu0 0.0
        %7277 = vmatpush1.msra.mxu0 0.0
        %7278 = vmatprep.subr.mxu0 0.0
        %7279 = vmatpush1.msra.mxu0 0.0
        %7280 = vmatprep.mubr.f32.mxu0 0.0
        %7281 = vmatmul.mubr.f32.gmra.mrb[0].mxu0 %v7143
        %v7282 = vpop.f32.mrb[0].mxu0
        %v7283 = vadd.f32 0.0, %v7282
        %v7284 = vpop.f32.mrb[0].mxu0
        %v7285 = vadd.f32 0.0, %v7284
        %7286 = vdwg.mxu0
        %7287 = vmatprep.subr.mxu0 %v7129
        %7288 = vmatpush1.msra.mxu0 %v7128
        %7289 = vmatprep.subr.mxu0 0.0
        %7290 = vmatpush1.msra.mxu0 0.0
        %7291 = vmatprep.subr.mxu0 0.0
        %7292 = vmatpush1.msra.mxu0 0.0
        %7293 = vmatprep.subr.mxu0 0.0
        %7294 = vmatpush1.msra.mxu0 0.0
        %7295 = vmatprep.subr.mxu0 0.0
        %7296 = vmatpush1.msra.mxu0 0.0
        %7297 = vmatprep.subr.mxu0 0.0
        %7298 = vmatpush1.msra.mxu0 0.0
        %7299 = vmatprep.subr.mxu0 0.0
        %7300 = vmatpush1.msra.mxu0 0.0
        %7301 = vmatprep.subr.mxu0 0.0
        %7302 = vmatpush1.msra.mxu0 0.0
        %7303 = vmatprep.subr.mxu0 0.0
        %7304 = vmatpush1.msra.mxu0 0.0
        %7305 = vmatprep.subr.mxu0 0.0
        %7306 = vmatpush1.msra.mxu0 0.0
        %7307 = vmatprep.subr.mxu0 0.0
        %7308 = vmatpush1.msra.mxu0 0.0
        %7309 = vmatprep.subr.mxu0 0.0
        %7310 = vmatpush1.msra.mxu0 0.0
        %7311 = vmatprep.subr.mxu0 0.0
        %7312 = vmatpush1.msra.mxu0 0.0
        %7313 = vmatprep.subr.mxu0 0.0
        %7314 = vmatpush1.msra.mxu0 0.0
        %7315 = vmatprep.subr.mxu0 0.0
        %7316 = vmatpush1.msra.mxu0 0.0
        %7317 = vmatprep.subr.mxu0 0.0
        %7318 = vmatpush1.msra.mxu0 0.0
        %7319 = vmatprep.subr.mxu0 0.0
        %7320 = vmatpush1.msra.mxu0 0.0
        %7321 = vmatprep.subr.mxu0 0.0
        %7322 = vmatpush1.msra.mxu0 0.0
        %7323 = vmatprep.subr.mxu0 0.0
        %7324 = vmatpush1.msra.mxu0 0.0
        %7325 = vmatprep.subr.mxu0 0.0
        %7326 = vmatpush1.msra.mxu0 0.0
        %7327 = vmatprep.subr.mxu0 0.0
        %7328 = vmatpush1.msra.mxu0 0.0
        %7329 = vmatprep.subr.mxu0 0.0
        %7330 = vmatpush1.msra.mxu0 0.0
        %7331 = vmatprep.subr.mxu0 0.0
        %7332 = vmatpush1.msra.mxu0 0.0
        %7333 = vmatprep.subr.mxu0 0.0
        %7334 = vmatpush1.msra.mxu0 0.0
        %7335 = vmatprep.subr.mxu0 0.0
        %7336 = vmatpush1.msra.mxu0 0.0
        %7337 = vmatprep.subr.mxu0 0.0
        %7338 = vmatpush1.msra.mxu0 0.0
        %7339 = vmatprep.subr.mxu0 0.0
        %7340 = vmatpush1.msra.mxu0 0.0
        %7341 = vmatprep.subr.mxu0 0.0
        %7342 = vmatpush1.msra.mxu0 0.0
        %7343 = vmatprep.subr.mxu0 0.0
        %7344 = vmatpush1.msra.mxu0 0.0
        %7345 = vmatprep.subr.mxu0 0.0
        %7346 = vmatpush1.msra.mxu0 0.0
        %7347 = vmatprep.subr.mxu0 0.0
        %7348 = vmatpush1.msra.mxu0 0.0
        %7349 = vmatprep.subr.mxu0 0.0
        %7350 = vmatpush1.msra.mxu0 0.0
        %7351 = vmatprep.mubr.f32.mxu0 0.0
        %7352 = vmatmul.mubr.f32.gmra.mrb[0].mxu0 %v7143
        %v7353 = vpop.f32.mrb[0].mxu0
        %v7354 = vadd.f32 0.0, %v7353
        %v7355 = vpop.f32.mrb[0].mxu0
        %v7356 = vadd.f32 0.0, %v7355
        %7357 = vdwg.mxu0
        %7358 = vmatprep.subr.mxu0 %v7131
        %7359 = vmatpush1.msra.mxu0 %v7130
        %7360 = vmatprep.subr.mxu0 0.0
        %7361 = vmatpush1.msra.mxu0 0.0
        %7362 = vmatprep.subr.mxu0 0.0
        %7363 = vmatpush1.msra.mxu0 0.0
        %7364 = vmatprep.subr.mxu0 0.0
        %7365 = vmatpush1.msra.mxu0 0.0
        %7366 = vmatprep.subr.mxu0 0.0
        %7367 = vmatpush1.msra.mxu0 0.0
        %7368 = vmatprep.subr.mxu0 0.0
        %7369 = vmatpush1.msra.mxu0 0.0
        %7370 = vmatprep.subr.mxu0 0.0
        %7371 = vmatpush1.msra.mxu0 0.0
        %7372 = vmatprep.subr.mxu0 0.0
        %7373 = vmatpush1.msra.mxu0 0.0
        %7374 = vmatprep.subr.mxu0 0.0
        %7375 = vmatpush1.msra.mxu0 0.0
        %7376 = vmatprep.subr.mxu0 0.0
        %7377 = vmatpush1.msra.mxu0 0.0
        %7378 = vmatprep.subr.mxu0 0.0
        %7379 = vmatpush1.msra.mxu0 0.0
        %7380 = vmatprep.subr.mxu0 0.0
        %7381 = vmatpush1.msra.mxu0 0.0
        %7382 = vmatprep.subr.mxu0 0.0
        %7383 = vmatpush1.msra.mxu0 0.0
        %7384 = vmatprep.subr.mxu0 0.0
        %7385 = vmatpush1.msra.mxu0 0.0
        %7386 = vmatprep.subr.mxu0 0.0
        %7387 = vmatpush1.msra.mxu0 0.0
        %7388 = vmatprep.subr.mxu0 0.0
        %7389 = vmatpush1.msra.mxu0 0.0
        %7390 = vmatprep.subr.mxu0 0.0
        %7391 = vmatpush1.msra.mxu0 0.0
        %7392 = vmatprep.subr.mxu0 0.0
        %7393 = vmatpush1.msra.mxu0 0.0
        %7394 = vmatprep.subr.mxu0 0.0
        %7395 = vmatpush1.msra.mxu0 0.0
        %7396 = vmatprep.subr.mxu0 0.0
        %7397 = vmatpush1.msra.mxu0 0.0
        %7398 = vmatprep.subr.mxu0 0.0
        %7399 = vmatpush1.msra.mxu0 0.0
        %7400 = vmatprep.subr.mxu0 0.0
        %7401 = vmatpush1.msra.mxu0 0.0
        %7402 = vmatprep.subr.mxu0 0.0
        %7403 = vmatpush1.msra.mxu0 0.0
        %7404 = vmatprep.subr.mxu0 0.0
        %7405 = vmatpush1.msra.mxu0 0.0
        %7406 = vmatprep.subr.mxu0 0.0
        %7407 = vmatpush1.msra.mxu0 0.0
        %7408 = vmatprep.subr.mxu0 0.0
        %7409 = vmatpush1.msra.mxu0 0.0
        %7410 = vmatprep.subr.mxu0 0.0
        %7411 = vmatpush1.msra.mxu0 0.0
        %7412 = vmatprep.subr.mxu0 0.0
        %7413 = vmatpush1.msra.mxu0 0.0
        %7414 = vmatprep.subr.mxu0 0.0
        %7415 = vmatpush1.msra.mxu0 0.0
        %7416 = vmatprep.subr.mxu0 0.0
        %7417 = vmatpush1.msra.mxu0 0.0
        %7418 = vmatprep.subr.mxu0 0.0
        %7419 = vmatpush1.msra.mxu0 0.0
        %7420 = vmatprep.subr.mxu0 0.0
        %7421 = vmatpush1.msra.mxu0 0.0
        %7422 = vmatprep.mubr.f32.mxu0 0.0
        %7423 = vmatmul.mubr.f32.gmra.mrb[0].mxu0 %v7143
        %v7424 = vpop.f32.mrb[0].mxu0
        %v7425 = vadd.f32 0.0, %v7424
        %v7426 = vpop.f32.mrb[0].mxu0
        %v7427 = vadd.f32 0.0, %v7426
        %7428 = vdwg.mxu0
        %7429 = vmatprep.subr.mxu0 0.0
        %7430 = vmatpush1.msra.mxu0 %v7132
        %7431 = vmatprep.subr.mxu0 0.0
        %7432 = vmatpush1.msra.mxu0 0.0
        %7433 = vmatprep.subr.mxu0 0.0
        %7434 = vmatpush1.msra.mxu0 0.0
        %7435 = vmatprep.subr.mxu0 0.0
        %7436 = vmatpush1.msra.mxu0 0.0
        %7437 = vmatprep.subr.mxu0 0.0
        %7438 = vmatpush1.msra.mxu0 0.0
        %7439 = vmatprep.subr.mxu0 0.0
        %7440 = vmatpush1.msra.mxu0 0.0
        %7441 = vmatprep.subr.mxu0 0.0
        %7442 = vmatpush1.msra.mxu0 0.0
        %7443 = vmatprep.subr.mxu0 0.0
        %7444 = vmatpush1.msra.mxu0 0.0
        %7445 = vmatprep.subr.mxu0 0.0
        %7446 = vmatpush1.msra.mxu0 0.0
        %7447 = vmatprep.subr.mxu0 0.0
        %7448 = vmatpush1.msra.mxu0 0.0
        %7449 = vmatprep.subr.mxu0 0.0
        %7450 = vmatpush1.msra.mxu0 0.0
        %7451 = vmatprep.subr.mxu0 0.0
        %7452 = vmatpush1.msra.mxu0 0.0
        %7453 = vmatprep.subr.mxu0 0.0
        %7454 = vmatpush1.msra.mxu0 0.0
        %7455 = vmatprep.subr.mxu0 0.0
        %7456 = vmatpush1.msra.mxu0 0.0
        %7457 = vmatprep.subr.mxu0 0.0
        %7458 = vmatpush1.msra.mxu0 0.0
        %7459 = vmatprep.subr.mxu0 0.0
        %7460 = vmatpush1.msra.mxu0 0.0
        %7461 = vmatprep.subr.mxu0 0.0
        %7462 = vmatpush1.msra.mxu0 0.0
        %7463 = vmatprep.subr.mxu0 0.0
        %7464 = vmatpush1.msra.mxu0 0.0
        %7465 = vmatprep.subr.mxu0 0.0
        %7466 = vmatpush1.msra.mxu0 0.0
        %7467 = vmatprep.subr.mxu0 0.0
        %7468 = vmatpush1.msra.mxu0 0.0
        %7469 = vmatprep.subr.mxu0 0.0
        %7470 = vmatpush1.msra.mxu0 0.0
        %7471 = vmatprep.subr.mxu0 0.0
        %7472 = vmatpush1.msra.mxu0 0.0
        %7473 = vmatprep.subr.mxu0 0.0
        %7474 = vmatpush1.msra.mxu0 0.0
        %7475 = vmatprep.subr.mxu0 0.0
        %7476 = vmatpush1.msra.mxu0 0.0
        %7477 = vmatprep.subr.mxu0 0.0
        %7478 = vmatpush1.msra.mxu0 0.0
        %7479 = vmatprep.subr.mxu0 0.0
        %7480 = vmatpush1.msra.mxu0 0.0
        %7481 = vmatprep.subr.mxu0 0.0
        %7482 = vmatpush1.msra.mxu0 0.0
        %7483 = vmatprep.subr.mxu0 0.0
        %7484 = vmatpush1.msra.mxu0 0.0
        %7485 = vmatprep.subr.mxu0 0.0
        %7486 = vmatpush1.msra.mxu0 0.0
        %7487 = vmatprep.subr.mxu0 0.0
        %7488 = vmatpush1.msra.mxu0 0.0
        %7489 = vmatprep.subr.mxu0 0.0
        %7490 = vmatpush1.msra.mxu0 0.0
        %7491 = vmatprep.subr.mxu0 0.0
        %7492 = vmatpush1.msra.mxu0 0.0
        %7493 = vmatprep.mubr.f32.mxu0 0.0
        %7494 = vmatmul.mubr.f32.gmra.mrb[0].mxu0 %v7143
        %v7495 = vpop.f32.mrb[0].mxu0
        %v7496 = vadd.f32 0.0, %v7495
        %v7497 = vpop.f32.mrb[0].mxu0
        %7498 = vdwg.mxu0
        %v7499 = vadd.f32 %v7092, %v7212
        %v7500 = vadd.f32 %v7093, %v7214
        %v7501 = vadd.f32 %v7094, %v7283
        %v7502 = vadd.f32 %v7095, %v7285
        %v7503 = vadd.f32 %v7096, %v7354
        %v7504 = vadd.f32 %v7097, %v7356
        %v7505 = vadd.f32 %v7098, %v7425
        %v7506 = vadd.f32 %v7099, %v7427
        %v7507 = vadd.f32 %v7100, %v7496
        %s7508 = scalar_lea.vmem %s2, 128
        %v7509 = vld [vmem:[%s7508] sm:$0xff]
        %7510 = vrot.lane.b32.xlu0 %v1385, 19
        %v7511 = vpop.permute.xlu0 %7510
        %7512 = vrot.lane.b32.xlu0 %v1386, 19
        %v7513 = vpop.permute.xlu0 %7512
        %7514 = vrot.lane.b32.xlu0 %v1387, 19
        %v7515 = vpop.permute.xlu0 %7514
        %7516 = vrot.lane.b32.xlu0 %v1388, 19
        %v7517 = vpop.permute.xlu0 %7516
        %7518 = vrot.lane.b32.xlu0 %v1389, 19
        %v7519 = vpop.permute.xlu0 %7518
        %7520 = vrot.lane.b32.xlu0 %v1390, 19
        %v7521 = vpop.permute.xlu0 %7520
        %7522 = vrot.lane.b32.xlu0 %v1391, 19
        %v7523 = vpop.permute.xlu0 %7522
        %7524 = vrot.lane.b32.xlu0 %v1392, 19
        %v7525 = vpop.permute.xlu0 %7524
        %7526 = vrot.lane.b32.xlu0 %v1393, 19
        %v7527 = vpop.permute.xlu0 %7526
        %7528 = vrot.lane.b32.xlu0 %v1394, 19
        %v7529 = vpop.permute.xlu0 %7528
        %vm7530 = vcmask 154624
        %v7531 = vsel %vm7530, %v7511, %v7513
        %v7532 = vsel %vm7530, %v7513, %v7515
        %v7533 = vsel %vm7530, %v7515, %v7517
        %v7534 = vsel %vm7530, %v7517, %v7519
        %v7535 = vsel %vm7530, %v7519, %v7521
        %v7536 = vsel %vm7530, %v7521, %v7523
        %v7537 = vsel %vm7530, %v7523, %v7525
        %v7538 = vsel %vm7530, %v7525, %v7527
        %v7539 = vsel %vm7530, %v7527, %v7529
        %v7550 = vsel %vm1016, %v7509, 0
        %7552 = vmatprep.subr.mxu0 %v7532
        %7553 = vmatpush1.msra.mxu0 %v7531
        %7554 = vmatprep.subr.mxu0 0.0
        %7555 = vmatpush1.msra.mxu0 0.0
        %7556 = vmatprep.subr.mxu0 0.0
        %7557 = vmatpush1.msra.mxu0 0.0
        %7558 = vmatprep.subr.mxu0 0.0
        %7559 = vmatpush1.msra.mxu0 0.0
        %7560 = vmatprep.subr.mxu0 0.0
        %7561 = vmatpush1.msra.mxu0 0.0
        %7562 = vmatprep.subr.mxu0 0.0
        %7563 = vmatpush1.msra.mxu0 0.0
        %7564 = vmatprep.subr.mxu0 0.0
        %7565 = vmatpush1.msra.mxu0 0.0
        %7566 = vmatprep.subr.mxu0 0.0
        %7567 = vmatpush1.msra.mxu0 0.0
        %7568 = vmatprep.subr.mxu0 0.0
        %7569 = vmatpush1.msra.mxu0 0.0
        %7570 = vmatprep.subr.mxu0 0.0
        %7571 = vmatpush1.msra.mxu0 0.0
        %7572 = vmatprep.subr.mxu0 0.0
        %7573 = vmatpush1.msra.mxu0 0.0
        %7574 = vmatprep.subr.mxu0 0.0
        %7575 = vmatpush1.msra.mxu0 0.0
        %7576 = vmatprep.subr.mxu0 0.0
        %7577 = vmatpush1.msra.mxu0 0.0
        %7578 = vmatprep.subr.mxu0 0.0
        %7579 = vmatpush1.msra.mxu0 0.0
        %7580 = vmatprep.subr.mxu0 0.0
        %7581 = vmatpush1.msra.mxu0 0.0
        %7582 = vmatprep.subr.mxu0 0.0
        %7583 = vmatpush1.msra.mxu0 0.0
        %7584 = vmatprep.subr.mxu0 0.0
        %7585 = vmatpush1.msra.mxu0 0.0
        %7586 = vmatprep.subr.mxu0 0.0
        %7587 = vmatpush1.msra.mxu0 0.0
        %7588 = vmatprep.subr.mxu0 0.0
        %7589 = vmatpush1.msra.mxu0 0.0
        %7590 = vmatprep.subr.mxu0 0.0
        %7591 = vmatpush1.msra.mxu0 0.0
        %7592 = vmatprep.subr.mxu0 0.0
        %7593 = vmatpush1.msra.mxu0 0.0
        %7594 = vmatprep.subr.mxu0 0.0
        %7595 = vmatpush1.msra.mxu0 0.0
        %7596 = vmatprep.subr.mxu0 0.0
        %7597 = vmatpush1.msra.mxu0 0.0
        %7598 = vmatprep.subr.mxu0 0.0
        %7599 = vmatpush1.msra.mxu0 0.0
        %7600 = vmatprep.subr.mxu0 0.0
        %7601 = vmatpush1.msra.mxu0 0.0
        %7602 = vmatprep.subr.mxu0 0.0
        %7603 = vmatpush1.msra.mxu0 0.0
        %7604 = vmatprep.subr.mxu0 0.0
        %7605 = vmatpush1.msra.mxu0 0.0
        %7606 = vmatprep.subr.mxu0 0.0
        %7607 = vmatpush1.msra.mxu0 0.0
        %7608 = vmatprep.subr.mxu0 0.0
        %7609 = vmatpush1.msra.mxu0 0.0
        %7610 = vmatprep.subr.mxu0 0.0
        %7611 = vmatpush1.msra.mxu0 0.0
        %7612 = vmatprep.subr.mxu0 0.0
        %7613 = vmatpush1.msra.mxu0 0.0
        %7614 = vmatprep.subr.mxu0 0.0
        %7615 = vmatpush1.msra.mxu0 0.0
        %7616 = vmatprep.mubr.f32.mxu0 0.0
        %7617 = vmatmul.mubr.f32.gmra.mrb[0].mxu0 %v7550
        %v7618 = vpop.f32.mrb[0].mxu0
        %v7619 = vadd.f32 0.0, %v7618
        %v7620 = vpop.f32.mrb[0].mxu0
        %v7621 = vadd.f32 0.0, %v7620
        %7622 = vdwg.mxu0
        %7623 = vmatprep.subr.mxu0 %v7534
        %7624 = vmatpush1.msra.mxu0 %v7533
        %7625 = vmatprep.subr.mxu0 0.0
        %7626 = vmatpush1.msra.mxu0 0.0
        %7627 = vmatprep.subr.mxu0 0.0
        %7628 = vmatpush1.msra.mxu0 0.0
        %7629 = vmatprep.subr.mxu0 0.0
        %7630 = vmatpush1.msra.mxu0 0.0
        %7631 = vmatprep.subr.mxu0 0.0
        %7632 = vmatpush1.msra.mxu0 0.0
        %7633 = vmatprep.subr.mxu0 0.0
        %7634 = vmatpush1.msra.mxu0 0.0
        %7635 = vmatprep.subr.mxu0 0.0
        %7636 = vmatpush1.msra.mxu0 0.0
        %7637 = vmatprep.subr.mxu0 0.0
        %7638 = vmatpush1.msra.mxu0 0.0
        %7639 = vmatprep.subr.mxu0 0.0
        %7640 = vmatpush1.msra.mxu0 0.0
        %7641 = vmatprep.subr.mxu0 0.0
        %7642 = vmatpush1.msra.mxu0 0.0
        %7643 = vmatprep.subr.mxu0 0.0
        %7644 = vmatpush1.msra.mxu0 0.0
        %7645 = vmatprep.subr.mxu0 0.0
        %7646 = vmatpush1.msra.mxu0 0.0
        %7647 = vmatprep.subr.mxu0 0.0
        %7648 = vmatpush1.msra.mxu0 0.0
        %7649 = vmatprep.subr.mxu0 0.0
        %7650 = vmatpush1.msra.mxu0 0.0
        %7651 = vmatprep.subr.mxu0 0.0
        %7652 = vmatpush1.msra.mxu0 0.0
        %7653 = vmatprep.subr.mxu0 0.0
        %7654 = vmatpush1.msra.mxu0 0.0
        %7655 = vmatprep.subr.mxu0 0.0
        %7656 = vmatpush1.msra.mxu0 0.0
        %7657 = vmatprep.subr.mxu0 0.0
        %7658 = vmatpush1.msra.mxu0 0.0
        %7659 = vmatprep.subr.mxu0 0.0
        %7660 = vmatpush1.msra.mxu0 0.0
        %7661 = vmatprep.subr.mxu0 0.0
        %7662 = vmatpush1.msra.mxu0 0.0
        %7663 = vmatprep.subr.mxu0 0.0
        %7664 = vmatpush1.msra.mxu0 0.0
        %7665 = vmatprep.subr.mxu0 0.0
        %7666 = vmatpush1.msra.mxu0 0.0
        %7667 = vmatprep.subr.mxu0 0.0
        %7668 = vmatpush1.msra.mxu0 0.0
        %7669 = vmatprep.subr.mxu0 0.0
        %7670 = vmatpush1.msra.mxu0 0.0
        %7671 = vmatprep.subr.mxu0 0.0
        %7672 = vmatpush1.msra.mxu0 0.0
        %7673 = vmatprep.subr.mxu0 0.0
        %7674 = vmatpush1.msra.mxu0 0.0
        %7675 = vmatprep.subr.mxu0 0.0
        %7676 = vmatpush1.msra.mxu0 0.0
        %7677 = vmatprep.subr.mxu0 0.0
        %7678 = vmatpush1.msra.mxu0 0.0
        %7679 = vmatprep.subr.mxu0 0.0
        %7680 = vmatpush1.msra.mxu0 0.0
        %7681 = vmatprep.subr.mxu0 0.0
        %7682 = vmatpush1.msra.mxu0 0.0
        %7683 = vmatprep.subr.mxu0 0.0
        %7684 = vmatpush1.msra.mxu0 0.0
        %7685 = vmatprep.subr.mxu0 0.0
        %7686 = vmatpush1.msra.mxu0 0.0
        %7687 = vmatprep.mubr.f32.mxu0 0.0
        %7688 = vmatmul.mubr.f32.gmra.mrb[0].mxu0 %v7550
        %v7689 = vpop.f32.mrb[0].mxu0
        %v7690 = vadd.f32 0.0, %v7689
        %v7691 = vpop.f32.mrb[0].mxu0
        %v7692 = vadd.f32 0.0, %v7691
        %7693 = vdwg.mxu0
        %7694 = vmatprep.subr.mxu0 %v7536
        %7695 = vmatpush1.msra.mxu0 %v7535
        %7696 = vmatprep.subr.mxu0 0.0
        %7697 = vmatpush1.msra.mxu0 0.0
        %7698 = vmatprep.subr.mxu0 0.0
        %7699 = vmatpush1.msra.mxu0 0.0
        %7700 = vmatprep.subr.mxu0 0.0
        %7701 = vmatpush1.msra.mxu0 0.0
        %7702 = vmatprep.subr.mxu0 0.0
        %7703 = vmatpush1.msra.mxu0 0.0
        %7704 = vmatprep.subr.mxu0 0.0
        %7705 = vmatpush1.msra.mxu0 0.0
        %7706 = vmatprep.subr.mxu0 0.0
        %7707 = vmatpush1.msra.mxu0 0.0
        %7708 = vmatprep.subr.mxu0 0.0
        %7709 = vmatpush1.msra.mxu0 0.0
        %7710 = vmatprep.subr.mxu0 0.0
        %7711 = vmatpush1.msra.mxu0 0.0
        %7712 = vmatprep.subr.mxu0 0.0
        %7713 = vmatpush1.msra.mxu0 0.0
        %7714 = vmatprep.subr.mxu0 0.0
        %7715 = vmatpush1.msra.mxu0 0.0
        %7716 = vmatprep.subr.mxu0 0.0
        %7717 = vmatpush1.msra.mxu0 0.0
        %7718 = vmatprep.subr.mxu0 0.0
        %7719 = vmatpush1.msra.mxu0 0.0
        %7720 = vmatprep.subr.mxu0 0.0
        %7721 = vmatpush1.msra.mxu0 0.0
        %7722 = vmatprep.subr.mxu0 0.0
        %7723 = vmatpush1.msra.mxu0 0.0
        %7724 = vmatprep.subr.mxu0 0.0
        %7725 = vmatpush1.msra.mxu0 0.0
        %7726 = vmatprep.subr.mxu0 0.0
        %7727 = vmatpush1.msra.mxu0 0.0
        %7728 = vmatprep.subr.mxu0 0.0
        %7729 = vmatpush1.msra.mxu0 0.0
        %7730 = vmatprep.subr.mxu0 0.0
        %7731 = vmatpush1.msra.mxu0 0.0
        %7732 = vmatprep.subr.mxu0 0.0
        %7733 = vmatpush1.msra.mxu0 0.0
        %7734 = vmatprep.subr.mxu0 0.0
        %7735 = vmatpush1.msra.mxu0 0.0
        %7736 = vmatprep.subr.mxu0 0.0
        %7737 = vmatpush1.msra.mxu0 0.0
        %7738 = vmatprep.subr.mxu0 0.0
        %7739 = vmatpush1.msra.mxu0 0.0
        %7740 = vmatprep.subr.mxu0 0.0
        %7741 = vmatpush1.msra.mxu0 0.0
        %7742 = vmatprep.subr.mxu0 0.0
        %7743 = vmatpush1.msra.mxu0 0.0
        %7744 = vmatprep.subr.mxu0 0.0
        %7745 = vmatpush1.msra.mxu0 0.0
        %7746 = vmatprep.subr.mxu0 0.0
        %7747 = vmatpush1.msra.mxu0 0.0
        %7748 = vmatprep.subr.mxu0 0.0
        %7749 = vmatpush1.msra.mxu0 0.0
        %7750 = vmatprep.subr.mxu0 0.0
        %7751 = vmatpush1.msra.mxu0 0.0
        %7752 = vmatprep.subr.mxu0 0.0
        %7753 = vmatpush1.msra.mxu0 0.0
        %7754 = vmatprep.subr.mxu0 0.0
        %7755 = vmatpush1.msra.mxu0 0.0
        %7756 = vmatprep.subr.mxu0 0.0
        %7757 = vmatpush1.msra.mxu0 0.0
        %7758 = vmatprep.mubr.f32.mxu0 0.0
        %7759 = vmatmul.mubr.f32.gmra.mrb[0].mxu0 %v7550
        %v7760 = vpop.f32.mrb[0].mxu0
        %v7761 = vadd.f32 0.0, %v7760
        %v7762 = vpop.f32.mrb[0].mxu0
        %v7763 = vadd.f32 0.0, %v7762
        %7764 = vdwg.mxu0
        %7765 = vmatprep.subr.mxu0 %v7538
        %7766 = vmatpush1.msra.mxu0 %v7537
        %7767 = vmatprep.subr.mxu0 0.0
        %7768 = vmatpush1.msra.mxu0 0.0
        %7769 = vmatprep.subr.mxu0 0.0
        %7770 = vmatpush1.msra.mxu0 0.0
        %7771 = vmatprep.subr.mxu0 0.0
        %7772 = vmatpush1.msra.mxu0 0.0
        %7773 = vmatprep.subr.mxu0 0.0
        %7774 = vmatpush1.msra.mxu0 0.0
        %7775 = vmatprep.subr.mxu0 0.0
        %7776 = vmatpush1.msra.mxu0 0.0
        %7777 = vmatprep.subr.mxu0 0.0
        %7778 = vmatpush1.msra.mxu0 0.0
        %7779 = vmatprep.subr.mxu0 0.0
        %7780 = vmatpush1.msra.mxu0 0.0
        %7781 = vmatprep.subr.mxu0 0.0
        %7782 = vmatpush1.msra.mxu0 0.0
        %7783 = vmatprep.subr.mxu0 0.0
        %7784 = vmatpush1.msra.mxu0 0.0
        %7785 = vmatprep.subr.mxu0 0.0
        %7786 = vmatpush1.msra.mxu0 0.0
        %7787 = vmatprep.subr.mxu0 0.0
        %7788 = vmatpush1.msra.mxu0 0.0
        %7789 = vmatprep.subr.mxu0 0.0
        %7790 = vmatpush1.msra.mxu0 0.0
        %7791 = vmatprep.subr.mxu0 0.0
        %7792 = vmatpush1.msra.mxu0 0.0
        %7793 = vmatprep.subr.mxu0 0.0
        %7794 = vmatpush1.msra.mxu0 0.0
        %7795 = vmatprep.subr.mxu0 0.0
        %7796 = vmatpush1.msra.mxu0 0.0
        %7797 = vmatprep.subr.mxu0 0.0
        %7798 = vmatpush1.msra.mxu0 0.0
        %7799 = vmatprep.subr.mxu0 0.0
        %7800 = vmatpush1.msra.mxu0 0.0
        %7801 = vmatprep.subr.mxu0 0.0
        %7802 = vmatpush1.msra.mxu0 0.0
        %7803 = vmatprep.subr.mxu0 0.0
        %7804 = vmatpush1.msra.mxu0 0.0
        %7805 = vmatprep.subr.mxu0 0.0
        %7806 = vmatpush1.msra.mxu0 0.0
        %7807 = vmatprep.subr.mxu0 0.0
        %7808 = vmatpush1.msra.mxu0 0.0
        %7809 = vmatprep.subr.mxu0 0.0
        %7810 = vmatpush1.msra.mxu0 0.0
        %7811 = vmatprep.subr.mxu0 0.0
        %7812 = vmatpush1.msra.mxu0 0.0
        %7813 = vmatprep.subr.mxu0 0.0
        %7814 = vmatpush1.msra.mxu0 0.0
        %7815 = vmatprep.subr.mxu0 0.0
        %7816 = vmatpush1.msra.mxu0 0.0
        %7817 = vmatprep.subr.mxu0 0.0
        %7818 = vmatpush1.msra.mxu0 0.0
        %7819 = vmatprep.subr.mxu0 0.0
        %7820 = vmatpush1.msra.mxu0 0.0
        %7821 = vmatprep.subr.mxu0 0.0
        %7822 = vmatpush1.msra.mxu0 0.0
        %7823 = vmatprep.subr.mxu0 0.0
        %7824 = vmatpush1.msra.mxu0 0.0
        %7825 = vmatprep.subr.mxu0 0.0
        %7826 = vmatpush1.msra.mxu0 0.0
        %7827 = vmatprep.subr.mxu0 0.0
        %7828 = vmatpush1.msra.mxu0 0.0
        %7829 = vmatprep.mubr.f32.mxu0 0.0
        %7830 = vmatmul.mubr.f32.gmra.mrb[0].mxu0 %v7550
        %v7831 = vpop.f32.mrb[0].mxu0
        %v7832 = vadd.f32 0.0, %v7831
        %v7833 = vpop.f32.mrb[0].mxu0
        %v7834 = vadd.f32 0.0, %v7833
        %7835 = vdwg.mxu0
        %7836 = vmatprep.subr.mxu0 0.0
        %7837 = vmatpush1.msra.mxu0 %v7539
        %7838 = vmatprep.subr.mxu0 0.0
        %7839 = vmatpush1.msra.mxu0 0.0
        %7840 = vmatprep.subr.mxu0 0.0
        %7841 = vmatpush1.msra.mxu0 0.0
        %7842 = vmatprep.subr.mxu0 0.0
        %7843 = vmatpush1.msra.mxu0 0.0
        %7844 = vmatprep.subr.mxu0 0.0
        %7845 = vmatpush1.msra.mxu0 0.0
        %7846 = vmatprep.subr.mxu0 0.0
        %7847 = vmatpush1.msra.mxu0 0.0
        %7848 = vmatprep.subr.mxu0 0.0
        %7849 = vmatpush1.msra.mxu0 0.0
        %7850 = vmatprep.subr.mxu0 0.0
        %7851 = vmatpush1.msra.mxu0 0.0
        %7852 = vmatprep.subr.mxu0 0.0
        %7853 = vmatpush1.msra.mxu0 0.0
        %7854 = vmatprep.subr.mxu0 0.0
        %7855 = vmatpush1.msra.mxu0 0.0
        %7856 = vmatprep.subr.mxu0 0.0
        %7857 = vmatpush1.msra.mxu0 0.0
        %7858 = vmatprep.subr.mxu0 0.0
        %7859 = vmatpush1.msra.mxu0 0.0
        %7860 = vmatprep.subr.mxu0 0.0
        %7861 = vmatpush1.msra.mxu0 0.0
        %7862 = vmatprep.subr.mxu0 0.0
        %7863 = vmatpush1.msra.mxu0 0.0
        %7864 = vmatprep.subr.mxu0 0.0
        %7865 = vmatpush1.msra.mxu0 0.0
        %7866 = vmatprep.subr.mxu0 0.0
        %7867 = vmatpush1.msra.mxu0 0.0
        %7868 = vmatprep.subr.mxu0 0.0
        %7869 = vmatpush1.msra.mxu0 0.0
        %7870 = vmatprep.subr.mxu0 0.0
        %7871 = vmatpush1.msra.mxu0 0.0
        %7872 = vmatprep.subr.mxu0 0.0
        %7873 = vmatpush1.msra.mxu0 0.0
        %7874 = vmatprep.subr.mxu0 0.0
        %7875 = vmatpush1.msra.mxu0 0.0
        %7876 = vmatprep.subr.mxu0 0.0
        %7877 = vmatpush1.msra.mxu0 0.0
        %7878 = vmatprep.subr.mxu0 0.0
        %7879 = vmatpush1.msra.mxu0 0.0
        %7880 = vmatprep.subr.mxu0 0.0
        %7881 = vmatpush1.msra.mxu0 0.0
        %7882 = vmatprep.subr.mxu0 0.0
        %7883 = vmatpush1.msra.mxu0 0.0
        %7884 = vmatprep.subr.mxu0 0.0
        %7885 = vmatpush1.msra.mxu0 0.0
        %7886 = vmatprep.subr.mxu0 0.0
        %7887 = vmatpush1.msra.mxu0 0.0
        %7888 = vmatprep.subr.mxu0 0.0
        %7889 = vmatpush1.msra.mxu0 0.0
        %7890 = vmatprep.subr.mxu0 0.0
        %7891 = vmatpush1.msra.mxu0 0.0
        %7892 = vmatprep.subr.mxu0 0.0
        %7893 = vmatpush1.msra.mxu0 0.0
        %7894 = vmatprep.subr.mxu0 0.0
        %7895 = vmatpush1.msra.mxu0 0.0
        %7896 = vmatprep.subr.mxu0 0.0
        %7897 = vmatpush1.msra.mxu0 0.0
        %7898 = vmatprep.subr.mxu0 0.0
        %7899 = vmatpush1.msra.mxu0 0.0
        %7900 = vmatprep.mubr.f32.mxu0 0.0
        %7901 = vmatmul.mubr.f32.gmra.mrb[0].mxu0 %v7550
        %v7902 = vpop.f32.mrb[0].mxu0
        %v7903 = vadd.f32 0.0, %v7902
        %v7904 = vpop.f32.mrb[0].mxu0
        %7905 = vdwg.mxu0
        %v7906 = vadd.f32 %v7499, %v7619
        %v7907 = vadd.f32 %v7500, %v7621
        %v7908 = vadd.f32 %v7501, %v7690
        %v7909 = vadd.f32 %v7502, %v7692
        %v7910 = vadd.f32 %v7503, %v7761
        %v7911 = vadd.f32 %v7504, %v7763
        %v7912 = vadd.f32 %v7505, %v7832
        %v7913 = vadd.f32 %v7506, %v7834
        %v7914 = vadd.f32 %v7507, %v7903
        %s7915 = scalar_lea.vmem %s2, 136
        %v7916 = vld [vmem:[%s7915] sm:$0xff]
        %7917 = vrot.lane.b32.xlu0 %v1385, 18
        %v7918 = vpop.permute.xlu0 %7917
        %7919 = vrot.lane.b32.xlu0 %v1386, 18
        %v7920 = vpop.permute.xlu0 %7919
        %7921 = vrot.lane.b32.xlu0 %v1387, 18
        %v7922 = vpop.permute.xlu0 %7921
        %7923 = vrot.lane.b32.xlu0 %v1388, 18
        %v7924 = vpop.permute.xlu0 %7923
        %7925 = vrot.lane.b32.xlu0 %v1389, 18
        %v7926 = vpop.permute.xlu0 %7925
        %7927 = vrot.lane.b32.xlu0 %v1390, 18
        %v7928 = vpop.permute.xlu0 %7927
        %7929 = vrot.lane.b32.xlu0 %v1391, 18
        %v7930 = vpop.permute.xlu0 %7929
        %7931 = vrot.lane.b32.xlu0 %v1392, 18
        %v7932 = vpop.permute.xlu0 %7931
        %7933 = vrot.lane.b32.xlu0 %v1393, 18
        %v7934 = vpop.permute.xlu0 %7933
        %7935 = vrot.lane.b32.xlu0 %v1394, 18
        %v7936 = vpop.permute.xlu0 %7935
        %vm7937 = vcmask 146432
        %v7938 = vsel %vm7937, %v7918, %v7920
        %v7939 = vsel %vm7937, %v7920, %v7922
        %v7940 = vsel %vm7937, %v7922, %v7924
        %v7941 = vsel %vm7937, %v7924, %v7926
        %v7942 = vsel %vm7937, %v7926, %v7928
        %v7943 = vsel %vm7937, %v7928, %v7930
        %v7944 = vsel %vm7937, %v7930, %v7932
        %v7945 = vsel %vm7937, %v7932, %v7934
        %v7946 = vsel %vm7937, %v7934, %v7936
        %v7957 = vsel %vm1016, %v7916, 0
        %7959 = vmatprep.subr.mxu0 %v7939
        %7960 = vmatpush1.msra.mxu0 %v7938
        %7961 = vmatprep.subr.mxu0 0.0
        %7962 = vmatpush1.msra.mxu0 0.0
        %7963 = vmatprep.subr.mxu0 0.0
        %7964 = vmatpush1.msra.mxu0 0.0
        %7965 = vmatprep.subr.mxu0 0.0
        %7966 = vmatpush1.msra.mxu0 0.0
        %7967 = vmatprep.subr.mxu0 0.0
        %7968 = vmatpush1.msra.mxu0 0.0
        %7969 = vmatprep.subr.mxu0 0.0
        %7970 = vmatpush1.msra.mxu0 0.0
        %7971 = vmatprep.subr.mxu0 0.0
        %7972 = vmatpush1.msra.mxu0 0.0
        %7973 = vmatprep.subr.mxu0 0.0
        %7974 = vmatpush1.msra.mxu0 0.0
        %7975 = vmatprep.subr.mxu0 0.0
        %7976 = vmatpush1.msra.mxu0 0.0
        %7977 = vmatprep.subr.mxu0 0.0
        %7978 = vmatpush1.msra.mxu0 0.0
        %7979 = vmatprep.subr.mxu0 0.0
        %7980 = vmatpush1.msra.mxu0 0.0
        %7981 = vmatprep.subr.mxu0 0.0
        %7982 = vmatpush1.msra.mxu0 0.0
        %7983 = vmatprep.subr.mxu0 0.0
        %7984 = vmatpush1.msra.mxu0 0.0
        %7985 = vmatprep.subr.mxu0 0.0
        %7986 = vmatpush1.msra.mxu0 0.0
        %7987 = vmatprep.subr.mxu0 0.0
        %7988 = vmatpush1.msra.mxu0 0.0
        %7989 = vmatprep.subr.mxu0 0.0
        %7990 = vmatpush1.msra.mxu0 0.0
        %7991 = vmatprep.subr.mxu0 0.0
        %7992 = vmatpush1.msra.mxu0 0.0
        %7993 = vmatprep.subr.mxu0 0.0
        %7994 = vmatpush1.msra.mxu0 0.0
        %7995 = vmatprep.subr.mxu0 0.0
        %7996 = vmatpush1.msra.mxu0 0.0
        %7997 = vmatprep.subr.mxu0 0.0
        %7998 = vmatpush1.msra.mxu0 0.0
        %7999 = vmatprep.subr.mxu0 0.0
        %8000 = vmatpush1.msra.mxu0 0.0
        %8001 = vmatprep.subr.mxu0 0.0
        %8002 = vmatpush1.msra.mxu0 0.0
        %8003 = vmatprep.subr.mxu0 0.0
        %8004 = vmatpush1.msra.mxu0 0.0
        %8005 = vmatprep.subr.mxu0 0.0
        %8006 = vmatpush1.msra.mxu0 0.0
        %8007 = vmatprep.subr.mxu0 0.0
        %8008 = vmatpush1.msra.mxu0 0.0
        %8009 = vmatprep.subr.mxu0 0.0
        %8010 = vmatpush1.msra.mxu0 0.0
        %8011 = vmatprep.subr.mxu0 0.0
        %8012 = vmatpush1.msra.mxu0 0.0
        %8013 = vmatprep.subr.mxu0 0.0
        %8014 = vmatpush1.msra.mxu0 0.0
        %8015 = vmatprep.subr.mxu0 0.0
        %8016 = vmatpush1.msra.mxu0 0.0
        %8017 = vmatprep.subr.mxu0 0.0
        %8018 = vmatpush1.msra.mxu0 0.0
        %8019 = vmatprep.subr.mxu0 0.0
        %8020 = vmatpush1.msra.mxu0 0.0
        %8021 = vmatprep.subr.mxu0 0.0
        %8022 = vmatpush1.msra.mxu0 0.0
        %8023 = vmatprep.mubr.f32.mxu0 0.0
        %8024 = vmatmul.mubr.f32.gmra.mrb[0].mxu0 %v7957
        %v8025 = vpop.f32.mrb[0].mxu0
        %v8026 = vadd.f32 0.0, %v8025
        %v8027 = vpop.f32.mrb[0].mxu0
        %v8028 = vadd.f32 0.0, %v8027
        %8029 = vdwg.mxu0
        %8030 = vmatprep.subr.mxu0 %v7941
        %8031 = vmatpush1.msra.mxu0 %v7940
        %8032 = vmatprep.subr.mxu0 0.0
        %8033 = vmatpush1.msra.mxu0 0.0
        %8034 = vmatprep.subr.mxu0 0.0
        %8035 = vmatpush1.msra.mxu0 0.0
        %8036 = vmatprep.subr.mxu0 0.0
        %8037 = vmatpush1.msra.mxu0 0.0
        %8038 = vmatprep.subr.mxu0 0.0
        %8039 = vmatpush1.msra.mxu0 0.0
        %8040 = vmatprep.subr.mxu0 0.0
        %8041 = vmatpush1.msra.mxu0 0.0
        %8042 = vmatprep.subr.mxu0 0.0
        %8043 = vmatpush1.msra.mxu0 0.0
        %8044 = vmatprep.subr.mxu0 0.0
        %8045 = vmatpush1.msra.mxu0 0.0
        %8046 = vmatprep.subr.mxu0 0.0
        %8047 = vmatpush1.msra.mxu0 0.0
        %8048 = vmatprep.subr.mxu0 0.0
        %8049 = vmatpush1.msra.mxu0 0.0
        %8050 = vmatprep.subr.mxu0 0.0
        %8051 = vmatpush1.msra.mxu0 0.0
        %8052 = vmatprep.subr.mxu0 0.0
        %8053 = vmatpush1.msra.mxu0 0.0
        %8054 = vmatprep.subr.mxu0 0.0
        %8055 = vmatpush1.msra.mxu0 0.0
        %8056 = vmatprep.subr.mxu0 0.0
        %8057 = vmatpush1.msra.mxu0 0.0
        %8058 = vmatprep.subr.mxu0 0.0
        %8059 = vmatpush1.msra.mxu0 0.0
        %8060 = vmatprep.subr.mxu0 0.0
        %8061 = vmatpush1.msra.mxu0 0.0
        %8062 = vmatprep.subr.mxu0 0.0
        %8063 = vmatpush1.msra.mxu0 0.0
        %8064 = vmatprep.subr.mxu0 0.0
        %8065 = vmatpush1.msra.mxu0 0.0
        %8066 = vmatprep.subr.mxu0 0.0
        %8067 = vmatpush1.msra.mxu0 0.0
        %8068 = vmatprep.subr.mxu0 0.0
        %8069 = vmatpush1.msra.mxu0 0.0
        %8070 = vmatprep.subr.mxu0 0.0
        %8071 = vmatpush1.msra.mxu0 0.0
        %8072 = vmatprep.subr.mxu0 0.0
        %8073 = vmatpush1.msra.mxu0 0.0
        %8074 = vmatprep.subr.mxu0 0.0
        %8075 = vmatpush1.msra.mxu0 0.0
        %8076 = vmatprep.subr.mxu0 0.0
        %8077 = vmatpush1.msra.mxu0 0.0
        %8078 = vmatprep.subr.mxu0 0.0
        %8079 = vmatpush1.msra.mxu0 0.0
        %8080 = vmatprep.subr.mxu0 0.0
        %8081 = vmatpush1.msra.mxu0 0.0
        %8082 = vmatprep.subr.mxu0 0.0
        %8083 = vmatpush1.msra.mxu0 0.0
        %8084 = vmatprep.subr.mxu0 0.0
        %8085 = vmatpush1.msra.mxu0 0.0
        %8086 = vmatprep.subr.mxu0 0.0
        %8087 = vmatpush1.msra.mxu0 0.0
        %8088 = vmatprep.subr.mxu0 0.0
        %8089 = vmatpush1.msra.mxu0 0.0
        %8090 = vmatprep.subr.mxu0 0.0
        %8091 = vmatpush1.msra.mxu0 0.0
        %8092 = vmatprep.subr.mxu0 0.0
        %8093 = vmatpush1.msra.mxu0 0.0
        %8094 = vmatprep.mubr.f32.mxu0 0.0
        %8095 = vmatmul.mubr.f32.gmra.mrb[0].mxu0 %v7957
        %v8096 = vpop.f32.mrb[0].mxu0
        %v8097 = vadd.f32 0.0, %v8096
        %v8098 = vpop.f32.mrb[0].mxu0
        %v8099 = vadd.f32 0.0, %v8098
        %8100 = vdwg.mxu0
        %8101 = vmatprep.subr.mxu0 %v7943
        %8102 = vmatpush1.msra.mxu0 %v7942
        %8103 = vmatprep.subr.mxu0 0.0
        %8104 = vmatpush1.msra.mxu0 0.0
        %8105 = vmatprep.subr.mxu0 0.0
        %8106 = vmatpush1.msra.mxu0 0.0
        %8107 = vmatprep.subr.mxu0 0.0
        %8108 = vmatpush1.msra.mxu0 0.0
        %8109 = vmatprep.subr.mxu0 0.0
        %8110 = vmatpush1.msra.mxu0 0.0
        %8111 = vmatprep.subr.mxu0 0.0
        %8112 = vmatpush1.msra.mxu0 0.0
        %8113 = vmatprep.subr.mxu0 0.0
        %8114 = vmatpush1.msra.mxu0 0.0
        %8115 = vmatprep.subr.mxu0 0.0
        %8116 = vmatpush1.msra.mxu0 0.0
        %8117 = vmatprep.subr.mxu0 0.0
        %8118 = vmatpush1.msra.mxu0 0.0
        %8119 = vmatprep.subr.mxu0 0.0
        %8120 = vmatpush1.msra.mxu0 0.0
        %8121 = vmatprep.subr.mxu0 0.0
        %8122 = vmatpush1.msra.mxu0 0.0
        %8123 = vmatprep.subr.mxu0 0.0
        %8124 = vmatpush1.msra.mxu0 0.0
        %8125 = vmatprep.subr.mxu0 0.0
        %8126 = vmatpush1.msra.mxu0 0.0
        %8127 = vmatprep.subr.mxu0 0.0
        %8128 = vmatpush1.msra.mxu0 0.0
        %8129 = vmatprep.subr.mxu0 0.0
        %8130 = vmatpush1.msra.mxu0 0.0
        %8131 = vmatprep.subr.mxu0 0.0
        %8132 = vmatpush1.msra.mxu0 0.0
        %8133 = vmatprep.subr.mxu0 0.0
        %8134 = vmatpush1.msra.mxu0 0.0
        %8135 = vmatprep.subr.mxu0 0.0
        %8136 = vmatpush1.msra.mxu0 0.0
        %8137 = vmatprep.subr.mxu0 0.0
        %8138 = vmatpush1.msra.mxu0 0.0
        %8139 = vmatprep.subr.mxu0 0.0
        %8140 = vmatpush1.msra.mxu0 0.0
        %8141 = vmatprep.subr.mxu0 0.0
        %8142 = vmatpush1.msra.mxu0 0.0
        %8143 = vmatprep.subr.mxu0 0.0
        %8144 = vmatpush1.msra.mxu0 0.0
        %8145 = vmatprep.subr.mxu0 0.0
        %8146 = vmatpush1.msra.mxu0 0.0
        %8147 = vmatprep.subr.mxu0 0.0
        %8148 = vmatpush1.msra.mxu0 0.0
        %8149 = vmatprep.subr.mxu0 0.0
        %8150 = vmatpush1.msra.mxu0 0.0
        %8151 = vmatprep.subr.mxu0 0.0
        %8152 = vmatpush1.msra.mxu0 0.0
        %8153 = vmatprep.subr.mxu0 0.0
        %8154 = vmatpush1.msra.mxu0 0.0
        %8155 = vmatprep.subr.mxu0 0.0
        %8156 = vmatpush1.msra.mxu0 0.0
        %8157 = vmatprep.subr.mxu0 0.0
        %8158 = vmatpush1.msra.mxu0 0.0
        %8159 = vmatprep.subr.mxu0 0.0
        %8160 = vmatpush1.msra.mxu0 0.0
        %8161 = vmatprep.subr.mxu0 0.0
        %8162 = vmatpush1.msra.mxu0 0.0
        %8163 = vmatprep.subr.mxu0 0.0
        %8164 = vmatpush1.msra.mxu0 0.0
        %8165 = vmatprep.mubr.f32.mxu0 0.0
        %8166 = vmatmul.mubr.f32.gmra.mrb[0].mxu0 %v7957
        %v8167 = vpop.f32.mrb[0].mxu0
        %v8168 = vadd.f32 0.0, %v8167
        %v8169 = vpop.f32.mrb[0].mxu0
        %v8170 = vadd.f32 0.0, %v8169
        %8171 = vdwg.mxu0
        %8172 = vmatprep.subr.mxu0 %v7945
        %8173 = vmatpush1.msra.mxu0 %v7944
        %8174 = vmatprep.subr.mxu0 0.0
        %8175 = vmatpush1.msra.mxu0 0.0
        %8176 = vmatprep.subr.mxu0 0.0
        %8177 = vmatpush1.msra.mxu0 0.0
        %8178 = vmatprep.subr.mxu0 0.0
        %8179 = vmatpush1.msra.mxu0 0.0
        %8180 = vmatprep.subr.mxu0 0.0
        %8181 = vmatpush1.msra.mxu0 0.0
        %8182 = vmatprep.subr.mxu0 0.0
        %8183 = vmatpush1.msra.mxu0 0.0
        %8184 = vmatprep.subr.mxu0 0.0
        %8185 = vmatpush1.msra.mxu0 0.0
        %8186 = vmatprep.subr.mxu0 0.0
        %8187 = vmatpush1.msra.mxu0 0.0
        %8188 = vmatprep.subr.mxu0 0.0
        %8189 = vmatpush1.msra.mxu0 0.0
        %8190 = vmatprep.subr.mxu0 0.0
        %8191 = vmatpush1.msra.mxu0 0.0
        %8192 = vmatprep.subr.mxu0 0.0
        %8193 = vmatpush1.msra.mxu0 0.0
        %8194 = vmatprep.subr.mxu0 0.0
        %8195 = vmatpush1.msra.mxu0 0.0
        %8196 = vmatprep.subr.mxu0 0.0
        %8197 = vmatpush1.msra.mxu0 0.0
        %8198 = vmatprep.subr.mxu0 0.0
        %8199 = vmatpush1.msra.mxu0 0.0
        %8200 = vmatprep.subr.mxu0 0.0
        %8201 = vmatpush1.msra.mxu0 0.0
        %8202 = vmatprep.subr.mxu0 0.0
        %8203 = vmatpush1.msra.mxu0 0.0
        %8204 = vmatprep.subr.mxu0 0.0
        %8205 = vmatpush1.msra.mxu0 0.0
        %8206 = vmatprep.subr.mxu0 0.0
        %8207 = vmatpush1.msra.mxu0 0.0
        %8208 = vmatprep.subr.mxu0 0.0
        %8209 = vmatpush1.msra.mxu0 0.0
        %8210 = vmatprep.subr.mxu0 0.0
        %8211 = vmatpush1.msra.mxu0 0.0
        %8212 = vmatprep.subr.mxu0 0.0
        %8213 = vmatpush1.msra.mxu0 0.0
        %8214 = vmatprep.subr.mxu0 0.0
        %8215 = vmatpush1.msra.mxu0 0.0
        %8216 = vmatprep.subr.mxu0 0.0
        %8217 = vmatpush1.msra.mxu0 0.0
        %8218 = vmatprep.subr.mxu0 0.0
        %8219 = vmatpush1.msra.mxu0 0.0
        %8220 = vmatprep.subr.mxu0 0.0
        %8221 = vmatpush1.msra.mxu0 0.0
        %8222 = vmatprep.subr.mxu0 0.0
        %8223 = vmatpush1.msra.mxu0 0.0
        %8224 = vmatprep.subr.mxu0 0.0
        %8225 = vmatpush1.msra.mxu0 0.0
        %8226 = vmatprep.subr.mxu0 0.0
        %8227 = vmatpush1.msra.mxu0 0.0
        %8228 = vmatprep.subr.mxu0 0.0
        %8229 = vmatpush1.msra.mxu0 0.0
        %8230 = vmatprep.subr.mxu0 0.0
        %8231 = vmatpush1.msra.mxu0 0.0
        %8232 = vmatprep.subr.mxu0 0.0
        %8233 = vmatpush1.msra.mxu0 0.0
        %8234 = vmatprep.subr.mxu0 0.0
        %8235 = vmatpush1.msra.mxu0 0.0
        %8236 = vmatprep.mubr.f32.mxu0 0.0
        %8237 = vmatmul.mubr.f32.gmra.mrb[0].mxu0 %v7957
        %v8238 = vpop.f32.mrb[0].mxu0
        %v8239 = vadd.f32 0.0, %v8238
        %v8240 = vpop.f32.mrb[0].mxu0
        %v8241 = vadd.f32 0.0, %v8240
        %8242 = vdwg.mxu0
        %8243 = vmatprep.subr.mxu0 0.0
        %8244 = vmatpush1.msra.mxu0 %v7946
        %8245 = vmatprep.subr.mxu0 0.0
        %8246 = vmatpush1.msra.mxu0 0.0
        %8247 = vmatprep.subr.mxu0 0.0
        %8248 = vmatpush1.msra.mxu0 0.0
        %8249 = vmatprep.subr.mxu0 0.0
        %8250 = vmatpush1.msra.mxu0 0.0
        %8251 = vmatprep.subr.mxu0 0.0
        %8252 = vmatpush1.msra.mxu0 0.0
        %8253 = vmatprep.subr.mxu0 0.0
        %8254 = vmatpush1.msra.mxu0 0.0
        %8255 = vmatprep.subr.mxu0 0.0
        %8256 = vmatpush1.msra.mxu0 0.0
        %8257 = vmatprep.subr.mxu0 0.0
        %8258 = vmatpush1.msra.mxu0 0.0
        %8259 = vmatprep.subr.mxu0 0.0
        %8260 = vmatpush1.msra.mxu0 0.0
        %8261 = vmatprep.subr.mxu0 0.0
        %8262 = vmatpush1.msra.mxu0 0.0
        %8263 = vmatprep.subr.mxu0 0.0
        %8264 = vmatpush1.msra.mxu0 0.0
        %8265 = vmatprep.subr.mxu0 0.0
        %8266 = vmatpush1.msra.mxu0 0.0
        %8267 = vmatprep.subr.mxu0 0.0
        %8268 = vmatpush1.msra.mxu0 0.0
        %8269 = vmatprep.subr.mxu0 0.0
        %8270 = vmatpush1.msra.mxu0 0.0
        %8271 = vmatprep.subr.mxu0 0.0
        %8272 = vmatpush1.msra.mxu0 0.0
        %8273 = vmatprep.subr.mxu0 0.0
        %8274 = vmatpush1.msra.mxu0 0.0
        %8275 = vmatprep.subr.mxu0 0.0
        %8276 = vmatpush1.msra.mxu0 0.0
        %8277 = vmatprep.subr.mxu0 0.0
        %8278 = vmatpush1.msra.mxu0 0.0
        %8279 = vmatprep.subr.mxu0 0.0
        %8280 = vmatpush1.msra.mxu0 0.0
        %8281 = vmatprep.subr.mxu0 0.0
        %8282 = vmatpush1.msra.mxu0 0.0
        %8283 = vmatprep.subr.mxu0 0.0
        %8284 = vmatpush1.msra.mxu0 0.0
        %8285 = vmatprep.subr.mxu0 0.0
        %8286 = vmatpush1.msra.mxu0 0.0
        %8287 = vmatprep.subr.mxu0 0.0
        %8288 = vmatpush1.msra.mxu0 0.0
        %8289 = vmatprep.subr.mxu0 0.0
        %8290 = vmatpush1.msra.mxu0 0.0
        %8291 = vmatprep.subr.mxu0 0.0
        %8292 = vmatpush1.msra.mxu0 0.0
        %8293 = vmatprep.subr.mxu0 0.0
        %8294 = vmatpush1.msra.mxu0 0.0
        %8295 = vmatprep.subr.mxu0 0.0
        %8296 = vmatpush1.msra.mxu0 0.0
        %8297 = vmatprep.subr.mxu0 0.0
        %8298 = vmatpush1.msra.mxu0 0.0
        %8299 = vmatprep.subr.mxu0 0.0
        %8300 = vmatpush1.msra.mxu0 0.0
        %8301 = vmatprep.subr.mxu0 0.0
        %8302 = vmatpush1.msra.mxu0 0.0
        %8303 = vmatprep.subr.mxu0 0.0
        %8304 = vmatpush1.msra.mxu0 0.0
        %8305 = vmatprep.subr.mxu0 0.0
        %8306 = vmatpush1.msra.mxu0 0.0
        %8307 = vmatprep.mubr.f32.mxu0 0.0
        %8308 = vmatmul.mubr.f32.gmra.mrb[0].mxu0 %v7957
        %v8309 = vpop.f32.mrb[0].mxu0
        %v8310 = vadd.f32 0.0, %v8309
        %v8311 = vpop.f32.mrb[0].mxu0
        %8312 = vdwg.mxu0
        %v8313 = vadd.f32 %v7906, %v8026
        %v8314 = vadd.f32 %v7907, %v8028
        %v8315 = vadd.f32 %v7908, %v8097
        %v8316 = vadd.f32 %v7909, %v8099
        %v8317 = vadd.f32 %v7910, %v8168
        %v8318 = vadd.f32 %v7911, %v8170
        %v8319 = vadd.f32 %v7912, %v8239
        %v8320 = vadd.f32 %v7913, %v8241
        %v8321 = vadd.f32 %v7914, %v8310
        %s8322 = scalar_lea.vmem %s2, 144
        %v8323 = vld [vmem:[%s8322] sm:$0xff]
        %8324 = vrot.lane.b32.xlu0 %v1385, 17
        %v8325 = vpop.permute.xlu0 %8324
        %8326 = vrot.lane.b32.xlu0 %v1386, 17
        %v8327 = vpop.permute.xlu0 %8326
        %8328 = vrot.lane.b32.xlu0 %v1387, 17
        %v8329 = vpop.permute.xlu0 %8328
        %8330 = vrot.lane.b32.xlu0 %v1388, 17
        %v8331 = vpop.permute.xlu0 %8330
        %8332 = vrot.lane.b32.xlu0 %v1389, 17
        %v8333 = vpop.permute.xlu0 %8332
        %8334 = vrot.lane.b32.xlu0 %v1390, 17
        %v8335 = vpop.permute.xlu0 %8334
        %8336 = vrot.lane.b32.xlu0 %v1391, 17
        %v8337 = vpop.permute.xlu0 %8336
        %8338 = vrot.lane.b32.xlu0 %v1392, 17
        %v8339 = vpop.permute.xlu0 %8338
        %8340 = vrot.lane.b32.xlu0 %v1393, 17
        %v8341 = vpop.permute.xlu0 %8340
        %8342 = vrot.lane.b32.xlu0 %v1394, 17
        %v8343 = vpop.permute.xlu0 %8342
        %vm8344 = vcmask 138240
        %v8345 = vsel %vm8344, %v8325, %v8327
        %v8346 = vsel %vm8344, %v8327, %v8329
        %v8347 = vsel %vm8344, %v8329, %v8331
        %v8348 = vsel %vm8344, %v8331, %v8333
        %v8349 = vsel %vm8344, %v8333, %v8335
        %v8350 = vsel %vm8344, %v8335, %v8337
        %v8351 = vsel %vm8344, %v8337, %v8339
        %v8352 = vsel %vm8344, %v8339, %v8341
        %v8353 = vsel %vm8344, %v8341, %v8343
        %v8364 = vsel %vm1016, %v8323, 0
        %8366 = vmatprep.subr.mxu0 %v8346
        %8367 = vmatpush1.msra.mxu0 %v8345
        %8368 = vmatprep.subr.mxu0 0.0
        %8369 = vmatpush1.msra.mxu0 0.0
        %8370 = vmatprep.subr.mxu0 0.0
        %8371 = vmatpush1.msra.mxu0 0.0
        %8372 = vmatprep.subr.mxu0 0.0
        %8373 = vmatpush1.msra.mxu0 0.0
        %8374 = vmatprep.subr.mxu0 0.0
        %8375 = vmatpush1.msra.mxu0 0.0
        %8376 = vmatprep.subr.mxu0 0.0
        %8377 = vmatpush1.msra.mxu0 0.0
        %8378 = vmatprep.subr.mxu0 0.0
        %8379 = vmatpush1.msra.mxu0 0.0
        %8380 = vmatprep.subr.mxu0 0.0
        %8381 = vmatpush1.msra.mxu0 0.0
        %8382 = vmatprep.subr.mxu0 0.0
        %8383 = vmatpush1.msra.mxu0 0.0
        %8384 = vmatprep.subr.mxu0 0.0
        %8385 = vmatpush1.msra.mxu0 0.0
        %8386 = vmatprep.subr.mxu0 0.0
        %8387 = vmatpush1.msra.mxu0 0.0
        %8388 = vmatprep.subr.mxu0 0.0
        %8389 = vmatpush1.msra.mxu0 0.0
        %8390 = vmatprep.subr.mxu0 0.0
        %8391 = vmatpush1.msra.mxu0 0.0
        %8392 = vmatprep.subr.mxu0 0.0
        %8393 = vmatpush1.msra.mxu0 0.0
        %8394 = vmatprep.subr.mxu0 0.0
        %8395 = vmatpush1.msra.mxu0 0.0
        %8396 = vmatprep.subr.mxu0 0.0
        %8397 = vmatpush1.msra.mxu0 0.0
        %8398 = vmatprep.subr.mxu0 0.0
        %8399 = vmatpush1.msra.mxu0 0.0
        %8400 = vmatprep.subr.mxu0 0.0
        %8401 = vmatpush1.msra.mxu0 0.0
        %8402 = vmatprep.subr.mxu0 0.0
        %8403 = vmatpush1.msra.mxu0 0.0
        %8404 = vmatprep.subr.mxu0 0.0
        %8405 = vmatpush1.msra.mxu0 0.0
        %8406 = vmatprep.subr.mxu0 0.0
        %8407 = vmatpush1.msra.mxu0 0.0
        %8408 = vmatprep.subr.mxu0 0.0
        %8409 = vmatpush1.msra.mxu0 0.0
        %8410 = vmatprep.subr.mxu0 0.0
        %8411 = vmatpush1.msra.mxu0 0.0
        %8412 = vmatprep.subr.mxu0 0.0
        %8413 = vmatpush1.msra.mxu0 0.0
        %8414 = vmatprep.subr.mxu0 0.0
        %8415 = vmatpush1.msra.mxu0 0.0
        %8416 = vmatprep.subr.mxu0 0.0
        %8417 = vmatpush1.msra.mxu0 0.0
        %8418 = vmatprep.subr.mxu0 0.0
        %8419 = vmatpush1.msra.mxu0 0.0
        %8420 = vmatprep.subr.mxu0 0.0
        %8421 = vmatpush1.msra.mxu0 0.0
        %8422 = vmatprep.subr.mxu0 0.0
        %8423 = vmatpush1.msra.mxu0 0.0
        %8424 = vmatprep.subr.mxu0 0.0
        %8425 = vmatpush1.msra.mxu0 0.0
        %8426 = vmatprep.subr.mxu0 0.0
        %8427 = vmatpush1.msra.mxu0 0.0
        %8428 = vmatprep.subr.mxu0 0.0
        %8429 = vmatpush1.msra.mxu0 0.0
        %8430 = vmatprep.mubr.f32.mxu0 0.0
        %8431 = vmatmul.mubr.f32.gmra.mrb[0].mxu0 %v8364
        %v8432 = vpop.f32.mrb[0].mxu0
        %v8433 = vadd.f32 0.0, %v8432
        %v8434 = vpop.f32.mrb[0].mxu0
        %v8435 = vadd.f32 0.0, %v8434
        %8436 = vdwg.mxu0
        %8437 = vmatprep.subr.mxu0 %v8348
        %8438 = vmatpush1.msra.mxu0 %v8347
        %8439 = vmatprep.subr.mxu0 0.0
        %8440 = vmatpush1.msra.mxu0 0.0
        %8441 = vmatprep.subr.mxu0 0.0
        %8442 = vmatpush1.msra.mxu0 0.0
        %8443 = vmatprep.subr.mxu0 0.0
        %8444 = vmatpush1.msra.mxu0 0.0
        %8445 = vmatprep.subr.mxu0 0.0
        %8446 = vmatpush1.msra.mxu0 0.0
        %8447 = vmatprep.subr.mxu0 0.0
        %8448 = vmatpush1.msra.mxu0 0.0
        %8449 = vmatprep.subr.mxu0 0.0
        %8450 = vmatpush1.msra.mxu0 0.0
        %8451 = vmatprep.subr.mxu0 0.0
        %8452 = vmatpush1.msra.mxu0 0.0
        %8453 = vmatprep.subr.mxu0 0.0
        %8454 = vmatpush1.msra.mxu0 0.0
        %8455 = vmatprep.subr.mxu0 0.0
        %8456 = vmatpush1.msra.mxu0 0.0
        %8457 = vmatprep.subr.mxu0 0.0
        %8458 = vmatpush1.msra.mxu0 0.0
        %8459 = vmatprep.subr.mxu0 0.0
        %8460 = vmatpush1.msra.mxu0 0.0
        %8461 = vmatprep.subr.mxu0 0.0
        %8462 = vmatpush1.msra.mxu0 0.0
        %8463 = vmatprep.subr.mxu0 0.0
        %8464 = vmatpush1.msra.mxu0 0.0
        %8465 = vmatprep.subr.mxu0 0.0
        %8466 = vmatpush1.msra.mxu0 0.0
        %8467 = vmatprep.subr.mxu0 0.0
        %8468 = vmatpush1.msra.mxu0 0.0
        %8469 = vmatprep.subr.mxu0 0.0
        %8470 = vmatpush1.msra.mxu0 0.0
        %8471 = vmatprep.subr.mxu0 0.0
        %8472 = vmatpush1.msra.mxu0 0.0
        %8473 = vmatprep.subr.mxu0 0.0
        %8474 = vmatpush1.msra.mxu0 0.0
        %8475 = vmatprep.subr.mxu0 0.0
        %8476 = vmatpush1.msra.mxu0 0.0
        %8477 = vmatprep.subr.mxu0 0.0
        %8478 = vmatpush1.msra.mxu0 0.0
        %8479 = vmatprep.subr.mxu0 0.0
        %8480 = vmatpush1.msra.mxu0 0.0
        %8481 = vmatprep.subr.mxu0 0.0
        %8482 = vmatpush1.msra.mxu0 0.0
        %8483 = vmatprep.subr.mxu0 0.0
        %8484 = vmatpush1.msra.mxu0 0.0
        %8485 = vmatprep.subr.mxu0 0.0
        %8486 = vmatpush1.msra.mxu0 0.0
        %8487 = vmatprep.subr.mxu0 0.0
        %8488 = vmatpush1.msra.mxu0 0.0
        %8489 = vmatprep.subr.mxu0 0.0
        %8490 = vmatpush1.msra.mxu0 0.0
        %8491 = vmatprep.subr.mxu0 0.0
        %8492 = vmatpush1.msra.mxu0 0.0
        %8493 = vmatprep.subr.mxu0 0.0
        %8494 = vmatpush1.msra.mxu0 0.0
        %8495 = vmatprep.subr.mxu0 0.0
        %8496 = vmatpush1.msra.mxu0 0.0
        %8497 = vmatprep.subr.mxu0 0.0
        %8498 = vmatpush1.msra.mxu0 0.0
        %8499 = vmatprep.subr.mxu0 0.0
        %8500 = vmatpush1.msra.mxu0 0.0
        %8501 = vmatprep.mubr.f32.mxu0 0.0
        %8502 = vmatmul.mubr.f32.gmra.mrb[0].mxu0 %v8364
        %v8503 = vpop.f32.mrb[0].mxu0
        %v8504 = vadd.f32 0.0, %v8503
        %v8505 = vpop.f32.mrb[0].mxu0
        %v8506 = vadd.f32 0.0, %v8505
        %8507 = vdwg.mxu0
        %8508 = vmatprep.subr.mxu0 %v8350
        %8509 = vmatpush1.msra.mxu0 %v8349
        %8510 = vmatprep.subr.mxu0 0.0
        %8511 = vmatpush1.msra.mxu0 0.0
        %8512 = vmatprep.subr.mxu0 0.0
        %8513 = vmatpush1.msra.mxu0 0.0
        %8514 = vmatprep.subr.mxu0 0.0
        %8515 = vmatpush1.msra.mxu0 0.0
        %8516 = vmatprep.subr.mxu0 0.0
        %8517 = vmatpush1.msra.mxu0 0.0
        %8518 = vmatprep.subr.mxu0 0.0
        %8519 = vmatpush1.msra.mxu0 0.0
        %8520 = vmatprep.subr.mxu0 0.0
        %8521 = vmatpush1.msra.mxu0 0.0
        %8522 = vmatprep.subr.mxu0 0.0
        %8523 = vmatpush1.msra.mxu0 0.0
        %8524 = vmatprep.subr.mxu0 0.0
        %8525 = vmatpush1.msra.mxu0 0.0
        %8526 = vmatprep.subr.mxu0 0.0
        %8527 = vmatpush1.msra.mxu0 0.0
        %8528 = vmatprep.subr.mxu0 0.0
        %8529 = vmatpush1.msra.mxu0 0.0
        %8530 = vmatprep.subr.mxu0 0.0
        %8531 = vmatpush1.msra.mxu0 0.0
        %8532 = vmatprep.subr.mxu0 0.0
        %8533 = vmatpush1.msra.mxu0 0.0
        %8534 = vmatprep.subr.mxu0 0.0
        %8535 = vmatpush1.msra.mxu0 0.0
        %8536 = vmatprep.subr.mxu0 0.0
        %8537 = vmatpush1.msra.mxu0 0.0
        %8538 = vmatprep.subr.mxu0 0.0
        %8539 = vmatpush1.msra.mxu0 0.0
        %8540 = vmatprep.subr.mxu0 0.0
        %8541 = vmatpush1.msra.mxu0 0.0
        %8542 = vmatprep.subr.mxu0 0.0
        %8543 = vmatpush1.msra.mxu0 0.0
        %8544 = vmatprep.subr.mxu0 0.0
        %8545 = vmatpush1.msra.mxu0 0.0
        %8546 = vmatprep.subr.mxu0 0.0
        %8547 = vmatpush1.msra.mxu0 0.0
        %8548 = vmatprep.subr.mxu0 0.0
        %8549 = vmatpush1.msra.mxu0 0.0
        %8550 = vmatprep.subr.mxu0 0.0
        %8551 = vmatpush1.msra.mxu0 0.0
        %8552 = vmatprep.subr.mxu0 0.0
        %8553 = vmatpush1.msra.mxu0 0.0
        %8554 = vmatprep.subr.mxu0 0.0
        %8555 = vmatpush1.msra.mxu0 0.0
        %8556 = vmatprep.subr.mxu0 0.0
        %8557 = vmatpush1.msra.mxu0 0.0
        %8558 = vmatprep.subr.mxu0 0.0
        %8559 = vmatpush1.msra.mxu0 0.0
        %8560 = vmatprep.subr.mxu0 0.0
        %8561 = vmatpush1.msra.mxu0 0.0
        %8562 = vmatprep.subr.mxu0 0.0
        %8563 = vmatpush1.msra.mxu0 0.0
        %8564 = vmatprep.subr.mxu0 0.0
        %8565 = vmatpush1.msra.mxu0 0.0
        %8566 = vmatprep.subr.mxu0 0.0
        %8567 = vmatpush1.msra.mxu0 0.0
        %8568 = vmatprep.subr.mxu0 0.0
        %8569 = vmatpush1.msra.mxu0 0.0
        %8570 = vmatprep.subr.mxu0 0.0
        %8571 = vmatpush1.msra.mxu0 0.0
        %8572 = vmatprep.mubr.f32.mxu0 0.0
        %8573 = vmatmul.mubr.f32.gmra.mrb[0].mxu0 %v8364
        %v8574 = vpop.f32.mrb[0].mxu0
        %v8575 = vadd.f32 0.0, %v8574
        %v8576 = vpop.f32.mrb[0].mxu0
        %v8577 = vadd.f32 0.0, %v8576
        %8578 = vdwg.mxu0
        %8579 = vmatprep.subr.mxu0 %v8352
        %8580 = vmatpush1.msra.mxu0 %v8351
        %8581 = vmatprep.subr.mxu0 0.0
        %8582 = vmatpush1.msra.mxu0 0.0
        %8583 = vmatprep.subr.mxu0 0.0
        %8584 = vmatpush1.msra.mxu0 0.0
        %8585 = vmatprep.subr.mxu0 0.0
        %8586 = vmatpush1.msra.mxu0 0.0
        %8587 = vmatprep.subr.mxu0 0.0
        %8588 = vmatpush1.msra.mxu0 0.0
        %8589 = vmatprep.subr.mxu0 0.0
        %8590 = vmatpush1.msra.mxu0 0.0
        %8591 = vmatprep.subr.mxu0 0.0
        %8592 = vmatpush1.msra.mxu0 0.0
        %8593 = vmatprep.subr.mxu0 0.0
        %8594 = vmatpush1.msra.mxu0 0.0
        %8595 = vmatprep.subr.mxu0 0.0
        %8596 = vmatpush1.msra.mxu0 0.0
        %8597 = vmatprep.subr.mxu0 0.0
        %8598 = vmatpush1.msra.mxu0 0.0
        %8599 = vmatprep.subr.mxu0 0.0
        %8600 = vmatpush1.msra.mxu0 0.0
        %8601 = vmatprep.subr.mxu0 0.0
        %8602 = vmatpush1.msra.mxu0 0.0
        %8603 = vmatprep.subr.mxu0 0.0
        %8604 = vmatpush1.msra.mxu0 0.0
        %8605 = vmatprep.subr.mxu0 0.0
        %8606 = vmatpush1.msra.mxu0 0.0
        %8607 = vmatprep.subr.mxu0 0.0
        %8608 = vmatpush1.msra.mxu0 0.0
        %8609 = vmatprep.subr.mxu0 0.0
        %8610 = vmatpush1.msra.mxu0 0.0
        %8611 = vmatprep.subr.mxu0 0.0
        %8612 = vmatpush1.msra.mxu0 0.0
        %8613 = vmatprep.subr.mxu0 0.0
        %8614 = vmatpush1.msra.mxu0 0.0
        %8615 = vmatprep.subr.mxu0 0.0
        %8616 = vmatpush1.msra.mxu0 0.0
        %8617 = vmatprep.subr.mxu0 0.0
        %8618 = vmatpush1.msra.mxu0 0.0
        %8619 = vmatprep.subr.mxu0 0.0
        %8620 = vmatpush1.msra.mxu0 0.0
        %8621 = vmatprep.subr.mxu0 0.0
        %8622 = vmatpush1.msra.mxu0 0.0
        %8623 = vmatprep.subr.mxu0 0.0
        %8624 = vmatpush1.msra.mxu0 0.0
        %8625 = vmatprep.subr.mxu0 0.0
        %8626 = vmatpush1.msra.mxu0 0.0
        %8627 = vmatprep.subr.mxu0 0.0
        %8628 = vmatpush1.msra.mxu0 0.0
        %8629 = vmatprep.subr.mxu0 0.0
        %8630 = vmatpush1.msra.mxu0 0.0
        %8631 = vmatprep.subr.mxu0 0.0
        %8632 = vmatpush1.msra.mxu0 0.0
        %8633 = vmatprep.subr.mxu0 0.0
        %8634 = vmatpush1.msra.mxu0 0.0
        %8635 = vmatprep.subr.mxu0 0.0
        %8636 = vmatpush1.msra.mxu0 0.0
        %8637 = vmatprep.subr.mxu0 0.0
        %8638 = vmatpush1.msra.mxu0 0.0
        %8639 = vmatprep.subr.mxu0 0.0
        %8640 = vmatpush1.msra.mxu0 0.0
        %8641 = vmatprep.subr.mxu0 0.0
        %8642 = vmatpush1.msra.mxu0 0.0
        %8643 = vmatprep.mubr.f32.mxu0 0.0
        %8644 = vmatmul.mubr.f32.gmra.mrb[0].mxu0 %v8364
        %v8645 = vpop.f32.mrb[0].mxu0
        %v8646 = vadd.f32 0.0, %v8645
        %v8647 = vpop.f32.mrb[0].mxu0
        %v8648 = vadd.f32 0.0, %v8647
        %8649 = vdwg.mxu0
        %8650 = vmatprep.subr.mxu0 0.0
        %8651 = vmatpush1.msra.mxu0 %v8353
        %8652 = vmatprep.subr.mxu0 0.0
        %8653 = vmatpush1.msra.mxu0 0.0
        %8654 = vmatprep.subr.mxu0 0.0
        %8655 = vmatpush1.msra.mxu0 0.0
        %8656 = vmatprep.subr.mxu0 0.0
        %8657 = vmatpush1.msra.mxu0 0.0
        %8658 = vmatprep.subr.mxu0 0.0
        %8659 = vmatpush1.msra.mxu0 0.0
        %8660 = vmatprep.subr.mxu0 0.0
        %8661 = vmatpush1.msra.mxu0 0.0
        %8662 = vmatprep.subr.mxu0 0.0
        %8663 = vmatpush1.msra.mxu0 0.0
        %8664 = vmatprep.subr.mxu0 0.0
        %8665 = vmatpush1.msra.mxu0 0.0
        %8666 = vmatprep.subr.mxu0 0.0
        %8667 = vmatpush1.msra.mxu0 0.0
        %8668 = vmatprep.subr.mxu0 0.0
        %8669 = vmatpush1.msra.mxu0 0.0
        %8670 = vmatprep.subr.mxu0 0.0
        %8671 = vmatpush1.msra.mxu0 0.0
        %8672 = vmatprep.subr.mxu0 0.0
        %8673 = vmatpush1.msra.mxu0 0.0
        %8674 = vmatprep.subr.mxu0 0.0
        %8675 = vmatpush1.msra.mxu0 0.0
        %8676 = vmatprep.subr.mxu0 0.0
        %8677 = vmatpush1.msra.mxu0 0.0
        %8678 = vmatprep.subr.mxu0 0.0
        %8679 = vmatpush1.msra.mxu0 0.0
        %8680 = vmatprep.subr.mxu0 0.0
        %8681 = vmatpush1.msra.mxu0 0.0
        %8682 = vmatprep.subr.mxu0 0.0
        %8683 = vmatpush1.msra.mxu0 0.0
        %8684 = vmatprep.subr.mxu0 0.0
        %8685 = vmatpush1.msra.mxu0 0.0
        %8686 = vmatprep.subr.mxu0 0.0
        %8687 = vmatpush1.msra.mxu0 0.0
        %8688 = vmatprep.subr.mxu0 0.0
        %8689 = vmatpush1.msra.mxu0 0.0
        %8690 = vmatprep.subr.mxu0 0.0
        %8691 = vmatpush1.msra.mxu0 0.0
        %8692 = vmatprep.subr.mxu0 0.0
        %8693 = vmatpush1.msra.mxu0 0.0
        %8694 = vmatprep.subr.mxu0 0.0
        %8695 = vmatpush1.msra.mxu0 0.0
        %8696 = vmatprep.subr.mxu0 0.0
        %8697 = vmatpush1.msra.mxu0 0.0
        %8698 = vmatprep.subr.mxu0 0.0
        %8699 = vmatpush1.msra.mxu0 0.0
        %8700 = vmatprep.subr.mxu0 0.0
        %8701 = vmatpush1.msra.mxu0 0.0
        %8702 = vmatprep.subr.mxu0 0.0
        %8703 = vmatpush1.msra.mxu0 0.0
        %8704 = vmatprep.subr.mxu0 0.0
        %8705 = vmatpush1.msra.mxu0 0.0
        %8706 = vmatprep.subr.mxu0 0.0
        %8707 = vmatpush1.msra.mxu0 0.0
        %8708 = vmatprep.subr.mxu0 0.0
        %8709 = vmatpush1.msra.mxu0 0.0
        %8710 = vmatprep.subr.mxu0 0.0
        %8711 = vmatpush1.msra.mxu0 0.0
        %8712 = vmatprep.subr.mxu0 0.0
        %8713 = vmatpush1.msra.mxu0 0.0
        %8714 = vmatprep.mubr.f32.mxu0 0.0
        %8715 = vmatmul.mubr.f32.gmra.mrb[0].mxu0 %v8364
        %v8716 = vpop.f32.mrb[0].mxu0
        %v8717 = vadd.f32 0.0, %v8716
        %v8718 = vpop.f32.mrb[0].mxu0
        %8719 = vdwg.mxu0
        %v8720 = vadd.f32 %v8313, %v8433
        %v8721 = vadd.f32 %v8314, %v8435
        %v8722 = vadd.f32 %v8315, %v8504
        %v8723 = vadd.f32 %v8316, %v8506
        %v8724 = vadd.f32 %v8317, %v8575
        %v8725 = vadd.f32 %v8318, %v8577
        %v8726 = vadd.f32 %v8319, %v8646
        %v8727 = vadd.f32 %v8320, %v8648
        %v8728 = vadd.f32 %v8321, %v8717
        %s8729 = scalar_lea.vmem %s2, 152
        %v8730 = vld [vmem:[%s8729] sm:$0xff]
        %8731 = vrot.lane.b32.xlu0 %v1385, 16
        %v8732 = vpop.permute.xlu0 %8731
        %8733 = vrot.lane.b32.xlu0 %v1386, 16
        %v8734 = vpop.permute.xlu0 %8733
        %8735 = vrot.lane.b32.xlu0 %v1387, 16
        %v8736 = vpop.permute.xlu0 %8735
        %8737 = vrot.lane.b32.xlu0 %v1388, 16
        %v8738 = vpop.permute.xlu0 %8737
        %8739 = vrot.lane.b32.xlu0 %v1389, 16
        %v8740 = vpop.permute.xlu0 %8739
        %8741 = vrot.lane.b32.xlu0 %v1390, 16
        %v8742 = vpop.permute.xlu0 %8741
        %8743 = vrot.lane.b32.xlu0 %v1391, 16
        %v8744 = vpop.permute.xlu0 %8743
        %8745 = vrot.lane.b32.xlu0 %v1392, 16
        %v8746 = vpop.permute.xlu0 %8745
        %8747 = vrot.lane.b32.xlu0 %v1393, 16
        %v8748 = vpop.permute.xlu0 %8747
        %8749 = vrot.lane.b32.xlu0 %v1394, 16
        %v8750 = vpop.permute.xlu0 %8749
        %vm8751 = vcmask 130048
        %v8752 = vsel %vm8751, %v8732, %v8734
        %v8753 = vsel %vm8751, %v8734, %v8736
        %v8754 = vsel %vm8751, %v8736, %v8738
        %v8755 = vsel %vm8751, %v8738, %v8740
        %v8756 = vsel %vm8751, %v8740, %v8742
        %v8757 = vsel %vm8751, %v8742, %v8744
        %v8758 = vsel %vm8751, %v8744, %v8746
        %v8759 = vsel %vm8751, %v8746, %v8748
        %v8760 = vsel %vm8751, %v8748, %v8750
        %v8771 = vsel %vm1016, %v8730, 0
        %8773 = vmatprep.subr.mxu0 %v8753
        %8774 = vmatpush1.msra.mxu0 %v8752
        %8775 = vmatprep.subr.mxu0 0.0
        %8776 = vmatpush1.msra.mxu0 0.0
        %8777 = vmatprep.subr.mxu0 0.0
        %8778 = vmatpush1.msra.mxu0 0.0
        %8779 = vmatprep.subr.mxu0 0.0
        %8780 = vmatpush1.msra.mxu0 0.0
        %8781 = vmatprep.subr.mxu0 0.0
        %8782 = vmatpush1.msra.mxu0 0.0
        %8783 = vmatprep.subr.mxu0 0.0
        %8784 = vmatpush1.msra.mxu0 0.0
        %8785 = vmatprep.subr.mxu0 0.0
        %8786 = vmatpush1.msra.mxu0 0.0
        %8787 = vmatprep.subr.mxu0 0.0
        %8788 = vmatpush1.msra.mxu0 0.0
        %8789 = vmatprep.subr.mxu0 0.0
        %8790 = vmatpush1.msra.mxu0 0.0
        %8791 = vmatprep.subr.mxu0 0.0
        %8792 = vmatpush1.msra.mxu0 0.0
        %8793 = vmatprep.subr.mxu0 0.0
        %8794 = vmatpush1.msra.mxu0 0.0
        %8795 = vmatprep.subr.mxu0 0.0
        %8796 = vmatpush1.msra.mxu0 0.0
        %8797 = vmatprep.subr.mxu0 0.0
        %8798 = vmatpush1.msra.mxu0 0.0
        %8799 = vmatprep.subr.mxu0 0.0
        %8800 = vmatpush1.msra.mxu0 0.0
        %8801 = vmatprep.subr.mxu0 0.0
        %8802 = vmatpush1.msra.mxu0 0.0
        %8803 = vmatprep.subr.mxu0 0.0
        %8804 = vmatpush1.msra.mxu0 0.0
        %8805 = vmatprep.subr.mxu0 0.0
        %8806 = vmatpush1.msra.mxu0 0.0
        %8807 = vmatprep.subr.mxu0 0.0
        %8808 = vmatpush1.msra.mxu0 0.0
        %8809 = vmatprep.subr.mxu0 0.0
        %8810 = vmatpush1.msra.mxu0 0.0
        %8811 = vmatprep.subr.mxu0 0.0
        %8812 = vmatpush1.msra.mxu0 0.0
        %8813 = vmatprep.subr.mxu0 0.0
        %8814 = vmatpush1.msra.mxu0 0.0
        %8815 = vmatprep.subr.mxu0 0.0
        %8816 = vmatpush1.msra.mxu0 0.0
        %8817 = vmatprep.subr.mxu0 0.0
        %8818 = vmatpush1.msra.mxu0 0.0
        %8819 = vmatprep.subr.mxu0 0.0
        %8820 = vmatpush1.msra.mxu0 0.0
        %8821 = vmatprep.subr.mxu0 0.0
        %8822 = vmatpush1.msra.mxu0 0.0
        %8823 = vmatprep.subr.mxu0 0.0
        %8824 = vmatpush1.msra.mxu0 0.0
        %8825 = vmatprep.subr.mxu0 0.0
        %8826 = vmatpush1.msra.mxu0 0.0
        %8827 = vmatprep.subr.mxu0 0.0
        %8828 = vmatpush1.msra.mxu0 0.0
        %8829 = vmatprep.subr.mxu0 0.0
        %8830 = vmatpush1.msra.mxu0 0.0
        %8831 = vmatprep.subr.mxu0 0.0
        %8832 = vmatpush1.msra.mxu0 0.0
        %8833 = vmatprep.subr.mxu0 0.0
        %8834 = vmatpush1.msra.mxu0 0.0
        %8835 = vmatprep.subr.mxu0 0.0
        %8836 = vmatpush1.msra.mxu0 0.0
        %8837 = vmatprep.mubr.f32.mxu0 0.0
        %8838 = vmatmul.mubr.f32.gmra.mrb[0].mxu0 %v8771
        %v8839 = vpop.f32.mrb[0].mxu0
        %v8840 = vadd.f32 0.0, %v8839
        %v8841 = vpop.f32.mrb[0].mxu0
        %v8842 = vadd.f32 0.0, %v8841
        %8843 = vdwg.mxu0
        %8844 = vmatprep.subr.mxu0 %v8755
        %8845 = vmatpush1.msra.mxu0 %v8754
        %8846 = vmatprep.subr.mxu0 0.0
        %8847 = vmatpush1.msra.mxu0 0.0
        %8848 = vmatprep.subr.mxu0 0.0
        %8849 = vmatpush1.msra.mxu0 0.0
        %8850 = vmatprep.subr.mxu0 0.0
        %8851 = vmatpush1.msra.mxu0 0.0
        %8852 = vmatprep.subr.mxu0 0.0
        %8853 = vmatpush1.msra.mxu0 0.0
        %8854 = vmatprep.subr.mxu0 0.0
        %8855 = vmatpush1.msra.mxu0 0.0
        %8856 = vmatprep.subr.mxu0 0.0
        %8857 = vmatpush1.msra.mxu0 0.0
        %8858 = vmatprep.subr.mxu0 0.0
        %8859 = vmatpush1.msra.mxu0 0.0
        %8860 = vmatprep.subr.mxu0 0.0
        %8861 = vmatpush1.msra.mxu0 0.0
        %8862 = vmatprep.subr.mxu0 0.0
        %8863 = vmatpush1.msra.mxu0 0.0
        %8864 = vmatprep.subr.mxu0 0.0
        %8865 = vmatpush1.msra.mxu0 0.0
        %8866 = vmatprep.subr.mxu0 0.0
        %8867 = vmatpush1.msra.mxu0 0.0
        %8868 = vmatprep.subr.mxu0 0.0
        %8869 = vmatpush1.msra.mxu0 0.0
        %8870 = vmatprep.subr.mxu0 0.0
        %8871 = vmatpush1.msra.mxu0 0.0
        %8872 = vmatprep.subr.mxu0 0.0
        %8873 = vmatpush1.msra.mxu0 0.0
        %8874 = vmatprep.subr.mxu0 0.0
        %8875 = vmatpush1.msra.mxu0 0.0
        %8876 = vmatprep.subr.mxu0 0.0
        %8877 = vmatpush1.msra.mxu0 0.0
        %8878 = vmatprep.subr.mxu0 0.0
        %8879 = vmatpush1.msra.mxu0 0.0
        %8880 = vmatprep.subr.mxu0 0.0
        %8881 = vmatpush1.msra.mxu0 0.0
        %8882 = vmatprep.subr.mxu0 0.0
        %8883 = vmatpush1.msra.mxu0 0.0
        %8884 = vmatprep.subr.mxu0 0.0
        %8885 = vmatpush1.msra.mxu0 0.0
        %8886 = vmatprep.subr.mxu0 0.0
        %8887 = vmatpush1.msra.mxu0 0.0
        %8888 = vmatprep.subr.mxu0 0.0
        %8889 = vmatpush1.msra.mxu0 0.0
        %8890 = vmatprep.subr.mxu0 0.0
        %8891 = vmatpush1.msra.mxu0 0.0
        %8892 = vmatprep.subr.mxu0 0.0
        %8893 = vmatpush1.msra.mxu0 0.0
        %8894 = vmatprep.subr.mxu0 0.0
        %8895 = vmatpush1.msra.mxu0 0.0
        %8896 = vmatprep.subr.mxu0 0.0
        %8897 = vmatpush1.msra.mxu0 0.0
        %8898 = vmatprep.subr.mxu0 0.0
        %8899 = vmatpush1.msra.mxu0 0.0
        %8900 = vmatprep.subr.mxu0 0.0
        %8901 = vmatpush1.msra.mxu0 0.0
        %8902 = vmatprep.subr.mxu0 0.0
        %8903 = vmatpush1.msra.mxu0 0.0
        %8904 = vmatprep.subr.mxu0 0.0
        %8905 = vmatpush1.msra.mxu0 0.0
        %8906 = vmatprep.subr.mxu0 0.0
        %8907 = vmatpush1.msra.mxu0 0.0
        %8908 = vmatprep.mubr.f32.mxu0 0.0
        %8909 = vmatmul.mubr.f32.gmra.mrb[0].mxu0 %v8771
        %v8910 = vpop.f32.mrb[0].mxu0
        %v8911 = vadd.f32 0.0, %v8910
        %v8912 = vpop.f32.mrb[0].mxu0
        %v8913 = vadd.f32 0.0, %v8912
        %8914 = vdwg.mxu0
        %8915 = vmatprep.subr.mxu0 %v8757
        %8916 = vmatpush1.msra.mxu0 %v8756
        %8917 = vmatprep.subr.mxu0 0.0
        %8918 = vmatpush1.msra.mxu0 0.0
        %8919 = vmatprep.subr.mxu0 0.0
        %8920 = vmatpush1.msra.mxu0 0.0
        %8921 = vmatprep.subr.mxu0 0.0
        %8922 = vmatpush1.msra.mxu0 0.0
        %8923 = vmatprep.subr.mxu0 0.0
        %8924 = vmatpush1.msra.mxu0 0.0
        %8925 = vmatprep.subr.mxu0 0.0
        %8926 = vmatpush1.msra.mxu0 0.0
        %8927 = vmatprep.subr.mxu0 0.0
        %8928 = vmatpush1.msra.mxu0 0.0
        %8929 = vmatprep.subr.mxu0 0.0
        %8930 = vmatpush1.msra.mxu0 0.0
        %8931 = vmatprep.subr.mxu0 0.0
        %8932 = vmatpush1.msra.mxu0 0.0
        %8933 = vmatprep.subr.mxu0 0.0
        %8934 = vmatpush1.msra.mxu0 0.0
        %8935 = vmatprep.subr.mxu0 0.0
        %8936 = vmatpush1.msra.mxu0 0.0
        %8937 = vmatprep.subr.mxu0 0.0
        %8938 = vmatpush1.msra.mxu0 0.0
        %8939 = vmatprep.subr.mxu0 0.0
        %8940 = vmatpush1.msra.mxu0 0.0
        %8941 = vmatprep.subr.mxu0 0.0
        %8942 = vmatpush1.msra.mxu0 0.0
        %8943 = vmatprep.subr.mxu0 0.0
        %8944 = vmatpush1.msra.mxu0 0.0
        %8945 = vmatprep.subr.mxu0 0.0
        %8946 = vmatpush1.msra.mxu0 0.0
        %8947 = vmatprep.subr.mxu0 0.0
        %8948 = vmatpush1.msra.mxu0 0.0
        %8949 = vmatprep.subr.mxu0 0.0
        %8950 = vmatpush1.msra.mxu0 0.0
        %8951 = vmatprep.subr.mxu0 0.0
        %8952 = vmatpush1.msra.mxu0 0.0
        %8953 = vmatprep.subr.mxu0 0.0
        %8954 = vmatpush1.msra.mxu0 0.0
        %8955 = vmatprep.subr.mxu0 0.0
        %8956 = vmatpush1.msra.mxu0 0.0
        %8957 = vmatprep.subr.mxu0 0.0
        %8958 = vmatpush1.msra.mxu0 0.0
        %8959 = vmatprep.subr.mxu0 0.0
        %8960 = vmatpush1.msra.mxu0 0.0
        %8961 = vmatprep.subr.mxu0 0.0
        %8962 = vmatpush1.msra.mxu0 0.0
        %8963 = vmatprep.subr.mxu0 0.0
        %8964 = vmatpush1.msra.mxu0 0.0
        %8965 = vmatprep.subr.mxu0 0.0
        %8966 = vmatpush1.msra.mxu0 0.0
        %8967 = vmatprep.subr.mxu0 0.0
        %8968 = vmatpush1.msra.mxu0 0.0
        %8969 = vmatprep.subr.mxu0 0.0
        %8970 = vmatpush1.msra.mxu0 0.0
        %8971 = vmatprep.subr.mxu0 0.0
        %8972 = vmatpush1.msra.mxu0 0.0
        %8973 = vmatprep.subr.mxu0 0.0
        %8974 = vmatpush1.msra.mxu0 0.0
        %8975 = vmatprep.subr.mxu0 0.0
        %8976 = vmatpush1.msra.mxu0 0.0
        %8977 = vmatprep.subr.mxu0 0.0
        %8978 = vmatpush1.msra.mxu0 0.0
        %8979 = vmatprep.mubr.f32.mxu0 0.0
        %8980 = vmatmul.mubr.f32.gmra.mrb[0].mxu0 %v8771
        %v8981 = vpop.f32.mrb[0].mxu0
        %v8982 = vadd.f32 0.0, %v8981
        %v8983 = vpop.f32.mrb[0].mxu0
        %v8984 = vadd.f32 0.0, %v8983
        %8985 = vdwg.mxu0
        %8986 = vmatprep.subr.mxu0 %v8759
        %8987 = vmatpush1.msra.mxu0 %v8758
        %8988 = vmatprep.subr.mxu0 0.0
        %8989 = vmatpush1.msra.mxu0 0.0
        %8990 = vmatprep.subr.mxu0 0.0
        %8991 = vmatpush1.msra.mxu0 0.0
        %8992 = vmatprep.subr.mxu0 0.0
        %8993 = vmatpush1.msra.mxu0 0.0
        %8994 = vmatprep.subr.mxu0 0.0
        %8995 = vmatpush1.msra.mxu0 0.0
        %8996 = vmatprep.subr.mxu0 0.0
        %8997 = vmatpush1.msra.mxu0 0.0
        %8998 = vmatprep.subr.mxu0 0.0
        %8999 = vmatpush1.msra.mxu0 0.0
        %9000 = vmatprep.subr.mxu0 0.0
        %9001 = vmatpush1.msra.mxu0 0.0
        %9002 = vmatprep.subr.mxu0 0.0
        %9003 = vmatpush1.msra.mxu0 0.0
        %9004 = vmatprep.subr.mxu0 0.0
        %9005 = vmatpush1.msra.mxu0 0.0
        %9006 = vmatprep.subr.mxu0 0.0
        %9007 = vmatpush1.msra.mxu0 0.0
        %9008 = vmatprep.subr.mxu0 0.0
        %9009 = vmatpush1.msra.mxu0 0.0
        %9010 = vmatprep.subr.mxu0 0.0
        %9011 = vmatpush1.msra.mxu0 0.0
        %9012 = vmatprep.subr.mxu0 0.0
        %9013 = vmatpush1.msra.mxu0 0.0
        %9014 = vmatprep.subr.mxu0 0.0
        %9015 = vmatpush1.msra.mxu0 0.0
        %9016 = vmatprep.subr.mxu0 0.0
        %9017 = vmatpush1.msra.mxu0 0.0
        %9018 = vmatprep.subr.mxu0 0.0
        %9019 = vmatpush1.msra.mxu0 0.0
        %9020 = vmatprep.subr.mxu0 0.0
        %9021 = vmatpush1.msra.mxu0 0.0
        %9022 = vmatprep.subr.mxu0 0.0
        %9023 = vmatpush1.msra.mxu0 0.0
        %9024 = vmatprep.subr.mxu0 0.0
        %9025 = vmatpush1.msra.mxu0 0.0
        %9026 = vmatprep.subr.mxu0 0.0
        %9027 = vmatpush1.msra.mxu0 0.0
        %9028 = vmatprep.subr.mxu0 0.0
        %9029 = vmatpush1.msra.mxu0 0.0
        %9030 = vmatprep.subr.mxu0 0.0
        %9031 = vmatpush1.msra.mxu0 0.0
        %9032 = vmatprep.subr.mxu0 0.0
        %9033 = vmatpush1.msra.mxu0 0.0
        %9034 = vmatprep.subr.mxu0 0.0
        %9035 = vmatpush1.msra.mxu0 0.0
        %9036 = vmatprep.subr.mxu0 0.0
        %9037 = vmatpush1.msra.mxu0 0.0
        %9038 = vmatprep.subr.mxu0 0.0
        %9039 = vmatpush1.msra.mxu0 0.0
        %9040 = vmatprep.subr.mxu0 0.0
        %9041 = vmatpush1.msra.mxu0 0.0
        %9042 = vmatprep.subr.mxu0 0.0
        %9043 = vmatpush1.msra.mxu0 0.0
        %9044 = vmatprep.subr.mxu0 0.0
        %9045 = vmatpush1.msra.mxu0 0.0
        %9046 = vmatprep.subr.mxu0 0.0
        %9047 = vmatpush1.msra.mxu0 0.0
        %9048 = vmatprep.subr.mxu0 0.0
        %9049 = vmatpush1.msra.mxu0 0.0
        %9050 = vmatprep.mubr.f32.mxu0 0.0
        %9051 = vmatmul.mubr.f32.gmra.mrb[0].mxu0 %v8771
        %v9052 = vpop.f32.mrb[0].mxu0
        %v9053 = vadd.f32 0.0, %v9052
        %v9054 = vpop.f32.mrb[0].mxu0
        %v9055 = vadd.f32 0.0, %v9054
        %9056 = vdwg.mxu0
        %9057 = vmatprep.subr.mxu0 0.0
        %9058 = vmatpush1.msra.mxu0 %v8760
        %9059 = vmatprep.subr.mxu0 0.0
        %9060 = vmatpush1.msra.mxu0 0.0
        %9061 = vmatprep.subr.mxu0 0.0
        %9062 = vmatpush1.msra.mxu0 0.0
        %9063 = vmatprep.subr.mxu0 0.0
        %9064 = vmatpush1.msra.mxu0 0.0
        %9065 = vmatprep.subr.mxu0 0.0
        %9066 = vmatpush1.msra.mxu0 0.0
        %9067 = vmatprep.subr.mxu0 0.0
        %9068 = vmatpush1.msra.mxu0 0.0
        %9069 = vmatprep.subr.mxu0 0.0
        %9070 = vmatpush1.msra.mxu0 0.0
        %9071 = vmatprep.subr.mxu0 0.0
        %9072 = vmatpush1.msra.mxu0 0.0
        %9073 = vmatprep.subr.mxu0 0.0
        %9074 = vmatpush1.msra.mxu0 0.0
        %9075 = vmatprep.subr.mxu0 0.0
        %9076 = vmatpush1.msra.mxu0 0.0
        %9077 = vmatprep.subr.mxu0 0.0
        %9078 = vmatpush1.msra.mxu0 0.0
        %9079 = vmatprep.subr.mxu0 0.0
        %9080 = vmatpush1.msra.mxu0 0.0
        %9081 = vmatprep.subr.mxu0 0.0
        %9082 = vmatpush1.msra.mxu0 0.0
        %9083 = vmatprep.subr.mxu0 0.0
        %9084 = vmatpush1.msra.mxu0 0.0
        %9085 = vmatprep.subr.mxu0 0.0
        %9086 = vmatpush1.msra.mxu0 0.0
        %9087 = vmatprep.subr.mxu0 0.0
        %9088 = vmatpush1.msra.mxu0 0.0
        %9089 = vmatprep.subr.mxu0 0.0
        %9090 = vmatpush1.msra.mxu0 0.0
        %9091 = vmatprep.subr.mxu0 0.0
        %9092 = vmatpush1.msra.mxu0 0.0
        %9093 = vmatprep.subr.mxu0 0.0
        %9094 = vmatpush1.msra.mxu0 0.0
        %9095 = vmatprep.subr.mxu0 0.0
        %9096 = vmatpush1.msra.mxu0 0.0
        %9097 = vmatprep.subr.mxu0 0.0
        %9098 = vmatpush1.msra.mxu0 0.0
        %9099 = vmatprep.subr.mxu0 0.0
        %9100 = vmatpush1.msra.mxu0 0.0
        %9101 = vmatprep.subr.mxu0 0.0
        %9102 = vmatpush1.msra.mxu0 0.0
        %9103 = vmatprep.subr.mxu0 0.0
        %9104 = vmatpush1.msra.mxu0 0.0
        %9105 = vmatprep.subr.mxu0 0.0
        %9106 = vmatpush1.msra.mxu0 0.0
        %9107 = vmatprep.subr.mxu0 0.0
        %9108 = vmatpush1.msra.mxu0 0.0
        %9109 = vmatprep.subr.mxu0 0.0
        %9110 = vmatpush1.msra.mxu0 0.0
        %9111 = vmatprep.subr.mxu0 0.0
        %9112 = vmatpush1.msra.mxu0 0.0
        %9113 = vmatprep.subr.mxu0 0.0
        %9114 = vmatpush1.msra.mxu0 0.0
        %9115 = vmatprep.subr.mxu0 0.0
        %9116 = vmatpush1.msra.mxu0 0.0
        %9117 = vmatprep.subr.mxu0 0.0
        %9118 = vmatpush1.msra.mxu0 0.0
        %9119 = vmatprep.subr.mxu0 0.0
        %9120 = vmatpush1.msra.mxu0 0.0
        %9121 = vmatprep.mubr.f32.mxu0 0.0
        %9122 = vmatmul.mubr.f32.gmra.mrb[0].mxu0 %v8771
        %v9123 = vpop.f32.mrb[0].mxu0
        %v9124 = vadd.f32 0.0, %v9123
        %v9125 = vpop.f32.mrb[0].mxu0
        %9126 = vdwg.mxu0
        %v9127 = vadd.f32 %v8720, %v8840
        %v9128 = vadd.f32 %v8721, %v8842
        %v9129 = vadd.f32 %v8722, %v8911
        %v9130 = vadd.f32 %v8723, %v8913
        %v9131 = vadd.f32 %v8724, %v8982
        %v9132 = vadd.f32 %v8725, %v8984
        %v9133 = vadd.f32 %v8726, %v9053
        %v9134 = vadd.f32 %v8727, %v9055
        %v9135 = vadd.f32 %v8728, %v9124
        %s9136 = scalar_lea.vmem %s2, 160
        %v9137 = vld [vmem:[%s9136] sm:$0xff]
        %v9138 = vld [vmem:[#allocation2 + $0x8] sm:$0xff]
        %v9139 = vld [vmem:[#allocation2 + $0x10] sm:$0xff]
        %v9140 = vld [vmem:[#allocation2 + $0x18] sm:$0xff]
        %v9141 = vld [vmem:[#allocation2 + $0x20] sm:$0xff]
        %v9142 = vld [vmem:[#allocation2 + $0x28] sm:$0xff]
        %v9143 = vld [vmem:[#allocation2 + $0x30] sm:$0xff]
        %v9144 = vld [vmem:[#allocation2 + $0x38] sm:$0xff]
        %v9145 = vld [vmem:[#allocation2 + $0x40] sm:$0xff]
        %v9146 = vld [vmem:[#allocation2 + $0x48] sm:$0xff]
        %v9147 = vld [vmem:[#allocation2 + $0x50] sm:$0xff]
        %9158 = vrot.lane.b32.xlu0 %v9138, 112
        %v9159 = vpop.permute.xlu0 %9158
        %9160 = vrot.lane.b32.xlu0 %v9139, 112
        %v9161 = vpop.permute.xlu0 %9160
        %9162 = vrot.lane.b32.xlu0 %v9140, 112
        %v9163 = vpop.permute.xlu0 %9162
        %9164 = vrot.lane.b32.xlu0 %v9141, 112
        %v9165 = vpop.permute.xlu0 %9164
        %9166 = vrot.lane.b32.xlu0 %v9142, 112
        %v9167 = vpop.permute.xlu0 %9166
        %9168 = vrot.lane.b32.xlu0 %v9143, 112
        %v9169 = vpop.permute.xlu0 %9168
        %9170 = vrot.lane.b32.xlu0 %v9144, 112
        %v9171 = vpop.permute.xlu0 %9170
        %9172 = vrot.lane.b32.xlu0 %v9145, 112
        %v9173 = vpop.permute.xlu0 %9172
        %9174 = vrot.lane.b32.xlu0 %v9146, 112
        %v9175 = vpop.permute.xlu0 %9174
        %9176 = vrot.lane.b32.xlu0 %v9147, 112
        %v9177 = vpop.permute.xlu0 %9176
        %vm9178 = vcmask 916480
        %v9179 = vsel %vm9178, %v9159, %v9161
        %v9180 = vsel %vm9178, %v9161, %v9163
        %v9181 = vsel %vm9178, %v9163, %v9165
        %v9182 = vsel %vm9178, %v9165, %v9167
        %v9183 = vsel %vm9178, %v9167, %v9169
        %v9184 = vsel %vm9178, %v9169, %v9171
        %v9185 = vsel %vm9178, %v9171, %v9173
        %v9186 = vsel %vm9178, %v9173, %v9175
        %v9187 = vsel %vm9178, %v9175, %v9177
        %v9198 = vsel %vm1016, %v9137, 0
        %9200 = vmatprep.subr.mxu0 %v9180
        %9201 = vmatpush1.msra.mxu0 %v9179
        %9202 = vmatprep.subr.mxu0 0.0
        %9203 = vmatpush1.msra.mxu0 0.0
        %9204 = vmatprep.subr.mxu0 0.0
        %9205 = vmatpush1.msra.mxu0 0.0
        %9206 = vmatprep.subr.mxu0 0.0
        %9207 = vmatpush1.msra.mxu0 0.0
        %9208 = vmatprep.subr.mxu0 0.0
        %9209 = vmatpush1.msra.mxu0 0.0
        %9210 = vmatprep.subr.mxu0 0.0
        %9211 = vmatpush1.msra.mxu0 0.0
        %9212 = vmatprep.subr.mxu0 0.0
        %9213 = vmatpush1.msra.mxu0 0.0
        %9214 = vmatprep.subr.mxu0 0.0
        %9215 = vmatpush1.msra.mxu0 0.0
        %9216 = vmatprep.subr.mxu0 0.0
        %9217 = vmatpush1.msra.mxu0 0.0
        %9218 = vmatprep.subr.mxu0 0.0
        %9219 = vmatpush1.msra.mxu0 0.0
        %9220 = vmatprep.subr.mxu0 0.0
        %9221 = vmatpush1.msra.mxu0 0.0
        %9222 = vmatprep.subr.mxu0 0.0
        %9223 = vmatpush1.msra.mxu0 0.0
        %9224 = vmatprep.subr.mxu0 0.0
        %9225 = vmatpush1.msra.mxu0 0.0
        %9226 = vmatprep.subr.mxu0 0.0
        %9227 = vmatpush1.msra.mxu0 0.0
        %9228 = vmatprep.subr.mxu0 0.0
        %9229 = vmatpush1.msra.mxu0 0.0
        %9230 = vmatprep.subr.mxu0 0.0
        %9231 = vmatpush1.msra.mxu0 0.0
        %9232 = vmatprep.subr.mxu0 0.0
        %9233 = vmatpush1.msra.mxu0 0.0
        %9234 = vmatprep.subr.mxu0 0.0
        %9235 = vmatpush1.msra.mxu0 0.0
        %9236 = vmatprep.subr.mxu0 0.0
        %9237 = vmatpush1.msra.mxu0 0.0
        %9238 = vmatprep.subr.mxu0 0.0
        %9239 = vmatpush1.msra.mxu0 0.0
        %9240 = vmatprep.subr.mxu0 0.0
        %9241 = vmatpush1.msra.mxu0 0.0
        %9242 = vmatprep.subr.mxu0 0.0
        %9243 = vmatpush1.msra.mxu0 0.0
        %9244 = vmatprep.subr.mxu0 0.0
        %9245 = vmatpush1.msra.mxu0 0.0
        %9246 = vmatprep.subr.mxu0 0.0
        %9247 = vmatpush1.msra.mxu0 0.0
        %9248 = vmatprep.subr.mxu0 0.0
        %9249 = vmatpush1.msra.mxu0 0.0
        %9250 = vmatprep.subr.mxu0 0.0
        %9251 = vmatpush1.msra.mxu0 0.0
        %9252 = vmatprep.subr.mxu0 0.0
        %9253 = vmatpush1.msra.mxu0 0.0
        %9254 = vmatprep.subr.mxu0 0.0
        %9255 = vmatpush1.msra.mxu0 0.0
        %9256 = vmatprep.subr.mxu0 0.0
        %9257 = vmatpush1.msra.mxu0 0.0
        %9258 = vmatprep.subr.mxu0 0.0
        %9259 = vmatpush1.msra.mxu0 0.0
        %9260 = vmatprep.subr.mxu0 0.0
        %9261 = vmatpush1.msra.mxu0 0.0
        %9262 = vmatprep.subr.mxu0 0.0
        %9263 = vmatpush1.msra.mxu0 0.0
        %9264 = vmatprep.mubr.f32.mxu0 0.0
        %9265 = vmatmul.mubr.f32.gmra.mrb[0].mxu0 %v9198
        %v9266 = vpop.f32.mrb[0].mxu0
        %v9267 = vadd.f32 0.0, %v9266
        %v9268 = vpop.f32.mrb[0].mxu0
        %v9269 = vadd.f32 0.0, %v9268
        %9270 = vdwg.mxu0
        %9271 = vmatprep.subr.mxu0 %v9182
        %9272 = vmatpush1.msra.mxu0 %v9181
        %9273 = vmatprep.subr.mxu0 0.0
        %9274 = vmatpush1.msra.mxu0 0.0
        %9275 = vmatprep.subr.mxu0 0.0
        %9276 = vmatpush1.msra.mxu0 0.0
        %9277 = vmatprep.subr.mxu0 0.0
        %9278 = vmatpush1.msra.mxu0 0.0
        %9279 = vmatprep.subr.mxu0 0.0
        %9280 = vmatpush1.msra.mxu0 0.0
        %9281 = vmatprep.subr.mxu0 0.0
        %9282 = vmatpush1.msra.mxu0 0.0
        %9283 = vmatprep.subr.mxu0 0.0
        %9284 = vmatpush1.msra.mxu0 0.0
        %9285 = vmatprep.subr.mxu0 0.0
        %9286 = vmatpush1.msra.mxu0 0.0
        %9287 = vmatprep.subr.mxu0 0.0
        %9288 = vmatpush1.msra.mxu0 0.0
        %9289 = vmatprep.subr.mxu0 0.0
        %9290 = vmatpush1.msra.mxu0 0.0
        %9291 = vmatprep.subr.mxu0 0.0
        %9292 = vmatpush1.msra.mxu0 0.0
        %9293 = vmatprep.subr.mxu0 0.0
        %9294 = vmatpush1.msra.mxu0 0.0
        %9295 = vmatprep.subr.mxu0 0.0
        %9296 = vmatpush1.msra.mxu0 0.0
        %9297 = vmatprep.subr.mxu0 0.0
        %9298 = vmatpush1.msra.mxu0 0.0
        %9299 = vmatprep.subr.mxu0 0.0
        %9300 = vmatpush1.msra.mxu0 0.0
        %9301 = vmatprep.subr.mxu0 0.0
        %9302 = vmatpush1.msra.mxu0 0.0
        %9303 = vmatprep.subr.mxu0 0.0
        %9304 = vmatpush1.msra.mxu0 0.0
        %9305 = vmatprep.subr.mxu0 0.0
        %9306 = vmatpush1.msra.mxu0 0.0
        %9307 = vmatprep.subr.mxu0 0.0
        %9308 = vmatpush1.msra.mxu0 0.0
        %9309 = vmatprep.subr.mxu0 0.0
        %9310 = vmatpush1.msra.mxu0 0.0
        %9311 = vmatprep.subr.mxu0 0.0
        %9312 = vmatpush1.msra.mxu0 0.0
        %9313 = vmatprep.subr.mxu0 0.0
        %9314 = vmatpush1.msra.mxu0 0.0
        %9315 = vmatprep.subr.mxu0 0.0
        %9316 = vmatpush1.msra.mxu0 0.0
        %9317 = vmatprep.subr.mxu0 0.0
        %9318 = vmatpush1.msra.mxu0 0.0
        %9319 = vmatprep.subr.mxu0 0.0
        %9320 = vmatpush1.msra.mxu0 0.0
        %9321 = vmatprep.subr.mxu0 0.0
        %9322 = vmatpush1.msra.mxu0 0.0
        %9323 = vmatprep.subr.mxu0 0.0
        %9324 = vmatpush1.msra.mxu0 0.0
        %9325 = vmatprep.subr.mxu0 0.0
        %9326 = vmatpush1.msra.mxu0 0.0
        %9327 = vmatprep.subr.mxu0 0.0
        %9328 = vmatpush1.msra.mxu0 0.0
        %9329 = vmatprep.subr.mxu0 0.0
        %9330 = vmatpush1.msra.mxu0 0.0
        %9331 = vmatprep.subr.mxu0 0.0
        %9332 = vmatpush1.msra.mxu0 0.0
        %9333 = vmatprep.subr.mxu0 0.0
        %9334 = vmatpush1.msra.mxu0 0.0
        %9335 = vmatprep.mubr.f32.mxu0 0.0
        %9336 = vmatmul.mubr.f32.gmra.mrb[0].mxu0 %v9198
        %v9337 = vpop.f32.mrb[0].mxu0
        %v9338 = vadd.f32 0.0, %v9337
        %v9339 = vpop.f32.mrb[0].mxu0
        %v9340 = vadd.f32 0.0, %v9339
        %9341 = vdwg.mxu0
        %9342 = vmatprep.subr.mxu0 %v9184
        %9343 = vmatpush1.msra.mxu0 %v9183
        %9344 = vmatprep.subr.mxu0 0.0
        %9345 = vmatpush1.msra.mxu0 0.0
        %9346 = vmatprep.subr.mxu0 0.0
        %9347 = vmatpush1.msra.mxu0 0.0
        %9348 = vmatprep.subr.mxu0 0.0
        %9349 = vmatpush1.msra.mxu0 0.0
        %9350 = vmatprep.subr.mxu0 0.0
        %9351 = vmatpush1.msra.mxu0 0.0
        %9352 = vmatprep.subr.mxu0 0.0
        %9353 = vmatpush1.msra.mxu0 0.0
        %9354 = vmatprep.subr.mxu0 0.0
        %9355 = vmatpush1.msra.mxu0 0.0
        %9356 = vmatprep.subr.mxu0 0.0
        %9357 = vmatpush1.msra.mxu0 0.0
        %9358 = vmatprep.subr.mxu0 0.0
        %9359 = vmatpush1.msra.mxu0 0.0
        %9360 = vmatprep.subr.mxu0 0.0
        %9361 = vmatpush1.msra.mxu0 0.0
        %9362 = vmatprep.subr.mxu0 0.0
        %9363 = vmatpush1.msra.mxu0 0.0
        %9364 = vmatprep.subr.mxu0 0.0
        %9365 = vmatpush1.msra.mxu0 0.0
        %9366 = vmatprep.subr.mxu0 0.0
        %9367 = vmatpush1.msra.mxu0 0.0
        %9368 = vmatprep.subr.mxu0 0.0
        %9369 = vmatpush1.msra.mxu0 0.0
        %9370 = vmatprep.subr.mxu0 0.0
        %9371 = vmatpush1.msra.mxu0 0.0
        %9372 = vmatprep.subr.mxu0 0.0
        %9373 = vmatpush1.msra.mxu0 0.0
        %9374 = vmatprep.subr.mxu0 0.0
        %9375 = vmatpush1.msra.mxu0 0.0
        %9376 = vmatprep.subr.mxu0 0.0
        %9377 = vmatpush1.msra.mxu0 0.0
        %9378 = vmatprep.subr.mxu0 0.0
        %9379 = vmatpush1.msra.mxu0 0.0
        %9380 = vmatprep.subr.mxu0 0.0
        %9381 = vmatpush1.msra.mxu0 0.0
        %9382 = vmatprep.subr.mxu0 0.0
        %9383 = vmatpush1.msra.mxu0 0.0
        %9384 = vmatprep.subr.mxu0 0.0
        %9385 = vmatpush1.msra.mxu0 0.0
        %9386 = vmatprep.subr.mxu0 0.0
        %9387 = vmatpush1.msra.mxu0 0.0
        %9388 = vmatprep.subr.mxu0 0.0
        %9389 = vmatpush1.msra.mxu0 0.0
        %9390 = vmatprep.subr.mxu0 0.0
        %9391 = vmatpush1.msra.mxu0 0.0
        %9392 = vmatprep.subr.mxu0 0.0
        %9393 = vmatpush1.msra.mxu0 0.0
        %9394 = vmatprep.subr.mxu0 0.0
        %9395 = vmatpush1.msra.mxu0 0.0
        %9396 = vmatprep.subr.mxu0 0.0
        %9397 = vmatpush1.msra.mxu0 0.0
        %9398 = vmatprep.subr.mxu0 0.0
        %9399 = vmatpush1.msra.mxu0 0.0
        %9400 = vmatprep.subr.mxu0 0.0
        %9401 = vmatpush1.msra.mxu0 0.0
        %9402 = vmatprep.subr.mxu0 0.0
        %9403 = vmatpush1.msra.mxu0 0.0
        %9404 = vmatprep.subr.mxu0 0.0
        %9405 = vmatpush1.msra.mxu0 0.0
        %9406 = vmatprep.mubr.f32.mxu0 0.0
        %9407 = vmatmul.mubr.f32.gmra.mrb[0].mxu0 %v9198
        %v9408 = vpop.f32.mrb[0].mxu0
        %v9409 = vadd.f32 0.0, %v9408
        %v9410 = vpop.f32.mrb[0].mxu0
        %v9411 = vadd.f32 0.0, %v9410
        %9412 = vdwg.mxu0
        %9413 = vmatprep.subr.mxu0 %v9186
        %9414 = vmatpush1.msra.mxu0 %v9185
        %9415 = vmatprep.subr.mxu0 0.0
        %9416 = vmatpush1.msra.mxu0 0.0
        %9417 = vmatprep.subr.mxu0 0.0
        %9418 = vmatpush1.msra.mxu0 0.0
        %9419 = vmatprep.subr.mxu0 0.0
        %9420 = vmatpush1.msra.mxu0 0.0
        %9421 = vmatprep.subr.mxu0 0.0
        %9422 = vmatpush1.msra.mxu0 0.0
        %9423 = vmatprep.subr.mxu0 0.0
        %9424 = vmatpush1.msra.mxu0 0.0
        %9425 = vmatprep.subr.mxu0 0.0
        %9426 = vmatpush1.msra.mxu0 0.0
        %9427 = vmatprep.subr.mxu0 0.0
        %9428 = vmatpush1.msra.mxu0 0.0
        %9429 = vmatprep.subr.mxu0 0.0
        %9430 = vmatpush1.msra.mxu0 0.0
        %9431 = vmatprep.subr.mxu0 0.0
        %9432 = vmatpush1.msra.mxu0 0.0
        %9433 = vmatprep.subr.mxu0 0.0
        %9434 = vmatpush1.msra.mxu0 0.0
        %9435 = vmatprep.subr.mxu0 0.0
        %9436 = vmatpush1.msra.mxu0 0.0
        %9437 = vmatprep.subr.mxu0 0.0
        %9438 = vmatpush1.msra.mxu0 0.0
        %9439 = vmatprep.subr.mxu0 0.0
        %9440 = vmatpush1.msra.mxu0 0.0
        %9441 = vmatprep.subr.mxu0 0.0
        %9442 = vmatpush1.msra.mxu0 0.0
        %9443 = vmatprep.subr.mxu0 0.0
        %9444 = vmatpush1.msra.mxu0 0.0
        %9445 = vmatprep.subr.mxu0 0.0
        %9446 = vmatpush1.msra.mxu0 0.0
        %9447 = vmatprep.subr.mxu0 0.0
        %9448 = vmatpush1.msra.mxu0 0.0
        %9449 = vmatprep.subr.mxu0 0.0
        %9450 = vmatpush1.msra.mxu0 0.0
        %9451 = vmatprep.subr.mxu0 0.0
        %9452 = vmatpush1.msra.mxu0 0.0
        %9453 = vmatprep.subr.mxu0 0.0
        %9454 = vmatpush1.msra.mxu0 0.0
        %9455 = vmatprep.subr.mxu0 0.0
        %9456 = vmatpush1.msra.mxu0 0.0
        %9457 = vmatprep.subr.mxu0 0.0
        %9458 = vmatpush1.msra.mxu0 0.0
        %9459 = vmatprep.subr.mxu0 0.0
        %9460 = vmatpush1.msra.mxu0 0.0
        %9461 = vmatprep.subr.mxu0 0.0
        %9462 = vmatpush1.msra.mxu0 0.0
        %9463 = vmatprep.subr.mxu0 0.0
        %9464 = vmatpush1.msra.mxu0 0.0
        %9465 = vmatprep.subr.mxu0 0.0
        %9466 = vmatpush1.msra.mxu0 0.0
        %9467 = vmatprep.subr.mxu0 0.0
        %9468 = vmatpush1.msra.mxu0 0.0
        %9469 = vmatprep.subr.mxu0 0.0
        %9470 = vmatpush1.msra.mxu0 0.0
        %9471 = vmatprep.subr.mxu0 0.0
        %9472 = vmatpush1.msra.mxu0 0.0
        %9473 = vmatprep.subr.mxu0 0.0
        %9474 = vmatpush1.msra.mxu0 0.0
        %9475 = vmatprep.subr.mxu0 0.0
        %9476 = vmatpush1.msra.mxu0 0.0
        %9477 = vmatprep.mubr.f32.mxu0 0.0
        %9478 = vmatmul.mubr.f32.gmra.mrb[0].mxu0 %v9198
        %v9479 = vpop.f32.mrb[0].mxu0
        %v9480 = vadd.f32 0.0, %v9479
        %v9481 = vpop.f32.mrb[0].mxu0
        %v9482 = vadd.f32 0.0, %v9481
        %9483 = vdwg.mxu0
        %9484 = vmatprep.subr.mxu0 0.0
        %9485 = vmatpush1.msra.mxu0 %v9187
        %9486 = vmatprep.subr.mxu0 0.0
        %9487 = vmatpush1.msra.mxu0 0.0
        %9488 = vmatprep.subr.mxu0 0.0
        %9489 = vmatpush1.msra.mxu0 0.0
        %9490 = vmatprep.subr.mxu0 0.0
        %9491 = vmatpush1.msra.mxu0 0.0
        %9492 = vmatprep.subr.mxu0 0.0
        %9493 = vmatpush1.msra.mxu0 0.0
        %9494 = vmatprep.subr.mxu0 0.0
        %9495 = vmatpush1.msra.mxu0 0.0
        %9496 = vmatprep.subr.mxu0 0.0
        %9497 = vmatpush1.msra.mxu0 0.0
        %9498 = vmatprep.subr.mxu0 0.0
        %9499 = vmatpush1.msra.mxu0 0.0
        %9500 = vmatprep.subr.mxu0 0.0
        %9501 = vmatpush1.msra.mxu0 0.0
        %9502 = vmatprep.subr.mxu0 0.0
        %9503 = vmatpush1.msra.mxu0 0.0
        %9504 = vmatprep.subr.mxu0 0.0
        %9505 = vmatpush1.msra.mxu0 0.0
        %9506 = vmatprep.subr.mxu0 0.0
        %9507 = vmatpush1.msra.mxu0 0.0
        %9508 = vmatprep.subr.mxu0 0.0
        %9509 = vmatpush1.msra.mxu0 0.0
        %9510 = vmatprep.subr.mxu0 0.0
        %9511 = vmatpush1.msra.mxu0 0.0
        %9512 = vmatprep.subr.mxu0 0.0
        %9513 = vmatpush1.msra.mxu0 0.0
        %9514 = vmatprep.subr.mxu0 0.0
        %9515 = vmatpush1.msra.mxu0 0.0
        %9516 = vmatprep.subr.mxu0 0.0
        %9517 = vmatpush1.msra.mxu0 0.0
        %9518 = vmatprep.subr.mxu0 0.0
        %9519 = vmatpush1.msra.mxu0 0.0
        %9520 = vmatprep.subr.mxu0 0.0
        %9521 = vmatpush1.msra.mxu0 0.0
        %9522 = vmatprep.subr.mxu0 0.0
        %9523 = vmatpush1.msra.mxu0 0.0
        %9524 = vmatprep.subr.mxu0 0.0
        %9525 = vmatpush1.msra.mxu0 0.0
        %9526 = vmatprep.subr.mxu0 0.0
        %9527 = vmatpush1.msra.mxu0 0.0
        %9528 = vmatprep.subr.mxu0 0.0
        %9529 = vmatpush1.msra.mxu0 0.0
        %9530 = vmatprep.subr.mxu0 0.0
        %9531 = vmatpush1.msra.mxu0 0.0
        %9532 = vmatprep.subr.mxu0 0.0
        %9533 = vmatpush1.msra.mxu0 0.0
        %9534 = vmatprep.subr.mxu0 0.0
        %9535 = vmatpush1.msra.mxu0 0.0
        %9536 = vmatprep.subr.mxu0 0.0
        %9537 = vmatpush1.msra.mxu0 0.0
        %9538 = vmatprep.subr.mxu0 0.0
        %9539 = vmatpush1.msra.mxu0 0.0
        %9540 = vmatprep.subr.mxu0 0.0
        %9541 = vmatpush1.msra.mxu0 0.0
        %9542 = vmatprep.subr.mxu0 0.0
        %9543 = vmatpush1.msra.mxu0 0.0
        %9544 = vmatprep.subr.mxu0 0.0
        %9545 = vmatpush1.msra.mxu0 0.0
        %9546 = vmatprep.subr.mxu0 0.0
        %9547 = vmatpush1.msra.mxu0 0.0
        %9548 = vmatprep.mubr.f32.mxu0 0.0
        %9549 = vmatmul.mubr.f32.gmra.mrb[0].mxu0 %v9198
        %v9550 = vpop.f32.mrb[0].mxu0
        %v9551 = vadd.f32 0.0, %v9550
        %v9552 = vpop.f32.mrb[0].mxu0
        %9553 = vdwg.mxu0
        %v9554 = vadd.f32 %v9127, %v9267
        %v9555 = vadd.f32 %v9128, %v9269
        %v9556 = vadd.f32 %v9129, %v9338
        %v9557 = vadd.f32 %v9130, %v9340
        %v9558 = vadd.f32 %v9131, %v9409
        %v9559 = vadd.f32 %v9132, %v9411
        %v9560 = vadd.f32 %v9133, %v9480
        %v9561 = vadd.f32 %v9134, %v9482
        %v9562 = vadd.f32 %v9135, %v9551
        %s9563 = scalar_lea.vmem %s2, 168
        %v9564 = vld [vmem:[%s9563] sm:$0xff]
        %9565 = vrot.lane.b32.xlu0 %v9138, 111
        %v9566 = vpop.permute.xlu0 %9565
        %9567 = vrot.lane.b32.xlu0 %v9139, 111
        %v9568 = vpop.permute.xlu0 %9567
        %9569 = vrot.lane.b32.xlu0 %v9140, 111
        %v9570 = vpop.permute.xlu0 %9569
        %9571 = vrot.lane.b32.xlu0 %v9141, 111
        %v9572 = vpop.permute.xlu0 %9571
        %9573 = vrot.lane.b32.xlu0 %v9142, 111
        %v9574 = vpop.permute.xlu0 %9573
        %9575 = vrot.lane.b32.xlu0 %v9143, 111
        %v9576 = vpop.permute.xlu0 %9575
        %9577 = vrot.lane.b32.xlu0 %v9144, 111
        %v9578 = vpop.permute.xlu0 %9577
        %9579 = vrot.lane.b32.xlu0 %v9145, 111
        %v9580 = vpop.permute.xlu0 %9579
        %9581 = vrot.lane.b32.xlu0 %v9146, 111
        %v9582 = vpop.permute.xlu0 %9581
        %9583 = vrot.lane.b32.xlu0 %v9147, 111
        %v9584 = vpop.permute.xlu0 %9583
        %vm9585 = vcmask 908288
        %v9586 = vsel %vm9585, %v9566, %v9568
        %v9587 = vsel %vm9585, %v9568, %v9570
        %v9588 = vsel %vm9585, %v9570, %v9572
        %v9589 = vsel %vm9585, %v9572, %v9574
        %v9590 = vsel %vm9585, %v9574, %v9576
        %v9591 = vsel %vm9585, %v9576, %v9578
        %v9592 = vsel %vm9585, %v9578, %v9580
        %v9593 = vsel %vm9585, %v9580, %v9582
        %v9594 = vsel %vm9585, %v9582, %v9584
        %v9605 = vsel %vm1016, %v9564, 0
        %9607 = vmatprep.subr.mxu0 %v9587
        %9608 = vmatpush1.msra.mxu0 %v9586
        %9609 = vmatprep.subr.mxu0 0.0
        %9610 = vmatpush1.msra.mxu0 0.0
        %9611 = vmatprep.subr.mxu0 0.0
        %9612 = vmatpush1.msra.mxu0 0.0
        %9613 = vmatprep.subr.mxu0 0.0
        %9614 = vmatpush1.msra.mxu0 0.0
        %9615 = vmatprep.subr.mxu0 0.0
        %9616 = vmatpush1.msra.mxu0 0.0
        %9617 = vmatprep.subr.mxu0 0.0
        %9618 = vmatpush1.msra.mxu0 0.0
        %9619 = vmatprep.subr.mxu0 0.0
        %9620 = vmatpush1.msra.mxu0 0.0
        %9621 = vmatprep.subr.mxu0 0.0
        %9622 = vmatpush1.msra.mxu0 0.0
        %9623 = vmatprep.subr.mxu0 0.0
        %9624 = vmatpush1.msra.mxu0 0.0
        %9625 = vmatprep.subr.mxu0 0.0
        %9626 = vmatpush1.msra.mxu0 0.0
        %9627 = vmatprep.subr.mxu0 0.0
        %9628 = vmatpush1.msra.mxu0 0.0
        %9629 = vmatprep.subr.mxu0 0.0
        %9630 = vmatpush1.msra.mxu0 0.0
        %9631 = vmatprep.subr.mxu0 0.0
        %9632 = vmatpush1.msra.mxu0 0.0
        %9633 = vmatprep.subr.mxu0 0.0
        %9634 = vmatpush1.msra.mxu0 0.0
        %9635 = vmatprep.subr.mxu0 0.0
        %9636 = vmatpush1.msra.mxu0 0.0
        %9637 = vmatprep.subr.mxu0 0.0
        %9638 = vmatpush1.msra.mxu0 0.0
        %9639 = vmatprep.subr.mxu0 0.0
        %9640 = vmatpush1.msra.mxu0 0.0
        %9641 = vmatprep.subr.mxu0 0.0
        %9642 = vmatpush1.msra.mxu0 0.0
        %9643 = vmatprep.subr.mxu0 0.0
        %9644 = vmatpush1.msra.mxu0 0.0
        %9645 = vmatprep.subr.mxu0 0.0
        %9646 = vmatpush1.msra.mxu0 0.0
        %9647 = vmatprep.subr.mxu0 0.0
        %9648 = vmatpush1.msra.mxu0 0.0
        %9649 = vmatprep.subr.mxu0 0.0
        %9650 = vmatpush1.msra.mxu0 0.0
        %9651 = vmatprep.subr.mxu0 0.0
        %9652 = vmatpush1.msra.mxu0 0.0
        %9653 = vmatprep.subr.mxu0 0.0
        %9654 = vmatpush1.msra.mxu0 0.0
        %9655 = vmatprep.subr.mxu0 0.0
        %9656 = vmatpush1.msra.mxu0 0.0
        %9657 = vmatprep.subr.mxu0 0.0
        %9658 = vmatpush1.msra.mxu0 0.0
        %9659 = vmatprep.subr.mxu0 0.0
        %9660 = vmatpush1.msra.mxu0 0.0
        %9661 = vmatprep.subr.mxu0 0.0
        %9662 = vmatpush1.msra.mxu0 0.0
        %9663 = vmatprep.subr.mxu0 0.0
        %9664 = vmatpush1.msra.mxu0 0.0
        %9665 = vmatprep.subr.mxu0 0.0
        %9666 = vmatpush1.msra.mxu0 0.0
        %9667 = vmatprep.subr.mxu0 0.0
        %9668 = vmatpush1.msra.mxu0 0.0
        %9669 = vmatprep.subr.mxu0 0.0
        %9670 = vmatpush1.msra.mxu0 0.0
        %9671 = vmatprep.mubr.f32.mxu0 0.0
        %9672 = vmatmul.mubr.f32.gmra.mrb[0].mxu0 %v9605
        %v9673 = vpop.f32.mrb[0].mxu0
        %v9674 = vadd.f32 0.0, %v9673
        %v9675 = vpop.f32.mrb[0].mxu0
        %v9676 = vadd.f32 0.0, %v9675
        %9677 = vdwg.mxu0
        %9678 = vmatprep.subr.mxu0 %v9589
        %9679 = vmatpush1.msra.mxu0 %v9588
        %9680 = vmatprep.subr.mxu0 0.0
        %9681 = vmatpush1.msra.mxu0 0.0
        %9682 = vmatprep.subr.mxu0 0.0
        %9683 = vmatpush1.msra.mxu0 0.0
        %9684 = vmatprep.subr.mxu0 0.0
        %9685 = vmatpush1.msra.mxu0 0.0
        %9686 = vmatprep.subr.mxu0 0.0
        %9687 = vmatpush1.msra.mxu0 0.0
        %9688 = vmatprep.subr.mxu0 0.0
        %9689 = vmatpush1.msra.mxu0 0.0
        %9690 = vmatprep.subr.mxu0 0.0
        %9691 = vmatpush1.msra.mxu0 0.0
        %9692 = vmatprep.subr.mxu0 0.0
        %9693 = vmatpush1.msra.mxu0 0.0
        %9694 = vmatprep.subr.mxu0 0.0
        %9695 = vmatpush1.msra.mxu0 0.0
        %9696 = vmatprep.subr.mxu0 0.0
        %9697 = vmatpush1.msra.mxu0 0.0
        %9698 = vmatprep.subr.mxu0 0.0
        %9699 = vmatpush1.msra.mxu0 0.0
        %9700 = vmatprep.subr.mxu0 0.0
        %9701 = vmatpush1.msra.mxu0 0.0
        %9702 = vmatprep.subr.mxu0 0.0
        %9703 = vmatpush1.msra.mxu0 0.0
        %9704 = vmatprep.subr.mxu0 0.0
        %9705 = vmatpush1.msra.mxu0 0.0
        %9706 = vmatprep.subr.mxu0 0.0
        %9707 = vmatpush1.msra.mxu0 0.0
        %9708 = vmatprep.subr.mxu0 0.0
        %9709 = vmatpush1.msra.mxu0 0.0
        %9710 = vmatprep.subr.mxu0 0.0
        %9711 = vmatpush1.msra.mxu0 0.0
        %9712 = vmatprep.subr.mxu0 0.0
        %9713 = vmatpush1.msra.mxu0 0.0
        %9714 = vmatprep.subr.mxu0 0.0
        %9715 = vmatpush1.msra.mxu0 0.0
        %9716 = vmatprep.subr.mxu0 0.0
        %9717 = vmatpush1.msra.mxu0 0.0
        %9718 = vmatprep.subr.mxu0 0.0
        %9719 = vmatpush1.msra.mxu0 0.0
        %9720 = vmatprep.subr.mxu0 0.0
        %9721 = vmatpush1.msra.mxu0 0.0
        %9722 = vmatprep.subr.mxu0 0.0
        %9723 = vmatpush1.msra.mxu0 0.0
        %9724 = vmatprep.subr.mxu0 0.0
        %9725 = vmatpush1.msra.mxu0 0.0
        %9726 = vmatprep.subr.mxu0 0.0
        %9727 = vmatpush1.msra.mxu0 0.0
        %9728 = vmatprep.subr.mxu0 0.0
        %9729 = vmatpush1.msra.mxu0 0.0
        %9730 = vmatprep.subr.mxu0 0.0
        %9731 = vmatpush1.msra.mxu0 0.0
        %9732 = vmatprep.subr.mxu0 0.0
        %9733 = vmatpush1.msra.mxu0 0.0
        %9734 = vmatprep.subr.mxu0 0.0
        %9735 = vmatpush1.msra.mxu0 0.0
        %9736 = vmatprep.subr.mxu0 0.0
        %9737 = vmatpush1.msra.mxu0 0.0
        %9738 = vmatprep.subr.mxu0 0.0
        %9739 = vmatpush1.msra.mxu0 0.0
        %9740 = vmatprep.subr.mxu0 0.0
        %9741 = vmatpush1.msra.mxu0 0.0
        %9742 = vmatprep.mubr.f32.mxu0 0.0
        %9743 = vmatmul.mubr.f32.gmra.mrb[0].mxu0 %v9605
        %v9744 = vpop.f32.mrb[0].mxu0
        %v9745 = vadd.f32 0.0, %v9744
        %v9746 = vpop.f32.mrb[0].mxu0
        %v9747 = vadd.f32 0.0, %v9746
        %9748 = vdwg.mxu0
        %9749 = vmatprep.subr.mxu0 %v9591
        %9750 = vmatpush1.msra.mxu0 %v9590
        %9751 = vmatprep.subr.mxu0 0.0
        %9752 = vmatpush1.msra.mxu0 0.0
        %9753 = vmatprep.subr.mxu0 0.0
        %9754 = vmatpush1.msra.mxu0 0.0
        %9755 = vmatprep.subr.mxu0 0.0
        %9756 = vmatpush1.msra.mxu0 0.0
        %9757 = vmatprep.subr.mxu0 0.0
        %9758 = vmatpush1.msra.mxu0 0.0
        %9759 = vmatprep.subr.mxu0 0.0
        %9760 = vmatpush1.msra.mxu0 0.0
        %9761 = vmatprep.subr.mxu0 0.0
        %9762 = vmatpush1.msra.mxu0 0.0
        %9763 = vmatprep.subr.mxu0 0.0
        %9764 = vmatpush1.msra.mxu0 0.0
        %9765 = vmatprep.subr.mxu0 0.0
        %9766 = vmatpush1.msra.mxu0 0.0
        %9767 = vmatprep.subr.mxu0 0.0
        %9768 = vmatpush1.msra.mxu0 0.0
        %9769 = vmatprep.subr.mxu0 0.0
        %9770 = vmatpush1.msra.mxu0 0.0
        %9771 = vmatprep.subr.mxu0 0.0
        %9772 = vmatpush1.msra.mxu0 0.0
        %9773 = vmatprep.subr.mxu0 0.0
        %9774 = vmatpush1.msra.mxu0 0.0
        %9775 = vmatprep.subr.mxu0 0.0
        %9776 = vmatpush1.msra.mxu0 0.0
        %9777 = vmatprep.subr.mxu0 0.0
        %9778 = vmatpush1.msra.mxu0 0.0
        %9779 = vmatprep.subr.mxu0 0.0
        %9780 = vmatpush1.msra.mxu0 0.0
        %9781 = vmatprep.subr.mxu0 0.0
        %9782 = vmatpush1.msra.mxu0 0.0
        %9783 = vmatprep.subr.mxu0 0.0
        %9784 = vmatpush1.msra.mxu0 0.0
        %9785 = vmatprep.subr.mxu0 0.0
        %9786 = vmatpush1.msra.mxu0 0.0
        %9787 = vmatprep.subr.mxu0 0.0
        %9788 = vmatpush1.msra.mxu0 0.0
        %9789 = vmatprep.subr.mxu0 0.0
        %9790 = vmatpush1.msra.mxu0 0.0
        %9791 = vmatprep.subr.mxu0 0.0
        %9792 = vmatpush1.msra.mxu0 0.0
        %9793 = vmatprep.subr.mxu0 0.0
        %9794 = vmatpush1.msra.mxu0 0.0
        %9795 = vmatprep.subr.mxu0 0.0
        %9796 = vmatpush1.msra.mxu0 0.0
        %9797 = vmatprep.subr.mxu0 0.0
        %9798 = vmatpush1.msra.mxu0 0.0
        %9799 = vmatprep.subr.mxu0 0.0
        %9800 = vmatpush1.msra.mxu0 0.0
        %9801 = vmatprep.subr.mxu0 0.0
        %9802 = vmatpush1.msra.mxu0 0.0
        %9803 = vmatprep.subr.mxu0 0.0
        %9804 = vmatpush1.msra.mxu0 0.0
        %9805 = vmatprep.subr.mxu0 0.0
        %9806 = vmatpush1.msra.mxu0 0.0
        %9807 = vmatprep.subr.mxu0 0.0
        %9808 = vmatpush1.msra.mxu0 0.0
        %9809 = vmatprep.subr.mxu0 0.0
        %9810 = vmatpush1.msra.mxu0 0.0
        %9811 = vmatprep.subr.mxu0 0.0
        %9812 = vmatpush1.msra.mxu0 0.0
        %9813 = vmatprep.mubr.f32.mxu0 0.0
        %9814 = vmatmul.mubr.f32.gmra.mrb[0].mxu0 %v9605
        %v9815 = vpop.f32.mrb[0].mxu0
        %v9816 = vadd.f32 0.0, %v9815
        %v9817 = vpop.f32.mrb[0].mxu0
        %v9818 = vadd.f32 0.0, %v9817
        %9819 = vdwg.mxu0
        %9820 = vmatprep.subr.mxu0 %v9593
        %9821 = vmatpush1.msra.mxu0 %v9592
        %9822 = vmatprep.subr.mxu0 0.0
        %9823 = vmatpush1.msra.mxu0 0.0
        %9824 = vmatprep.subr.mxu0 0.0
        %9825 = vmatpush1.msra.mxu0 0.0
        %9826 = vmatprep.subr.mxu0 0.0
        %9827 = vmatpush1.msra.mxu0 0.0
        %9828 = vmatprep.subr.mxu0 0.0
        %9829 = vmatpush1.msra.mxu0 0.0
        %9830 = vmatprep.subr.mxu0 0.0
        %9831 = vmatpush1.msra.mxu0 0.0
        %9832 = vmatprep.subr.mxu0 0.0
        %9833 = vmatpush1.msra.mxu0 0.0
        %9834 = vmatprep.subr.mxu0 0.0
        %9835 = vmatpush1.msra.mxu0 0.0
        %9836 = vmatprep.subr.mxu0 0.0
        %9837 = vmatpush1.msra.mxu0 0.0
        %9838 = vmatprep.subr.mxu0 0.0
        %9839 = vmatpush1.msra.mxu0 0.0
        %9840 = vmatprep.subr.mxu0 0.0
        %9841 = vmatpush1.msra.mxu0 0.0
        %9842 = vmatprep.subr.mxu0 0.0
        %9843 = vmatpush1.msra.mxu0 0.0
        %9844 = vmatprep.subr.mxu0 0.0
        %9845 = vmatpush1.msra.mxu0 0.0
        %9846 = vmatprep.subr.mxu0 0.0
        %9847 = vmatpush1.msra.mxu0 0.0
        %9848 = vmatprep.subr.mxu0 0.0
        %9849 = vmatpush1.msra.mxu0 0.0
        %9850 = vmatprep.subr.mxu0 0.0
        %9851 = vmatpush1.msra.mxu0 0.0
        %9852 = vmatprep.subr.mxu0 0.0
        %9853 = vmatpush1.msra.mxu0 0.0
        %9854 = vmatprep.subr.mxu0 0.0
        %9855 = vmatpush1.msra.mxu0 0.0
        %9856 = vmatprep.subr.mxu0 0.0
        %9857 = vmatpush1.msra.mxu0 0.0
        %9858 = vmatprep.subr.mxu0 0.0
        %9859 = vmatpush1.msra.mxu0 0.0
        %9860 = vmatprep.subr.mxu0 0.0
        %9861 = vmatpush1.msra.mxu0 0.0
        %9862 = vmatprep.subr.mxu0 0.0
        %9863 = vmatpush1.msra.mxu0 0.0
        %9864 = vmatprep.subr.mxu0 0.0
        %9865 = vmatpush1.msra.mxu0 0.0
        %9866 = vmatprep.subr.mxu0 0.0
        %9867 = vmatpush1.msra.mxu0 0.0
        %9868 = vmatprep.subr.mxu0 0.0
        %9869 = vmatpush1.msra.mxu0 0.0
        %9870 = vmatprep.subr.mxu0 0.0
        %9871 = vmatpush1.msra.mxu0 0.0
        %9872 = vmatprep.subr.mxu0 0.0
        %9873 = vmatpush1.msra.mxu0 0.0
        %9874 = vmatprep.subr.mxu0 0.0
        %9875 = vmatpush1.msra.mxu0 0.0
        %9876 = vmatprep.subr.mxu0 0.0
        %9877 = vmatpush1.msra.mxu0 0.0
        %9878 = vmatprep.subr.mxu0 0.0
        %9879 = vmatpush1.msra.mxu0 0.0
        %9880 = vmatprep.subr.mxu0 0.0
        %9881 = vmatpush1.msra.mxu0 0.0
        %9882 = vmatprep.subr.mxu0 0.0
        %9883 = vmatpush1.msra.mxu0 0.0
        %9884 = vmatprep.mubr.f32.mxu0 0.0
        %9885 = vmatmul.mubr.f32.gmra.mrb[0].mxu0 %v9605
        %v9886 = vpop.f32.mrb[0].mxu0
        %v9887 = vadd.f32 0.0, %v9886
        %v9888 = vpop.f32.mrb[0].mxu0
        %v9889 = vadd.f32 0.0, %v9888
        %9890 = vdwg.mxu0
        %9891 = vmatprep.subr.mxu0 0.0
        %9892 = vmatpush1.msra.mxu0 %v9594
        %9893 = vmatprep.subr.mxu0 0.0
        %9894 = vmatpush1.msra.mxu0 0.0
        %9895 = vmatprep.subr.mxu0 0.0
        %9896 = vmatpush1.msra.mxu0 0.0
        %9897 = vmatprep.subr.mxu0 0.0
        %9898 = vmatpush1.msra.mxu0 0.0
        %9899 = vmatprep.subr.mxu0 0.0
        %9900 = vmatpush1.msra.mxu0 0.0
        %9901 = vmatprep.subr.mxu0 0.0
        %9902 = vmatpush1.msra.mxu0 0.0
        %9903 = vmatprep.subr.mxu0 0.0
        %9904 = vmatpush1.msra.mxu0 0.0
        %9905 = vmatprep.subr.mxu0 0.0
        %9906 = vmatpush1.msra.mxu0 0.0
        %9907 = vmatprep.subr.mxu0 0.0
        %9908 = vmatpush1.msra.mxu0 0.0
        %9909 = vmatprep.subr.mxu0 0.0
        %9910 = vmatpush1.msra.mxu0 0.0
        %9911 = vmatprep.subr.mxu0 0.0
        %9912 = vmatpush1.msra.mxu0 0.0
        %9913 = vmatprep.subr.mxu0 0.0
        %9914 = vmatpush1.msra.mxu0 0.0
        %9915 = vmatprep.subr.mxu0 0.0
        %9916 = vmatpush1.msra.mxu0 0.0
        %9917 = vmatprep.subr.mxu0 0.0
        %9918 = vmatpush1.msra.mxu0 0.0
        %9919 = vmatprep.subr.mxu0 0.0
        %9920 = vmatpush1.msra.mxu0 0.0
        %9921 = vmatprep.subr.mxu0 0.0
        %9922 = vmatpush1.msra.mxu0 0.0
        %9923 = vmatprep.subr.mxu0 0.0
        %9924 = vmatpush1.msra.mxu0 0.0
        %9925 = vmatprep.subr.mxu0 0.0
        %9926 = vmatpush1.msra.mxu0 0.0
        %9927 = vmatprep.subr.mxu0 0.0
        %9928 = vmatpush1.msra.mxu0 0.0
        %9929 = vmatprep.subr.mxu0 0.0
        %9930 = vmatpush1.msra.mxu0 0.0
        %9931 = vmatprep.subr.mxu0 0.0
        %9932 = vmatpush1.msra.mxu0 0.0
        %9933 = vmatprep.subr.mxu0 0.0
        %9934 = vmatpush1.msra.mxu0 0.0
        %9935 = vmatprep.subr.mxu0 0.0
        %9936 = vmatpush1.msra.mxu0 0.0
        %9937 = vmatprep.subr.mxu0 0.0
        %9938 = vmatpush1.msra.mxu0 0.0
        %9939 = vmatprep.subr.mxu0 0.0
        %9940 = vmatpush1.msra.mxu0 0.0
        %9941 = vmatprep.subr.mxu0 0.0
        %9942 = vmatpush1.msra.mxu0 0.0
        %9943 = vmatprep.subr.mxu0 0.0
        %9944 = vmatpush1.msra.mxu0 0.0
        %9945 = vmatprep.subr.mxu0 0.0
        %9946 = vmatpush1.msra.mxu0 0.0
        %9947 = vmatprep.subr.mxu0 0.0
        %9948 = vmatpush1.msra.mxu0 0.0
        %9949 = vmatprep.subr.mxu0 0.0
        %9950 = vmatpush1.msra.mxu0 0.0
        %9951 = vmatprep.subr.mxu0 0.0
        %9952 = vmatpush1.msra.mxu0 0.0
        %9953 = vmatprep.subr.mxu0 0.0
        %9954 = vmatpush1.msra.mxu0 0.0
        %9955 = vmatprep.mubr.f32.mxu0 0.0
        %9956 = vmatmul.mubr.f32.gmra.mrb[0].mxu0 %v9605
        %v9957 = vpop.f32.mrb[0].mxu0
        %v9958 = vadd.f32 0.0, %v9957
        %v9959 = vpop.f32.mrb[0].mxu0
        %9960 = vdwg.mxu0
        %v9961 = vadd.f32 %v9554, %v9674
        %v9962 = vadd.f32 %v9555, %v9676
        %v9963 = vadd.f32 %v9556, %v9745
        %v9964 = vadd.f32 %v9557, %v9747
        %v9965 = vadd.f32 %v9558, %v9816
        %v9966 = vadd.f32 %v9559, %v9818
        %v9967 = vadd.f32 %v9560, %v9887
        %v9968 = vadd.f32 %v9561, %v9889
        %v9969 = vadd.f32 %v9562, %v9958
        %s9970 = scalar_lea.vmem %s2, 176
        %v9971 = vld [vmem:[%s9970] sm:$0xff]
        %9972 = vrot.lane.b32.xlu0 %v9138, 110
        %v9973 = vpop.permute.xlu0 %9972
        %9974 = vrot.lane.b32.xlu0 %v9139, 110
        %v9975 = vpop.permute.xlu0 %9974
        %9976 = vrot.lane.b32.xlu0 %v9140, 110
        %v9977 = vpop.permute.xlu0 %9976
        %9978 = vrot.lane.b32.xlu0 %v9141, 110
        %v9979 = vpop.permute.xlu0 %9978
        %9980 = vrot.lane.b32.xlu0 %v9142, 110
        %v9981 = vpop.permute.xlu0 %9980
        %9982 = vrot.lane.b32.xlu0 %v9143, 110
        %v9983 = vpop.permute.xlu0 %9982
        %9984 = vrot.lane.b32.xlu0 %v9144, 110
        %v9985 = vpop.permute.xlu0 %9984
        %9986 = vrot.lane.b32.xlu0 %v9145, 110
        %v9987 = vpop.permute.xlu0 %9986
        %9988 = vrot.lane.b32.xlu0 %v9146, 110
        %v9989 = vpop.permute.xlu0 %9988
        %9990 = vrot.lane.b32.xlu0 %v9147, 110
        %v9991 = vpop.permute.xlu0 %9990
        %vm9992 = vcmask 900096
        %v9993 = vsel %vm9992, %v9973, %v9975
        %v9994 = vsel %vm9992, %v9975, %v9977
        %v9995 = vsel %vm9992, %v9977, %v9979
        %v9996 = vsel %vm9992, %v9979, %v9981
        %v9997 = vsel %vm9992, %v9981, %v9983
        %v9998 = vsel %vm9992, %v9983, %v9985
        %v9999 = vsel %vm9992, %v9985, %v9987
        %v10000 = vsel %vm9992, %v9987, %v9989
        %v10001 = vsel %vm9992, %v9989, %v9991
        %v10012 = vsel %vm1016, %v9971, 0
        %10014 = vmatprep.subr.mxu0 %v9994
        %10015 = vmatpush1.msra.mxu0 %v9993
        %10016 = vmatprep.subr.mxu0 0.0
        %10017 = vmatpush1.msra.mxu0 0.0
        %10018 = vmatprep.subr.mxu0 0.0
        %10019 = vmatpush1.msra.mxu0 0.0
        %10020 = vmatprep.subr.mxu0 0.0
        %10021 = vmatpush1.msra.mxu0 0.0
        %10022 = vmatprep.subr.mxu0 0.0
        %10023 = vmatpush1.msra.mxu0 0.0
        %10024 = vmatprep.subr.mxu0 0.0
        %10025 = vmatpush1.msra.mxu0 0.0
        %10026 = vmatprep.subr.mxu0 0.0
        %10027 = vmatpush1.msra.mxu0 0.0
        %10028 = vmatprep.subr.mxu0 0.0
        %10029 = vmatpush1.msra.mxu0 0.0
        %10030 = vmatprep.subr.mxu0 0.0
        %10031 = vmatpush1.msra.mxu0 0.0
        %10032 = vmatprep.subr.mxu0 0.0
        %10033 = vmatpush1.msra.mxu0 0.0
        %10034 = vmatprep.subr.mxu0 0.0
        %10035 = vmatpush1.msra.mxu0 0.0
        %10036 = vmatprep.subr.mxu0 0.0
        %10037 = vmatpush1.msra.mxu0 0.0
        %10038 = vmatprep.subr.mxu0 0.0
        %10039 = vmatpush1.msra.mxu0 0.0
        %10040 = vmatprep.subr.mxu0 0.0
        %10041 = vmatpush1.msra.mxu0 0.0
        %10042 = vmatprep.subr.mxu0 0.0
        %10043 = vmatpush1.msra.mxu0 0.0
        %10044 = vmatprep.subr.mxu0 0.0
        %10045 = vmatpush1.msra.mxu0 0.0
        %10046 = vmatprep.subr.mxu0 0.0
        %10047 = vmatpush1.msra.mxu0 0.0
        %10048 = vmatprep.subr.mxu0 0.0
        %10049 = vmatpush1.msra.mxu0 0.0
        %10050 = vmatprep.subr.mxu0 0.0
        %10051 = vmatpush1.msra.mxu0 0.0
        %10052 = vmatprep.subr.mxu0 0.0
        %10053 = vmatpush1.msra.mxu0 0.0
        %10054 = vmatprep.subr.mxu0 0.0
        %10055 = vmatpush1.msra.mxu0 0.0
        %10056 = vmatprep.subr.mxu0 0.0
        %10057 = vmatpush1.msra.mxu0 0.0
        %10058 = vmatprep.subr.mxu0 0.0
        %10059 = vmatpush1.msra.mxu0 0.0
        %10060 = vmatprep.subr.mxu0 0.0
        %10061 = vmatpush1.msra.mxu0 0.0
        %10062 = vmatprep.subr.mxu0 0.0
        %10063 = vmatpush1.msra.mxu0 0.0
        %10064 = vmatprep.subr.mxu0 0.0
        %10065 = vmatpush1.msra.mxu0 0.0
        %10066 = vmatprep.subr.mxu0 0.0
        %10067 = vmatpush1.msra.mxu0 0.0
        %10068 = vmatprep.subr.mxu0 0.0
        %10069 = vmatpush1.msra.mxu0 0.0
        %10070 = vmatprep.subr.mxu0 0.0
        %10071 = vmatpush1.msra.mxu0 0.0
        %10072 = vmatprep.subr.mxu0 0.0
        %10073 = vmatpush1.msra.mxu0 0.0
        %10074 = vmatprep.subr.mxu0 0.0
        %10075 = vmatpush1.msra.mxu0 0.0
        %10076 = vmatprep.subr.mxu0 0.0
        %10077 = vmatpush1.msra.mxu0 0.0
        %10078 = vmatprep.mubr.f32.mxu0 0.0
        %10079 = vmatmul.mubr.f32.gmra.mrb[0].mxu0 %v10012
        %v10080 = vpop.f32.mrb[0].mxu0
        %v10081 = vadd.f32 0.0, %v10080
        %v10082 = vpop.f32.mrb[0].mxu0
        %v10083 = vadd.f32 0.0, %v10082
        %10084 = vdwg.mxu0
        %10085 = vmatprep.subr.mxu0 %v9996
        %10086 = vmatpush1.msra.mxu0 %v9995
        %10087 = vmatprep.subr.mxu0 0.0
        %10088 = vmatpush1.msra.mxu0 0.0
        %10089 = vmatprep.subr.mxu0 0.0
        %10090 = vmatpush1.msra.mxu0 0.0
        %10091 = vmatprep.subr.mxu0 0.0
        %10092 = vmatpush1.msra.mxu0 0.0
        %10093 = vmatprep.subr.mxu0 0.0
        %10094 = vmatpush1.msra.mxu0 0.0
        %10095 = vmatprep.subr.mxu0 0.0
        %10096 = vmatpush1.msra.mxu0 0.0
        %10097 = vmatprep.subr.mxu0 0.0
        %10098 = vmatpush1.msra.mxu0 0.0
        %10099 = vmatprep.subr.mxu0 0.0
        %10100 = vmatpush1.msra.mxu0 0.0
        %10101 = vmatprep.subr.mxu0 0.0
        %10102 = vmatpush1.msra.mxu0 0.0
        %10103 = vmatprep.subr.mxu0 0.0
        %10104 = vmatpush1.msra.mxu0 0.0
        %10105 = vmatprep.subr.mxu0 0.0
        %10106 = vmatpush1.msra.mxu0 0.0
        %10107 = vmatprep.subr.mxu0 0.0
        %10108 = vmatpush1.msra.mxu0 0.0
        %10109 = vmatprep.subr.mxu0 0.0
        %10110 = vmatpush1.msra.mxu0 0.0
        %10111 = vmatprep.subr.mxu0 0.0
        %10112 = vmatpush1.msra.mxu0 0.0
        %10113 = vmatprep.subr.mxu0 0.0
        %10114 = vmatpush1.msra.mxu0 0.0
        %10115 = vmatprep.subr.mxu0 0.0
        %10116 = vmatpush1.msra.mxu0 0.0
        %10117 = vmatprep.subr.mxu0 0.0
        %10118 = vmatpush1.msra.mxu0 0.0
        %10119 = vmatprep.subr.mxu0 0.0
        %10120 = vmatpush1.msra.mxu0 0.0
        %10121 = vmatprep.subr.mxu0 0.0
        %10122 = vmatpush1.msra.mxu0 0.0
        %10123 = vmatprep.subr.mxu0 0.0
        %10124 = vmatpush1.msra.mxu0 0.0
        %10125 = vmatprep.subr.mxu0 0.0
        %10126 = vmatpush1.msra.mxu0 0.0
        %10127 = vmatprep.subr.mxu0 0.0
        %10128 = vmatpush1.msra.mxu0 0.0
        %10129 = vmatprep.subr.mxu0 0.0
        %10130 = vmatpush1.msra.mxu0 0.0
        %10131 = vmatprep.subr.mxu0 0.0
        %10132 = vmatpush1.msra.mxu0 0.0
        %10133 = vmatprep.subr.mxu0 0.0
        %10134 = vmatpush1.msra.mxu0 0.0
        %10135 = vmatprep.subr.mxu0 0.0
        %10136 = vmatpush1.msra.mxu0 0.0
        %10137 = vmatprep.subr.mxu0 0.0
        %10138 = vmatpush1.msra.mxu0 0.0
        %10139 = vmatprep.subr.mxu0 0.0
        %10140 = vmatpush1.msra.mxu0 0.0
        %10141 = vmatprep.subr.mxu0 0.0
        %10142 = vmatpush1.msra.mxu0 0.0
        %10143 = vmatprep.subr.mxu0 0.0
        %10144 = vmatpush1.msra.mxu0 0.0
        %10145 = vmatprep.subr.mxu0 0.0
        %10146 = vmatpush1.msra.mxu0 0.0
        %10147 = vmatprep.subr.mxu0 0.0
        %10148 = vmatpush1.msra.mxu0 0.0
        %10149 = vmatprep.mubr.f32.mxu0 0.0
        %10150 = vmatmul.mubr.f32.gmra.mrb[0].mxu0 %v10012
        %v10151 = vpop.f32.mrb[0].mxu0
        %v10152 = vadd.f32 0.0, %v10151
        %v10153 = vpop.f32.mrb[0].mxu0
        %v10154 = vadd.f32 0.0, %v10153
        %10155 = vdwg.mxu0
        %10156 = vmatprep.subr.mxu0 %v9998
        %10157 = vmatpush1.msra.mxu0 %v9997
        %10158 = vmatprep.subr.mxu0 0.0
        %10159 = vmatpush1.msra.mxu0 0.0
        %10160 = vmatprep.subr.mxu0 0.0
        %10161 = vmatpush1.msra.mxu0 0.0
        %10162 = vmatprep.subr.mxu0 0.0
        %10163 = vmatpush1.msra.mxu0 0.0
        %10164 = vmatprep.subr.mxu0 0.0
        %10165 = vmatpush1.msra.mxu0 0.0
        %10166 = vmatprep.subr.mxu0 0.0
        %10167 = vmatpush1.msra.mxu0 0.0
        %10168 = vmatprep.subr.mxu0 0.0
        %10169 = vmatpush1.msra.mxu0 0.0
        %10170 = vmatprep.subr.mxu0 0.0
        %10171 = vmatpush1.msra.mxu0 0.0
        %10172 = vmatprep.subr.mxu0 0.0
        %10173 = vmatpush1.msra.mxu0 0.0
        %10174 = vmatprep.subr.mxu0 0.0
        %10175 = vmatpush1.msra.mxu0 0.0
        %10176 = vmatprep.subr.mxu0 0.0
        %10177 = vmatpush1.msra.mxu0 0.0
        %10178 = vmatprep.subr.mxu0 0.0
        %10179 = vmatpush1.msra.mxu0 0.0
        %10180 = vmatprep.subr.mxu0 0.0
        %10181 = vmatpush1.msra.mxu0 0.0
        %10182 = vmatprep.subr.mxu0 0.0
        %10183 = vmatpush1.msra.mxu0 0.0
        %10184 = vmatprep.subr.mxu0 0.0
        %10185 = vmatpush1.msra.mxu0 0.0
        %10186 = vmatprep.subr.mxu0 0.0
        %10187 = vmatpush1.msra.mxu0 0.0
        %10188 = vmatprep.subr.mxu0 0.0
        %10189 = vmatpush1.msra.mxu0 0.0
        %10190 = vmatprep.subr.mxu0 0.0
        %10191 = vmatpush1.msra.mxu0 0.0
        %10192 = vmatprep.subr.mxu0 0.0
        %10193 = vmatpush1.msra.mxu0 0.0
        %10194 = vmatprep.subr.mxu0 0.0
        %10195 = vmatpush1.msra.mxu0 0.0
        %10196 = vmatprep.subr.mxu0 0.0
        %10197 = vmatpush1.msra.mxu0 0.0
        %10198 = vmatprep.subr.mxu0 0.0
        %10199 = vmatpush1.msra.mxu0 0.0
        %10200 = vmatprep.subr.mxu0 0.0
        %10201 = vmatpush1.msra.mxu0 0.0
        %10202 = vmatprep.subr.mxu0 0.0
        %10203 = vmatpush1.msra.mxu0 0.0
        %10204 = vmatprep.subr.mxu0 0.0
        %10205 = vmatpush1.msra.mxu0 0.0
        %10206 = vmatprep.subr.mxu0 0.0
        %10207 = vmatpush1.msra.mxu0 0.0
        %10208 = vmatprep.subr.mxu0 0.0
        %10209 = vmatpush1.msra.mxu0 0.0
        %10210 = vmatprep.subr.mxu0 0.0
        %10211 = vmatpush1.msra.mxu0 0.0
        %10212 = vmatprep.subr.mxu0 0.0
        %10213 = vmatpush1.msra.mxu0 0.0
        %10214 = vmatprep.subr.mxu0 0.0
        %10215 = vmatpush1.msra.mxu0 0.0
        %10216 = vmatprep.subr.mxu0 0.0
        %10217 = vmatpush1.msra.mxu0 0.0
        %10218 = vmatprep.subr.mxu0 0.0
        %10219 = vmatpush1.msra.mxu0 0.0
        %10220 = vmatprep.mubr.f32.mxu0 0.0
        %10221 = vmatmul.mubr.f32.gmra.mrb[0].mxu0 %v10012
        %v10222 = vpop.f32.mrb[0].mxu0
        %v10223 = vadd.f32 0.0, %v10222
        %v10224 = vpop.f32.mrb[0].mxu0
        %v10225 = vadd.f32 0.0, %v10224
        %10226 = vdwg.mxu0
        %10227 = vmatprep.subr.mxu0 %v10000
        %10228 = vmatpush1.msra.mxu0 %v9999
        %10229 = vmatprep.subr.mxu0 0.0
        %10230 = vmatpush1.msra.mxu0 0.0
        %10231 = vmatprep.subr.mxu0 0.0
        %10232 = vmatpush1.msra.mxu0 0.0
        %10233 = vmatprep.subr.mxu0 0.0
        %10234 = vmatpush1.msra.mxu0 0.0
        %10235 = vmatprep.subr.mxu0 0.0
        %10236 = vmatpush1.msra.mxu0 0.0
        %10237 = vmatprep.subr.mxu0 0.0
        %10238 = vmatpush1.msra.mxu0 0.0
        %10239 = vmatprep.subr.mxu0 0.0
        %10240 = vmatpush1.msra.mxu0 0.0
        %10241 = vmatprep.subr.mxu0 0.0
        %10242 = vmatpush1.msra.mxu0 0.0
        %10243 = vmatprep.subr.mxu0 0.0
        %10244 = vmatpush1.msra.mxu0 0.0
        %10245 = vmatprep.subr.mxu0 0.0
        %10246 = vmatpush1.msra.mxu0 0.0
        %10247 = vmatprep.subr.mxu0 0.0
        %10248 = vmatpush1.msra.mxu0 0.0
        %10249 = vmatprep.subr.mxu0 0.0
        %10250 = vmatpush1.msra.mxu0 0.0
        %10251 = vmatprep.subr.mxu0 0.0
        %10252 = vmatpush1.msra.mxu0 0.0
        %10253 = vmatprep.subr.mxu0 0.0
        %10254 = vmatpush1.msra.mxu0 0.0
        %10255 = vmatprep.subr.mxu0 0.0
        %10256 = vmatpush1.msra.mxu0 0.0
        %10257 = vmatprep.subr.mxu0 0.0
        %10258 = vmatpush1.msra.mxu0 0.0
        %10259 = vmatprep.subr.mxu0 0.0
        %10260 = vmatpush1.msra.mxu0 0.0
        %10261 = vmatprep.subr.mxu0 0.0
        %10262 = vmatpush1.msra.mxu0 0.0
        %10263 = vmatprep.subr.mxu0 0.0
        %10264 = vmatpush1.msra.mxu0 0.0
        %10265 = vmatprep.subr.mxu0 0.0
        %10266 = vmatpush1.msra.mxu0 0.0
        %10267 = vmatprep.subr.mxu0 0.0
        %10268 = vmatpush1.msra.mxu0 0.0
        %10269 = vmatprep.subr.mxu0 0.0
        %10270 = vmatpush1.msra.mxu0 0.0
        %10271 = vmatprep.subr.mxu0 0.0
        %10272 = vmatpush1.msra.mxu0 0.0
        %10273 = vmatprep.subr.mxu0 0.0
        %10274 = vmatpush1.msra.mxu0 0.0
        %10275 = vmatprep.subr.mxu0 0.0
        %10276 = vmatpush1.msra.mxu0 0.0
        %10277 = vmatprep.subr.mxu0 0.0
        %10278 = vmatpush1.msra.mxu0 0.0
        %10279 = vmatprep.subr.mxu0 0.0
        %10280 = vmatpush1.msra.mxu0 0.0
        %10281 = vmatprep.subr.mxu0 0.0
        %10282 = vmatpush1.msra.mxu0 0.0
        %10283 = vmatprep.subr.mxu0 0.0
        %10284 = vmatpush1.msra.mxu0 0.0
        %10285 = vmatprep.subr.mxu0 0.0
        %10286 = vmatpush1.msra.mxu0 0.0
        %10287 = vmatprep.subr.mxu0 0.0
        %10288 = vmatpush1.msra.mxu0 0.0
        %10289 = vmatprep.subr.mxu0 0.0
        %10290 = vmatpush1.msra.mxu0 0.0
        %10291 = vmatprep.mubr.f32.mxu0 0.0
        %10292 = vmatmul.mubr.f32.gmra.mrb[0].mxu0 %v10012
        %v10293 = vpop.f32.mrb[0].mxu0
        %v10294 = vadd.f32 0.0, %v10293
        %v10295 = vpop.f32.mrb[0].mxu0
        %v10296 = vadd.f32 0.0, %v10295
        %10297 = vdwg.mxu0
        %10298 = vmatprep.subr.mxu0 0.0
        %10299 = vmatpush1.msra.mxu0 %v10001
        %10300 = vmatprep.subr.mxu0 0.0
        %10301 = vmatpush1.msra.mxu0 0.0
        %10302 = vmatprep.subr.mxu0 0.0
        %10303 = vmatpush1.msra.mxu0 0.0
        %10304 = vmatprep.subr.mxu0 0.0
        %10305 = vmatpush1.msra.mxu0 0.0
        %10306 = vmatprep.subr.mxu0 0.0
        %10307 = vmatpush1.msra.mxu0 0.0
        %10308 = vmatprep.subr.mxu0 0.0
        %10309 = vmatpush1.msra.mxu0 0.0
        %10310 = vmatprep.subr.mxu0 0.0
        %10311 = vmatpush1.msra.mxu0 0.0
        %10312 = vmatprep.subr.mxu0 0.0
        %10313 = vmatpush1.msra.mxu0 0.0
        %10314 = vmatprep.subr.mxu0 0.0
        %10315 = vmatpush1.msra.mxu0 0.0
        %10316 = vmatprep.subr.mxu0 0.0
        %10317 = vmatpush1.msra.mxu0 0.0
        %10318 = vmatprep.subr.mxu0 0.0
        %10319 = vmatpush1.msra.mxu0 0.0
        %10320 = vmatprep.subr.mxu0 0.0
        %10321 = vmatpush1.msra.mxu0 0.0
        %10322 = vmatprep.subr.mxu0 0.0
        %10323 = vmatpush1.msra.mxu0 0.0
        %10324 = vmatprep.subr.mxu0 0.0
        %10325 = vmatpush1.msra.mxu0 0.0
        %10326 = vmatprep.subr.mxu0 0.0
        %10327 = vmatpush1.msra.mxu0 0.0
        %10328 = vmatprep.subr.mxu0 0.0
        %10329 = vmatpush1.msra.mxu0 0.0
        %10330 = vmatprep.subr.mxu0 0.0
        %10331 = vmatpush1.msra.mxu0 0.0
        %10332 = vmatprep.subr.mxu0 0.0
        %10333 = vmatpush1.msra.mxu0 0.0
        %10334 = vmatprep.subr.mxu0 0.0
        %10335 = vmatpush1.msra.mxu0 0.0
        %10336 = vmatprep.subr.mxu0 0.0
        %10337 = vmatpush1.msra.mxu0 0.0
        %10338 = vmatprep.subr.mxu0 0.0
        %10339 = vmatpush1.msra.mxu0 0.0
        %10340 = vmatprep.subr.mxu0 0.0
        %10341 = vmatpush1.msra.mxu0 0.0
        %10342 = vmatprep.subr.mxu0 0.0
        %10343 = vmatpush1.msra.mxu0 0.0
        %10344 = vmatprep.subr.mxu0 0.0
        %10345 = vmatpush1.msra.mxu0 0.0
        %10346 = vmatprep.subr.mxu0 0.0
        %10347 = vmatpush1.msra.mxu0 0.0
        %10348 = vmatprep.subr.mxu0 0.0
        %10349 = vmatpush1.msra.mxu0 0.0
        %10350 = vmatprep.subr.mxu0 0.0
        %10351 = vmatpush1.msra.mxu0 0.0
        %10352 = vmatprep.subr.mxu0 0.0
        %10353 = vmatpush1.msra.mxu0 0.0
        %10354 = vmatprep.subr.mxu0 0.0
        %10355 = vmatpush1.msra.mxu0 0.0
        %10356 = vmatprep.subr.mxu0 0.0
        %10357 = vmatpush1.msra.mxu0 0.0
        %10358 = vmatprep.subr.mxu0 0.0
        %10359 = vmatpush1.msra.mxu0 0.0
        %10360 = vmatprep.subr.mxu0 0.0
        %10361 = vmatpush1.msra.mxu0 0.0
        %10362 = vmatprep.mubr.f32.mxu0 0.0
        %10363 = vmatmul.mubr.f32.gmra.mrb[0].mxu0 %v10012
        %v10364 = vpop.f32.mrb[0].mxu0
        %v10365 = vadd.f32 0.0, %v10364
        %v10366 = vpop.f32.mrb[0].mxu0
        %10367 = vdwg.mxu0
        %v10368 = vadd.f32 %v9961, %v10081
        %v10369 = vadd.f32 %v9962, %v10083
        %v10370 = vadd.f32 %v9963, %v10152
        %v10371 = vadd.f32 %v9964, %v10154
        %v10372 = vadd.f32 %v9965, %v10223
        %v10373 = vadd.f32 %v9966, %v10225
        %v10374 = vadd.f32 %v9967, %v10294
        %v10375 = vadd.f32 %v9968, %v10296
        %v10376 = vadd.f32 %v9969, %v10365
        %s10377 = scalar_lea.vmem %s2, 184
        %v10378 = vld [vmem:[%s10377] sm:$0xff]
        %10379 = vrot.lane.b32.xlu0 %v9138, 109
        %v10380 = vpop.permute.xlu0 %10379
        %10381 = vrot.lane.b32.xlu0 %v9139, 109
        %v10382 = vpop.permute.xlu0 %10381
        %10383 = vrot.lane.b32.xlu0 %v9140, 109
        %v10384 = vpop.permute.xlu0 %10383
        %10385 = vrot.lane.b32.xlu0 %v9141, 109
        %v10386 = vpop.permute.xlu0 %10385
        %10387 = vrot.lane.b32.xlu0 %v9142, 109
        %v10388 = vpop.permute.xlu0 %10387
        %10389 = vrot.lane.b32.xlu0 %v9143, 109
        %v10390 = vpop.permute.xlu0 %10389
        %10391 = vrot.lane.b32.xlu0 %v9144, 109
        %v10392 = vpop.permute.xlu0 %10391
        %10393 = vrot.lane.b32.xlu0 %v9145, 109
        %v10394 = vpop.permute.xlu0 %10393
        %10395 = vrot.lane.b32.xlu0 %v9146, 109
        %v10396 = vpop.permute.xlu0 %10395
        %10397 = vrot.lane.b32.xlu0 %v9147, 109
        %v10398 = vpop.permute.xlu0 %10397
        %vm10399 = vcmask 891904
        %v10400 = vsel %vm10399, %v10380, %v10382
        %v10401 = vsel %vm10399, %v10382, %v10384
        %v10402 = vsel %vm10399, %v10384, %v10386
        %v10403 = vsel %vm10399, %v10386, %v10388
        %v10404 = vsel %vm10399, %v10388, %v10390
        %v10405 = vsel %vm10399, %v10390, %v10392
        %v10406 = vsel %vm10399, %v10392, %v10394
        %v10407 = vsel %vm10399, %v10394, %v10396
        %v10408 = vsel %vm10399, %v10396, %v10398
        %v10419 = vsel %vm1016, %v10378, 0
        %10421 = vmatprep.subr.mxu0 %v10401
        %10422 = vmatpush1.msra.mxu0 %v10400
        %10423 = vmatprep.subr.mxu0 0.0
        %10424 = vmatpush1.msra.mxu0 0.0
        %10425 = vmatprep.subr.mxu0 0.0
        %10426 = vmatpush1.msra.mxu0 0.0
        %10427 = vmatprep.subr.mxu0 0.0
        %10428 = vmatpush1.msra.mxu0 0.0
        %10429 = vmatprep.subr.mxu0 0.0
        %10430 = vmatpush1.msra.mxu0 0.0
        %10431 = vmatprep.subr.mxu0 0.0
        %10432 = vmatpush1.msra.mxu0 0.0
        %10433 = vmatprep.subr.mxu0 0.0
        %10434 = vmatpush1.msra.mxu0 0.0
        %10435 = vmatprep.subr.mxu0 0.0
        %10436 = vmatpush1.msra.mxu0 0.0
        %10437 = vmatprep.subr.mxu0 0.0
        %10438 = vmatpush1.msra.mxu0 0.0
        %10439 = vmatprep.subr.mxu0 0.0
        %10440 = vmatpush1.msra.mxu0 0.0
        %10441 = vmatprep.subr.mxu0 0.0
        %10442 = vmatpush1.msra.mxu0 0.0
        %10443 = vmatprep.subr.mxu0 0.0
        %10444 = vmatpush1.msra.mxu0 0.0
        %10445 = vmatprep.subr.mxu0 0.0
        %10446 = vmatpush1.msra.mxu0 0.0
        %10447 = vmatprep.subr.mxu0 0.0
        %10448 = vmatpush1.msra.mxu0 0.0
        %10449 = vmatprep.subr.mxu0 0.0
        %10450 = vmatpush1.msra.mxu0 0.0
        %10451 = vmatprep.subr.mxu0 0.0
        %10452 = vmatpush1.msra.mxu0 0.0
        %10453 = vmatprep.subr.mxu0 0.0
        %10454 = vmatpush1.msra.mxu0 0.0
        %10455 = vmatprep.subr.mxu0 0.0
        %10456 = vmatpush1.msra.mxu0 0.0
        %10457 = vmatprep.subr.mxu0 0.0
        %10458 = vmatpush1.msra.mxu0 0.0
        %10459 = vmatprep.subr.mxu0 0.0
        %10460 = vmatpush1.msra.mxu0 0.0
        %10461 = vmatprep.subr.mxu0 0.0
        %10462 = vmatpush1.msra.mxu0 0.0
        %10463 = vmatprep.subr.mxu0 0.0
        %10464 = vmatpush1.msra.mxu0 0.0
        %10465 = vmatprep.subr.mxu0 0.0
        %10466 = vmatpush1.msra.mxu0 0.0
        %10467 = vmatprep.subr.mxu0 0.0
        %10468 = vmatpush1.msra.mxu0 0.0
        %10469 = vmatprep.subr.mxu0 0.0
        %10470 = vmatpush1.msra.mxu0 0.0
        %10471 = vmatprep.subr.mxu0 0.0
        %10472 = vmatpush1.msra.mxu0 0.0
        %10473 = vmatprep.subr.mxu0 0.0
        %10474 = vmatpush1.msra.mxu0 0.0
        %10475 = vmatprep.subr.mxu0 0.0
        %10476 = vmatpush1.msra.mxu0 0.0
        %10477 = vmatprep.subr.mxu0 0.0
        %10478 = vmatpush1.msra.mxu0 0.0
        %10479 = vmatprep.subr.mxu0 0.0
        %10480 = vmatpush1.msra.mxu0 0.0
        %10481 = vmatprep.subr.mxu0 0.0
        %10482 = vmatpush1.msra.mxu0 0.0
        %10483 = vmatprep.subr.mxu0 0.0
        %10484 = vmatpush1.msra.mxu0 0.0
        %10485 = vmatprep.mubr.f32.mxu0 0.0
        %10486 = vmatmul.mubr.f32.gmra.mrb[0].mxu0 %v10419
        %v10487 = vpop.f32.mrb[0].mxu0
        %v10488 = vadd.f32 0.0, %v10487
        %v10489 = vpop.f32.mrb[0].mxu0
        %v10490 = vadd.f32 0.0, %v10489
        %10491 = vdwg.mxu0
        %10492 = vmatprep.subr.mxu0 %v10403
        %10493 = vmatpush1.msra.mxu0 %v10402
        %10494 = vmatprep.subr.mxu0 0.0
        %10495 = vmatpush1.msra.mxu0 0.0
        %10496 = vmatprep.subr.mxu0 0.0
        %10497 = vmatpush1.msra.mxu0 0.0
        %10498 = vmatprep.subr.mxu0 0.0
        %10499 = vmatpush1.msra.mxu0 0.0
        %10500 = vmatprep.subr.mxu0 0.0
        %10501 = vmatpush1.msra.mxu0 0.0
        %10502 = vmatprep.subr.mxu0 0.0
        %10503 = vmatpush1.msra.mxu0 0.0
        %10504 = vmatprep.subr.mxu0 0.0
        %10505 = vmatpush1.msra.mxu0 0.0
        %10506 = vmatprep.subr.mxu0 0.0
        %10507 = vmatpush1.msra.mxu0 0.0
        %10508 = vmatprep.subr.mxu0 0.0
        %10509 = vmatpush1.msra.mxu0 0.0
        %10510 = vmatprep.subr.mxu0 0.0
        %10511 = vmatpush1.msra.mxu0 0.0
        %10512 = vmatprep.subr.mxu0 0.0
        %10513 = vmatpush1.msra.mxu0 0.0
        %10514 = vmatprep.subr.mxu0 0.0
        %10515 = vmatpush1.msra.mxu0 0.0
        %10516 = vmatprep.subr.mxu0 0.0
        %10517 = vmatpush1.msra.mxu0 0.0
        %10518 = vmatprep.subr.mxu0 0.0
        %10519 = vmatpush1.msra.mxu0 0.0
        %10520 = vmatprep.subr.mxu0 0.0
        %10521 = vmatpush1.msra.mxu0 0.0
        %10522 = vmatprep.subr.mxu0 0.0
        %10523 = vmatpush1.msra.mxu0 0.0
        %10524 = vmatprep.subr.mxu0 0.0
        %10525 = vmatpush1.msra.mxu0 0.0
        %10526 = vmatprep.subr.mxu0 0.0
        %10527 = vmatpush1.msra.mxu0 0.0
        %10528 = vmatprep.subr.mxu0 0.0
        %10529 = vmatpush1.msra.mxu0 0.0
        %10530 = vmatprep.subr.mxu0 0.0
        %10531 = vmatpush1.msra.mxu0 0.0
        %10532 = vmatprep.subr.mxu0 0.0
        %10533 = vmatpush1.msra.mxu0 0.0
        %10534 = vmatprep.subr.mxu0 0.0
        %10535 = vmatpush1.msra.mxu0 0.0
        %10536 = vmatprep.subr.mxu0 0.0
        %10537 = vmatpush1.msra.mxu0 0.0
        %10538 = vmatprep.subr.mxu0 0.0
        %10539 = vmatpush1.msra.mxu0 0.0
        %10540 = vmatprep.subr.mxu0 0.0
        %10541 = vmatpush1.msra.mxu0 0.0
        %10542 = vmatprep.subr.mxu0 0.0
        %10543 = vmatpush1.msra.mxu0 0.0
        %10544 = vmatprep.subr.mxu0 0.0
        %10545 = vmatpush1.msra.mxu0 0.0
        %10546 = vmatprep.subr.mxu0 0.0
        %10547 = vmatpush1.msra.mxu0 0.0
        %10548 = vmatprep.subr.mxu0 0.0
        %10549 = vmatpush1.msra.mxu0 0.0
        %10550 = vmatprep.subr.mxu0 0.0
        %10551 = vmatpush1.msra.mxu0 0.0
        %10552 = vmatprep.subr.mxu0 0.0
        %10553 = vmatpush1.msra.mxu0 0.0
        %10554 = vmatprep.subr.mxu0 0.0
        %10555 = vmatpush1.msra.mxu0 0.0
        %10556 = vmatprep.mubr.f32.mxu0 0.0
        %10557 = vmatmul.mubr.f32.gmra.mrb[0].mxu0 %v10419
        %v10558 = vpop.f32.mrb[0].mxu0
        %v10559 = vadd.f32 0.0, %v10558
        %v10560 = vpop.f32.mrb[0].mxu0
        %v10561 = vadd.f32 0.0, %v10560
        %10562 = vdwg.mxu0
        %10563 = vmatprep.subr.mxu0 %v10405
        %10564 = vmatpush1.msra.mxu0 %v10404
        %10565 = vmatprep.subr.mxu0 0.0
        %10566 = vmatpush1.msra.mxu0 0.0
        %10567 = vmatprep.subr.mxu0 0.0
        %10568 = vmatpush1.msra.mxu0 0.0
        %10569 = vmatprep.subr.mxu0 0.0
        %10570 = vmatpush1.msra.mxu0 0.0
        %10571 = vmatprep.subr.mxu0 0.0
        %10572 = vmatpush1.msra.mxu0 0.0
        %10573 = vmatprep.subr.mxu0 0.0
        %10574 = vmatpush1.msra.mxu0 0.0
        %10575 = vmatprep.subr.mxu0 0.0
        %10576 = vmatpush1.msra.mxu0 0.0
        %10577 = vmatprep.subr.mxu0 0.0
        %10578 = vmatpush1.msra.mxu0 0.0
        %10579 = vmatprep.subr.mxu0 0.0
        %10580 = vmatpush1.msra.mxu0 0.0
        %10581 = vmatprep.subr.mxu0 0.0
        %10582 = vmatpush1.msra.mxu0 0.0
        %10583 = vmatprep.subr.mxu0 0.0
        %10584 = vmatpush1.msra.mxu0 0.0
        %10585 = vmatprep.subr.mxu0 0.0
        %10586 = vmatpush1.msra.mxu0 0.0
        %10587 = vmatprep.subr.mxu0 0.0
        %10588 = vmatpush1.msra.mxu0 0.0
        %10589 = vmatprep.subr.mxu0 0.0
        %10590 = vmatpush1.msra.mxu0 0.0
        %10591 = vmatprep.subr.mxu0 0.0
        %10592 = vmatpush1.msra.mxu0 0.0
        %10593 = vmatprep.subr.mxu0 0.0
        %10594 = vmatpush1.msra.mxu0 0.0
        %10595 = vmatprep.subr.mxu0 0.0
        %10596 = vmatpush1.msra.mxu0 0.0
        %10597 = vmatprep.subr.mxu0 0.0
        %10598 = vmatpush1.msra.mxu0 0.0
        %10599 = vmatprep.subr.mxu0 0.0
        %10600 = vmatpush1.msra.mxu0 0.0
        %10601 = vmatprep.subr.mxu0 0.0
        %10602 = vmatpush1.msra.mxu0 0.0
        %10603 = vmatprep.subr.mxu0 0.0
        %10604 = vmatpush1.msra.mxu0 0.0
        %10605 = vmatprep.subr.mxu0 0.0
        %10606 = vmatpush1.msra.mxu0 0.0
        %10607 = vmatprep.subr.mxu0 0.0
        %10608 = vmatpush1.msra.mxu0 0.0
        %10609 = vmatprep.subr.mxu0 0.0
        %10610 = vmatpush1.msra.mxu0 0.0
        %10611 = vmatprep.subr.mxu0 0.0
        %10612 = vmatpush1.msra.mxu0 0.0
        %10613 = vmatprep.subr.mxu0 0.0
        %10614 = vmatpush1.msra.mxu0 0.0
        %10615 = vmatprep.subr.mxu0 0.0
        %10616 = vmatpush1.msra.mxu0 0.0
        %10617 = vmatprep.subr.mxu0 0.0
        %10618 = vmatpush1.msra.mxu0 0.0
        %10619 = vmatprep.subr.mxu0 0.0
        %10620 = vmatpush1.msra.mxu0 0.0
        %10621 = vmatprep.subr.mxu0 0.0
        %10622 = vmatpush1.msra.mxu0 0.0
        %10623 = vmatprep.subr.mxu0 0.0
        %10624 = vmatpush1.msra.mxu0 0.0
        %10625 = vmatprep.subr.mxu0 0.0
        %10626 = vmatpush1.msra.mxu0 0.0
        %10627 = vmatprep.mubr.f32.mxu0 0.0
        %10628 = vmatmul.mubr.f32.gmra.mrb[0].mxu0 %v10419
        %v10629 = vpop.f32.mrb[0].mxu0
        %v10630 = vadd.f32 0.0, %v10629
        %v10631 = vpop.f32.mrb[0].mxu0
        %v10632 = vadd.f32 0.0, %v10631
        %10633 = vdwg.mxu0
        %10634 = vmatprep.subr.mxu0 %v10407
        %10635 = vmatpush1.msra.mxu0 %v10406
        %10636 = vmatprep.subr.mxu0 0.0
        %10637 = vmatpush1.msra.mxu0 0.0
        %10638 = vmatprep.subr.mxu0 0.0
        %10639 = vmatpush1.msra.mxu0 0.0
        %10640 = vmatprep.subr.mxu0 0.0
        %10641 = vmatpush1.msra.mxu0 0.0
        %10642 = vmatprep.subr.mxu0 0.0
        %10643 = vmatpush1.msra.mxu0 0.0
        %10644 = vmatprep.subr.mxu0 0.0
        %10645 = vmatpush1.msra.mxu0 0.0
        %10646 = vmatprep.subr.mxu0 0.0
        %10647 = vmatpush1.msra.mxu0 0.0
        %10648 = vmatprep.subr.mxu0 0.0
        %10649 = vmatpush1.msra.mxu0 0.0
        %10650 = vmatprep.subr.mxu0 0.0
        %10651 = vmatpush1.msra.mxu0 0.0
        %10652 = vmatprep.subr.mxu0 0.0
        %10653 = vmatpush1.msra.mxu0 0.0
        %10654 = vmatprep.subr.mxu0 0.0
        %10655 = vmatpush1.msra.mxu0 0.0
        %10656 = vmatprep.subr.mxu0 0.0
        %10657 = vmatpush1.msra.mxu0 0.0
        %10658 = vmatprep.subr.mxu0 0.0
        %10659 = vmatpush1.msra.mxu0 0.0
        %10660 = vmatprep.subr.mxu0 0.0
        %10661 = vmatpush1.msra.mxu0 0.0
        %10662 = vmatprep.subr.mxu0 0.0
        %10663 = vmatpush1.msra.mxu0 0.0
        %10664 = vmatprep.subr.mxu0 0.0
        %10665 = vmatpush1.msra.mxu0 0.0
        %10666 = vmatprep.subr.mxu0 0.0
        %10667 = vmatpush1.msra.mxu0 0.0
        %10668 = vmatprep.subr.mxu0 0.0
        %10669 = vmatpush1.msra.mxu0 0.0
        %10670 = vmatprep.subr.mxu0 0.0
        %10671 = vmatpush1.msra.mxu0 0.0
        %10672 = vmatprep.subr.mxu0 0.0
        %10673 = vmatpush1.msra.mxu0 0.0
        %10674 = vmatprep.subr.mxu0 0.0
        %10675 = vmatpush1.msra.mxu0 0.0
        %10676 = vmatprep.subr.mxu0 0.0
        %10677 = vmatpush1.msra.mxu0 0.0
        %10678 = vmatprep.subr.mxu0 0.0
        %10679 = vmatpush1.msra.mxu0 0.0
        %10680 = vmatprep.subr.mxu0 0.0
        %10681 = vmatpush1.msra.mxu0 0.0
        %10682 = vmatprep.subr.mxu0 0.0
        %10683 = vmatpush1.msra.mxu0 0.0
        %10684 = vmatprep.subr.mxu0 0.0
        %10685 = vmatpush1.msra.mxu0 0.0
        %10686 = vmatprep.subr.mxu0 0.0
        %10687 = vmatpush1.msra.mxu0 0.0
        %10688 = vmatprep.subr.mxu0 0.0
        %10689 = vmatpush1.msra.mxu0 0.0
        %10690 = vmatprep.subr.mxu0 0.0
        %10691 = vmatpush1.msra.mxu0 0.0
        %10692 = vmatprep.subr.mxu0 0.0
        %10693 = vmatpush1.msra.mxu0 0.0
        %10694 = vmatprep.subr.mxu0 0.0
        %10695 = vmatpush1.msra.mxu0 0.0
        %10696 = vmatprep.subr.mxu0 0.0
        %10697 = vmatpush1.msra.mxu0 0.0
        %10698 = vmatprep.mubr.f32.mxu0 0.0
        %10699 = vmatmul.mubr.f32.gmra.mrb[0].mxu0 %v10419
        %v10700 = vpop.f32.mrb[0].mxu0
        %v10701 = vadd.f32 0.0, %v10700
        %v10702 = vpop.f32.mrb[0].mxu0
        %v10703 = vadd.f32 0.0, %v10702
        %10704 = vdwg.mxu0
        %10705 = vmatprep.subr.mxu0 0.0
        %10706 = vmatpush1.msra.mxu0 %v10408
        %10707 = vmatprep.subr.mxu0 0.0
        %10708 = vmatpush1.msra.mxu0 0.0
        %10709 = vmatprep.subr.mxu0 0.0
        %10710 = vmatpush1.msra.mxu0 0.0
        %10711 = vmatprep.subr.mxu0 0.0
        %10712 = vmatpush1.msra.mxu0 0.0
        %10713 = vmatprep.subr.mxu0 0.0
        %10714 = vmatpush1.msra.mxu0 0.0
        %10715 = vmatprep.subr.mxu0 0.0
        %10716 = vmatpush1.msra.mxu0 0.0
        %10717 = vmatprep.subr.mxu0 0.0
        %10718 = vmatpush1.msra.mxu0 0.0
        %10719 = vmatprep.subr.mxu0 0.0
        %10720 = vmatpush1.msra.mxu0 0.0
        %10721 = vmatprep.subr.mxu0 0.0
        %10722 = vmatpush1.msra.mxu0 0.0
        %10723 = vmatprep.subr.mxu0 0.0
        %10724 = vmatpush1.msra.mxu0 0.0
        %10725 = vmatprep.subr.mxu0 0.0
        %10726 = vmatpush1.msra.mxu0 0.0
        %10727 = vmatprep.subr.mxu0 0.0
        %10728 = vmatpush1.msra.mxu0 0.0
        %10729 = vmatprep.subr.mxu0 0.0
        %10730 = vmatpush1.msra.mxu0 0.0
        %10731 = vmatprep.subr.mxu0 0.0
        %10732 = vmatpush1.msra.mxu0 0.0
        %10733 = vmatprep.subr.mxu0 0.0
        %10734 = vmatpush1.msra.mxu0 0.0
        %10735 = vmatprep.subr.mxu0 0.0
        %10736 = vmatpush1.msra.mxu0 0.0
        %10737 = vmatprep.subr.mxu0 0.0
        %10738 = vmatpush1.msra.mxu0 0.0
        %10739 = vmatprep.subr.mxu0 0.0
        %10740 = vmatpush1.msra.mxu0 0.0
        %10741 = vmatprep.subr.mxu0 0.0
        %10742 = vmatpush1.msra.mxu0 0.0
        %10743 = vmatprep.subr.mxu0 0.0
        %10744 = vmatpush1.msra.mxu0 0.0
        %10745 = vmatprep.subr.mxu0 0.0
        %10746 = vmatpush1.msra.mxu0 0.0
        %10747 = vmatprep.subr.mxu0 0.0
        %10748 = vmatpush1.msra.mxu0 0.0
        %10749 = vmatprep.subr.mxu0 0.0
        %10750 = vmatpush1.msra.mxu0 0.0
        %10751 = vmatprep.subr.mxu0 0.0
        %10752 = vmatpush1.msra.mxu0 0.0
        %10753 = vmatprep.subr.mxu0 0.0
        %10754 = vmatpush1.msra.mxu0 0.0
        %10755 = vmatprep.subr.mxu0 0.0
        %10756 = vmatpush1.msra.mxu0 0.0
        %10757 = vmatprep.subr.mxu0 0.0
        %10758 = vmatpush1.msra.mxu0 0.0
        %10759 = vmatprep.subr.mxu0 0.0
        %10760 = vmatpush1.msra.mxu0 0.0
        %10761 = vmatprep.subr.mxu0 0.0
        %10762 = vmatpush1.msra.mxu0 0.0
        %10763 = vmatprep.subr.mxu0 0.0
        %10764 = vmatpush1.msra.mxu0 0.0
        %10765 = vmatprep.subr.mxu0 0.0
        %10766 = vmatpush1.msra.mxu0 0.0
        %10767 = vmatprep.subr.mxu0 0.0
        %10768 = vmatpush1.msra.mxu0 0.0
        %10769 = vmatprep.mubr.f32.mxu0 0.0
        %10770 = vmatmul.mubr.f32.gmra.mrb[0].mxu0 %v10419
        %v10771 = vpop.f32.mrb[0].mxu0
        %v10772 = vadd.f32 0.0, %v10771
        %v10773 = vpop.f32.mrb[0].mxu0
        %10774 = vdwg.mxu0
        %v10775 = vadd.f32 %v10368, %v10488
        %v10776 = vadd.f32 %v10369, %v10490
        %v10777 = vadd.f32 %v10370, %v10559
        %v10778 = vadd.f32 %v10371, %v10561
        %v10779 = vadd.f32 %v10372, %v10630
        %v10780 = vadd.f32 %v10373, %v10632
        %v10781 = vadd.f32 %v10374, %v10701
        %v10782 = vadd.f32 %v10375, %v10703
        %v10783 = vadd.f32 %v10376, %v10772
        %s10784 = scalar_lea.vmem %s2, 192
        %v10785 = vld [vmem:[%s10784] sm:$0xff]
        %10786 = vrot.lane.b32.xlu0 %v9138, 108
        %v10787 = vpop.permute.xlu0 %10786
        %10788 = vrot.lane.b32.xlu0 %v9139, 108
        %v10789 = vpop.permute.xlu0 %10788
        %10790 = vrot.lane.b32.xlu0 %v9140, 108
        %v10791 = vpop.permute.xlu0 %10790
        %10792 = vrot.lane.b32.xlu0 %v9141, 108
        %v10793 = vpop.permute.xlu0 %10792
        %10794 = vrot.lane.b32.xlu0 %v9142, 108
        %v10795 = vpop.permute.xlu0 %10794
        %10796 = vrot.lane.b32.xlu0 %v9143, 108
        %v10797 = vpop.permute.xlu0 %10796
        %10798 = vrot.lane.b32.xlu0 %v9144, 108
        %v10799 = vpop.permute.xlu0 %10798
        %10800 = vrot.lane.b32.xlu0 %v9145, 108
        %v10801 = vpop.permute.xlu0 %10800
        %10802 = vrot.lane.b32.xlu0 %v9146, 108
        %v10803 = vpop.permute.xlu0 %10802
        %10804 = vrot.lane.b32.xlu0 %v9147, 108
        %v10805 = vpop.permute.xlu0 %10804
        %vm10806 = vcmask 883712
        %v10807 = vsel %vm10806, %v10787, %v10789
        %v10808 = vsel %vm10806, %v10789, %v10791
        %v10809 = vsel %vm10806, %v10791, %v10793
        %v10810 = vsel %vm10806, %v10793, %v10795
        %v10811 = vsel %vm10806, %v10795, %v10797
        %v10812 = vsel %vm10806, %v10797, %v10799
        %v10813 = vsel %vm10806, %v10799, %v10801
        %v10814 = vsel %vm10806, %v10801, %v10803
        %v10815 = vsel %vm10806, %v10803, %v10805
        %v10826 = vsel %vm1016, %v10785, 0
        %10828 = vmatprep.subr.mxu0 %v10808
        %10829 = vmatpush1.msra.mxu0 %v10807
        %10830 = vmatprep.subr.mxu0 0.0
        %10831 = vmatpush1.msra.mxu0 0.0
        %10832 = vmatprep.subr.mxu0 0.0
        %10833 = vmatpush1.msra.mxu0 0.0
        %10834 = vmatprep.subr.mxu0 0.0
        %10835 = vmatpush1.msra.mxu0 0.0
        %10836 = vmatprep.subr.mxu0 0.0
        %10837 = vmatpush1.msra.mxu0 0.0
        %10838 = vmatprep.subr.mxu0 0.0
        %10839 = vmatpush1.msra.mxu0 0.0
        %10840 = vmatprep.subr.mxu0 0.0
        %10841 = vmatpush1.msra.mxu0 0.0
        %10842 = vmatprep.subr.mxu0 0.0
        %10843 = vmatpush1.msra.mxu0 0.0
        %10844 = vmatprep.subr.mxu0 0.0
        %10845 = vmatpush1.msra.mxu0 0.0
        %10846 = vmatprep.subr.mxu0 0.0
        %10847 = vmatpush1.msra.mxu0 0.0
        %10848 = vmatprep.subr.mxu0 0.0
        %10849 = vmatpush1.msra.mxu0 0.0
        %10850 = vmatprep.subr.mxu0 0.0
        %10851 = vmatpush1.msra.mxu0 0.0
        %10852 = vmatprep.subr.mxu0 0.0
        %10853 = vmatpush1.msra.mxu0 0.0
        %10854 = vmatprep.subr.mxu0 0.0
        %10855 = vmatpush1.msra.mxu0 0.0
        %10856 = vmatprep.subr.mxu0 0.0
        %10857 = vmatpush1.msra.mxu0 0.0
        %10858 = vmatprep.subr.mxu0 0.0
        %10859 = vmatpush1.msra.mxu0 0.0
        %10860 = vmatprep.subr.mxu0 0.0
        %10861 = vmatpush1.msra.mxu0 0.0
        %10862 = vmatprep.subr.mxu0 0.0
        %10863 = vmatpush1.msra.mxu0 0.0
        %10864 = vmatprep.subr.mxu0 0.0
        %10865 = vmatpush1.msra.mxu0 0.0
        %10866 = vmatprep.subr.mxu0 0.0
        %10867 = vmatpush1.msra.mxu0 0.0
        %10868 = vmatprep.subr.mxu0 0.0
        %10869 = vmatpush1.msra.mxu0 0.0
        %10870 = vmatprep.subr.mxu0 0.0
        %10871 = vmatpush1.msra.mxu0 0.0
        %10872 = vmatprep.subr.mxu0 0.0
        %10873 = vmatpush1.msra.mxu0 0.0
        %10874 = vmatprep.subr.mxu0 0.0
        %10875 = vmatpush1.msra.mxu0 0.0
        %10876 = vmatprep.subr.mxu0 0.0
        %10877 = vmatpush1.msra.mxu0 0.0
        %10878 = vmatprep.subr.mxu0 0.0
        %10879 = vmatpush1.msra.mxu0 0.0
        %10880 = vmatprep.subr.mxu0 0.0
        %10881 = vmatpush1.msra.mxu0 0.0
        %10882 = vmatprep.subr.mxu0 0.0
        %10883 = vmatpush1.msra.mxu0 0.0
        %10884 = vmatprep.subr.mxu0 0.0
        %10885 = vmatpush1.msra.mxu0 0.0
        %10886 = vmatprep.subr.mxu0 0.0
        %10887 = vmatpush1.msra.mxu0 0.0
        %10888 = vmatprep.subr.mxu0 0.0
        %10889 = vmatpush1.msra.mxu0 0.0
        %10890 = vmatprep.subr.mxu0 0.0
        %10891 = vmatpush1.msra.mxu0 0.0
        %10892 = vmatprep.mubr.f32.mxu0 0.0
        %10893 = vmatmul.mubr.f32.gmra.mrb[0].mxu0 %v10826
        %v10894 = vpop.f32.mrb[0].mxu0
        %v10895 = vadd.f32 0.0, %v10894
        %v10896 = vpop.f32.mrb[0].mxu0
        %v10897 = vadd.f32 0.0, %v10896
        %10898 = vdwg.mxu0
        %10899 = vmatprep.subr.mxu0 %v10810
        %10900 = vmatpush1.msra.mxu0 %v10809
        %10901 = vmatprep.subr.mxu0 0.0
        %10902 = vmatpush1.msra.mxu0 0.0
        %10903 = vmatprep.subr.mxu0 0.0
        %10904 = vmatpush1.msra.mxu0 0.0
        %10905 = vmatprep.subr.mxu0 0.0
        %10906 = vmatpush1.msra.mxu0 0.0
        %10907 = vmatprep.subr.mxu0 0.0
        %10908 = vmatpush1.msra.mxu0 0.0
        %10909 = vmatprep.subr.mxu0 0.0
        %10910 = vmatpush1.msra.mxu0 0.0
        %10911 = vmatprep.subr.mxu0 0.0
        %10912 = vmatpush1.msra.mxu0 0.0
        %10913 = vmatprep.subr.mxu0 0.0
        %10914 = vmatpush1.msra.mxu0 0.0
        %10915 = vmatprep.subr.mxu0 0.0
        %10916 = vmatpush1.msra.mxu0 0.0
        %10917 = vmatprep.subr.mxu0 0.0
        %10918 = vmatpush1.msra.mxu0 0.0
        %10919 = vmatprep.subr.mxu0 0.0
        %10920 = vmatpush1.msra.mxu0 0.0
        %10921 = vmatprep.subr.mxu0 0.0
        %10922 = vmatpush1.msra.mxu0 0.0
        %10923 = vmatprep.subr.mxu0 0.0
        %10924 = vmatpush1.msra.mxu0 0.0
        %10925 = vmatprep.subr.mxu0 0.0
        %10926 = vmatpush1.msra.mxu0 0.0
        %10927 = vmatprep.subr.mxu0 0.0
        %10928 = vmatpush1.msra.mxu0 0.0
        %10929 = vmatprep.subr.mxu0 0.0
        %10930 = vmatpush1.msra.mxu0 0.0
        %10931 = vmatprep.subr.mxu0 0.0
        %10932 = vmatpush1.msra.mxu0 0.0
        %10933 = vmatprep.subr.mxu0 0.0
        %10934 = vmatpush1.msra.mxu0 0.0
        %10935 = vmatprep.subr.mxu0 0.0
        %10936 = vmatpush1.msra.mxu0 0.0
        %10937 = vmatprep.subr.mxu0 0.0
        %10938 = vmatpush1.msra.mxu0 0.0
        %10939 = vmatprep.subr.mxu0 0.0
        %10940 = vmatpush1.msra.mxu0 0.0
        %10941 = vmatprep.subr.mxu0 0.0
        %10942 = vmatpush1.msra.mxu0 0.0
        %10943 = vmatprep.subr.mxu0 0.0
        %10944 = vmatpush1.msra.mxu0 0.0
        %10945 = vmatprep.subr.mxu0 0.0
        %10946 = vmatpush1.msra.mxu0 0.0
        %10947 = vmatprep.subr.mxu0 0.0
        %10948 = vmatpush1.msra.mxu0 0.0
        %10949 = vmatprep.subr.mxu0 0.0
        %10950 = vmatpush1.msra.mxu0 0.0
        %10951 = vmatprep.subr.mxu0 0.0
        %10952 = vmatpush1.msra.mxu0 0.0
        %10953 = vmatprep.subr.mxu0 0.0
        %10954 = vmatpush1.msra.mxu0 0.0
        %10955 = vmatprep.subr.mxu0 0.0
        %10956 = vmatpush1.msra.mxu0 0.0
        %10957 = vmatprep.subr.mxu0 0.0
        %10958 = vmatpush1.msra.mxu0 0.0
        %10959 = vmatprep.subr.mxu0 0.0
        %10960 = vmatpush1.msra.mxu0 0.0
        %10961 = vmatprep.subr.mxu0 0.0
        %10962 = vmatpush1.msra.mxu0 0.0
        %10963 = vmatprep.mubr.f32.mxu0 0.0
        %10964 = vmatmul.mubr.f32.gmra.mrb[0].mxu0 %v10826
        %v10965 = vpop.f32.mrb[0].mxu0
        %v10966 = vadd.f32 0.0, %v10965
        %v10967 = vpop.f32.mrb[0].mxu0
        %v10968 = vadd.f32 0.0, %v10967
        %10969 = vdwg.mxu0
        %10970 = vmatprep.subr.mxu0 %v10812
        %10971 = vmatpush1.msra.mxu0 %v10811
        %10972 = vmatprep.subr.mxu0 0.0
        %10973 = vmatpush1.msra.mxu0 0.0
        %10974 = vmatprep.subr.mxu0 0.0
        %10975 = vmatpush1.msra.mxu0 0.0
        %10976 = vmatprep.subr.mxu0 0.0
        %10977 = vmatpush1.msra.mxu0 0.0
        %10978 = vmatprep.subr.mxu0 0.0
        %10979 = vmatpush1.msra.mxu0 0.0
        %10980 = vmatprep.subr.mxu0 0.0
        %10981 = vmatpush1.msra.mxu0 0.0
        %10982 = vmatprep.subr.mxu0 0.0
        %10983 = vmatpush1.msra.mxu0 0.0
        %10984 = vmatprep.subr.mxu0 0.0
        %10985 = vmatpush1.msra.mxu0 0.0
        %10986 = vmatprep.subr.mxu0 0.0
        %10987 = vmatpush1.msra.mxu0 0.0
        %10988 = vmatprep.subr.mxu0 0.0
        %10989 = vmatpush1.msra.mxu0 0.0
        %10990 = vmatprep.subr.mxu0 0.0
        %10991 = vmatpush1.msra.mxu0 0.0
        %10992 = vmatprep.subr.mxu0 0.0
        %10993 = vmatpush1.msra.mxu0 0.0
        %10994 = vmatprep.subr.mxu0 0.0
        %10995 = vmatpush1.msra.mxu0 0.0
        %10996 = vmatprep.subr.mxu0 0.0
        %10997 = vmatpush1.msra.mxu0 0.0
        %10998 = vmatprep.subr.mxu0 0.0
        %10999 = vmatpush1.msra.mxu0 0.0
        %11000 = vmatprep.subr.mxu0 0.0
        %11001 = vmatpush1.msra.mxu0 0.0
        %11002 = vmatprep.subr.mxu0 0.0
        %11003 = vmatpush1.msra.mxu0 0.0
        %11004 = vmatprep.subr.mxu0 0.0
        %11005 = vmatpush1.msra.mxu0 0.0
        %11006 = vmatprep.subr.mxu0 0.0
        %11007 = vmatpush1.msra.mxu0 0.0
        %11008 = vmatprep.subr.mxu0 0.0
        %11009 = vmatpush1.msra.mxu0 0.0
        %11010 = vmatprep.subr.mxu0 0.0
        %11011 = vmatpush1.msra.mxu0 0.0
        %11012 = vmatprep.subr.mxu0 0.0
        %11013 = vmatpush1.msra.mxu0 0.0
        %11014 = vmatprep.subr.mxu0 0.0
        %11015 = vmatpush1.msra.mxu0 0.0
        %11016 = vmatprep.subr.mxu0 0.0
        %11017 = vmatpush1.msra.mxu0 0.0
        %11018 = vmatprep.subr.mxu0 0.0
        %11019 = vmatpush1.msra.mxu0 0.0
        %11020 = vmatprep.subr.mxu0 0.0
        %11021 = vmatpush1.msra.mxu0 0.0
        %11022 = vmatprep.subr.mxu0 0.0
        %11023 = vmatpush1.msra.mxu0 0.0
        %11024 = vmatprep.subr.mxu0 0.0
        %11025 = vmatpush1.msra.mxu0 0.0
        %11026 = vmatprep.subr.mxu0 0.0
        %11027 = vmatpush1.msra.mxu0 0.0
        %11028 = vmatprep.subr.mxu0 0.0
        %11029 = vmatpush1.msra.mxu0 0.0
        %11030 = vmatprep.subr.mxu0 0.0
        %11031 = vmatpush1.msra.mxu0 0.0
        %11032 = vmatprep.subr.mxu0 0.0
        %11033 = vmatpush1.msra.mxu0 0.0
        %11034 = vmatprep.mubr.f32.mxu0 0.0
        %11035 = vmatmul.mubr.f32.gmra.mrb[0].mxu0 %v10826
        %v11036 = vpop.f32.mrb[0].mxu0
        %v11037 = vadd.f32 0.0, %v11036
        %v11038 = vpop.f32.mrb[0].mxu0
        %v11039 = vadd.f32 0.0, %v11038
        %11040 = vdwg.mxu0
        %11041 = vmatprep.subr.mxu0 %v10814
        %11042 = vmatpush1.msra.mxu0 %v10813
        %11043 = vmatprep.subr.mxu0 0.0
        %11044 = vmatpush1.msra.mxu0 0.0
        %11045 = vmatprep.subr.mxu0 0.0
        %11046 = vmatpush1.msra.mxu0 0.0
        %11047 = vmatprep.subr.mxu0 0.0
        %11048 = vmatpush1.msra.mxu0 0.0
        %11049 = vmatprep.subr.mxu0 0.0
        %11050 = vmatpush1.msra.mxu0 0.0
        %11051 = vmatprep.subr.mxu0 0.0
        %11052 = vmatpush1.msra.mxu0 0.0
        %11053 = vmatprep.subr.mxu0 0.0
        %11054 = vmatpush1.msra.mxu0 0.0
        %11055 = vmatprep.subr.mxu0 0.0
        %11056 = vmatpush1.msra.mxu0 0.0
        %11057 = vmatprep.subr.mxu0 0.0
        %11058 = vmatpush1.msra.mxu0 0.0
        %11059 = vmatprep.subr.mxu0 0.0
        %11060 = vmatpush1.msra.mxu0 0.0
        %11061 = vmatprep.subr.mxu0 0.0
        %11062 = vmatpush1.msra.mxu0 0.0
        %11063 = vmatprep.subr.mxu0 0.0
        %11064 = vmatpush1.msra.mxu0 0.0
        %11065 = vmatprep.subr.mxu0 0.0
        %11066 = vmatpush1.msra.mxu0 0.0
        %11067 = vmatprep.subr.mxu0 0.0
        %11068 = vmatpush1.msra.mxu0 0.0
        %11069 = vmatprep.subr.mxu0 0.0
        %11070 = vmatpush1.msra.mxu0 0.0
        %11071 = vmatprep.subr.mxu0 0.0
        %11072 = vmatpush1.msra.mxu0 0.0
        %11073 = vmatprep.subr.mxu0 0.0
        %11074 = vmatpush1.msra.mxu0 0.0
        %11075 = vmatprep.subr.mxu0 0.0
        %11076 = vmatpush1.msra.mxu0 0.0
        %11077 = vmatprep.subr.mxu0 0.0
        %11078 = vmatpush1.msra.mxu0 0.0
        %11079 = vmatprep.subr.mxu0 0.0
        %11080 = vmatpush1.msra.mxu0 0.0
        %11081 = vmatprep.subr.mxu0 0.0
        %11082 = vmatpush1.msra.mxu0 0.0
        %11083 = vmatprep.subr.mxu0 0.0
        %11084 = vmatpush1.msra.mxu0 0.0
        %11085 = vmatprep.subr.mxu0 0.0
        %11086 = vmatpush1.msra.mxu0 0.0
        %11087 = vmatprep.subr.mxu0 0.0
        %11088 = vmatpush1.msra.mxu0 0.0
        %11089 = vmatprep.subr.mxu0 0.0
        %11090 = vmatpush1.msra.mxu0 0.0
        %11091 = vmatprep.subr.mxu0 0.0
        %11092 = vmatpush1.msra.mxu0 0.0
        %11093 = vmatprep.subr.mxu0 0.0
        %11094 = vmatpush1.msra.mxu0 0.0
        %11095 = vmatprep.subr.mxu0 0.0
        %11096 = vmatpush1.msra.mxu0 0.0
        %11097 = vmatprep.subr.mxu0 0.0
        %11098 = vmatpush1.msra.mxu0 0.0
        %11099 = vmatprep.subr.mxu0 0.0
        %11100 = vmatpush1.msra.mxu0 0.0
        %11101 = vmatprep.subr.mxu0 0.0
        %11102 = vmatpush1.msra.mxu0 0.0
        %11103 = vmatprep.subr.mxu0 0.0
        %11104 = vmatpush1.msra.mxu0 0.0
        %11105 = vmatprep.mubr.f32.mxu0 0.0
        %11106 = vmatmul.mubr.f32.gmra.mrb[0].mxu0 %v10826
        %v11107 = vpop.f32.mrb[0].mxu0
        %v11108 = vadd.f32 0.0, %v11107
        %v11109 = vpop.f32.mrb[0].mxu0
        %v11110 = vadd.f32 0.0, %v11109
        %11111 = vdwg.mxu0
        %11112 = vmatprep.subr.mxu0 0.0
        %11113 = vmatpush1.msra.mxu0 %v10815
        %11114 = vmatprep.subr.mxu0 0.0
        %11115 = vmatpush1.msra.mxu0 0.0
        %11116 = vmatprep.subr.mxu0 0.0
        %11117 = vmatpush1.msra.mxu0 0.0
        %11118 = vmatprep.subr.mxu0 0.0
        %11119 = vmatpush1.msra.mxu0 0.0
        %11120 = vmatprep.subr.mxu0 0.0
        %11121 = vmatpush1.msra.mxu0 0.0
        %11122 = vmatprep.subr.mxu0 0.0
        %11123 = vmatpush1.msra.mxu0 0.0
        %11124 = vmatprep.subr.mxu0 0.0
        %11125 = vmatpush1.msra.mxu0 0.0
        %11126 = vmatprep.subr.mxu0 0.0
        %11127 = vmatpush1.msra.mxu0 0.0
        %11128 = vmatprep.subr.mxu0 0.0
        %11129 = vmatpush1.msra.mxu0 0.0
        %11130 = vmatprep.subr.mxu0 0.0
        %11131 = vmatpush1.msra.mxu0 0.0
        %11132 = vmatprep.subr.mxu0 0.0
        %11133 = vmatpush1.msra.mxu0 0.0
        %11134 = vmatprep.subr.mxu0 0.0
        %11135 = vmatpush1.msra.mxu0 0.0
        %11136 = vmatprep.subr.mxu0 0.0
        %11137 = vmatpush1.msra.mxu0 0.0
        %11138 = vmatprep.subr.mxu0 0.0
        %11139 = vmatpush1.msra.mxu0 0.0
        %11140 = vmatprep.subr.mxu0 0.0
        %11141 = vmatpush1.msra.mxu0 0.0
        %11142 = vmatprep.subr.mxu0 0.0
        %11143 = vmatpush1.msra.mxu0 0.0
        %11144 = vmatprep.subr.mxu0 0.0
        %11145 = vmatpush1.msra.mxu0 0.0
        %11146 = vmatprep.subr.mxu0 0.0
        %11147 = vmatpush1.msra.mxu0 0.0
        %11148 = vmatprep.subr.mxu0 0.0
        %11149 = vmatpush1.msra.mxu0 0.0
        %11150 = vmatprep.subr.mxu0 0.0
        %11151 = vmatpush1.msra.mxu0 0.0
        %11152 = vmatprep.subr.mxu0 0.0
        %11153 = vmatpush1.msra.mxu0 0.0
        %11154 = vmatprep.subr.mxu0 0.0
        %11155 = vmatpush1.msra.mxu0 0.0
        %11156 = vmatprep.subr.mxu0 0.0
        %11157 = vmatpush1.msra.mxu0 0.0
        %11158 = vmatprep.subr.mxu0 0.0
        %11159 = vmatpush1.msra.mxu0 0.0
        %11160 = vmatprep.subr.mxu0 0.0
        %11161 = vmatpush1.msra.mxu0 0.0
        %11162 = vmatprep.subr.mxu0 0.0
        %11163 = vmatpush1.msra.mxu0 0.0
        %11164 = vmatprep.subr.mxu0 0.0
        %11165 = vmatpush1.msra.mxu0 0.0
        %11166 = vmatprep.subr.mxu0 0.0
        %11167 = vmatpush1.msra.mxu0 0.0
        %11168 = vmatprep.subr.mxu0 0.0
        %11169 = vmatpush1.msra.mxu0 0.0
        %11170 = vmatprep.subr.mxu0 0.0
        %11171 = vmatpush1.msra.mxu0 0.0
        %11172 = vmatprep.subr.mxu0 0.0
        %11173 = vmatpush1.msra.mxu0 0.0
        %11174 = vmatprep.subr.mxu0 0.0
        %11175 = vmatpush1.msra.mxu0 0.0
        %11176 = vmatprep.mubr.f32.mxu0 0.0
        %11177 = vmatmul.mubr.f32.gmra.mrb[0].mxu0 %v10826
        %v11178 = vpop.f32.mrb[0].mxu0
        %v11179 = vadd.f32 0.0, %v11178
        %v11180 = vpop.f32.mrb[0].mxu0
        %11181 = vdwg.mxu0
        %v11182 = vadd.f32 %v10775, %v10895
        %v11183 = vadd.f32 %v10776, %v10897
        %v11184 = vadd.f32 %v10777, %v10966
        %v11185 = vadd.f32 %v10778, %v10968
        %v11186 = vadd.f32 %v10779, %v11037
        %v11187 = vadd.f32 %v10780, %v11039
        %v11188 = vadd.f32 %v10781, %v11108
        %v11189 = vadd.f32 %v10782, %v11110
        %v11190 = vadd.f32 %v10783, %v11179
        %v11191 = vmax.f32 %v11182, 0.0
        %v11192 = vmax.f32 %v11183, 0.0
        %v11193 = vmax.f32 %v11184, 0.0
        %v11194 = vmax.f32 %v11185, 0.0
        %v11195 = vmax.f32 %v11186, 0.0
        %v11196 = vmax.f32 %v11187, 0.0
        %v11197 = vmax.f32 %v11188, 0.0
        %v11198 = vmax.f32 %v11189, 0.0
        %v11199 = vmax.f32 %v11190, 0.0
        %11200 = vst [vmem:[%s190] sm:$0xff] %v11191
        %11201 = vst [vmem:[%s190 + $0x8] sm:$0xff] %v11192
        %11202 = vst [vmem:[%s190 + $0x10] sm:$0xff] %v11193
        %11203 = vst [vmem:[%s190 + $0x18] sm:$0xff] %v11194
        %11204 = vst [vmem:[%s190 + $0x20] sm:$0xff] %v11195
        %11205 = vst [vmem:[%s190 + $0x28] sm:$0xff] %v11196
        %11206 = vst [vmem:[%s190 + $0x30] sm:$0xff] %v11197
        %11207 = vst [vmem:[%s190 + $0x38] sm:$0xff] %v11198
        %11208 = vst [vmem:[%s190 + $0x40] sm:$0xff] %v11199
        %s11209 = sand.u32 %s115, 1
        %s11210 = scalar_lea.sflag [#allocation4], %s11209
        %s11211 = sand.u32 %s115, 1
        %s11212 = smul.addr %s11211, 72
        %s11213 = scalar_lea.vmem [#allocation3], %s11212
        // Predicated region
        $region37: #{tpu_custom_call.1} parent=35 // pred_check
          %p11214 = pneg %p125
        $region38: #{tpu_custom_call.1} parent=35 // pred_check_branch
          %11216 = sbr.rel (%p11214) target = $region40
        $region39: #{tpu_custom_call.1} parent=35 // pred_region
          %s11218 = ssub.s32 1152, 1152
          %11219 = vsyncadd %s11210, %s11218
          %s11220 = smul.addr %s18, 9
          %s11221 = smul.addr %s11220, 128
          %s11222 = scalar_lea.hbm %s4, %s11221
          %s11224 = sshll.u32 %s11213, 4
          %s11225 = int_to_ptr.vmem [resolvable:$true] %s11224
          %11227 = dma.vmem_to_hbm [thread:$0]  %s11225, 1152, %s11222, %s11210
        $region40: #{tpu_custom_call.1} parent=35 // pred_fallthru
          _
      $region36: #{tpu_custom_call.1} parent=5 // pred_fallthru
        _
      %p11228 = scmp.le.s32.totalorder 2, %s13
      // Predicated region
      $region41: #{tpu_custom_call.1} parent=5 // pred_check
        %p11229 = pneg %p11228
      $region42: #{tpu_custom_call.1} parent=5 // pred_check_branch
        %11231 = sbr.rel (%p11229) target = $region44
      $region43: #{tpu_custom_call.1} parent=5 // pred_region
        %s11232 = ssub.s32 %s13, 2
        // Predicated region
        $region45: #{tpu_custom_call.1} parent=43 // pred_check
          %p11233 = pneg %p131
        $region46: #{tpu_custom_call.1} parent=43 // pred_check_branch
          %11235 = sbr.rel (%p11233) target = $region48
        $region47: #{tpu_custom_call.1} parent=43 // pred_region
          %s11236 = sand.u32 %s116, 1
          %s11237 = scalar_lea.sflag [#allocation4], %s11236
          %s11238 = sand.u32 %s116, 1
          %s11239 = smul.addr %s11238, 72
          %s11240 = scalar_lea.vmem [#allocation3], %s11239
          %11241 = dma.done %s11237, 1152
        $region48: #{tpu_custom_call.1} parent=43 // pred_fallthru
          _
      $region44: #{tpu_custom_call.1} parent=5 // pred_fallthru
        _
    $region6: #{tpu_custom_call.1} parent=1 // loop_footer
      %s17 = sadd.s32 1, %s13
    $region7: #{tpu_custom_call.1} parent=1 // loop_footer_branch
      %12 = sbr.rel target = $region3
    $region8: #{tpu_custom_call.1} parent=1 // loop_exit
      _
    %11242 = vsyncpa [#allocation4], 1
    %s11243 = scalar_lea.sflag [#allocation4], 1
    %11244 = vsyncpa %s11243, 1

</llo_original>
